<compile_context>
chip_gen: v5e
topology: v5e:2x2
jax: 0.10.0
libtpu: 0.0.40
codegen_flags: <defaults>
</compile_context>

<pallas_src>
import functools

import numpy as np
import jax
import jax.numpy as jnp
from jax import lax
from jax.experimental import pallas as pl
from jax.experimental.pallas import tpu as pltpu

_LANE = 128          # TPU lane width: C_out padded to this -> unmasked output stores
_BN_EPS = 1e-5       # nn.BatchNorm2d default
_LEAK = 0.2          # nn.LeakyReLU(0.2)


# --------------------------------------------------------------------------- #
# Pallas kernel: fused Conv2d(3x3, stride=1, pad=1) + bias + activation        #
# --------------------------------------------------------------------------- #
def _conv3x3_kernel(x_ref, w_ref, b_ref, o_ref, *, act, width, tile):
    """One (batch, spatial-tile) grid step.

    x_ref: (1, 3, (H+2)*W, C_in) bf16 -- kw-shifted, H-padded, (h,w)-flattened image
    w_ref: (9, C_in, C_out_pad)  bf16 -- tap-major weights (tap = kh*3 + kw)
    b_ref: (1, C_out_pad)        f32
    o_ref: (1, tile, C_out_pad)  f32  -- lane-dense output tile (C_out_pad % 128 == 0)
    """
    i = pl.program_id(1)
    c_out_p = o_ref.shape[-1]
    acc = jnp.zeros((tile, c_out_p), jnp.float32)
    for kh in range(3):
        for kw in range(3):
            # Patch rows of tap (kh, kw) for flat output positions
            # [i*tile, i*tile + tile) are the contiguous input rows
            # [i*tile + kh*W, i*tile + kh*W + tile) of the kw-shifted copy.
            start = i * tile + kh * width
            if tile % 8 == 0 and width % 8 == 0:
                start = pl.multiple_of(start, 8)
            lhs = x_ref[0, kw, pl.ds(start, tile), :]            # (tile, C_in) bf16
            acc += jnp.dot(lhs, w_ref[kh * 3 + kw],
                           preferred_element_type=jnp.float32)   # MXU, f32 accumulate
    acc = acc + b_ref[...]
    if act == "leaky":
        acc = jnp.where(acc >= 0.0, acc, _LEAK * acc)
    elif act == "tanh":
        acc = jnp.tanh(acc)
    o_ref[0] = acc.astype(o_ref.dtype)


def _spatial_tile(hw, n):
    """Largest tile of the flattened H*W axis that still yields >= 4 grid steps
    (keeps both v7x TensorCores busy) while amortizing per-step overhead."""
    for t in (2048, 1024, 512, 256, 128):
        if hw % t == 0 and n * (hw // t) >= 4:
            return t
    return hw


def conv3x3_pallas(x_nhwc, weight, bias, act):
    """Conv2d(kernel=3, stride=1, padding=1) + bias + activation, NHWC in/out.

    x_nhwc: (N, H, W, C_in) f32
    weight: (C_out, C_in, 3, 3) f32 (PyTorch layout)
    bias:   (C_out,) f32
    act:    "linear" | "leaky" | "tanh"
    """
    n, h, w, c_in = x_nhwc.shape
    c_out = weight.shape[0]
    c_out_p = pl.cdiv(c_out, _LANE) * _LANE
    hw = h * w
    tile = _spatial_tile(hw, n)
    n_tiles = hw // tile

    # Pad H and W by 1 and build the three width-shifted copies; after flattening
    # (h, w) the kh shift becomes a constant row offset of kh*W, so every tap's
    # patch block is a contiguous 2-D slice inside the kernel (no 9x im2col).
    # Note: for very large H*W the per-image block would need spatial blocking
    # with a halo; at these sizes the whole image comfortably fits VMEM.
    xp = jnp.pad(x_nhwc, ((0, 0), (1, 1), (1, 1), (0, 0))).astype(jnp.bfloat16)
    xs = jnp.stack([xp[:, :, kw:kw + w, :] for kw in range(3)], axis=1)
    xs = xs.reshape(n, 3, (h + 2) * w, c_in)                     # (N, 3, (H+2)*W, C_in)

    # (C_out, C_in, 3, 3) -> (9, C_in, C_out) -> zero-pad C_out to lane-dense 128.
    wt = jnp.transpose(weight, (2, 3, 1, 0)).reshape(9, c_in, c_out)
    wt = jnp.pad(wt, ((0, 0), (0, 0), (0, c_out_p - c_out))).astype(jnp.bfloat16)
    bp = jnp.pad(bias, (0, c_out_p - c_out)).reshape(1, c_out_p).astype(jnp.float32)

    flops = 2 * n * hw * 9 * c_in * c_out_p
    transcendentals = n * hw * c_out_p if act == "tanh" else 0
    bytes_accessed = xs.size * 2 + wt.size * 2 + bp.size * 4 + n * hw * c_out_p * 4

    out = pl.pallas_call(
        functools.partial(_conv3x3_kernel, act=act, width=w, tile=tile),
        out_shape=jax.ShapeDtypeStruct((n, hw, c_out_p), jnp.float32),
        grid=(n, n_tiles),
        in_specs=[
            # Full (flattened) image per batch element: only re-fetched when the
            # batch index changes; spatial tiles reuse the resident block.
            pl.BlockSpec((1, 3, (h + 2) * w, c_in), lambda b, i: (b, 0, 0, 0)),
            # Weights / bias: constant index map -> VMEM-resident across the grid.
            pl.BlockSpec((9, c_in, c_out_p), lambda b, i: (0, 0, 0)),
            pl.BlockSpec((1, c_out_p), lambda b, i: (0, 0)),
        ],
        out_specs=pl.BlockSpec((1, tile, c_out_p), lambda b, i: (b, i, 0)),
        compiler_params=pltpu.CompilerParams(
            dimension_semantics=("parallel", "parallel")),
        cost_estimate=pl.CostEstimate(flops=flops,
                                      transcendentals=transcendentals,
                                      bytes_accessed=bytes_accessed),
    )(xs, wt, bp)

    # Drop the zero-padded channels; reshape back to NHWC (contiguous, free).
    return out[:, :, :c_out].reshape(n, h, w, c_out)


def conv3x3_xla(x_nhwc, weight, bias, act):
    """Reference path: XLA convolution with the same bf16/f32 precision recipe."""
    y = lax.conv_general_dilated(
        x_nhwc.astype(jnp.bfloat16), weight.astype(jnp.bfloat16),
        window_strides=(1, 1), padding=((1, 1), (1, 1)),
        dimension_numbers=("NHWC", "OIHW", "NHWC"),
        preferred_element_type=jnp.float32)
    y = y + bias.reshape(1, 1, 1, -1)
    if act == "leaky":
        y = jnp.where(y >= 0.0, y, _LEAK * y)
    elif act == "tanh":
        y = jnp.tanh(y)
    return y


# --------------------------------------------------------------------------- #
# DetailsNet forward (matches the PyTorch module, including the fact that the  #
# original forward uses block3 twice and never uses block2).                   #
# --------------------------------------------------------------------------- #
def _details_net_forward(params, x_nchw, conv_fn):
    x = jnp.transpose(x_nchw, (0, 2, 3, 1))                      # NCHW -> NHWC (once)

    def cbl(p, x):                                               # Conv + BatchNorm + LeakyReLU
        y = conv_fn(x, p["w"], p["b"], "linear")
        # nn.BatchNorm2d in (default) training mode: batch statistics, biased var.
        mean = jnp.mean(y, axis=(0, 1, 2), keepdims=True)
        var = jnp.mean(jnp.square(y - mean), axis=(0, 1, 2), keepdims=True)
        y = (y - mean) * lax.rsqrt(var + _BN_EPS)
        y = y * p["gamma"].reshape(1, 1, 1, -1) + p["beta"].reshape(1, 1, 1, -1)
        return jnp.where(y >= 0.0, y, _LEAK * y)

    def cl(p, x):                                                # Conv + LeakyReLU (fused)
        return conv_fn(x, p["w"], p["b"], "leaky")

    def residual_block(p, x):
        return cl(p["cl"], cbl(p["cbl"], x))

    x = residual_block(params["block0"], x)
    r1 = x
    x = residual_block(params["block1"], x) + r1                 # x += residual1
    r2 = x
    x = residual_block(params["block3"], x) + r2                 # original uses block3 here
    r3 = x
    x = residual_block(params["block3"], x) + r3
    x = conv_fn(x, params["final"]["w"], params["final"]["b"], "tanh")   # C: Conv + Tanh
    return jnp.transpose(x, (0, 3, 1, 2))                        # back to NCHW


def _init_conv(key, c_in, c_out, with_bn=False):
    """PyTorch nn.Conv2d default init: U(-1/sqrt(fan_in), 1/sqrt(fan_in))."""
    kw_key, kb_key = jax.random.split(key)
    bound = 1.0 / np.sqrt(c_in * 9)
    p = {
        "w": jax.random.uniform(kw_key, (c_out, c_in, 3, 3), jnp.float32, -bound, bound),
        "b": jax.random.uniform(kb_key, (c_out,), jnp.float32, -bound, bound),
    }
    if with_bn:
        p["gamma"] = jnp.ones((c_out,), jnp.float32)
        p["beta"] = jnp.zeros((c_out,), jnp.float32)
    return p


def init_details_net(key, input_channels=32, output_channels=3):
    ks = jax.random.split(key, 9)

    def block(k1, k2, c_in, c_out):
        return {"cbl": _init_conv(k1, c_in, c_out, with_bn=True),
                "cl": _init_conv(k2, c_out, c_out)}

    return {
        "block0": block(ks[0], ks[1], input_channels, 64),
        "block1": block(ks[2], ks[3], 64, 64),
        "block2": block(ks[4], ks[5], 64, 64),   # constructed but unused (as in PyTorch forward)
        "block3": block(ks[6], ks[7], 64, 64),
        "final": _init_conv(ks[8], 64, output_channels),
    }


if __name__ == "__main__":
    N, C_IN, H, W = 2, 32, 16, 16      # DetailsNet default latent channels = 32

    root = jax.random.PRNGKey(0)
    k_params, k_x = jax.random.split(root)
    params = init_details_net(k_params, input_channels=C_IN, output_channels=3)
    x = jax.random.normal(k_x, (N, C_IN, H, W), dtype=jnp.float32)

    pallas_forward = jax.jit(
        functools.partial(_details_net_forward, conv_fn=conv3x3_pallas))
    xla_forward = jax.jit(
        functools.partial(_details_net_forward, conv_fn=conv3x3_xla))

    out = jax.block_until_ready(pallas_forward(params, x))
    assert out.shape == (N, 3, H, W), out.shape

    ref = jax.block_until_ready(xla_forward(params, x))
    np.testing.assert_allclose(np.asarray(out), np.asarray(ref), rtol=2e-2, atol=2e-2)

    print("KERNEL_OK")
</pallas_src>

<mosaic_0001>
module attributes {stable_mosaic.version = 11 : i64} {
  func.func @_conv3x3_kernel(%arg0: i32, %arg1: i32, %arg2: memref<1x3x288x32xbf16, #tpu.memory_space<vmem>>, %arg3: memref<9x32x128xbf16, #tpu.memory_space<vmem>>, %arg4: memref<1x128xf32, #tpu.memory_space<vmem>>, %arg5: memref<1x128x128xf32, #tpu.memory_space<vmem>>) attributes {dimension_semantics = [#tpu.dimension_semantics<parallel>, #tpu.dimension_semantics<parallel>], iteration_bounds = array<i64: 2, 2>, scalar_prefetch = 0 : i64, scratch_operands = 0 : i64, tpu.core_type = #tpu.core_type<tc>, window_params = [{transform_indices = @transform_0, window_bounds = array<i64: 1, 3, 288, 32>}, {pipeline_mode = #tpu.pipeline_mode<synchronous>, transform_indices = @transform_1, window_bounds = array<i64: 9, 32, 128>}, {pipeline_mode = #tpu.pipeline_mode<synchronous>, transform_indices = @transform_2, window_bounds = array<i64: 1, 128>}, {transform_indices = @transform_3, window_bounds = array<i64: 1, 128, 128>}]} {
    %cst = arith.constant 0.000000e+00 : f32
    %0 = vector.broadcast %cst : f32 to vector<128x128xf32>
    %c128_i32 = arith.constant 128 : i32
    %1 = arith.muli %arg1, %c128_i32 : i32
    %c0_i32 = arith.constant 0 : i32
    %2 = arith.addi %1, %c0_i32 : i32
    %3 = tpu.assume_multiple %2, 8 : i32
    %c0 = arith.constant 0 : index
    %c0_0 = arith.constant 0 : index
    %4 = arith.index_cast %3 : i32 to index
    %c0_1 = arith.constant 0 : index
    %5 = vector.load %arg2[%c0, %c0_0, %4, %c0_1] : memref<1x3x288x32xbf16, #tpu.memory_space<vmem>>, vector<1x1x128x32xbf16>
    %6 = vector.shape_cast %5 : vector<1x1x128x32xbf16> to vector<128x32xbf16>
    %c0_2 = arith.constant 0 : index
    %c0_3 = arith.constant 0 : index
    %c0_4 = arith.constant 0 : index
    %7 = vector.load %arg3[%c0_2, %c0_3, %c0_4] : memref<9x32x128xbf16, #tpu.memory_space<vmem>>, vector<1x32x128xbf16>
    %8 = vector.shape_cast %7 : vector<1x32x128xbf16> to vector<32x128xbf16>
    %cst_5 = arith.constant dense<0.000000e+00> : vector<128x128xf32>
    %9 = tpu.matmul %6, %8, %cst_5 {dimension_numbers = #tpu.dot_dimension_numbers<[1], [0], [0], [1], [0, 0, 1, 1], [], []>} : vector<128x32xbf16>, vector<32x128xbf16>, vector<128x128xf32> -> vector<128x128xf32>
    %10 = arith.addf %0, %9 : vector<128x128xf32>
    %c128_i32_6 = arith.constant 128 : i32
    %11 = arith.muli %arg1, %c128_i32_6 : i32
    %c0_i32_7 = arith.constant 0 : i32
    %12 = arith.addi %11, %c0_i32_7 : i32
    %13 = tpu.assume_multiple %12, 8 : i32
    %c0_8 = arith.constant 0 : index
    %c1 = arith.constant 1 : index
    %14 = arith.index_cast %13 : i32 to index
    %c0_9 = arith.constant 0 : index
    %15 = vector.load %arg2[%c0_8, %c1, %14, %c0_9] : memref<1x3x288x32xbf16, #tpu.memory_space<vmem>>, vector<1x1x128x32xbf16>
    %16 = vector.shape_cast %15 : vector<1x1x128x32xbf16> to vector<128x32xbf16>
    %c1_10 = arith.constant 1 : index
    %c0_11 = arith.constant 0 : index
    %c0_12 = arith.constant 0 : index
    %17 = vector.load %arg3[%c1_10, %c0_11, %c0_12] : memref<9x32x128xbf16, #tpu.memory_space<vmem>>, vector<1x32x128xbf16>
    %18 = vector.shape_cast %17 : vector<1x32x128xbf16> to vector<32x128xbf16>
    %cst_13 = arith.constant dense<0.000000e+00> : vector<128x128xf32>
    %19 = tpu.matmul %16, %18, %cst_13 {dimension_numbers = #tpu.dot_dimension_numbers<[1], [0], [0], [1], [0, 0, 1, 1], [], []>} : vector<128x32xbf16>, vector<32x128xbf16>, vector<128x128xf32> -> vector<128x128xf32>
    %20 = arith.addf %10, %19 : vector<128x128xf32>
    %c128_i32_14 = arith.constant 128 : i32
    %21 = arith.muli %arg1, %c128_i32_14 : i32
    %c0_i32_15 = arith.constant 0 : i32
    %22 = arith.addi %21, %c0_i32_15 : i32
    %23 = tpu.assume_multiple %22, 8 : i32
    %c0_16 = arith.constant 0 : index
    %c2 = arith.constant 2 : index
    %24 = arith.index_cast %23 : i32 to index
    %c0_17 = arith.constant 0 : index
    %25 = vector.load %arg2[%c0_16, %c2, %24, %c0_17] : memref<1x3x288x32xbf16, #tpu.memory_space<vmem>>, vector<1x1x128x32xbf16>
    %26 = vector.shape_cast %25 : vector<1x1x128x32xbf16> to vector<128x32xbf16>
    %c2_18 = arith.constant 2 : index
    %c0_19 = arith.constant 0 : index
    %c0_20 = arith.constant 0 : index
    %27 = vector.load %arg3[%c2_18, %c0_19, %c0_20] : memref<9x32x128xbf16, #tpu.memory_space<vmem>>, vector<1x32x128xbf16>
    %28 = vector.shape_cast %27 : vector<1x32x128xbf16> to vector<32x128xbf16>
    %cst_21 = arith.constant dense<0.000000e+00> : vector<128x128xf32>
    %29 = tpu.matmul %26, %28, %cst_21 {dimension_numbers = #tpu.dot_dimension_numbers<[1], [0], [0], [1], [0, 0, 1, 1], [], []>} : vector<128x32xbf16>, vector<32x128xbf16>, vector<128x128xf32> -> vector<128x128xf32>
    %30 = arith.addf %20, %29 : vector<128x128xf32>
    %c128_i32_22 = arith.constant 128 : i32
    %31 = arith.muli %arg1, %c128_i32_22 : i32
    %c16_i32 = arith.constant 16 : i32
    %32 = arith.addi %31, %c16_i32 : i32
    %33 = tpu.assume_multiple %32, 8 : i32
    %c0_23 = arith.constant 0 : index
    %c0_24 = arith.constant 0 : index
    %34 = arith.index_cast %33 : i32 to index
    %c0_25 = arith.constant 0 : index
    %35 = vector.load %arg2[%c0_23, %c0_24, %34, %c0_25] : memref<1x3x288x32xbf16, #tpu.memory_space<vmem>>, vector<1x1x128x32xbf16>
    %36 = vector.shape_cast %35 : vector<1x1x128x32xbf16> to vector<128x32xbf16>
    %c3 = arith.constant 3 : index
    %c0_26 = arith.constant 0 : index
    %c0_27 = arith.constant 0 : index
    %37 = vector.load %arg3[%c3, %c0_26, %c0_27] : memref<9x32x128xbf16, #tpu.memory_space<vmem>>, vector<1x32x128xbf16>
    %38 = vector.shape_cast %37 : vector<1x32x128xbf16> to vector<32x128xbf16>
    %cst_28 = arith.constant dense<0.000000e+00> : vector<128x128xf32>
    %39 = tpu.matmul %36, %38, %cst_28 {dimension_numbers = #tpu.dot_dimension_numbers<[1], [0], [0], [1], [0, 0, 1, 1], [], []>} : vector<128x32xbf16>, vector<32x128xbf16>, vector<128x128xf32> -> vector<128x128xf32>
    %40 = arith.addf %30, %39 : vector<128x128xf32>
    %c128_i32_29 = arith.constant 128 : i32
    %41 = arith.muli %arg1, %c128_i32_29 : i32
    %c16_i32_30 = arith.constant 16 : i32
    %42 = arith.addi %41, %c16_i32_30 : i32
    %43 = tpu.assume_multiple %42, 8 : i32
    %c0_31 = arith.constant 0 : index
    %c1_32 = arith.constant 1 : index
    %44 = arith.index_cast %43 : i32 to index
    %c0_33 = arith.constant 0 : index
    %45 = vector.load %arg2[%c0_31, %c1_32, %44, %c0_33] : memref<1x3x288x32xbf16, #tpu.memory_space<vmem>>, vector<1x1x128x32xbf16>
    %46 = vector.shape_cast %45 : vector<1x1x128x32xbf16> to vector<128x32xbf16>
    %c4 = arith.constant 4 : index
    %c0_34 = arith.constant 0 : index
    %c0_35 = arith.constant 0 : index
    %47 = vector.load %arg3[%c4, %c0_34, %c0_35] : memref<9x32x128xbf16, #tpu.memory_space<vmem>>, vector<1x32x128xbf16>
    %48 = vector.shape_cast %47 : vector<1x32x128xbf16> to vector<32x128xbf16>
    %cst_36 = arith.constant dense<0.000000e+00> : vector<128x128xf32>
    %49 = tpu.matmul %46, %48, %cst_36 {dimension_numbers = #tpu.dot_dimension_numbers<[1], [0], [0], [1], [0, 0, 1, 1], [], []>} : vector<128x32xbf16>, vector<32x128xbf16>, vector<128x128xf32> -> vector<128x128xf32>
    %50 = arith.addf %40, %49 : vector<128x128xf32>
    %c128_i32_37 = arith.constant 128 : i32
    %51 = arith.muli %arg1, %c128_i32_37 : i32
    %c16_i32_38 = arith.constant 16 : i32
    %52 = arith.addi %51, %c16_i32_38 : i32
    %53 = tpu.assume_multiple %52, 8 : i32
    %c0_39 = arith.constant 0 : index
    %c2_40 = arith.constant 2 : index
    %54 = arith.index_cast %53 : i32 to index
    %c0_41 = arith.constant 0 : index
    %55 = vector.load %arg2[%c0_39, %c2_40, %54, %c0_41] : memref<1x3x288x32xbf16, #tpu.memory_space<vmem>>, vector<1x1x128x32xbf16>
    %56 = vector.shape_cast %55 : vector<1x1x128x32xbf16> to vector<128x32xbf16>
    %c5 = arith.constant 5 : index
    %c0_42 = arith.constant 0 : index
    %c0_43 = arith.constant 0 : index
    %57 = vector.load %arg3[%c5, %c0_42, %c0_43] : memref<9x32x128xbf16, #tpu.memory_space<vmem>>, vector<1x32x128xbf16>
    %58 = vector.shape_cast %57 : vector<1x32x128xbf16> to vector<32x128xbf16>
    %cst_44 = arith.constant dense<0.000000e+00> : vector<128x128xf32>
    %59 = tpu.matmul %56, %58, %cst_44 {dimension_numbers = #tpu.dot_dimension_numbers<[1], [0], [0], [1], [0, 0, 1, 1], [], []>} : vector<128x32xbf16>, vector<32x128xbf16>, vector<128x128xf32> -> vector<128x128xf32>
    %60 = arith.addf %50, %59 : vector<128x128xf32>
    %c128_i32_45 = arith.constant 128 : i32
    %61 = arith.muli %arg1, %c128_i32_45 : i32
    %c32_i32 = arith.constant 32 : i32
    %62 = arith.addi %61, %c32_i32 : i32
    %63 = tpu.assume_multiple %62, 8 : i32
    %c0_46 = arith.constant 0 : index
    %c0_47 = arith.constant 0 : index
    %64 = arith.index_cast %63 : i32 to index
    %c0_48 = arith.constant 0 : index
    %65 = vector.load %arg2[%c0_46, %c0_47, %64, %c0_48] : memref<1x3x288x32xbf16, #tpu.memory_space<vmem>>, vector<1x1x128x32xbf16>
    %66 = vector.shape_cast %65 : vector<1x1x128x32xbf16> to vector<128x32xbf16>
    %c6 = arith.constant 6 : index
    %c0_49 = arith.constant 0 : index
    %c0_50 = arith.constant 0 : index
    %67 = vector.load %arg3[%c6, %c0_49, %c0_50] : memref<9x32x128xbf16, #tpu.memory_space<vmem>>, vector<1x32x128xbf16>
    %68 = vector.shape_cast %67 : vector<1x32x128xbf16> to vector<32x128xbf16>
    %cst_51 = arith.constant dense<0.000000e+00> : vector<128x128xf32>
    %69 = tpu.matmul %66, %68, %cst_51 {dimension_numbers = #tpu.dot_dimension_numbers<[1], [0], [0], [1], [0, 0, 1, 1], [], []>} : vector<128x32xbf16>, vector<32x128xbf16>, vector<128x128xf32> -> vector<128x128xf32>
    %70 = arith.addf %60, %69 : vector<128x128xf32>
    %c128_i32_52 = arith.constant 128 : i32
    %71 = arith.muli %arg1, %c128_i32_52 : i32
    %c32_i32_53 = arith.constant 32 : i32
    %72 = arith.addi %71, %c32_i32_53 : i32
    %73 = tpu.assume_multiple %72, 8 : i32
    %c0_54 = arith.constant 0 : index
    %c1_55 = arith.constant 1 : index
    %74 = arith.index_cast %73 : i32 to index
    %c0_56 = arith.constant 0 : index
    %75 = vector.load %arg2[%c0_54, %c1_55, %74, %c0_56] : memref<1x3x288x32xbf16, #tpu.memory_space<vmem>>, vector<1x1x128x32xbf16>
    %76 = vector.shape_cast %75 : vector<1x1x128x32xbf16> to vector<128x32xbf16>
    %c7 = arith.constant 7 : index
    %c0_57 = arith.constant 0 : index
    %c0_58 = arith.constant 0 : index
    %77 = vector.load %arg3[%c7, %c0_57, %c0_58] : memref<9x32x128xbf16, #tpu.memory_space<vmem>>, vector<1x32x128xbf16>
    %78 = vector.shape_cast %77 : vector<1x32x128xbf16> to vector<32x128xbf16>
    %cst_59 = arith.constant dense<0.000000e+00> : vector<128x128xf32>
    %79 = tpu.matmul %76, %78, %cst_59 {dimension_numbers = #tpu.dot_dimension_numbers<[1], [0], [0], [1], [0, 0, 1, 1], [], []>} : vector<128x32xbf16>, vector<32x128xbf16>, vector<128x128xf32> -> vector<128x128xf32>
    %80 = arith.addf %70, %79 : vector<128x128xf32>
    %c128_i32_60 = arith.constant 128 : i32
    %81 = arith.muli %arg1, %c128_i32_60 : i32
    %c32_i32_61 = arith.constant 32 : i32
    %82 = arith.addi %81, %c32_i32_61 : i32
    %83 = tpu.assume_multiple %82, 8 : i32
    %c0_62 = arith.constant 0 : index
    %c2_63 = arith.constant 2 : index
    %84 = arith.index_cast %83 : i32 to index
    %c0_64 = arith.constant 0 : index
    %85 = vector.load %arg2[%c0_62, %c2_63, %84, %c0_64] : memref<1x3x288x32xbf16, #tpu.memory_space<vmem>>, vector<1x1x128x32xbf16>
    %86 = vector.shape_cast %85 : vector<1x1x128x32xbf16> to vector<128x32xbf16>
    %c8 = arith.constant 8 : index
    %c0_65 = arith.constant 0 : index
    %c0_66 = arith.constant 0 : index
    %87 = vector.load %arg3[%c8, %c0_65, %c0_66] : memref<9x32x128xbf16, #tpu.memory_space<vmem>>, vector<1x32x128xbf16>
    %88 = vector.shape_cast %87 : vector<1x32x128xbf16> to vector<32x128xbf16>
    %cst_67 = arith.constant dense<0.000000e+00> : vector<128x128xf32>
    %89 = tpu.matmul %86, %88, %cst_67 {dimension_numbers = #tpu.dot_dimension_numbers<[1], [0], [0], [1], [0, 0, 1, 1], [], []>} : vector<128x32xbf16>, vector<32x128xbf16>, vector<128x128xf32> -> vector<128x128xf32>
    %90 = arith.addf %80, %89 : vector<128x128xf32>
    %c0_68 = arith.constant 0 : index
    %c0_69 = arith.constant 0 : index
    %91 = vector.load %arg4[%c0_68, %c0_69] : memref<1x128xf32, #tpu.memory_space<vmem>>, vector<1x128xf32>
    %92 = vector.broadcast %91 : vector<1x128xf32> to vector<128x128xf32>
    %93 = arith.addf %90, %92 : vector<128x128xf32>
    %c0_70 = arith.constant 0 : index
    %c0_71 = arith.constant 0 : index
    %c0_72 = arith.constant 0 : index
    %94 = vector.load %arg5[%c0_70, %c0_71, %c0_72] : memref<1x128x128xf32, #tpu.memory_space<vmem>>, vector<1x128x128xf32>
    %95 = vector.shape_cast %94 : vector<1x128x128xf32> to vector<128x128xf32>
    %96 = vector.shape_cast %93 : vector<128x128xf32> to vector<1x128x128xf32>
    tpu.vector_store %arg5[%c0_70, %c0_71, %c0_72], %96 {strides = array<i32>} : memref<1x128x128xf32, #tpu.memory_space<vmem>>, vector<1x128x128xf32>,
    return
  }
  func.func @transform_0(%arg0: i32, %arg1: i32) -> (i32, i32, i32, i32) {
    %c0_i32 = arith.constant 0 : i32
    %c0_i32_0 = arith.constant 0 : i32
    %c0_i32_1 = arith.constant 0 : i32
    %c0_i32_2 = arith.constant 0 : i32
    return %arg0, %c0_i32, %c0_i32_0, %c0_i32_1 : i32, i32, i32, i32
  }
  func.func @transform_1(%arg0: i32, %arg1: i32) -> (i32, i32, i32) {
    %c0_i32 = arith.constant 0 : i32
    %c0_i32_0 = arith.constant 0 : i32
    %c0_i32_1 = arith.constant 0 : i32
    %c0_i32_2 = arith.constant 0 : i32
    return %c0_i32, %c0_i32_0, %c0_i32_1 : i32, i32, i32
  }
  func.func @transform_2(%arg0: i32, %arg1: i32) -> (i32, i32) {
    %c0_i32 = arith.constant 0 : i32
    %c0_i32_0 = arith.constant 0 : i32
    %c0_i32_1 = arith.constant 0 : i32
    return %c0_i32, %c0_i32_0 : i32, i32
  }
  func.func @transform_3(%arg0: i32, %arg1: i32) -> (i32, i32, i32) {
    %c0_i32 = arith.constant 0 : i32
    %c0_i32_0 = arith.constant 0 : i32
    return %arg0, %arg1, %c0_i32 : i32, i32, i32
  }
}

module attributes {stable_mosaic.version = 11 : i64} {
  func.func @_conv3x3_kernel(%arg0: i32, %arg1: i32, %arg2: memref<1x3x288x64xbf16, #tpu.memory_space<vmem>>, %arg3: memref<9x64x128xbf16, #tpu.memory_space<vmem>>, %arg4: memref<1x128xf32, #tpu.memory_space<vmem>>, %arg5: memref<1x128x128xf32, #tpu.memory_space<vmem>>) attributes {dimension_semantics = [#tpu.dimension_semantics<parallel>, #tpu.dimension_semantics<parallel>], iteration_bounds = array<i64: 2, 2>, scalar_prefetch = 0 : i64, scratch_operands = 0 : i64, tpu.core_type = #tpu.core_type<tc>, window_params = [{transform_indices = @transform_0, window_bounds = array<i64: 1, 3, 288, 64>}, {pipeline_mode = #tpu.pipeline_mode<synchronous>, transform_indices = @transform_1, window_bounds = array<i64: 9, 64, 128>}, {pipeline_mode = #tpu.pipeline_mode<synchronous>, transform_indices = @transform_2, window_bounds = array<i64: 1, 128>}, {transform_indices = @transform_3, window_bounds = array<i64: 1, 128, 128>}]} {
    %cst = arith.constant 0.000000e+00 : f32
    %0 = vector.broadcast %cst : f32 to vector<128x128xf32>
    %c128_i32 = arith.constant 128 : i32
    %1 = arith.muli %arg1, %c128_i32 : i32
    %c0_i32 = arith.constant 0 : i32
    %2 = arith.addi %1, %c0_i32 : i32
    %3 = tpu.assume_multiple %2, 8 : i32
    %c0 = arith.constant 0 : index
    %c0_0 = arith.constant 0 : index
    %4 = arith.index_cast %3 : i32 to index
    %c0_1 = arith.constant 0 : index
    %5 = vector.load %arg2[%c0, %c0_0, %4, %c0_1] : memref<1x3x288x64xbf16, #tpu.memory_space<vmem>>, vector<1x1x128x64xbf16>
    %6 = vector.shape_cast %5 : vector<1x1x128x64xbf16> to vector<128x64xbf16>
    %c0_2 = arith.constant 0 : index
    %c0_3 = arith.constant 0 : index
    %c0_4 = arith.constant 0 : index
    %7 = vector.load %arg3[%c0_2, %c0_3, %c0_4] : memref<9x64x128xbf16, #tpu.memory_space<vmem>>, vector<1x64x128xbf16>
    %8 = vector.shape_cast %7 : vector<1x64x128xbf16> to vector<64x128xbf16>
    %cst_5 = arith.constant dense<0.000000e+00> : vector<128x128xf32>
    %9 = tpu.matmul %6, %8, %cst_5 {dimension_numbers = #tpu.dot_dimension_numbers<[1], [0], [0], [1], [0, 0, 1, 1], [], []>} : vector<128x64xbf16>, vector<64x128xbf16>, vector<128x128xf32> -> vector<128x128xf32>
    %10 = arith.addf %0, %9 : vector<128x128xf32>
    %c128_i32_6 = arith.constant 128 : i32
    %11 = arith.muli %arg1, %c128_i32_6 : i32
    %c0_i32_7 = arith.constant 0 : i32
    %12 = arith.addi %11, %c0_i32_7 : i32
    %13 = tpu.assume_multiple %12, 8 : i32
    %c0_8 = arith.constant 0 : index
    %c1 = arith.constant 1 : index
    %14 = arith.index_cast %13 : i32 to index
    %c0_9 = arith.constant 0 : index
    %15 = vector.load %arg2[%c0_8, %c1, %14, %c0_9] : memref<1x3x288x64xbf16, #tpu.memory_space<vmem>>, vector<1x1x128x64xbf16>
    %16 = vector.shape_cast %15 : vector<1x1x128x64xbf16> to vector<128x64xbf16>
    %c1_10 = arith.constant 1 : index
    %c0_11 = arith.constant 0 : index
    %c0_12 = arith.constant 0 : index
    %17 = vector.load %arg3[%c1_10, %c0_11, %c0_12] : memref<9x64x128xbf16, #tpu.memory_space<vmem>>, vector<1x64x128xbf16>
    %18 = vector.shape_cast %17 : vector<1x64x128xbf16> to vector<64x128xbf16>
    %cst_13 = arith.constant dense<0.000000e+00> : vector<128x128xf32>
    %19 = tpu.matmul %16, %18, %cst_13 {dimension_numbers = #tpu.dot_dimension_numbers<[1], [0], [0], [1], [0, 0, 1, 1], [], []>} : vector<128x64xbf16>, vector<64x128xbf16>, vector<128x128xf32> -> vector<128x128xf32>
    %20 = arith.addf %10, %19 : vector<128x128xf32>
    %c128_i32_14 = arith.constant 128 : i32
    %21 = arith.muli %arg1, %c128_i32_14 : i32
    %c0_i32_15 = arith.constant 0 : i32
    %22 = arith.addi %21, %c0_i32_15 : i32
    %23 = tpu.assume_multiple %22, 8 : i32
    %c0_16 = arith.constant 0 : index
    %c2 = arith.constant 2 : index
    %24 = arith.index_cast %23 : i32 to index
    %c0_17 = arith.constant 0 : index
    %25 = vector.load %arg2[%c0_16, %c2, %24, %c0_17] : memref<1x3x288x64xbf16, #tpu.memory_space<vmem>>, vector<1x1x128x64xbf16>
    %26 = vector.shape_cast %25 : vector<1x1x128x64xbf16> to vector<128x64xbf16>
    %c2_18 = arith.constant 2 : index
    %c0_19 = arith.constant 0 : index
    %c0_20 = arith.constant 0 : index
    %27 = vector.load %arg3[%c2_18, %c0_19, %c0_20] : memref<9x64x128xbf16, #tpu.memory_space<vmem>>, vector<1x64x128xbf16>
    %28 = vector.shape_cast %27 : vector<1x64x128xbf16> to vector<64x128xbf16>
    %cst_21 = arith.constant dense<0.000000e+00> : vector<128x128xf32>
    %29 = tpu.matmul %26, %28, %cst_21 {dimension_numbers = #tpu.dot_dimension_numbers<[1], [0], [0], [1], [0, 0, 1, 1], [], []>} : vector<128x64xbf16>, vector<64x128xbf16>, vector<128x128xf32> -> vector<128x128xf32>
    %30 = arith.addf %20, %29 : vector<128x128xf32>
    %c128_i32_22 = arith.constant 128 : i32
    %31 = arith.muli %arg1, %c128_i32_22 : i32
    %c16_i32 = arith.constant 16 : i32
    %32 = arith.addi %31, %c16_i32 : i32
    %33 = tpu.assume_multiple %32, 8 : i32
    %c0_23 = arith.constant 0 : index
    %c0_24 = arith.constant 0 : index
    %34 = arith.index_cast %33 : i32 to index
    %c0_25 = arith.constant 0 : index
    %35 = vector.load %arg2[%c0_23, %c0_24, %34, %c0_25] : memref<1x3x288x64xbf16, #tpu.memory_space<vmem>>, vector<1x1x128x64xbf16>
    %36 = vector.shape_cast %35 : vector<1x1x128x64xbf16> to vector<128x64xbf16>
    %c3 = arith.constant 3 : index
    %c0_26 = arith.constant 0 : index
    %c0_27 = arith.constant 0 : index
    %37 = vector.load %arg3[%c3, %c0_26, %c0_27] : memref<9x64x128xbf16, #tpu.memory_space<vmem>>, vector<1x64x128xbf16>
    %38 = vector.shape_cast %37 : vector<1x64x128xbf16> to vector<64x128xbf16>
    %cst_28 = arith.constant dense<0.000000e+00> : vector<128x128xf32>
    %39 = tpu.matmul %36, %38, %cst_28 {dimension_numbers = #tpu.dot_dimension_numbers<[1], [0], [0], [1], [0, 0, 1, 1], [], []>} : vector<128x64xbf16>, vector<64x128xbf16>, vector<128x128xf32> -> vector<128x128xf32>
    %40 = arith.addf %30, %39 : vector<128x128xf32>
    %c128_i32_29 = arith.constant 128 : i32
    %41 = arith.muli %arg1, %c128_i32_29 : i32
    %c16_i32_30 = arith.constant 16 : i32
    %42 = arith.addi %41, %c16_i32_30 : i32
    %43 = tpu.assume_multiple %42, 8 : i32
    %c0_31 = arith.constant 0 : index
    %c1_32 = arith.constant 1 : index
    %44 = arith.index_cast %43 : i32 to index
    %c0_33 = arith.constant 0 : index
    %45 = vector.load %arg2[%c0_31, %c1_32, %44, %c0_33] : memref<1x3x288x64xbf16, #tpu.memory_space<vmem>>, vector<1x1x128x64xbf16>
    %46 = vector.shape_cast %45 : vector<1x1x128x64xbf16> to vector<128x64xbf16>
    %c4 = arith.constant 4 : index
    %c0_34 = arith.constant 0 : index
    %c0_35 = arith.constant 0 : index
    %47 = vector.load %arg3[%c4, %c0_34, %c0_35] : memref<9x64x128xbf16, #tpu.memory_space<vmem>>, vector<1x64x128xbf16>
    %48 = vector.shape_cast %47 : vector<1x64x128xbf16> to vector<64x128xbf16>
    %cst_36 = arith.constant dense<0.000000e+00> : vector<128x128xf32>
    %49 = tpu.matmul %46, %48, %cst_36 {dimension_numbers = #tpu.dot_dimension_numbers<[1], [0], [0], [1], [0, 0, 1, 1], [], []>} : vector<128x64xbf16>, vector<64x128xbf16>, vector<128x128xf32> -> vector<128x128xf32>
    %50 = arith.addf %40, %49 : vector<128x128xf32>
    %c128_i32_37 = arith.constant 128 : i32
    %51 = arith.muli %arg1, %c128_i32_37 : i32
    %c16_i32_38 = arith.constant 16 : i32
    %52 = arith.addi %51, %c16_i32_38 : i32
    %53 = tpu.assume_multiple %52, 8 : i32
    %c0_39 = arith.constant 0 : index
    %c2_40 = arith.constant 2 : index
    %54 = arith.index_cast %53 : i32 to index
    %c0_41 = arith.constant 0 : index
    %55 = vector.load %arg2[%c0_39, %c2_40, %54, %c0_41] : memref<1x3x288x64xbf16, #tpu.memory_space<vmem>>, vector<1x1x128x64xbf16>
    %56 = vector.shape_cast %55 : vector<1x1x128x64xbf16> to vector<128x64xbf16>
    %c5 = arith.constant 5 : index
    %c0_42 = arith.constant 0 : index
    %c0_43 = arith.constant 0 : index
    %57 = vector.load %arg3[%c5, %c0_42, %c0_43] : memref<9x64x128xbf16, #tpu.memory_space<vmem>>, vector<1x64x128xbf16>
    %58 = vector.shape_cast %57 : vector<1x64x128xbf16> to vector<64x128xbf16>
    %cst_44 = arith.constant dense<0.000000e+00> : vector<128x128xf32>
    %59 = tpu.matmul %56, %58, %cst_44 {dimension_numbers = #tpu.dot_dimension_numbers<[1], [0], [0], [1], [0, 0, 1, 1], [], []>} : vector<128x64xbf16>, vector<64x128xbf16>, vector<128x128xf32> -> vector<128x128xf32>
    %60 = arith.addf %50, %59 : vector<128x128xf32>
    %c128_i32_45 = arith.constant 128 : i32
    %61 = arith.muli %arg1, %c128_i32_45 : i32
    %c32_i32 = arith.constant 32 : i32
    %62 = arith.addi %61, %c32_i32 : i32
    %63 = tpu.assume_multiple %62, 8 : i32
    %c0_46 = arith.constant 0 : index
    %c0_47 = arith.constant 0 : index
    %64 = arith.index_cast %63 : i32 to index
    %c0_48 = arith.constant 0 : index
    %65 = vector.load %arg2[%c0_46, %c0_47, %64, %c0_48] : memref<1x3x288x64xbf16, #tpu.memory_space<vmem>>, vector<1x1x128x64xbf16>
    %66 = vector.shape_cast %65 : vector<1x1x128x64xbf16> to vector<128x64xbf16>
    %c6 = arith.constant 6 : index
    %c0_49 = arith.constant 0 : index
    %c0_50 = arith.constant 0 : index
    %67 = vector.load %arg3[%c6, %c0_49, %c0_50] : memref<9x64x128xbf16, #tpu.memory_space<vmem>>, vector<1x64x128xbf16>
    %68 = vector.shape_cast %67 : vector<1x64x128xbf16> to vector<64x128xbf16>
    %cst_51 = arith.constant dense<0.000000e+00> : vector<128x128xf32>
    %69 = tpu.matmul %66, %68, %cst_51 {dimension_numbers = #tpu.dot_dimension_numbers<[1], [0], [0], [1], [0, 0, 1, 1], [], []>} : vector<128x64xbf16>, vector<64x128xbf16>, vector<128x128xf32> -> vector<128x128xf32>
    %70 = arith.addf %60, %69 : vector<128x128xf32>
    %c128_i32_52 = arith.constant 128 : i32
    %71 = arith.muli %arg1, %c128_i32_52 : i32
    %c32_i32_53 = arith.constant 32 : i32
    %72 = arith.addi %71, %c32_i32_53 : i32
    %73 = tpu.assume_multiple %72, 8 : i32
    %c0_54 = arith.constant 0 : index
    %c1_55 = arith.constant 1 : index
    %74 = arith.index_cast %73 : i32 to index
    %c0_56 = arith.constant 0 : index
    %75 = vector.load %arg2[%c0_54, %c1_55, %74, %c0_56] : memref<1x3x288x64xbf16, #tpu.memory_space<vmem>>, vector<1x1x128x64xbf16>
    %76 = vector.shape_cast %75 : vector<1x1x128x64xbf16> to vector<128x64xbf16>
    %c7 = arith.constant 7 : index
    %c0_57 = arith.constant 0 : index
    %c0_58 = arith.constant 0 : index
    %77 = vector.load %arg3[%c7, %c0_57, %c0_58] : memref<9x64x128xbf16, #tpu.memory_space<vmem>>, vector<1x64x128xbf16>
    %78 = vector.shape_cast %77 : vector<1x64x128xbf16> to vector<64x128xbf16>
    %cst_59 = arith.constant dense<0.000000e+00> : vector<128x128xf32>
    %79 = tpu.matmul %76, %78, %cst_59 {dimension_numbers = #tpu.dot_dimension_numbers<[1], [0], [0], [1], [0, 0, 1, 1], [], []>} : vector<128x64xbf16>, vector<64x128xbf16>, vector<128x128xf32> -> vector<128x128xf32>
    %80 = arith.addf %70, %79 : vector<128x128xf32>
    %c128_i32_60 = arith.constant 128 : i32
    %81 = arith.muli %arg1, %c128_i32_60 : i32
    %c32_i32_61 = arith.constant 32 : i32
    %82 = arith.addi %81, %c32_i32_61 : i32
    %83 = tpu.assume_multiple %82, 8 : i32
    %c0_62 = arith.constant 0 : index
    %c2_63 = arith.constant 2 : index
    %84 = arith.index_cast %83 : i32 to index
    %c0_64 = arith.constant 0 : index
    %85 = vector.load %arg2[%c0_62, %c2_63, %84, %c0_64] : memref<1x3x288x64xbf16, #tpu.memory_space<vmem>>, vector<1x1x128x64xbf16>
    %86 = vector.shape_cast %85 : vector<1x1x128x64xbf16> to vector<128x64xbf16>
    %c8 = arith.constant 8 : index
    %c0_65 = arith.constant 0 : index
    %c0_66 = arith.constant 0 : index
    %87 = vector.load %arg3[%c8, %c0_65, %c0_66] : memref<9x64x128xbf16, #tpu.memory_space<vmem>>, vector<1x64x128xbf16>
    %88 = vector.shape_cast %87 : vector<1x64x128xbf16> to vector<64x128xbf16>
    %cst_67 = arith.constant dense<0.000000e+00> : vector<128x128xf32>
    %89 = tpu.matmul %86, %88, %cst_67 {dimension_numbers = #tpu.dot_dimension_numbers<[1], [0], [0], [1], [0, 0, 1, 1], [], []>} : vector<128x64xbf16>, vector<64x128xbf16>, vector<128x128xf32> -> vector<128x128xf32>
    %90 = arith.addf %80, %89 : vector<128x128xf32>
    %c0_68 = arith.constant 0 : index
    %c0_69 = arith.constant 0 : index
    %91 = vector.load %arg4[%c0_68, %c0_69] : memref<1x128xf32, #tpu.memory_space<vmem>>, vector<1x128xf32>
    %92 = vector.broadcast %91 : vector<1x128xf32> to vector<128x128xf32>
    %93 = arith.addf %90, %92 : vector<128x128xf32>
    %cst_70 = arith.constant 0.000000e+00 : f32
    %94 = vector.broadcast %cst_70 : f32 to vector<128x128xf32>
    %95 = arith.cmpf oge, %93, %94 : vector<128x128xf32>
    %cst_71 = arith.constant 2.000000e-01 : f32
    %96 = vector.broadcast %cst_71 : f32 to vector<128x128xf32>
    %97 = arith.mulf %96, %93 : vector<128x128xf32>
    %98 = arith.select %95, %93, %97 : vector<128x128xi1>, vector<128x128xf32>
    %c0_72 = arith.constant 0 : index
    %c0_73 = arith.constant 0 : index
    %c0_74 = arith.constant 0 : index
    %99 = vector.load %arg5[%c0_72, %c0_73, %c0_74] : memref<1x128x128xf32, #tpu.memory_space<vmem>>, vector<1x128x128xf32>
    %100 = vector.shape_cast %99 : vector<1x128x128xf32> to vector<128x128xf32>
    %101 = vector.shape_cast %98 : vector<128x128xf32> to vector<1x128x128xf32>
    tpu.vector_store %arg5[%c0_72, %c0_73, %c0_74], %101 {strides = array<i32>} : memref<1x128x128xf32, #tpu.memory_space<vmem>>, vector<1x128x128xf32>,
    return
  }
  func.func @transform_0(%arg0: i32, %arg1: i32) -> (i32, i32, i32, i32) {
    %c0_i32 = arith.constant 0 : i32
    %c0_i32_0 = arith.constant 0 : i32
    %c0_i32_1 = arith.constant 0 : i32
    %c0_i32_2 = arith.constant 0 : i32
    return %arg0, %c0_i32, %c0_i32_0, %c0_i32_1 : i32, i32, i32, i32
  }
  func.func @transform_1(%arg0: i32, %arg1: i32) -> (i32, i32, i32) {
    %c0_i32 = arith.constant 0 : i32
    %c0_i32_0 = arith.constant 0 : i32
    %c0_i32_1 = arith.constant 0 : i32
    %c0_i32_2 = arith.constant 0 : i32
    return %c0_i32, %c0_i32_0, %c0_i32_1 : i32, i32, i32
  }
  func.func @transform_2(%arg0: i32, %arg1: i32) -> (i32, i32) {
    %c0_i32 = arith.constant 0 : i32
    %c0_i32_0 = arith.constant 0 : i32
    %c0_i32_1 = arith.constant 0 : i32
    return %c0_i32, %c0_i32_0 : i32, i32
  }
  func.func @transform_3(%arg0: i32, %arg1: i32) -> (i32, i32, i32) {
    %c0_i32 = arith.constant 0 : i32
    %c0_i32_0 = arith.constant 0 : i32
    return %arg0, %arg1, %c0_i32 : i32, i32, i32
  }
}

module attributes {stable_mosaic.version = 11 : i64} {
  func.func @_conv3x3_kernel(%arg0: i32, %arg1: i32, %arg2: memref<1x3x288x64xbf16, #tpu.memory_space<vmem>>, %arg3: memref<9x64x128xbf16, #tpu.memory_space<vmem>>, %arg4: memref<1x128xf32, #tpu.memory_space<vmem>>, %arg5: memref<1x128x128xf32, #tpu.memory_space<vmem>>) attributes {dimension_semantics = [#tpu.dimension_semantics<parallel>, #tpu.dimension_semantics<parallel>], iteration_bounds = array<i64: 2, 2>, scalar_prefetch = 0 : i64, scratch_operands = 0 : i64, tpu.core_type = #tpu.core_type<tc>, window_params = [{transform_indices = @transform_0, window_bounds = array<i64: 1, 3, 288, 64>}, {pipeline_mode = #tpu.pipeline_mode<synchronous>, transform_indices = @transform_1, window_bounds = array<i64: 9, 64, 128>}, {pipeline_mode = #tpu.pipeline_mode<synchronous>, transform_indices = @transform_2, window_bounds = array<i64: 1, 128>}, {transform_indices = @transform_3, window_bounds = array<i64: 1, 128, 128>}]} {
    %cst = arith.constant 0.000000e+00 : f32
    %0 = vector.broadcast %cst : f32 to vector<128x128xf32>
    %c128_i32 = arith.constant 128 : i32
    %1 = arith.muli %arg1, %c128_i32 : i32
    %c0_i32 = arith.constant 0 : i32
    %2 = arith.addi %1, %c0_i32 : i32
    %3 = tpu.assume_multiple %2, 8 : i32
    %c0 = arith.constant 0 : index
    %c0_0 = arith.constant 0 : index
    %4 = arith.index_cast %3 : i32 to index
    %c0_1 = arith.constant 0 : index
    %5 = vector.load %arg2[%c0, %c0_0, %4, %c0_1] : memref<1x3x288x64xbf16, #tpu.memory_space<vmem>>, vector<1x1x128x64xbf16>
    %6 = vector.shape_cast %5 : vector<1x1x128x64xbf16> to vector<128x64xbf16>
    %c0_2 = arith.constant 0 : index
    %c0_3 = arith.constant 0 : index
    %c0_4 = arith.constant 0 : index
    %7 = vector.load %arg3[%c0_2, %c0_3, %c0_4] : memref<9x64x128xbf16, #tpu.memory_space<vmem>>, vector<1x64x128xbf16>
    %8 = vector.shape_cast %7 : vector<1x64x128xbf16> to vector<64x128xbf16>
    %cst_5 = arith.constant dense<0.000000e+00> : vector<128x128xf32>
    %9 = tpu.matmul %6, %8, %cst_5 {dimension_numbers = #tpu.dot_dimension_numbers<[1], [0], [0], [1], [0, 0, 1, 1], [], []>} : vector<128x64xbf16>, vector<64x128xbf16>, vector<128x128xf32> -> vector<128x128xf32>
    %10 = arith.addf %0, %9 : vector<128x128xf32>
    %c128_i32_6 = arith.constant 128 : i32
    %11 = arith.muli %arg1, %c128_i32_6 : i32
    %c0_i32_7 = arith.constant 0 : i32
    %12 = arith.addi %11, %c0_i32_7 : i32
    %13 = tpu.assume_multiple %12, 8 : i32
    %c0_8 = arith.constant 0 : index
    %c1 = arith.constant 1 : index
    %14 = arith.index_cast %13 : i32 to index
    %c0_9 = arith.constant 0 : index
    %15 = vector.load %arg2[%c0_8, %c1, %14, %c0_9] : memref<1x3x288x64xbf16, #tpu.memory_space<vmem>>, vector<1x1x128x64xbf16>
    %16 = vector.shape_cast %15 : vector<1x1x128x64xbf16> to vector<128x64xbf16>
    %c1_10 = arith.constant 1 : index
    %c0_11 = arith.constant 0 : index
    %c0_12 = arith.constant 0 : index
    %17 = vector.load %arg3[%c1_10, %c0_11, %c0_12] : memref<9x64x128xbf16, #tpu.memory_space<vmem>>, vector<1x64x128xbf16>
    %18 = vector.shape_cast %17 : vector<1x64x128xbf16> to vector<64x128xbf16>
    %cst_13 = arith.constant dense<0.000000e+00> : vector<128x128xf32>
    %19 = tpu.matmul %16, %18, %cst_13 {dimension_numbers = #tpu.dot_dimension_numbers<[1], [0], [0], [1], [0, 0, 1, 1], [], []>} : vector<128x64xbf16>, vector<64x128xbf16>, vector<128x128xf32> -> vector<128x128xf32>
    %20 = arith.addf %10, %19 : vector<128x128xf32>
    %c128_i32_14 = arith.constant 128 : i32
    %21 = arith.muli %arg1, %c128_i32_14 : i32
    %c0_i32_15 = arith.constant 0 : i32
    %22 = arith.addi %21, %c0_i32_15 : i32
    %23 = tpu.assume_multiple %22, 8 : i32
    %c0_16 = arith.constant 0 : index
    %c2 = arith.constant 2 : index
    %24 = arith.index_cast %23 : i32 to index
    %c0_17 = arith.constant 0 : index
    %25 = vector.load %arg2[%c0_16, %c2, %24, %c0_17] : memref<1x3x288x64xbf16, #tpu.memory_space<vmem>>, vector<1x1x128x64xbf16>
    %26 = vector.shape_cast %25 : vector<1x1x128x64xbf16> to vector<128x64xbf16>
    %c2_18 = arith.constant 2 : index
    %c0_19 = arith.constant 0 : index
    %c0_20 = arith.constant 0 : index
    %27 = vector.load %arg3[%c2_18, %c0_19, %c0_20] : memref<9x64x128xbf16, #tpu.memory_space<vmem>>, vector<1x64x128xbf16>
    %28 = vector.shape_cast %27 : vector<1x64x128xbf16> to vector<64x128xbf16>
    %cst_21 = arith.constant dense<0.000000e+00> : vector<128x128xf32>
    %29 = tpu.matmul %26, %28, %cst_21 {dimension_numbers = #tpu.dot_dimension_numbers<[1], [0], [0], [1], [0, 0, 1, 1], [], []>} : vector<128x64xbf16>, vector<64x128xbf16>, vector<128x128xf32> -> vector<128x128xf32>
    %30 = arith.addf %20, %29 : vector<128x128xf32>
    %c128_i32_22 = arith.constant 128 : i32
    %31 = arith.muli %arg1, %c128_i32_22 : i32
    %c16_i32 = arith.constant 16 : i32
    %32 = arith.addi %31, %c16_i32 : i32
    %33 = tpu.assume_multiple %32, 8 : i32
    %c0_23 = arith.constant 0 : index
    %c0_24 = arith.constant 0 : index
    %34 = arith.index_cast %33 : i32 to index
    %c0_25 = arith.constant 0 : index
    %35 = vector.load %arg2[%c0_23, %c0_24, %34, %c0_25] : memref<1x3x288x64xbf16, #tpu.memory_space<vmem>>, vector<1x1x128x64xbf16>
    %36 = vector.shape_cast %35 : vector<1x1x128x64xbf16> to vector<128x64xbf16>
    %c3 = arith.constant 3 : index
    %c0_26 = arith.constant 0 : index
    %c0_27 = arith.constant 0 : index
    %37 = vector.load %arg3[%c3, %c0_26, %c0_27] : memref<9x64x128xbf16, #tpu.memory_space<vmem>>, vector<1x64x128xbf16>
    %38 = vector.shape_cast %37 : vector<1x64x128xbf16> to vector<64x128xbf16>
    %cst_28 = arith.constant dense<0.000000e+00> : vector<128x128xf32>
    %39 = tpu.matmul %36, %38, %cst_28 {dimension_numbers = #tpu.dot_dimension_numbers<[1], [0], [0], [1], [0, 0, 1, 1], [], []>} : vector<128x64xbf16>, vector<64x128xbf16>, vector<128x128xf32> -> vector<128x128xf32>
    %40 = arith.addf %30, %39 : vector<128x128xf32>
    %c128_i32_29 = arith.constant 128 : i32
    %41 = arith.muli %arg1, %c128_i32_29 : i32
    %c16_i32_30 = arith.constant 16 : i32
    %42 = arith.addi %41, %c16_i32_30 : i32
    %43 = tpu.assume_multiple %42, 8 : i32
    %c0_31 = arith.constant 0 : index
    %c1_32 = arith.constant 1 : index
    %44 = arith.index_cast %43 : i32 to index
    %c0_33 = arith.constant 0 : index
    %45 = vector.load %arg2[%c0_31, %c1_32, %44, %c0_33] : memref<1x3x288x64xbf16, #tpu.memory_space<vmem>>, vector<1x1x128x64xbf16>
    %46 = vector.shape_cast %45 : vector<1x1x128x64xbf16> to vector<128x64xbf16>
    %c4 = arith.constant 4 : index
    %c0_34 = arith.constant 0 : index
    %c0_35 = arith.constant 0 : index
    %47 = vector.load %arg3[%c4, %c0_34, %c0_35] : memref<9x64x128xbf16, #tpu.memory_space<vmem>>, vector<1x64x128xbf16>
    %48 = vector.shape_cast %47 : vector<1x64x128xbf16> to vector<64x128xbf16>
    %cst_36 = arith.constant dense<0.000000e+00> : vector<128x128xf32>
    %49 = tpu.matmul %46, %48, %cst_36 {dimension_numbers = #tpu.dot_dimension_numbers<[1], [0], [0], [1], [0, 0, 1, 1], [], []>} : vector<128x64xbf16>, vector<64x128xbf16>, vector<128x128xf32> -> vector<128x128xf32>
    %50 = arith.addf %40, %49 : vector<128x128xf32>
    %c128_i32_37 = arith.constant 128 : i32
    %51 = arith.muli %arg1, %c128_i32_37 : i32
    %c16_i32_38 = arith.constant 16 : i32
    %52 = arith.addi %51, %c16_i32_38 : i32
    %53 = tpu.assume_multiple %52, 8 : i32
    %c0_39 = arith.constant 0 : index
    %c2_40 = arith.constant 2 : index
    %54 = arith.index_cast %53 : i32 to index
    %c0_41 = arith.constant 0 : index
    %55 = vector.load %arg2[%c0_39, %c2_40, %54, %c0_41] : memref<1x3x288x64xbf16, #tpu.memory_space<vmem>>, vector<1x1x128x64xbf16>
    %56 = vector.shape_cast %55 : vector<1x1x128x64xbf16> to vector<128x64xbf16>
    %c5 = arith.constant 5 : index
    %c0_42 = arith.constant 0 : index
    %c0_43 = arith.constant 0 : index
    %57 = vector.load %arg3[%c5, %c0_42, %c0_43] : memref<9x64x128xbf16, #tpu.memory_space<vmem>>, vector<1x64x128xbf16>
    %58 = vector.shape_cast %57 : vector<1x64x128xbf16> to vector<64x128xbf16>
    %cst_44 = arith.constant dense<0.000000e+00> : vector<128x128xf32>
    %59 = tpu.matmul %56, %58, %cst_44 {dimension_numbers = #tpu.dot_dimension_numbers<[1], [0], [0], [1], [0, 0, 1, 1], [], []>} : vector<128x64xbf16>, vector<64x128xbf16>, vector<128x128xf32> -> vector<128x128xf32>
    %60 = arith.addf %50, %59 : vector<128x128xf32>
    %c128_i32_45 = arith.constant 128 : i32
    %61 = arith.muli %arg1, %c128_i32_45 : i32
    %c32_i32 = arith.constant 32 : i32
    %62 = arith.addi %61, %c32_i32 : i32
    %63 = tpu.assume_multiple %62, 8 : i32
    %c0_46 = arith.constant 0 : index
    %c0_47 = arith.constant 0 : index
    %64 = arith.index_cast %63 : i32 to index
    %c0_48 = arith.constant 0 : index
    %65 = vector.load %arg2[%c0_46, %c0_47, %64, %c0_48] : memref<1x3x288x64xbf16, #tpu.memory_space<vmem>>, vector<1x1x128x64xbf16>
    %66 = vector.shape_cast %65 : vector<1x1x128x64xbf16> to vector<128x64xbf16>
    %c6 = arith.constant 6 : index
    %c0_49 = arith.constant 0 : index
    %c0_50 = arith.constant 0 : index
    %67 = vector.load %arg3[%c6, %c0_49, %c0_50] : memref<9x64x128xbf16, #tpu.memory_space<vmem>>, vector<1x64x128xbf16>
    %68 = vector.shape_cast %67 : vector<1x64x128xbf16> to vector<64x128xbf16>
    %cst_51 = arith.constant dense<0.000000e+00> : vector<128x128xf32>
    %69 = tpu.matmul %66, %68, %cst_51 {dimension_numbers = #tpu.dot_dimension_numbers<[1], [0], [0], [1], [0, 0, 1, 1], [], []>} : vector<128x64xbf16>, vector<64x128xbf16>, vector<128x128xf32> -> vector<128x128xf32>
    %70 = arith.addf %60, %69 : vector<128x128xf32>
    %c128_i32_52 = arith.constant 128 : i32
    %71 = arith.muli %arg1, %c128_i32_52 : i32
    %c32_i32_53 = arith.constant 32 : i32
    %72 = arith.addi %71, %c32_i32_53 : i32
    %73 = tpu.assume_multiple %72, 8 : i32
    %c0_54 = arith.constant 0 : index
    %c1_55 = arith.constant 1 : index
    %74 = arith.index_cast %73 : i32 to index
    %c0_56 = arith.constant 0 : index
    %75 = vector.load %arg2[%c0_54, %c1_55, %74, %c0_56] : memref<1x3x288x64xbf16, #tpu.memory_space<vmem>>, vector<1x1x128x64xbf16>
    %76 = vector.shape_cast %75 : vector<1x1x128x64xbf16> to vector<128x64xbf16>
    %c7 = arith.constant 7 : index
    %c0_57 = arith.constant 0 : index
    %c0_58 = arith.constant 0 : index
    %77 = vector.load %arg3[%c7, %c0_57, %c0_58] : memref<9x64x128xbf16, #tpu.memory_space<vmem>>, vector<1x64x128xbf16>
    %78 = vector.shape_cast %77 : vector<1x64x128xbf16> to vector<64x128xbf16>
    %cst_59 = arith.constant dense<0.000000e+00> : vector<128x128xf32>
    %79 = tpu.matmul %76, %78, %cst_59 {dimension_numbers = #tpu.dot_dimension_numbers<[1], [0], [0], [1], [0, 0, 1, 1], [], []>} : vector<128x64xbf16>, vector<64x128xbf16>, vector<128x128xf32> -> vector<128x128xf32>
    %80 = arith.addf %70, %79 : vector<128x128xf32>
    %c128_i32_60 = arith.constant 128 : i32
    %81 = arith.muli %arg1, %c128_i32_60 : i32
    %c32_i32_61 = arith.constant 32 : i32
    %82 = arith.addi %81, %c32_i32_61 : i32
    %83 = tpu.assume_multiple %82, 8 : i32
    %c0_62 = arith.constant 0 : index
    %c2_63 = arith.constant 2 : index
    %84 = arith.index_cast %83 : i32 to index
    %c0_64 = arith.constant 0 : index
    %85 = vector.load %arg2[%c0_62, %c2_63, %84, %c0_64] : memref<1x3x288x64xbf16, #tpu.memory_space<vmem>>, vector<1x1x128x64xbf16>
    %86 = vector.shape_cast %85 : vector<1x1x128x64xbf16> to vector<128x64xbf16>
    %c8 = arith.constant 8 : index
    %c0_65 = arith.constant 0 : index
    %c0_66 = arith.constant 0 : index
    %87 = vector.load %arg3[%c8, %c0_65, %c0_66] : memref<9x64x128xbf16, #tpu.memory_space<vmem>>, vector<1x64x128xbf16>
    %88 = vector.shape_cast %87 : vector<1x64x128xbf16> to vector<64x128xbf16>
    %cst_67 = arith.constant dense<0.000000e+00> : vector<128x128xf32>
    %89 = tpu.matmul %86, %88, %cst_67 {dimension_numbers = #tpu.dot_dimension_numbers<[1], [0], [0], [1], [0, 0, 1, 1], [], []>} : vector<128x64xbf16>, vector<64x128xbf16>, vector<128x128xf32> -> vector<128x128xf32>
    %90 = arith.addf %80, %89 : vector<128x128xf32>
    %c0_68 = arith.constant 0 : index
    %c0_69 = arith.constant 0 : index
    %91 = vector.load %arg4[%c0_68, %c0_69] : memref<1x128xf32, #tpu.memory_space<vmem>>, vector<1x128xf32>
    %92 = vector.broadcast %91 : vector<1x128xf32> to vector<128x128xf32>
    %93 = arith.addf %90, %92 : vector<128x128xf32>
    %c0_70 = arith.constant 0 : index
    %c0_71 = arith.constant 0 : index
    %c0_72 = arith.constant 0 : index
    %94 = vector.load %arg5[%c0_70, %c0_71, %c0_72] : memref<1x128x128xf32, #tpu.memory_space<vmem>>, vector<1x128x128xf32>
    %95 = vector.shape_cast %94 : vector<1x128x128xf32> to vector<128x128xf32>
    %96 = vector.shape_cast %93 : vector<128x128xf32> to vector<1x128x128xf32>
    tpu.vector_store %arg5[%c0_70, %c0_71, %c0_72], %96 {strides = array<i32>} : memref<1x128x128xf32, #tpu.memory_space<vmem>>, vector<1x128x128xf32>,
    return
  }
  func.func @transform_0(%arg0: i32, %arg1: i32) -> (i32, i32, i32, i32) {
    %c0_i32 = arith.constant 0 : i32
    %c0_i32_0 = arith.constant 0 : i32
    %c0_i32_1 = arith.constant 0 : i32
    %c0_i32_2 = arith.constant 0 : i32
    return %arg0, %c0_i32, %c0_i32_0, %c0_i32_1 : i32, i32, i32, i32
  }
  func.func @transform_1(%arg0: i32, %arg1: i32) -> (i32, i32, i32) {
    %c0_i32 = arith.constant 0 : i32
    %c0_i32_0 = arith.constant 0 : i32
    %c0_i32_1 = arith.constant 0 : i32
    %c0_i32_2 = arith.constant 0 : i32
    return %c0_i32, %c0_i32_0, %c0_i32_1 : i32, i32, i32
  }
  func.func @transform_2(%arg0: i32, %arg1: i32) -> (i32, i32) {
    %c0_i32 = arith.constant 0 : i32
    %c0_i32_0 = arith.constant 0 : i32
    %c0_i32_1 = arith.constant 0 : i32
    return %c0_i32, %c0_i32_0 : i32, i32
  }
  func.func @transform_3(%arg0: i32, %arg1: i32) -> (i32, i32, i32) {
    %c0_i32 = arith.constant 0 : i32
    %c0_i32_0 = arith.constant 0 : i32
    return %arg0, %arg1, %c0_i32 : i32, i32, i32
  }
}

module attributes {stable_mosaic.version = 11 : i64} {
  func.func @_conv3x3_kernel(%arg0: i32, %arg1: i32, %arg2: memref<1x3x288x64xbf16, #tpu.memory_space<vmem>>, %arg3: memref<9x64x128xbf16, #tpu.memory_space<vmem>>, %arg4: memref<1x128xf32, #tpu.memory_space<vmem>>, %arg5: memref<1x128x128xf32, #tpu.memory_space<vmem>>) attributes {dimension_semantics = [#tpu.dimension_semantics<parallel>, #tpu.dimension_semantics<parallel>], iteration_bounds = array<i64: 2, 2>, scalar_prefetch = 0 : i64, scratch_operands = 0 : i64, tpu.core_type = #tpu.core_type<tc>, window_params = [{transform_indices = @transform_0, window_bounds = array<i64: 1, 3, 288, 64>}, {pipeline_mode = #tpu.pipeline_mode<synchronous>, transform_indices = @transform_1, window_bounds = array<i64: 9, 64, 128>}, {pipeline_mode = #tpu.pipeline_mode<synchronous>, transform_indices = @transform_2, window_bounds = array<i64: 1, 128>}, {transform_indices = @transform_3, window_bounds = array<i64: 1, 128, 128>}]} {
    %cst = arith.constant 0.000000e+00 : f32
    %0 = vector.broadcast %cst : f32 to vector<128x128xf32>
    %c128_i32 = arith.constant 128 : i32
    %1 = arith.muli %arg1, %c128_i32 : i32
    %c0_i32 = arith.constant 0 : i32
    %2 = arith.addi %1, %c0_i32 : i32
    %3 = tpu.assume_multiple %2, 8 : i32
    %c0 = arith.constant 0 : index
    %c0_0 = arith.constant 0 : index
    %4 = arith.index_cast %3 : i32 to index
    %c0_1 = arith.constant 0 : index
    %5 = vector.load %arg2[%c0, %c0_0, %4, %c0_1] : memref<1x3x288x64xbf16, #tpu.memory_space<vmem>>, vector<1x1x128x64xbf16>
    %6 = vector.shape_cast %5 : vector<1x1x128x64xbf16> to vector<128x64xbf16>
    %c0_2 = arith.constant 0 : index
    %c0_3 = arith.constant 0 : index
    %c0_4 = arith.constant 0 : index
    %7 = vector.load %arg3[%c0_2, %c0_3, %c0_4] : memref<9x64x128xbf16, #tpu.memory_space<vmem>>, vector<1x64x128xbf16>
    %8 = vector.shape_cast %7 : vector<1x64x128xbf16> to vector<64x128xbf16>
    %cst_5 = arith.constant dense<0.000000e+00> : vector<128x128xf32>
    %9 = tpu.matmul %6, %8, %cst_5 {dimension_numbers = #tpu.dot_dimension_numbers<[1], [0], [0], [1], [0, 0, 1, 1], [], []>} : vector<128x64xbf16>, vector<64x128xbf16>, vector<128x128xf32> -> vector<128x128xf32>
    %10 = arith.addf %0, %9 : vector<128x128xf32>
    %c128_i32_6 = arith.constant 128 : i32
    %11 = arith.muli %arg1, %c128_i32_6 : i32
    %c0_i32_7 = arith.constant 0 : i32
    %12 = arith.addi %11, %c0_i32_7 : i32
    %13 = tpu.assume_multiple %12, 8 : i32
    %c0_8 = arith.constant 0 : index
    %c1 = arith.constant 1 : index
    %14 = arith.index_cast %13 : i32 to index
    %c0_9 = arith.constant 0 : index
    %15 = vector.load %arg2[%c0_8, %c1, %14, %c0_9] : memref<1x3x288x64xbf16, #tpu.memory_space<vmem>>, vector<1x1x128x64xbf16>
    %16 = vector.shape_cast %15 : vector<1x1x128x64xbf16> to vector<128x64xbf16>
    %c1_10 = arith.constant 1 : index
    %c0_11 = arith.constant 0 : index
    %c0_12 = arith.constant 0 : index
    %17 = vector.load %arg3[%c1_10, %c0_11, %c0_12] : memref<9x64x128xbf16, #tpu.memory_space<vmem>>, vector<1x64x128xbf16>
    %18 = vector.shape_cast %17 : vector<1x64x128xbf16> to vector<64x128xbf16>
    %cst_13 = arith.constant dense<0.000000e+00> : vector<128x128xf32>
    %19 = tpu.matmul %16, %18, %cst_13 {dimension_numbers = #tpu.dot_dimension_numbers<[1], [0], [0], [1], [0, 0, 1, 1], [], []>} : vector<128x64xbf16>, vector<64x128xbf16>, vector<128x128xf32> -> vector<128x128xf32>
    %20 = arith.addf %10, %19 : vector<128x128xf32>
    %c128_i32_14 = arith.constant 128 : i32
    %21 = arith.muli %arg1, %c128_i32_14 : i32
    %c0_i32_15 = arith.constant 0 : i32
    %22 = arith.addi %21, %c0_i32_15 : i32
    %23 = tpu.assume_multiple %22, 8 : i32
    %c0_16 = arith.constant 0 : index
    %c2 = arith.constant 2 : index
    %24 = arith.index_cast %23 : i32 to index
    %c0_17 = arith.constant 0 : index
    %25 = vector.load %arg2[%c0_16, %c2, %24, %c0_17] : memref<1x3x288x64xbf16, #tpu.memory_space<vmem>>, vector<1x1x128x64xbf16>
    %26 = vector.shape_cast %25 : vector<1x1x128x64xbf16> to vector<128x64xbf16>
    %c2_18 = arith.constant 2 : index
    %c0_19 = arith.constant 0 : index
    %c0_20 = arith.constant 0 : index
    %27 = vector.load %arg3[%c2_18, %c0_19, %c0_20] : memref<9x64x128xbf16, #tpu.memory_space<vmem>>, vector<1x64x128xbf16>
    %28 = vector.shape_cast %27 : vector<1x64x128xbf16> to vector<64x128xbf16>
    %cst_21 = arith.constant dense<0.000000e+00> : vector<128x128xf32>
    %29 = tpu.matmul %26, %28, %cst_21 {dimension_numbers = #tpu.dot_dimension_numbers<[1], [0], [0], [1], [0, 0, 1, 1], [], []>} : vector<128x64xbf16>, vector<64x128xbf16>, vector<128x128xf32> -> vector<128x128xf32>
    %30 = arith.addf %20, %29 : vector<128x128xf32>
    %c128_i32_22 = arith.constant 128 : i32
    %31 = arith.muli %arg1, %c128_i32_22 : i32
    %c16_i32 = arith.constant 16 : i32
    %32 = arith.addi %31, %c16_i32 : i32
    %33 = tpu.assume_multiple %32, 8 : i32
    %c0_23 = arith.constant 0 : index
    %c0_24 = arith.constant 0 : index
    %34 = arith.index_cast %33 : i32 to index
    %c0_25 = arith.constant 0 : index
    %35 = vector.load %arg2[%c0_23, %c0_24, %34, %c0_25] : memref<1x3x288x64xbf16, #tpu.memory_space<vmem>>, vector<1x1x128x64xbf16>
    %36 = vector.shape_cast %35 : vector<1x1x128x64xbf16> to vector<128x64xbf16>
    %c3 = arith.constant 3 : index
    %c0_26 = arith.constant 0 : index
    %c0_27 = arith.constant 0 : index
    %37 = vector.load %arg3[%c3, %c0_26, %c0_27] : memref<9x64x128xbf16, #tpu.memory_space<vmem>>, vector<1x64x128xbf16>
    %38 = vector.shape_cast %37 : vector<1x64x128xbf16> to vector<64x128xbf16>
    %cst_28 = arith.constant dense<0.000000e+00> : vector<128x128xf32>
    %39 = tpu.matmul %36, %38, %cst_28 {dimension_numbers = #tpu.dot_dimension_numbers<[1], [0], [0], [1], [0, 0, 1, 1], [], []>} : vector<128x64xbf16>, vector<64x128xbf16>, vector<128x128xf32> -> vector<128x128xf32>
    %40 = arith.addf %30, %39 : vector<128x128xf32>
    %c128_i32_29 = arith.constant 128 : i32
    %41 = arith.muli %arg1, %c128_i32_29 : i32
    %c16_i32_30 = arith.constant 16 : i32
    %42 = arith.addi %41, %c16_i32_30 : i32
    %43 = tpu.assume_multiple %42, 8 : i32
    %c0_31 = arith.constant 0 : index
    %c1_32 = arith.constant 1 : index
    %44 = arith.index_cast %43 : i32 to index
    %c0_33 = arith.constant 0 : index
    %45 = vector.load %arg2[%c0_31, %c1_32, %44, %c0_33] : memref<1x3x288x64xbf16, #tpu.memory_space<vmem>>, vector<1x1x128x64xbf16>
    %46 = vector.shape_cast %45 : vector<1x1x128x64xbf16> to vector<128x64xbf16>
    %c4 = arith.constant 4 : index
    %c0_34 = arith.constant 0 : index
    %c0_35 = arith.constant 0 : index
    %47 = vector.load %arg3[%c4, %c0_34, %c0_35] : memref<9x64x128xbf16, #tpu.memory_space<vmem>>, vector<1x64x128xbf16>
    %48 = vector.shape_cast %47 : vector<1x64x128xbf16> to vector<64x128xbf16>
    %cst_36 = arith.constant dense<0.000000e+00> : vector<128x128xf32>
    %49 = tpu.matmul %46, %48, %cst_36 {dimension_numbers = #tpu.dot_dimension_numbers<[1], [0], [0], [1], [0, 0, 1, 1], [], []>} : vector<128x64xbf16>, vector<64x128xbf16>, vector<128x128xf32> -> vector<128x128xf32>
    %50 = arith.addf %40, %49 : vector<128x128xf32>
    %c128_i32_37 = arith.constant 128 : i32
    %51 = arith.muli %arg1, %c128_i32_37 : i32
    %c16_i32_38 = arith.constant 16 : i32
    %52 = arith.addi %51, %c16_i32_38 : i32
    %53 = tpu.assume_multiple %52, 8 : i32
    %c0_39 = arith.constant 0 : index
    %c2_40 = arith.constant 2 : index
    %54 = arith.index_cast %53 : i32 to index
    %c0_41 = arith.constant 0 : index
    %55 = vector.load %arg2[%c0_39, %c2_40, %54, %c0_41] : memref<1x3x288x64xbf16, #tpu.memory_space<vmem>>, vector<1x1x128x64xbf16>
    %56 = vector.shape_cast %55 : vector<1x1x128x64xbf16> to vector<128x64xbf16>
    %c5 = arith.constant 5 : index
    %c0_42 = arith.constant 0 : index
    %c0_43 = arith.constant 0 : index
    %57 = vector.load %arg3[%c5, %c0_42, %c0_43] : memref<9x64x128xbf16, #tpu.memory_space<vmem>>, vector<1x64x128xbf16>
    %58 = vector.shape_cast %57 : vector<1x64x128xbf16> to vector<64x128xbf16>
    %cst_44 = arith.constant dense<0.000000e+00> : vector<128x128xf32>
    %59 = tpu.matmul %56, %58, %cst_44 {dimension_numbers = #tpu.dot_dimension_numbers<[1], [0], [0], [1], [0, 0, 1, 1], [], []>} : vector<128x64xbf16>, vector<64x128xbf16>, vector<128x128xf32> -> vector<128x128xf32>
    %60 = arith.addf %50, %59 : vector<128x128xf32>
    %c128_i32_45 = arith.constant 128 : i32
    %61 = arith.muli %arg1, %c128_i32_45 : i32
    %c32_i32 = arith.constant 32 : i32
    %62 = arith.addi %61, %c32_i32 : i32
    %63 = tpu.assume_multiple %62, 8 : i32
    %c0_46 = arith.constant 0 : index
    %c0_47 = arith.constant 0 : index
    %64 = arith.index_cast %63 : i32 to index
    %c0_48 = arith.constant 0 : index
    %65 = vector.load %arg2[%c0_46, %c0_47, %64, %c0_48] : memref<1x3x288x64xbf16, #tpu.memory_space<vmem>>, vector<1x1x128x64xbf16>
    %66 = vector.shape_cast %65 : vector<1x1x128x64xbf16> to vector<128x64xbf16>
    %c6 = arith.constant 6 : index
    %c0_49 = arith.constant 0 : index
    %c0_50 = arith.constant 0 : index
    %67 = vector.load %arg3[%c6, %c0_49, %c0_50] : memref<9x64x128xbf16, #tpu.memory_space<vmem>>, vector<1x64x128xbf16>
    %68 = vector.shape_cast %67 : vector<1x64x128xbf16> to vector<64x128xbf16>
    %cst_51 = arith.constant dense<0.000000e+00> : vector<128x128xf32>
    %69 = tpu.matmul %66, %68, %cst_51 {dimension_numbers = #tpu.dot_dimension_numbers<[1], [0], [0], [1], [0, 0, 1, 1], [], []>} : vector<128x64xbf16>, vector<64x128xbf16>, vector<128x128xf32> -> vector<128x128xf32>
    %70 = arith.addf %60, %69 : vector<128x128xf32>
    %c128_i32_52 = arith.constant 128 : i32
    %71 = arith.muli %arg1, %c128_i32_52 : i32
    %c32_i32_53 = arith.constant 32 : i32
    %72 = arith.addi %71, %c32_i32_53 : i32
    %73 = tpu.assume_multiple %72, 8 : i32
    %c0_54 = arith.constant 0 : index
    %c1_55 = arith.constant 1 : index
    %74 = arith.index_cast %73 : i32 to index
    %c0_56 = arith.constant 0 : index
    %75 = vector.load %arg2[%c0_54, %c1_55, %74, %c0_56] : memref<1x3x288x64xbf16, #tpu.memory_space<vmem>>, vector<1x1x128x64xbf16>
    %76 = vector.shape_cast %75 : vector<1x1x128x64xbf16> to vector<128x64xbf16>
    %c7 = arith.constant 7 : index
    %c0_57 = arith.constant 0 : index
    %c0_58 = arith.constant 0 : index
    %77 = vector.load %arg3[%c7, %c0_57, %c0_58] : memref<9x64x128xbf16, #tpu.memory_space<vmem>>, vector<1x64x128xbf16>
    %78 = vector.shape_cast %77 : vector<1x64x128xbf16> to vector<64x128xbf16>
    %cst_59 = arith.constant dense<0.000000e+00> : vector<128x128xf32>
    %79 = tpu.matmul %76, %78, %cst_59 {dimension_numbers = #tpu.dot_dimension_numbers<[1], [0], [0], [1], [0, 0, 1, 1], [], []>} : vector<128x64xbf16>, vector<64x128xbf16>, vector<128x128xf32> -> vector<128x128xf32>
    %80 = arith.addf %70, %79 : vector<128x128xf32>
    %c128_i32_60 = arith.constant 128 : i32
    %81 = arith.muli %arg1, %c128_i32_60 : i32
    %c32_i32_61 = arith.constant 32 : i32
    %82 = arith.addi %81, %c32_i32_61 : i32
    %83 = tpu.assume_multiple %82, 8 : i32
    %c0_62 = arith.constant 0 : index
    %c2_63 = arith.constant 2 : index
    %84 = arith.index_cast %83 : i32 to index
    %c0_64 = arith.constant 0 : index
    %85 = vector.load %arg2[%c0_62, %c2_63, %84, %c0_64] : memref<1x3x288x64xbf16, #tpu.memory_space<vmem>>, vector<1x1x128x64xbf16>
    %86 = vector.shape_cast %85 : vector<1x1x128x64xbf16> to vector<128x64xbf16>
    %c8 = arith.constant 8 : index
    %c0_65 = arith.constant 0 : index
    %c0_66 = arith.constant 0 : index
    %87 = vector.load %arg3[%c8, %c0_65, %c0_66] : memref<9x64x128xbf16, #tpu.memory_space<vmem>>, vector<1x64x128xbf16>
    %88 = vector.shape_cast %87 : vector<1x64x128xbf16> to vector<64x128xbf16>
    %cst_67 = arith.constant dense<0.000000e+00> : vector<128x128xf32>
    %89 = tpu.matmul %86, %88, %cst_67 {dimension_numbers = #tpu.dot_dimension_numbers<[1], [0], [0], [1], [0, 0, 1, 1], [], []>} : vector<128x64xbf16>, vector<64x128xbf16>, vector<128x128xf32> -> vector<128x128xf32>
    %90 = arith.addf %80, %89 : vector<128x128xf32>
    %c0_68 = arith.constant 0 : index
    %c0_69 = arith.constant 0 : index
    %91 = vector.load %arg4[%c0_68, %c0_69] : memref<1x128xf32, #tpu.memory_space<vmem>>, vector<1x128xf32>
    %92 = vector.broadcast %91 : vector<1x128xf32> to vector<128x128xf32>
    %93 = arith.addf %90, %92 : vector<128x128xf32>
    %94 = math.tanh %93 : vector<128x128xf32>
    %c0_70 = arith.constant 0 : index
    %c0_71 = arith.constant 0 : index
    %c0_72 = arith.constant 0 : index
    %95 = vector.load %arg5[%c0_70, %c0_71, %c0_72] : memref<1x128x128xf32, #tpu.memory_space<vmem>>, vector<1x128x128xf32>
    %96 = vector.shape_cast %95 : vector<1x128x128xf32> to vector<128x128xf32>
    %97 = vector.shape_cast %94 : vector<128x128xf32> to vector<1x128x128xf32>
    tpu.vector_store %arg5[%c0_70, %c0_71, %c0_72], %97 {strides = array<i32>} : memref<1x128x128xf32, #tpu.memory_space<vmem>>, vector<1x128x128xf32>,
    return
  }
  func.func @transform_0(%arg0: i32, %arg1: i32) -> (i32, i32, i32, i32) {
    %c0_i32 = arith.constant 0 : i32
    %c0_i32_0 = arith.constant 0 : i32
    %c0_i32_1 = arith.constant 0 : i32
    %c0_i32_2 = arith.constant 0 : i32
    return %arg0, %c0_i32, %c0_i32_0, %c0_i32_1 : i32, i32, i32, i32
  }
  func.func @transform_1(%arg0: i32, %arg1: i32) -> (i32, i32, i32) {
    %c0_i32 = arith.constant 0 : i32
    %c0_i32_0 = arith.constant 0 : i32
    %c0_i32_1 = arith.constant 0 : i32
    %c0_i32_2 = arith.constant 0 : i32
    return %c0_i32, %c0_i32_0, %c0_i32_1 : i32, i32, i32
  }
  func.func @transform_2(%arg0: i32, %arg1: i32) -> (i32, i32) {
    %c0_i32 = arith.constant 0 : i32
    %c0_i32_0 = arith.constant 0 : i32
    %c0_i32_1 = arith.constant 0 : i32
    return %c0_i32, %c0_i32_0 : i32, i32
  }
  func.func @transform_3(%arg0: i32, %arg1: i32) -> (i32, i32, i32) {
    %c0_i32 = arith.constant 0 : i32
    %c0_i32_0 = arith.constant 0 : i32
    return %arg0, %arg1, %c0_i32 : i32, i32, i32
  }
}

</mosaic_0001>

<llo_original>
// kernel: _details_net_forward.9
$region0: #{_details_net_forward.9}
  #allocation0 [shape = 'u32[]', space=smem, size = 0x4, offset = 0x4, fixed_abs, tag = 'smem constant byte address 0x4 - core index']
  #allocation1 [shape = 'u32[72,128]{1,0:T(1,128)}', space=vmem, size = 0x9000, scoped, tag = 'internal scratch']
  %s0 = inlined_call_operand.vmem [shape: bf16[2,3,288,32], index: 0, kind: input, shape index: {}]
  %s1 = inlined_call_operand.vmem [shape: bf16[9,32,128], index: 1, kind: input, shape index: {}]
  %s2 = inlined_call_operand.vmem [shape: f32[1,128], index: 2, kind: input, shape index: {}]
  %s3 = inlined_call_operand.vmem [shape: f32[2,256,128], index: 3, kind: output, shape index: {}]
  %s4 = sld [smem:[#allocation0]]
  $region45: #{_details_net_forward.9} parent=0
    _
  %s6 = ssub.s32 1, %s4
  %s7 = scalar_select 0, %s6, %s4
  loop: start=0, step=1, limit=6
  $region2: #{_details_net_forward.9} parent=0 // loop_pre_header
    _
  $region3: #{_details_net_forward.9} parent=0 // loop_header
    %s9 = sphi 0, %s13
    %p10 = scmp.ge.s32.totalorder %s9, 6
    %s16 = sphi 0, %s28
    %s17 = sphi 0, %s24
    %s18 = sphi 0, %s16
    %s19 = sphi 0, %s17
    %s20 = sphi 0, %s18
    %s21 = sphi 0, %s19
    %s31 = sphi 0, %s33
    %s34 = sphi 0, %s31
    %s35 = sphi 0, %s34
    %s51 = sphi 0, %s35
    %s55 = sphi 0, %s55
    %s57 = sphi 0, %s55
    %s58 = sphi 0, %s57
    %s72 = sphi 0, %s58
    %s76 = sphi 0, %s76
    %s78 = sphi 0, %s76
    %s79 = sphi 0, %s78
    %s93 = sphi 0, %s79
    %s101 = sphi 0, %s103
    %s104 = sphi 0, %s101
    %s105 = sphi 0, %s104
    %s121 = sphi 0, %s105
  $region4: #{_details_net_forward.9} parent=0 // loop_header_branch
    %12 = sbr.rel (%p10) target = $region8
  $region5: #{_details_net_forward.9} parent=0 // loop_body
    %s14 = ssub.s32 %s9, 1
    %s15 = ssub.s32 %s9, 2
    %s22 = sadd.s32 1, %s17
    %p23 = scmp.ge.s32.totalorder %s22, 2
    %s24 = scalar_select %p23, 0, %s22
    %s25 = sadd.s32 1, %s16
    %s26 = scalar_select %p23, %s25, %s16
    %p27 = scmp.ge.s32.totalorder %s26, 2
    %s28 = scalar_select %p27, 0, %s26
    %s29 = ssub.s32 %s16, %s28
    %p30 = scmp.eq.s32.totalorder %s29, 0
    %s32 = sadd.s32 %s31, 1
    %s33 = scalar_select %p30, %s31, %s32
    %p36 = pneg %p30
    %p37 = scmp.eq.s32.totalorder %s9, 3
    %p38 = por %p36, %p37
    %p39 = scmp.ne.s32.totalorder %s31, %s34
    %p40 = scmp.eq.s32.totalorder %s9, 0
    %p41 = por %p39, %p40
    %p42 = scmp.ne.s32.totalorder %s31, %s34
    %p43 = scmp.eq.s32.totalorder %s14, 3
    %p44 = por %p42, %p43
    %p45 = scmp.ne.s32.totalorder %s34, %s35
    %p46 = scmp.eq.s32.totalorder %s14, 0
    %p47 = por %p45, %p46
    %p48 = scmp.ne.s32.totalorder %s34, %s35
    %p49 = scmp.eq.s32.totalorder %s15, 3
    %p50 = por %p48, %p49
    %p52 = scmp.ne.s32.totalorder %s35, %s51
    %p53 = scmp.eq.s32.totalorder %s15, 0
    %p54 = por %p52, %p53
    %s56 = sadd.s32 %s55, 1
    %p59 = scmp.eq.s32.totalorder %s9, 3
    %p60 = scmp.ne.s32.totalorder %s55, %s57
    %p61 = scmp.eq.s32.totalorder %s9, 0
    %p62 = por %p60, %p61
    %p63 = scmp.ne.s32.totalorder %s55, %s57
    %p64 = scmp.eq.s32.totalorder %s14, 3
    %p65 = por %p63, %p64
    %p66 = scmp.ne.s32.totalorder %s57, %s58
    %p67 = scmp.eq.s32.totalorder %s14, 0
    %p68 = por %p66, %p67
    %p69 = scmp.ne.s32.totalorder %s57, %s58
    %p70 = scmp.eq.s32.totalorder %s15, 3
    %p71 = por %p69, %p70
    %p73 = scmp.ne.s32.totalorder %s58, %s72
    %p74 = scmp.eq.s32.totalorder %s15, 0
    %p75 = por %p73, %p74
    %s77 = sadd.s32 %s76, 1
    %p80 = scmp.eq.s32.totalorder %s9, 3
    %p81 = scmp.ne.s32.totalorder %s76, %s78
    %p82 = scmp.eq.s32.totalorder %s9, 0
    %p83 = por %p81, %p82
    %p84 = scmp.ne.s32.totalorder %s76, %s78
    %p85 = scmp.eq.s32.totalorder %s14, 3
    %p86 = por %p84, %p85
    %p87 = scmp.ne.s32.totalorder %s78, %s79
    %p88 = scmp.eq.s32.totalorder %s14, 0
    %p89 = por %p87, %p88
    %p90 = scmp.ne.s32.totalorder %s78, %s79
    %p91 = scmp.eq.s32.totalorder %s15, 3
    %p92 = por %p90, %p91
    %p94 = scmp.ne.s32.totalorder %s79, %s93
    %p95 = scmp.eq.s32.totalorder %s15, 0
    %p96 = por %p94, %p95
    %s97 = ssub.s32 %s16, %s28
    %s98 = ssub.s32 %s17, %s24
    %s99 = sor.u32 %s97, %s98
    %p100 = scmp.eq.s32.totalorder %s99, 0
    %s102 = sadd.s32 %s101, 1
    %s103 = scalar_select %p100, %s101, %s102
    %p106 = pneg %p100
    %p107 = scmp.eq.s32.totalorder %s9, 3
    %p108 = por %p106, %p107
    %p109 = scmp.ne.s32.totalorder %s101, %s104
    %p110 = scmp.eq.s32.totalorder %s9, 0
    %p111 = por %p109, %p110
    %p112 = scmp.ne.s32.totalorder %s101, %s104
    %p113 = scmp.eq.s32.totalorder %s14, 3
    %p114 = por %p112, %p113
    %p115 = scmp.ne.s32.totalorder %s104, %s105
    %p116 = scmp.eq.s32.totalorder %s14, 0
    %p117 = por %p115, %p116
    %p118 = scmp.ne.s32.totalorder %s104, %s105
    %p119 = scmp.eq.s32.totalorder %s15, 3
    %p120 = por %p118, %p119
    %p122 = scmp.ne.s32.totalorder %s105, %s121
    %p123 = scmp.eq.s32.totalorder %s15, 0
    %p124 = por %p122, %p123
    %p125 = scmp.le.s32.totalorder 1, %s9
    %p126 = scmp.lt.s32.totalorder %s9, 5
    %p127 = pnand %p125, %p126
    %p128 = pneg %p127
    // Predicated region
    $region9: #{_details_net_forward.9} parent=5 // pred_check
      _
    $region10: #{_details_net_forward.9} parent=5 // pred_check_branch
      %130 = sbr.rel (%p127) target = $region12
    $region11: #{_details_net_forward.9} parent=5 // pred_region
      %s131 = ssub.s32 %s9, 1
      // Predicated region
      $region13: #{_details_net_forward.9} parent=11 // pred_check
        %p132 = pneg %p68
      $region14: #{_details_net_forward.9} parent=11 // pred_check_branch
        %134 = sbr.rel (%p132) target = $region16
      $region15: #{_details_net_forward.9} parent=11 // pred_region
        _
      $region16: #{_details_net_forward.9} parent=11 // pred_fallthru
        _
      // Predicated region
      $region17: #{_details_net_forward.9} parent=11 // pred_check
        %p135 = pneg %p89
      $region18: #{_details_net_forward.9} parent=11 // pred_check_branch
        %137 = sbr.rel (%p135) target = $region20
      $region19: #{_details_net_forward.9} parent=11 // pred_region
        _
      $region20: #{_details_net_forward.9} parent=11 // pred_fallthru
        _
    $region12: #{_details_net_forward.9} parent=5 // pred_fallthru
      _
    %p138 = scmp.lt.s32.totalorder %s9, 4
    // Predicated region
    $region21: #{_details_net_forward.9} parent=5 // pred_check
      %p139 = pneg %p138
    $region22: #{_details_net_forward.9} parent=5 // pred_check_branch
      %141 = sbr.rel (%p139) target = $region24
    $region23: #{_details_net_forward.9} parent=5 // pred_region
      // Predicated region
      $region25: #{_details_net_forward.9} parent=23 // pred_check
        %p142 = pneg %p41
      $region26: #{_details_net_forward.9} parent=23 // pred_check_branch
        %144 = sbr.rel (%p142) target = $region28
      $region27: #{_details_net_forward.9} parent=23 // pred_region
        %p145 = scmp.lt.s32.totalorder %s16, 1
        %s146 = scalar_select %p145, %s16, 1
        %s147 = smul.addr %s146, 108
        %s148 = smul.addr %s147, 4
        %s149 = scalar_lea.vmem %s0, %s148
      $region28: #{_details_net_forward.9} parent=23 // pred_fallthru
        _
    $region24: #{_details_net_forward.9} parent=5 // pred_fallthru
      _
    %p150 = scmp.le.s32.totalorder 1, %s9
    %p151 = scmp.lt.s32.totalorder %s9, 5
    %p152 = pnand %p150, %p151
    %p153 = pneg %p152
    // Predicated region
    $region29: #{_details_net_forward.9} parent=5 // pred_check
      _
    $region30: #{_details_net_forward.9} parent=5 // pred_check_branch
      %155 = sbr.rel (%p152) target = $region32
    $region31: #{_details_net_forward.9} parent=5 // pred_region
      %s156 = ssub.s32 %s9, 1
      %p157 = scmp.lt.s32.totalorder %s18, 1
      %s158 = scalar_select %p157, %s18, 1
      %s159 = smul.addr %s158, 108
      %s160 = smul.addr %s159, 4
      %s161 = scalar_lea.vmem %s0, %s160
      %p162 = pneg %p47
      %p163 = pneg %p44
      %p164 = pneg %p68
      %p165 = pneg %p65
      %p166 = pneg %p89
      %p167 = pneg %p86
      %p168 = pneg %p117
      %p169 = pneg %p114
      %s170 = smul.u32 16, %s19
      %p171 = scmp.lt.s32.totalorder %s18, 1
      %s172 = scalar_select %p171, %s18, 1
      %p173 = scmp.lt.s32.totalorder %s170, 31
      %s174 = scalar_select %p173, %s170, 31
      %s175 = smul.addr %s172, 32
      %s176 = sadd.s32 %s174, %s175
      %s177 = smul.addr %s176, 8
      %s178 = scalar_lea.vmem %s3, %s177
      %p179 = scmp.lt.s32.totalorder %s18, 1
      %s180 = scalar_select %p179, %s18, 1
      %s181 = smul.addr %s180, 108
      %s182 = smul.addr %s181, 4
      %s183 = scalar_lea.vmem %s0, %s182
      %s184 = smul.u32 16, %s19
      %p185 = scmp.lt.s32.totalorder %s18, 1
      %s186 = scalar_select %p185, %s18, 1
      %p187 = scmp.lt.s32.totalorder %s184, 31
      %s188 = scalar_select %p187, %s184, 31
      %s189 = smul.addr %s186, 32
      %s190 = sadd.s32 %s188, %s189
      %s191 = smul.addr %s190, 8
      %s192 = scalar_lea.vmem %s3, %s191
      %s193 = smul.u32 16, %s19
      %s195 = smul.u32 %s19, 128
      %s196 = sshra.s32 %s195, 3
      %s197 = sand.u32 %s195, 7
      %s198 = smul.addr %s196, 4
      %s199 = scalar_lea.vmem %s183, %s198
      %v200 = vld [vmem:[%s199] sm:$0xf]
      %v201 = vld [vmem:[%s199 + $0x4] sm:$0xf]
      %v202 = vld [vmem:[%s199 + $0x8] sm:$0xf]
      %v203 = vld [vmem:[%s199 + $0xc] sm:$0xf]
      %v204 = vld [vmem:[%s199 + $0x10] sm:$0xf]
      %v205 = vld [vmem:[%s199 + $0x14] sm:$0xf]
      %v206 = vld [vmem:[%s199 + $0x18] sm:$0xf]
      %v207 = vld [vmem:[%s199 + $0x1c] sm:$0xf]
      %v208 = vld [vmem:[%s199 + $0x20] sm:$0xf]
      %v209 = vld [vmem:[%s199 + $0x24] sm:$0xf]
      %v210 = vld [vmem:[%s199 + $0x28] sm:$0xf]
      %v211 = vld [vmem:[%s199 + $0x2c] sm:$0xf]
      %v212 = vld [vmem:[%s199 + $0x30] sm:$0xf]
      %v213 = vld [vmem:[%s199 + $0x34] sm:$0xf]
      %v214 = vld [vmem:[%s199 + $0x38] sm:$0xf]
      %v215 = vld [vmem:[%s199 + $0x3c] sm:$0xf]
      %v216 = vld [vmem:[%s1] sm:$0xf]
      %v217 = vld [vmem:[%s1 + $0x4] sm:$0xf]
      %v218 = vld [vmem:[%s1 + $0x8] sm:$0xf]
      %v219 = vld [vmem:[%s1 + $0xc] sm:$0xf]
      %s220 = sadd.s32 %s196, 36
      %s221 = smul.addr %s220, 4
      %s222 = scalar_lea.vmem %s183, %s221
      %v223 = vld [vmem:[%s222] sm:$0xf]
      %v224 = vld [vmem:[%s222 + $0x4] sm:$0xf]
      %v225 = vld [vmem:[%s222 + $0x8] sm:$0xf]
      %v226 = vld [vmem:[%s222 + $0xc] sm:$0xf]
      %v227 = vld [vmem:[%s222 + $0x10] sm:$0xf]
      %v228 = vld [vmem:[%s222 + $0x14] sm:$0xf]
      %v229 = vld [vmem:[%s222 + $0x18] sm:$0xf]
      %v230 = vld [vmem:[%s222 + $0x1c] sm:$0xf]
      %v231 = vld [vmem:[%s222 + $0x20] sm:$0xf]
      %v232 = vld [vmem:[%s222 + $0x24] sm:$0xf]
      %v233 = vld [vmem:[%s222 + $0x28] sm:$0xf]
      %v234 = vld [vmem:[%s222 + $0x2c] sm:$0xf]
      %v235 = vld [vmem:[%s222 + $0x30] sm:$0xf]
      %v236 = vld [vmem:[%s222 + $0x34] sm:$0xf]
      %v237 = vld [vmem:[%s222 + $0x38] sm:$0xf]
      %v238 = vld [vmem:[%s222 + $0x3c] sm:$0xf]
      %s239 = scalar_lea.vmem %s1, 16
      %v240 = vld [vmem:[%s239] sm:$0xf]
      %v241 = vld [vmem:[%s239 + $0x4] sm:$0xf]
      %v242 = vld [vmem:[%s239 + $0x8] sm:$0xf]
      %v243 = vld [vmem:[%s239 + $0xc] sm:$0xf]
      %v260 = vunpack.c.l.b16 %v223
      %v261 = vunpack.c.l.b16 %v224
      %v262 = vunpack.c.l.b16 %v225
      %v263 = vunpack.c.l.b16 %v226
      %v264 = vunpack.c.l.b16 %v227
      %v265 = vunpack.c.l.b16 %v228
      %v266 = vunpack.c.l.b16 %v229
      %v267 = vunpack.c.l.b16 %v230
      %v268 = vunpack.c.l.b16 %v231
      %v269 = vunpack.c.l.b16 %v232
      %v270 = vunpack.c.l.b16 %v233
      %v271 = vunpack.c.l.b16 %v234
      %v272 = vunpack.c.l.b16 %v235
      %v273 = vunpack.c.l.b16 %v236
      %v274 = vunpack.c.l.b16 %v237
      %v275 = vunpack.c.l.b16 %v238
      %v276 = vpack.c.b16 %v261, %v260
      %v277 = vpack.c.b16 %v263, %v262
      %v278 = vpack.c.b16 %v265, %v264
      %v279 = vpack.c.b16 %v267, %v266
      %v280 = vpack.c.b16 %v269, %v268
      %v281 = vpack.c.b16 %v271, %v270
      %v282 = vpack.c.b16 %v273, %v272
      %v283 = vpack.c.b16 %v275, %v274
      %v288 = vunpack.c.l.b16 %v240
      %v289 = vunpack.c.l.b16 %v241
      %v290 = vunpack.c.l.b16 %v242
      %v291 = vunpack.c.l.b16 %v243
      %v292 = vpack.c.b16 %v289, %v288
      %v293 = vpack.c.b16 %v291, %v290
      %vm296 = vcmask 261120
      %v298 = vsel %vm296, %v276, 0
      %v301 = vsel %vm296, %v277, 0
      %v304 = vsel %vm296, %v278, 0
      %v307 = vsel %vm296, %v279, 0
      %v310 = vsel %vm296, %v280, 0
      %v313 = vsel %vm296, %v281, 0
      %v316 = vsel %vm296, %v282, 0
      %v319 = vsel %vm296, %v283, 0
      %321 = vmatpush.bf16.msra.mxu0 0
      %322 = vmatpush.bf16.msra.mxu0 0
      %323 = vmatpush.bf16.msra.mxu0 0
      %324 = vmatpush.bf16.msra.mxu0 0
      %325 = vmatpush.bf16.msra.mxu0 0
      %326 = vmatpush.bf16.msra.mxu0 0
      %327 = vmatpush.bf16.msra.mxu0 %v293
      %328 = vmatpush.bf16.msra.mxu0 %v292
      %329 = vmatmul.bf16.gmra.mxu0 %v298
      %v330 = vpop.f32.mrf.mxu0
      %v331 = vadd.f32 0.0, %v330
      %v332 = vpop.f32.mrf.mxu0
      %v333 = vadd.f32 0.0, %v332
      %334 = vmatmul.bf16.gmra.mxu0 %v301
      %v335 = vpop.f32.mrf.mxu0
      %v336 = vadd.f32 0.0, %v335
      %v337 = vpop.f32.mrf.mxu0
      %v338 = vadd.f32 0.0, %v337
      %339 = vmatmul.bf16.gmra.mxu0 %v304
      %v340 = vpop.f32.mrf.mxu0
      %v341 = vadd.f32 0.0, %v340
      %v342 = vpop.f32.mrf.mxu0
      %v343 = vadd.f32 0.0, %v342
      %344 = vmatmul.bf16.gmra.mxu0 %v307
      %v345 = vpop.f32.mrf.mxu0
      %v346 = vadd.f32 0.0, %v345
      %v347 = vpop.f32.mrf.mxu0
      %v348 = vadd.f32 0.0, %v347
      %349 = vmatmul.bf16.gmra.mxu0 %v310
      %v350 = vpop.f32.mrf.mxu0
      %v351 = vadd.f32 0.0, %v350
      %v352 = vpop.f32.mrf.mxu0
      %v353 = vadd.f32 0.0, %v352
      %354 = vmatmul.bf16.gmra.mxu0 %v313
      %v355 = vpop.f32.mrf.mxu0
      %v356 = vadd.f32 0.0, %v355
      %v357 = vpop.f32.mrf.mxu0
      %v358 = vadd.f32 0.0, %v357
      %359 = vmatmul.bf16.gmra.mxu0 %v316
      %v360 = vpop.f32.mrf.mxu0
      %v361 = vadd.f32 0.0, %v360
      %v362 = vpop.f32.mrf.mxu0
      %v363 = vadd.f32 0.0, %v362
      %364 = vmatmul.bf16.gmra.mxu0 %v319
      %v365 = vpop.f32.mrf.mxu0
      %v366 = vadd.f32 0.0, %v365
      %v367 = vpop.f32.mrf.mxu0
      %v368 = vadd.f32 0.0, %v367
      %369 = vdwg.mxu0
      %v386 = vunpack.c.l.b16 %v200
      %v387 = vunpack.c.l.b16 %v201
      %v388 = vunpack.c.l.b16 %v202
      %v389 = vunpack.c.l.b16 %v203
      %v390 = vunpack.c.l.b16 %v204
      %v391 = vunpack.c.l.b16 %v205
      %v392 = vunpack.c.l.b16 %v206
      %v393 = vunpack.c.l.b16 %v207
      %v394 = vunpack.c.l.b16 %v208
      %v395 = vunpack.c.l.b16 %v209
      %v396 = vunpack.c.l.b16 %v210
      %v397 = vunpack.c.l.b16 %v211
      %v398 = vunpack.c.l.b16 %v212
      %v399 = vunpack.c.l.b16 %v213
      %v400 = vunpack.c.l.b16 %v214
      %v401 = vunpack.c.l.b16 %v215
      %v402 = vpack.c.b16 %v387, %v386
      %v403 = vpack.c.b16 %v389, %v388
      %v404 = vpack.c.b16 %v391, %v390
      %v405 = vpack.c.b16 %v393, %v392
      %v406 = vpack.c.b16 %v395, %v394
      %v407 = vpack.c.b16 %v397, %v396
      %v408 = vpack.c.b16 %v399, %v398
      %v409 = vpack.c.b16 %v401, %v400
      %v414 = vunpack.c.l.b16 %v216
      %v415 = vunpack.c.l.b16 %v217
      %v416 = vunpack.c.l.b16 %v218
      %v417 = vunpack.c.l.b16 %v219
      %v418 = vpack.c.b16 %v415, %v414
      %v419 = vpack.c.b16 %v417, %v416
      %v423 = vsel %vm296, %v402, 0
      %v426 = vsel %vm296, %v403, 0
      %v429 = vsel %vm296, %v404, 0
      %v432 = vsel %vm296, %v405, 0
      %v435 = vsel %vm296, %v406, 0
      %v438 = vsel %vm296, %v407, 0
      %v441 = vsel %vm296, %v408, 0
      %v444 = vsel %vm296, %v409, 0
      %446 = vmatpush.bf16.msra.mxu0 0
      %447 = vmatpush.bf16.msra.mxu0 0
      %448 = vmatpush.bf16.msra.mxu0 0
      %449 = vmatpush.bf16.msra.mxu0 0
      %450 = vmatpush.bf16.msra.mxu0 0
      %451 = vmatpush.bf16.msra.mxu0 0
      %452 = vmatpush.bf16.msra.mxu0 %v419
      %453 = vmatpush.bf16.msra.mxu0 %v418
      %454 = vmatmul.bf16.gmra.mxu0 %v423
      %v455 = vpop.f32.mrf.mxu0
      %v456 = vadd.f32 %v331, %v455
      %v457 = vpop.f32.mrf.mxu0
      %v458 = vadd.f32 %v333, %v457
      %459 = vmatmul.bf16.gmra.mxu0 %v426
      %v460 = vpop.f32.mrf.mxu0
      %v461 = vadd.f32 %v336, %v460
      %v462 = vpop.f32.mrf.mxu0
      %v463 = vadd.f32 %v338, %v462
      %464 = vmatmul.bf16.gmra.mxu0 %v429
      %v465 = vpop.f32.mrf.mxu0
      %v466 = vadd.f32 %v341, %v465
      %v467 = vpop.f32.mrf.mxu0
      %v468 = vadd.f32 %v343, %v467
      %469 = vmatmul.bf16.gmra.mxu0 %v432
      %v470 = vpop.f32.mrf.mxu0
      %v471 = vadd.f32 %v346, %v470
      %v472 = vpop.f32.mrf.mxu0
      %v473 = vadd.f32 %v348, %v472
      %474 = vmatmul.bf16.gmra.mxu0 %v435
      %v475 = vpop.f32.mrf.mxu0
      %v476 = vadd.f32 %v351, %v475
      %v477 = vpop.f32.mrf.mxu0
      %v478 = vadd.f32 %v353, %v477
      %479 = vmatmul.bf16.gmra.mxu0 %v438
      %v480 = vpop.f32.mrf.mxu0
      %v481 = vadd.f32 %v356, %v480
      %v482 = vpop.f32.mrf.mxu0
      %v483 = vadd.f32 %v358, %v482
      %484 = vmatmul.bf16.gmra.mxu0 %v441
      %v485 = vpop.f32.mrf.mxu0
      %v486 = vadd.f32 %v361, %v485
      %v487 = vpop.f32.mrf.mxu0
      %v488 = vadd.f32 %v363, %v487
      %489 = vmatmul.bf16.gmra.mxu0 %v444
      %v490 = vpop.f32.mrf.mxu0
      %v491 = vadd.f32 %v366, %v490
      %v492 = vpop.f32.mrf.mxu0
      %v493 = vadd.f32 %v368, %v492
      %494 = vdwg.mxu0
      %s495 = sadd.s32 %s196, 72
      %s496 = smul.addr %s495, 4
      %s497 = scalar_lea.vmem %s183, %s496
      %v498 = vld [vmem:[%s497] sm:$0xf]
      %v499 = vld [vmem:[%s497 + $0x4] sm:$0xf]
      %v500 = vld [vmem:[%s497 + $0x8] sm:$0xf]
      %v501 = vld [vmem:[%s497 + $0xc] sm:$0xf]
      %v502 = vld [vmem:[%s497 + $0x10] sm:$0xf]
      %v503 = vld [vmem:[%s497 + $0x14] sm:$0xf]
      %v504 = vld [vmem:[%s497 + $0x18] sm:$0xf]
      %v505 = vld [vmem:[%s497 + $0x1c] sm:$0xf]
      %v506 = vld [vmem:[%s497 + $0x20] sm:$0xf]
      %v507 = vld [vmem:[%s497 + $0x24] sm:$0xf]
      %v508 = vld [vmem:[%s497 + $0x28] sm:$0xf]
      %v509 = vld [vmem:[%s497 + $0x2c] sm:$0xf]
      %v510 = vld [vmem:[%s497 + $0x30] sm:$0xf]
      %v511 = vld [vmem:[%s497 + $0x34] sm:$0xf]
      %v512 = vld [vmem:[%s497 + $0x38] sm:$0xf]
      %v513 = vld [vmem:[%s497 + $0x3c] sm:$0xf]
      %s514 = scalar_lea.vmem %s1, 32
      %v515 = vld [vmem:[%s514] sm:$0xf]
      %v516 = vld [vmem:[%s514 + $0x4] sm:$0xf]
      %v517 = vld [vmem:[%s514 + $0x8] sm:$0xf]
      %v518 = vld [vmem:[%s514 + $0xc] sm:$0xf]
      %v535 = vunpack.c.l.b16 %v498
      %v536 = vunpack.c.l.b16 %v499
      %v537 = vunpack.c.l.b16 %v500
      %v538 = vunpack.c.l.b16 %v501
      %v539 = vunpack.c.l.b16 %v502
      %v540 = vunpack.c.l.b16 %v503
      %v541 = vunpack.c.l.b16 %v504
      %v542 = vunpack.c.l.b16 %v505
      %v543 = vunpack.c.l.b16 %v506
      %v544 = vunpack.c.l.b16 %v507
      %v545 = vunpack.c.l.b16 %v508
      %v546 = vunpack.c.l.b16 %v509
      %v547 = vunpack.c.l.b16 %v510
      %v548 = vunpack.c.l.b16 %v511
      %v549 = vunpack.c.l.b16 %v512
      %v550 = vunpack.c.l.b16 %v513
      %v551 = vpack.c.b16 %v536, %v535
      %v552 = vpack.c.b16 %v538, %v537
      %v553 = vpack.c.b16 %v540, %v539
      %v554 = vpack.c.b16 %v542, %v541
      %v555 = vpack.c.b16 %v544, %v543
      %v556 = vpack.c.b16 %v546, %v545
      %v557 = vpack.c.b16 %v548, %v547
      %v558 = vpack.c.b16 %v550, %v549
      %v563 = vunpack.c.l.b16 %v515
      %v564 = vunpack.c.l.b16 %v516
      %v565 = vunpack.c.l.b16 %v517
      %v566 = vunpack.c.l.b16 %v518
      %v567 = vpack.c.b16 %v564, %v563
      %v568 = vpack.c.b16 %v566, %v565
      %v572 = vsel %vm296, %v551, 0
      %v575 = vsel %vm296, %v552, 0
      %v578 = vsel %vm296, %v553, 0
      %v581 = vsel %vm296, %v554, 0
      %v584 = vsel %vm296, %v555, 0
      %v587 = vsel %vm296, %v556, 0
      %v590 = vsel %vm296, %v557, 0
      %v593 = vsel %vm296, %v558, 0
      %595 = vmatpush.bf16.msra.mxu0 0
      %596 = vmatpush.bf16.msra.mxu0 0
      %597 = vmatpush.bf16.msra.mxu0 0
      %598 = vmatpush.bf16.msra.mxu0 0
      %599 = vmatpush.bf16.msra.mxu0 0
      %600 = vmatpush.bf16.msra.mxu0 0
      %601 = vmatpush.bf16.msra.mxu0 %v568
      %602 = vmatpush.bf16.msra.mxu0 %v567
      %603 = vmatmul.bf16.gmra.mxu0 %v572
      %v604 = vpop.f32.mrf.mxu0
      %v605 = vadd.f32 0.0, %v604
      %v606 = vpop.f32.mrf.mxu0
      %v607 = vadd.f32 0.0, %v606
      %608 = vmatmul.bf16.gmra.mxu0 %v575
      %v609 = vpop.f32.mrf.mxu0
      %v610 = vadd.f32 0.0, %v609
      %v611 = vpop.f32.mrf.mxu0
      %v612 = vadd.f32 0.0, %v611
      %613 = vmatmul.bf16.gmra.mxu0 %v578
      %v614 = vpop.f32.mrf.mxu0
      %v615 = vadd.f32 0.0, %v614
      %v616 = vpop.f32.mrf.mxu0
      %v617 = vadd.f32 0.0, %v616
      %618 = vmatmul.bf16.gmra.mxu0 %v581
      %v619 = vpop.f32.mrf.mxu0
      %v620 = vadd.f32 0.0, %v619
      %v621 = vpop.f32.mrf.mxu0
      %v622 = vadd.f32 0.0, %v621
      %623 = vmatmul.bf16.gmra.mxu0 %v584
      %v624 = vpop.f32.mrf.mxu0
      %v625 = vadd.f32 0.0, %v624
      %v626 = vpop.f32.mrf.mxu0
      %v627 = vadd.f32 0.0, %v626
      %628 = vmatmul.bf16.gmra.mxu0 %v587
      %v629 = vpop.f32.mrf.mxu0
      %v630 = vadd.f32 0.0, %v629
      %v631 = vpop.f32.mrf.mxu0
      %v632 = vadd.f32 0.0, %v631
      %633 = vmatmul.bf16.gmra.mxu0 %v590
      %v634 = vpop.f32.mrf.mxu0
      %v635 = vadd.f32 0.0, %v634
      %v636 = vpop.f32.mrf.mxu0
      %v637 = vadd.f32 0.0, %v636
      %638 = vmatmul.bf16.gmra.mxu0 %v593
      %v639 = vpop.f32.mrf.mxu0
      %v640 = vadd.f32 0.0, %v639
      %v641 = vpop.f32.mrf.mxu0
      %v642 = vadd.f32 0.0, %v641
      %643 = vdwg.mxu0
      %v644 = vadd.f32 %v456, %v605
      %v645 = vadd.f32 %v458, %v607
      %v646 = vadd.f32 %v461, %v610
      %v647 = vadd.f32 %v463, %v612
      %v648 = vadd.f32 %v466, %v615
      %v649 = vadd.f32 %v468, %v617
      %v650 = vadd.f32 %v471, %v620
      %v651 = vadd.f32 %v473, %v622
      %v652 = vadd.f32 %v476, %v625
      %v653 = vadd.f32 %v478, %v627
      %v654 = vadd.f32 %v481, %v630
      %v655 = vadd.f32 %v483, %v632
      %v656 = vadd.f32 %v486, %v635
      %v657 = vadd.f32 %v488, %v637
      %v658 = vadd.f32 %v491, %v640
      %v659 = vadd.f32 %v493, %v642
      %s660 = sadd.s32 %s195, 16
      %s661 = sshra.s32 %s660, 3
      %s662 = sand.u32 %s660, 7
      %s663 = smul.addr %s661, 4
      %s664 = scalar_lea.vmem %s183, %s663
      %v665 = vld [vmem:[%s664] sm:$0xf]
      %v666 = vld [vmem:[%s664 + $0x4] sm:$0xf]
      %v667 = vld [vmem:[%s664 + $0x8] sm:$0xf]
      %v668 = vld [vmem:[%s664 + $0xc] sm:$0xf]
      %v669 = vld [vmem:[%s664 + $0x10] sm:$0xf]
      %v670 = vld [vmem:[%s664 + $0x14] sm:$0xf]
      %v671 = vld [vmem:[%s664 + $0x18] sm:$0xf]
      %v672 = vld [vmem:[%s664 + $0x1c] sm:$0xf]
      %v673 = vld [vmem:[%s664 + $0x20] sm:$0xf]
      %v674 = vld [vmem:[%s664 + $0x24] sm:$0xf]
      %v675 = vld [vmem:[%s664 + $0x28] sm:$0xf]
      %v676 = vld [vmem:[%s664 + $0x2c] sm:$0xf]
      %v677 = vld [vmem:[%s664 + $0x30] sm:$0xf]
      %v678 = vld [vmem:[%s664 + $0x34] sm:$0xf]
      %v679 = vld [vmem:[%s664 + $0x38] sm:$0xf]
      %v680 = vld [vmem:[%s664 + $0x3c] sm:$0xf]
      %s681 = scalar_lea.vmem %s1, 48
      %v682 = vld [vmem:[%s681] sm:$0xf]
      %v683 = vld [vmem:[%s681 + $0x4] sm:$0xf]
      %v684 = vld [vmem:[%s681 + $0x8] sm:$0xf]
      %v685 = vld [vmem:[%s681 + $0xc] sm:$0xf]
      %v702 = vunpack.c.l.b16 %v665
      %v703 = vunpack.c.l.b16 %v666
      %v704 = vunpack.c.l.b16 %v667
      %v705 = vunpack.c.l.b16 %v668
      %v706 = vunpack.c.l.b16 %v669
      %v707 = vunpack.c.l.b16 %v670
      %v708 = vunpack.c.l.b16 %v671
      %v709 = vunpack.c.l.b16 %v672
      %v710 = vunpack.c.l.b16 %v673
      %v711 = vunpack.c.l.b16 %v674
      %v712 = vunpack.c.l.b16 %v675
      %v713 = vunpack.c.l.b16 %v676
      %v714 = vunpack.c.l.b16 %v677
      %v715 = vunpack.c.l.b16 %v678
      %v716 = vunpack.c.l.b16 %v679
      %v717 = vunpack.c.l.b16 %v680
      %v718 = vpack.c.b16 %v703, %v702
      %v719 = vpack.c.b16 %v705, %v704
      %v720 = vpack.c.b16 %v707, %v706
      %v721 = vpack.c.b16 %v709, %v708
      %v722 = vpack.c.b16 %v711, %v710
      %v723 = vpack.c.b16 %v713, %v712
      %v724 = vpack.c.b16 %v715, %v714
      %v725 = vpack.c.b16 %v717, %v716
      %v730 = vunpack.c.l.b16 %v682
      %v731 = vunpack.c.l.b16 %v683
      %v732 = vunpack.c.l.b16 %v684
      %v733 = vunpack.c.l.b16 %v685
      %v734 = vpack.c.b16 %v731, %v730
      %v735 = vpack.c.b16 %v733, %v732
      %v739 = vsel %vm296, %v718, 0
      %v742 = vsel %vm296, %v719, 0
      %v745 = vsel %vm296, %v720, 0
      %v748 = vsel %vm296, %v721, 0
      %v751 = vsel %vm296, %v722, 0
      %v754 = vsel %vm296, %v723, 0
      %v757 = vsel %vm296, %v724, 0
      %v760 = vsel %vm296, %v725, 0
      %762 = vmatpush.bf16.msra.mxu0 0
      %763 = vmatpush.bf16.msra.mxu0 0
      %764 = vmatpush.bf16.msra.mxu0 0
      %765 = vmatpush.bf16.msra.mxu0 0
      %766 = vmatpush.bf16.msra.mxu0 0
      %767 = vmatpush.bf16.msra.mxu0 0
      %768 = vmatpush.bf16.msra.mxu0 %v735
      %769 = vmatpush.bf16.msra.mxu0 %v734
      %770 = vmatmul.bf16.gmra.mxu0 %v739
      %v771 = vpop.f32.mrf.mxu0
      %v772 = vadd.f32 0.0, %v771
      %v773 = vpop.f32.mrf.mxu0
      %v774 = vadd.f32 0.0, %v773
      %775 = vmatmul.bf16.gmra.mxu0 %v742
      %v776 = vpop.f32.mrf.mxu0
      %v777 = vadd.f32 0.0, %v776
      %v778 = vpop.f32.mrf.mxu0
      %v779 = vadd.f32 0.0, %v778
      %780 = vmatmul.bf16.gmra.mxu0 %v745
      %v781 = vpop.f32.mrf.mxu0
      %v782 = vadd.f32 0.0, %v781
      %v783 = vpop.f32.mrf.mxu0
      %v784 = vadd.f32 0.0, %v783
      %785 = vmatmul.bf16.gmra.mxu0 %v748
      %v786 = vpop.f32.mrf.mxu0
      %v787 = vadd.f32 0.0, %v786
      %v788 = vpop.f32.mrf.mxu0
      %v789 = vadd.f32 0.0, %v788
      %790 = vmatmul.bf16.gmra.mxu0 %v751
      %v791 = vpop.f32.mrf.mxu0
      %v792 = vadd.f32 0.0, %v791
      %v793 = vpop.f32.mrf.mxu0
      %v794 = vadd.f32 0.0, %v793
      %795 = vmatmul.bf16.gmra.mxu0 %v754
      %v796 = vpop.f32.mrf.mxu0
      %v797 = vadd.f32 0.0, %v796
      %v798 = vpop.f32.mrf.mxu0
      %v799 = vadd.f32 0.0, %v798
      %800 = vmatmul.bf16.gmra.mxu0 %v757
      %v801 = vpop.f32.mrf.mxu0
      %v802 = vadd.f32 0.0, %v801
      %v803 = vpop.f32.mrf.mxu0
      %v804 = vadd.f32 0.0, %v803
      %805 = vmatmul.bf16.gmra.mxu0 %v760
      %v806 = vpop.f32.mrf.mxu0
      %v807 = vadd.f32 0.0, %v806
      %v808 = vpop.f32.mrf.mxu0
      %v809 = vadd.f32 0.0, %v808
      %810 = vdwg.mxu0
      %v811 = vadd.f32 %v644, %v772
      %v812 = vadd.f32 %v645, %v774
      %v813 = vadd.f32 %v646, %v777
      %v814 = vadd.f32 %v647, %v779
      %v815 = vadd.f32 %v648, %v782
      %v816 = vadd.f32 %v649, %v784
      %v817 = vadd.f32 %v650, %v787
      %v818 = vadd.f32 %v651, %v789
      %v819 = vadd.f32 %v652, %v792
      %v820 = vadd.f32 %v653, %v794
      %v821 = vadd.f32 %v654, %v797
      %v822 = vadd.f32 %v655, %v799
      %v823 = vadd.f32 %v656, %v802
      %v824 = vadd.f32 %v657, %v804
      %v825 = vadd.f32 %v658, %v807
      %v826 = vadd.f32 %v659, %v809
      %s827 = sadd.s32 %s661, 36
      %s828 = smul.addr %s827, 4
      %s829 = scalar_lea.vmem %s183, %s828
      %v830 = vld [vmem:[%s829] sm:$0xf]
      %v831 = vld [vmem:[%s829 + $0x4] sm:$0xf]
      %v832 = vld [vmem:[%s829 + $0x8] sm:$0xf]
      %v833 = vld [vmem:[%s829 + $0xc] sm:$0xf]
      %v834 = vld [vmem:[%s829 + $0x10] sm:$0xf]
      %v835 = vld [vmem:[%s829 + $0x14] sm:$0xf]
      %v836 = vld [vmem:[%s829 + $0x18] sm:$0xf]
      %v837 = vld [vmem:[%s829 + $0x1c] sm:$0xf]
      %v838 = vld [vmem:[%s829 + $0x20] sm:$0xf]
      %v839 = vld [vmem:[%s829 + $0x24] sm:$0xf]
      %v840 = vld [vmem:[%s829 + $0x28] sm:$0xf]
      %v841 = vld [vmem:[%s829 + $0x2c] sm:$0xf]
      %v842 = vld [vmem:[%s829 + $0x30] sm:$0xf]
      %v843 = vld [vmem:[%s829 + $0x34] sm:$0xf]
      %v844 = vld [vmem:[%s829 + $0x38] sm:$0xf]
      %v845 = vld [vmem:[%s829 + $0x3c] sm:$0xf]
      %s846 = scalar_lea.vmem %s1, 64
      %v847 = vld [vmem:[%s846] sm:$0xf]
      %v848 = vld [vmem:[%s846 + $0x4] sm:$0xf]
      %v849 = vld [vmem:[%s846 + $0x8] sm:$0xf]
      %v850 = vld [vmem:[%s846 + $0xc] sm:$0xf]
      %v867 = vunpack.c.l.b16 %v830
      %v868 = vunpack.c.l.b16 %v831
      %v869 = vunpack.c.l.b16 %v832
      %v870 = vunpack.c.l.b16 %v833
      %v871 = vunpack.c.l.b16 %v834
      %v872 = vunpack.c.l.b16 %v835
      %v873 = vunpack.c.l.b16 %v836
      %v874 = vunpack.c.l.b16 %v837
      %v875 = vunpack.c.l.b16 %v838
      %v876 = vunpack.c.l.b16 %v839
      %v877 = vunpack.c.l.b16 %v840
      %v878 = vunpack.c.l.b16 %v841
      %v879 = vunpack.c.l.b16 %v842
      %v880 = vunpack.c.l.b16 %v843
      %v881 = vunpack.c.l.b16 %v844
      %v882 = vunpack.c.l.b16 %v845
      %v883 = vpack.c.b16 %v868, %v867
      %v884 = vpack.c.b16 %v870, %v869
      %v885 = vpack.c.b16 %v872, %v871
      %v886 = vpack.c.b16 %v874, %v873
      %v887 = vpack.c.b16 %v876, %v875
      %v888 = vpack.c.b16 %v878, %v877
      %v889 = vpack.c.b16 %v880, %v879
      %v890 = vpack.c.b16 %v882, %v881
      %v895 = vunpack.c.l.b16 %v847
      %v896 = vunpack.c.l.b16 %v848
      %v897 = vunpack.c.l.b16 %v849
      %v898 = vunpack.c.l.b16 %v850
      %v899 = vpack.c.b16 %v896, %v895
      %v900 = vpack.c.b16 %v898, %v897
      %v904 = vsel %vm296, %v883, 0
      %v907 = vsel %vm296, %v884, 0
      %v910 = vsel %vm296, %v885, 0
      %v913 = vsel %vm296, %v886, 0
      %v916 = vsel %vm296, %v887, 0
      %v919 = vsel %vm296, %v888, 0
      %v922 = vsel %vm296, %v889, 0
      %v925 = vsel %vm296, %v890, 0
      %927 = vmatpush.bf16.msra.mxu0 0
      %928 = vmatpush.bf16.msra.mxu0 0
      %929 = vmatpush.bf16.msra.mxu0 0
      %930 = vmatpush.bf16.msra.mxu0 0
      %931 = vmatpush.bf16.msra.mxu0 0
      %932 = vmatpush.bf16.msra.mxu0 0
      %933 = vmatpush.bf16.msra.mxu0 %v900
      %934 = vmatpush.bf16.msra.mxu0 %v899
      %935 = vmatmul.bf16.gmra.mxu0 %v904
      %v936 = vpop.f32.mrf.mxu0
      %v937 = vadd.f32 0.0, %v936
      %v938 = vpop.f32.mrf.mxu0
      %v939 = vadd.f32 0.0, %v938
      %940 = vmatmul.bf16.gmra.mxu0 %v907
      %v941 = vpop.f32.mrf.mxu0
      %v942 = vadd.f32 0.0, %v941
      %v943 = vpop.f32.mrf.mxu0
      %v944 = vadd.f32 0.0, %v943
      %945 = vmatmul.bf16.gmra.mxu0 %v910
      %v946 = vpop.f32.mrf.mxu0
      %v947 = vadd.f32 0.0, %v946
      %v948 = vpop.f32.mrf.mxu0
      %v949 = vadd.f32 0.0, %v948
      %950 = vmatmul.bf16.gmra.mxu0 %v913
      %v951 = vpop.f32.mrf.mxu0
      %v952 = vadd.f32 0.0, %v951
      %v953 = vpop.f32.mrf.mxu0
      %v954 = vadd.f32 0.0, %v953
      %955 = vmatmul.bf16.gmra.mxu0 %v916
      %v956 = vpop.f32.mrf.mxu0
      %v957 = vadd.f32 0.0, %v956
      %v958 = vpop.f32.mrf.mxu0
      %v959 = vadd.f32 0.0, %v958
      %960 = vmatmul.bf16.gmra.mxu0 %v919
      %v961 = vpop.f32.mrf.mxu0
      %v962 = vadd.f32 0.0, %v961
      %v963 = vpop.f32.mrf.mxu0
      %v964 = vadd.f32 0.0, %v963
      %965 = vmatmul.bf16.gmra.mxu0 %v922
      %v966 = vpop.f32.mrf.mxu0
      %v967 = vadd.f32 0.0, %v966
      %v968 = vpop.f32.mrf.mxu0
      %v969 = vadd.f32 0.0, %v968
      %970 = vmatmul.bf16.gmra.mxu0 %v925
      %v971 = vpop.f32.mrf.mxu0
      %v972 = vadd.f32 0.0, %v971
      %v973 = vpop.f32.mrf.mxu0
      %v974 = vadd.f32 0.0, %v973
      %975 = vdwg.mxu0
      %v976 = vadd.f32 %v811, %v937
      %v977 = vadd.f32 %v812, %v939
      %v978 = vadd.f32 %v813, %v942
      %v979 = vadd.f32 %v814, %v944
      %v980 = vadd.f32 %v815, %v947
      %v981 = vadd.f32 %v816, %v949
      %v982 = vadd.f32 %v817, %v952
      %v983 = vadd.f32 %v818, %v954
      %v984 = vadd.f32 %v819, %v957
      %v985 = vadd.f32 %v820, %v959
      %v986 = vadd.f32 %v821, %v962
      %v987 = vadd.f32 %v822, %v964
      %v988 = vadd.f32 %v823, %v967
      %v989 = vadd.f32 %v824, %v969
      %v990 = vadd.f32 %v825, %v972
      %v991 = vadd.f32 %v826, %v974
      %s992 = sadd.s32 %s661, 72
      %s993 = smul.addr %s992, 4
      %s994 = scalar_lea.vmem %s183, %s993
      %v995 = vld [vmem:[%s994] sm:$0xf]
      %v996 = vld [vmem:[%s994 + $0x4] sm:$0xf]
      %v997 = vld [vmem:[%s994 + $0x8] sm:$0xf]
      %v998 = vld [vmem:[%s994 + $0xc] sm:$0xf]
      %v999 = vld [vmem:[%s994 + $0x10] sm:$0xf]
      %v1000 = vld [vmem:[%s994 + $0x14] sm:$0xf]
      %v1001 = vld [vmem:[%s994 + $0x18] sm:$0xf]
      %v1002 = vld [vmem:[%s994 + $0x1c] sm:$0xf]
      %v1003 = vld [vmem:[%s994 + $0x20] sm:$0xf]
      %v1004 = vld [vmem:[%s994 + $0x24] sm:$0xf]
      %v1005 = vld [vmem:[%s994 + $0x28] sm:$0xf]
      %v1006 = vld [vmem:[%s994 + $0x2c] sm:$0xf]
      %v1007 = vld [vmem:[%s994 + $0x30] sm:$0xf]
      %v1008 = vld [vmem:[%s994 + $0x34] sm:$0xf]
      %v1009 = vld [vmem:[%s994 + $0x38] sm:$0xf]
      %v1010 = vld [vmem:[%s994 + $0x3c] sm:$0xf]
      %s1011 = scalar_lea.vmem %s1, 80
      %v1012 = vld [vmem:[%s1011] sm:$0xf]
      %v1013 = vld [vmem:[%s1011 + $0x4] sm:$0xf]
      %v1014 = vld [vmem:[%s1011 + $0x8] sm:$0xf]
      %v1015 = vld [vmem:[%s1011 + $0xc] sm:$0xf]
      %v1032 = vunpack.c.l.b16 %v995
      %v1033 = vunpack.c.l.b16 %v996
      %v1034 = vunpack.c.l.b16 %v997
      %v1035 = vunpack.c.l.b16 %v998
      %v1036 = vunpack.c.l.b16 %v999
      %v1037 = vunpack.c.l.b16 %v1000
      %v1038 = vunpack.c.l.b16 %v1001
      %v1039 = vunpack.c.l.b16 %v1002
      %v1040 = vunpack.c.l.b16 %v1003
      %v1041 = vunpack.c.l.b16 %v1004
      %v1042 = vunpack.c.l.b16 %v1005
      %v1043 = vunpack.c.l.b16 %v1006
      %v1044 = vunpack.c.l.b16 %v1007
      %v1045 = vunpack.c.l.b16 %v1008
      %v1046 = vunpack.c.l.b16 %v1009
      %v1047 = vunpack.c.l.b16 %v1010
      %v1048 = vpack.c.b16 %v1033, %v1032
      %v1049 = vpack.c.b16 %v1035, %v1034
      %v1050 = vpack.c.b16 %v1037, %v1036
      %v1051 = vpack.c.b16 %v1039, %v1038
      %v1052 = vpack.c.b16 %v1041, %v1040
      %v1053 = vpack.c.b16 %v1043, %v1042
      %v1054 = vpack.c.b16 %v1045, %v1044
      %v1055 = vpack.c.b16 %v1047, %v1046
      %v1060 = vunpack.c.l.b16 %v1012
      %v1061 = vunpack.c.l.b16 %v1013
      %v1062 = vunpack.c.l.b16 %v1014
      %v1063 = vunpack.c.l.b16 %v1015
      %v1064 = vpack.c.b16 %v1061, %v1060
      %v1065 = vpack.c.b16 %v1063, %v1062
      %v1069 = vsel %vm296, %v1048, 0
      %v1072 = vsel %vm296, %v1049, 0
      %v1075 = vsel %vm296, %v1050, 0
      %v1078 = vsel %vm296, %v1051, 0
      %v1081 = vsel %vm296, %v1052, 0
      %v1084 = vsel %vm296, %v1053, 0
      %v1087 = vsel %vm296, %v1054, 0
      %v1090 = vsel %vm296, %v1055, 0
      %1092 = vmatpush.bf16.msra.mxu0 0
      %1093 = vmatpush.bf16.msra.mxu0 0
      %1094 = vmatpush.bf16.msra.mxu0 0
      %1095 = vmatpush.bf16.msra.mxu0 0
      %1096 = vmatpush.bf16.msra.mxu0 0
      %1097 = vmatpush.bf16.msra.mxu0 0
      %1098 = vmatpush.bf16.msra.mxu0 %v1065
      %1099 = vmatpush.bf16.msra.mxu0 %v1064
      %1100 = vmatmul.bf16.gmra.mxu0 %v1069
      %v1101 = vpop.f32.mrf.mxu0
      %v1102 = vadd.f32 0.0, %v1101
      %v1103 = vpop.f32.mrf.mxu0
      %v1104 = vadd.f32 0.0, %v1103
      %1105 = vmatmul.bf16.gmra.mxu0 %v1072
      %v1106 = vpop.f32.mrf.mxu0
      %v1107 = vadd.f32 0.0, %v1106
      %v1108 = vpop.f32.mrf.mxu0
      %v1109 = vadd.f32 0.0, %v1108
      %1110 = vmatmul.bf16.gmra.mxu0 %v1075
      %v1111 = vpop.f32.mrf.mxu0
      %v1112 = vadd.f32 0.0, %v1111
      %v1113 = vpop.f32.mrf.mxu0
      %v1114 = vadd.f32 0.0, %v1113
      %1115 = vmatmul.bf16.gmra.mxu0 %v1078
      %v1116 = vpop.f32.mrf.mxu0
      %v1117 = vadd.f32 0.0, %v1116
      %v1118 = vpop.f32.mrf.mxu0
      %v1119 = vadd.f32 0.0, %v1118
      %1120 = vmatmul.bf16.gmra.mxu0 %v1081
      %v1121 = vpop.f32.mrf.mxu0
      %v1122 = vadd.f32 0.0, %v1121
      %v1123 = vpop.f32.mrf.mxu0
      %v1124 = vadd.f32 0.0, %v1123
      %1125 = vmatmul.bf16.gmra.mxu0 %v1084
      %v1126 = vpop.f32.mrf.mxu0
      %v1127 = vadd.f32 0.0, %v1126
      %v1128 = vpop.f32.mrf.mxu0
      %v1129 = vadd.f32 0.0, %v1128
      %1130 = vmatmul.bf16.gmra.mxu0 %v1087
      %v1131 = vpop.f32.mrf.mxu0
      %v1132 = vadd.f32 0.0, %v1131
      %v1133 = vpop.f32.mrf.mxu0
      %v1134 = vadd.f32 0.0, %v1133
      %1135 = vmatmul.bf16.gmra.mxu0 %v1090
      %v1136 = vpop.f32.mrf.mxu0
      %v1137 = vadd.f32 0.0, %v1136
      %v1138 = vpop.f32.mrf.mxu0
      %v1139 = vadd.f32 0.0, %v1138
      %1140 = vdwg.mxu0
      %v1141 = vadd.f32 %v976, %v1102
      %v1142 = vadd.f32 %v977, %v1104
      %v1143 = vadd.f32 %v978, %v1107
      %v1144 = vadd.f32 %v979, %v1109
      %v1145 = vadd.f32 %v980, %v1112
      %v1146 = vadd.f32 %v981, %v1114
      %v1147 = vadd.f32 %v982, %v1117
      %v1148 = vadd.f32 %v983, %v1119
      %v1149 = vadd.f32 %v984, %v1122
      %v1150 = vadd.f32 %v985, %v1124
      %v1151 = vadd.f32 %v986, %v1127
      %v1152 = vadd.f32 %v987, %v1129
      %v1153 = vadd.f32 %v988, %v1132
      %v1154 = vadd.f32 %v989, %v1134
      %v1155 = vadd.f32 %v990, %v1137
      %v1156 = vadd.f32 %v991, %v1139
      %s1157 = sadd.s32 %s195, 32
      %s1158 = sshra.s32 %s1157, 3
      %s1159 = sand.u32 %s1157, 7
      %s1160 = smul.addr %s1158, 4
      %s1161 = scalar_lea.vmem %s183, %s1160
      %v1162 = vld [vmem:[%s1161] sm:$0xf]
      %v1163 = vld [vmem:[%s1161 + $0x4] sm:$0xf]
      %v1164 = vld [vmem:[%s1161 + $0x8] sm:$0xf]
      %v1165 = vld [vmem:[%s1161 + $0xc] sm:$0xf]
      %v1166 = vld [vmem:[%s1161 + $0x10] sm:$0xf]
      %v1167 = vld [vmem:[%s1161 + $0x14] sm:$0xf]
      %v1168 = vld [vmem:[%s1161 + $0x18] sm:$0xf]
      %v1169 = vld [vmem:[%s1161 + $0x1c] sm:$0xf]
      %v1170 = vld [vmem:[%s1161 + $0x20] sm:$0xf]
      %v1171 = vld [vmem:[%s1161 + $0x24] sm:$0xf]
      %v1172 = vld [vmem:[%s1161 + $0x28] sm:$0xf]
      %v1173 = vld [vmem:[%s1161 + $0x2c] sm:$0xf]
      %v1174 = vld [vmem:[%s1161 + $0x30] sm:$0xf]
      %v1175 = vld [vmem:[%s1161 + $0x34] sm:$0xf]
      %v1176 = vld [vmem:[%s1161 + $0x38] sm:$0xf]
      %v1177 = vld [vmem:[%s1161 + $0x3c] sm:$0xf]
      %s1178 = scalar_lea.vmem %s1, 96
      %v1179 = vld [vmem:[%s1178] sm:$0xf]
      %v1180 = vld [vmem:[%s1178 + $0x4] sm:$0xf]
      %v1181 = vld [vmem:[%s1178 + $0x8] sm:$0xf]
      %v1182 = vld [vmem:[%s1178 + $0xc] sm:$0xf]
      %v1199 = vunpack.c.l.b16 %v1162
      %v1200 = vunpack.c.l.b16 %v1163
      %v1201 = vunpack.c.l.b16 %v1164
      %v1202 = vunpack.c.l.b16 %v1165
      %v1203 = vunpack.c.l.b16 %v1166
      %v1204 = vunpack.c.l.b16 %v1167
      %v1205 = vunpack.c.l.b16 %v1168
      %v1206 = vunpack.c.l.b16 %v1169
      %v1207 = vunpack.c.l.b16 %v1170
      %v1208 = vunpack.c.l.b16 %v1171
      %v1209 = vunpack.c.l.b16 %v1172
      %v1210 = vunpack.c.l.b16 %v1173
      %v1211 = vunpack.c.l.b16 %v1174
      %v1212 = vunpack.c.l.b16 %v1175
      %v1213 = vunpack.c.l.b16 %v1176
      %v1214 = vunpack.c.l.b16 %v1177
      %v1215 = vpack.c.b16 %v1200, %v1199
      %v1216 = vpack.c.b16 %v1202, %v1201
      %v1217 = vpack.c.b16 %v1204, %v1203
      %v1218 = vpack.c.b16 %v1206, %v1205
      %v1219 = vpack.c.b16 %v1208, %v1207
      %v1220 = vpack.c.b16 %v1210, %v1209
      %v1221 = vpack.c.b16 %v1212, %v1211
      %v1222 = vpack.c.b16 %v1214, %v1213
      %v1227 = vunpack.c.l.b16 %v1179
      %v1228 = vunpack.c.l.b16 %v1180
      %v1229 = vunpack.c.l.b16 %v1181
      %v1230 = vunpack.c.l.b16 %v1182
      %v1231 = vpack.c.b16 %v1228, %v1227
      %v1232 = vpack.c.b16 %v1230, %v1229
      %v1236 = vsel %vm296, %v1215, 0
      %v1239 = vsel %vm296, %v1216, 0
      %v1242 = vsel %vm296, %v1217, 0
      %v1245 = vsel %vm296, %v1218, 0
      %v1248 = vsel %vm296, %v1219, 0
      %v1251 = vsel %vm296, %v1220, 0
      %v1254 = vsel %vm296, %v1221, 0
      %v1257 = vsel %vm296, %v1222, 0
      %1259 = vmatpush.bf16.msra.mxu0 0
      %1260 = vmatpush.bf16.msra.mxu0 0
      %1261 = vmatpush.bf16.msra.mxu0 0
      %1262 = vmatpush.bf16.msra.mxu0 0
      %1263 = vmatpush.bf16.msra.mxu0 0
      %1264 = vmatpush.bf16.msra.mxu0 0
      %1265 = vmatpush.bf16.msra.mxu0 %v1232
      %1266 = vmatpush.bf16.msra.mxu0 %v1231
      %1267 = vmatmul.bf16.gmra.mxu0 %v1236
      %v1268 = vpop.f32.mrf.mxu0
      %v1269 = vadd.f32 0.0, %v1268
      %v1270 = vpop.f32.mrf.mxu0
      %v1271 = vadd.f32 0.0, %v1270
      %1272 = vmatmul.bf16.gmra.mxu0 %v1239
      %v1273 = vpop.f32.mrf.mxu0
      %v1274 = vadd.f32 0.0, %v1273
      %v1275 = vpop.f32.mrf.mxu0
      %v1276 = vadd.f32 0.0, %v1275
      %1277 = vmatmul.bf16.gmra.mxu0 %v1242
      %v1278 = vpop.f32.mrf.mxu0
      %v1279 = vadd.f32 0.0, %v1278
      %v1280 = vpop.f32.mrf.mxu0
      %v1281 = vadd.f32 0.0, %v1280
      %1282 = vmatmul.bf16.gmra.mxu0 %v1245
      %v1283 = vpop.f32.mrf.mxu0
      %v1284 = vadd.f32 0.0, %v1283
      %v1285 = vpop.f32.mrf.mxu0
      %v1286 = vadd.f32 0.0, %v1285
      %1287 = vmatmul.bf16.gmra.mxu0 %v1248
      %v1288 = vpop.f32.mrf.mxu0
      %v1289 = vadd.f32 0.0, %v1288
      %v1290 = vpop.f32.mrf.mxu0
      %v1291 = vadd.f32 0.0, %v1290
      %1292 = vmatmul.bf16.gmra.mxu0 %v1251
      %v1293 = vpop.f32.mrf.mxu0
      %v1294 = vadd.f32 0.0, %v1293
      %v1295 = vpop.f32.mrf.mxu0
      %v1296 = vadd.f32 0.0, %v1295
      %1297 = vmatmul.bf16.gmra.mxu0 %v1254
      %v1298 = vpop.f32.mrf.mxu0
      %v1299 = vadd.f32 0.0, %v1298
      %v1300 = vpop.f32.mrf.mxu0
      %v1301 = vadd.f32 0.0, %v1300
      %1302 = vmatmul.bf16.gmra.mxu0 %v1257
      %v1303 = vpop.f32.mrf.mxu0
      %v1304 = vadd.f32 0.0, %v1303
      %v1305 = vpop.f32.mrf.mxu0
      %v1306 = vadd.f32 0.0, %v1305
      %1307 = vdwg.mxu0
      %v1308 = vadd.f32 %v1141, %v1269
      %v1309 = vadd.f32 %v1142, %v1271
      %v1310 = vadd.f32 %v1143, %v1274
      %v1311 = vadd.f32 %v1144, %v1276
      %v1312 = vadd.f32 %v1145, %v1279
      %v1313 = vadd.f32 %v1146, %v1281
      %v1314 = vadd.f32 %v1147, %v1284
      %v1315 = vadd.f32 %v1148, %v1286
      %v1316 = vadd.f32 %v1149, %v1289
      %v1317 = vadd.f32 %v1150, %v1291
      %v1318 = vadd.f32 %v1151, %v1294
      %v1319 = vadd.f32 %v1152, %v1296
      %v1320 = vadd.f32 %v1153, %v1299
      %v1321 = vadd.f32 %v1154, %v1301
      %v1322 = vadd.f32 %v1155, %v1304
      %v1323 = vadd.f32 %v1156, %v1306
      %s1324 = sadd.s32 %s1158, 36
      %s1325 = smul.addr %s1324, 4
      %s1326 = scalar_lea.vmem %s183, %s1325
      %v1327 = vld [vmem:[%s1326] sm:$0xf]
      %v1328 = vld [vmem:[%s1326 + $0x4] sm:$0xf]
      %v1329 = vld [vmem:[%s1326 + $0x8] sm:$0xf]
      %v1330 = vld [vmem:[%s1326 + $0xc] sm:$0xf]
      %v1331 = vld [vmem:[%s1326 + $0x10] sm:$0xf]
      %v1332 = vld [vmem:[%s1326 + $0x14] sm:$0xf]
      %v1333 = vld [vmem:[%s1326 + $0x18] sm:$0xf]
      %v1334 = vld [vmem:[%s1326 + $0x1c] sm:$0xf]
      %v1335 = vld [vmem:[%s1326 + $0x20] sm:$0xf]
      %v1336 = vld [vmem:[%s1326 + $0x24] sm:$0xf]
      %v1337 = vld [vmem:[%s1326 + $0x28] sm:$0xf]
      %v1338 = vld [vmem:[%s1326 + $0x2c] sm:$0xf]
      %v1339 = vld [vmem:[%s1326 + $0x30] sm:$0xf]
      %v1340 = vld [vmem:[%s1326 + $0x34] sm:$0xf]
      %v1341 = vld [vmem:[%s1326 + $0x38] sm:$0xf]
      %v1342 = vld [vmem:[%s1326 + $0x3c] sm:$0xf]
      %s1343 = scalar_lea.vmem %s1, 112
      %v1344 = vld [vmem:[%s1343] sm:$0xf]
      %v1345 = vld [vmem:[%s1343 + $0x4] sm:$0xf]
      %v1346 = vld [vmem:[%s1343 + $0x8] sm:$0xf]
      %v1347 = vld [vmem:[%s1343 + $0xc] sm:$0xf]
      %v1364 = vunpack.c.l.b16 %v1327
      %v1365 = vunpack.c.l.b16 %v1328
      %v1366 = vunpack.c.l.b16 %v1329
      %v1367 = vunpack.c.l.b16 %v1330
      %v1368 = vunpack.c.l.b16 %v1331
      %v1369 = vunpack.c.l.b16 %v1332
      %v1370 = vunpack.c.l.b16 %v1333
      %v1371 = vunpack.c.l.b16 %v1334
      %v1372 = vunpack.c.l.b16 %v1335
      %v1373 = vunpack.c.l.b16 %v1336
      %v1374 = vunpack.c.l.b16 %v1337
      %v1375 = vunpack.c.l.b16 %v1338
      %v1376 = vunpack.c.l.b16 %v1339
      %v1377 = vunpack.c.l.b16 %v1340
      %v1378 = vunpack.c.l.b16 %v1341
      %v1379 = vunpack.c.l.b16 %v1342
      %v1380 = vpack.c.b16 %v1365, %v1364
      %v1381 = vpack.c.b16 %v1367, %v1366
      %v1382 = vpack.c.b16 %v1369, %v1368
      %v1383 = vpack.c.b16 %v1371, %v1370
      %v1384 = vpack.c.b16 %v1373, %v1372
      %v1385 = vpack.c.b16 %v1375, %v1374
      %v1386 = vpack.c.b16 %v1377, %v1376
      %v1387 = vpack.c.b16 %v1379, %v1378
      %v1392 = vunpack.c.l.b16 %v1344
      %v1393 = vunpack.c.l.b16 %v1345
      %v1394 = vunpack.c.l.b16 %v1346
      %v1395 = vunpack.c.l.b16 %v1347
      %v1396 = vpack.c.b16 %v1393, %v1392
      %v1397 = vpack.c.b16 %v1395, %v1394
      %v1401 = vsel %vm296, %v1380, 0
      %v1404 = vsel %vm296, %v1381, 0
      %v1407 = vsel %vm296, %v1382, 0
      %v1410 = vsel %vm296, %v1383, 0
      %v1413 = vsel %vm296, %v1384, 0
      %v1416 = vsel %vm296, %v1385, 0
      %v1419 = vsel %vm296, %v1386, 0
      %v1422 = vsel %vm296, %v1387, 0
      %1424 = vmatpush.bf16.msra.mxu0 0
      %1425 = vmatpush.bf16.msra.mxu0 0
      %1426 = vmatpush.bf16.msra.mxu0 0
      %1427 = vmatpush.bf16.msra.mxu0 0
      %1428 = vmatpush.bf16.msra.mxu0 0
      %1429 = vmatpush.bf16.msra.mxu0 0
      %1430 = vmatpush.bf16.msra.mxu0 %v1397
      %1431 = vmatpush.bf16.msra.mxu0 %v1396
      %1432 = vmatmul.bf16.gmra.mxu0 %v1401
      %v1433 = vpop.f32.mrf.mxu0
      %v1434 = vadd.f32 0.0, %v1433
      %v1435 = vpop.f32.mrf.mxu0
      %v1436 = vadd.f32 0.0, %v1435
      %1437 = vmatmul.bf16.gmra.mxu0 %v1404
      %v1438 = vpop.f32.mrf.mxu0
      %v1439 = vadd.f32 0.0, %v1438
      %v1440 = vpop.f32.mrf.mxu0
      %v1441 = vadd.f32 0.0, %v1440
      %1442 = vmatmul.bf16.gmra.mxu0 %v1407
      %v1443 = vpop.f32.mrf.mxu0
      %v1444 = vadd.f32 0.0, %v1443
      %v1445 = vpop.f32.mrf.mxu0
      %v1446 = vadd.f32 0.0, %v1445
      %1447 = vmatmul.bf16.gmra.mxu0 %v1410
      %v1448 = vpop.f32.mrf.mxu0
      %v1449 = vadd.f32 0.0, %v1448
      %v1450 = vpop.f32.mrf.mxu0
      %v1451 = vadd.f32 0.0, %v1450
      %1452 = vmatmul.bf16.gmra.mxu0 %v1413
      %v1453 = vpop.f32.mrf.mxu0
      %v1454 = vadd.f32 0.0, %v1453
      %v1455 = vpop.f32.mrf.mxu0
      %v1456 = vadd.f32 0.0, %v1455
      %1457 = vmatmul.bf16.gmra.mxu0 %v1416
      %v1458 = vpop.f32.mrf.mxu0
      %v1459 = vadd.f32 0.0, %v1458
      %v1460 = vpop.f32.mrf.mxu0
      %v1461 = vadd.f32 0.0, %v1460
      %1462 = vmatmul.bf16.gmra.mxu0 %v1419
      %v1463 = vpop.f32.mrf.mxu0
      %v1464 = vadd.f32 0.0, %v1463
      %v1465 = vpop.f32.mrf.mxu0
      %v1466 = vadd.f32 0.0, %v1465
      %1467 = vmatmul.bf16.gmra.mxu0 %v1422
      %v1468 = vpop.f32.mrf.mxu0
      %v1469 = vadd.f32 0.0, %v1468
      %v1470 = vpop.f32.mrf.mxu0
      %v1471 = vadd.f32 0.0, %v1470
      %1472 = vdwg.mxu0
      %v1473 = vadd.f32 %v1308, %v1434
      %v1474 = vadd.f32 %v1309, %v1436
      %v1475 = vadd.f32 %v1310, %v1439
      %v1476 = vadd.f32 %v1311, %v1441
      %v1477 = vadd.f32 %v1312, %v1444
      %v1478 = vadd.f32 %v1313, %v1446
      %v1479 = vadd.f32 %v1314, %v1449
      %v1480 = vadd.f32 %v1315, %v1451
      %v1481 = vadd.f32 %v1316, %v1454
      %v1482 = vadd.f32 %v1317, %v1456
      %v1483 = vadd.f32 %v1318, %v1459
      %v1484 = vadd.f32 %v1319, %v1461
      %v1485 = vadd.f32 %v1320, %v1464
      %v1486 = vadd.f32 %v1321, %v1466
      %v1487 = vadd.f32 %v1322, %v1469
      %v1488 = vadd.f32 %v1323, %v1471
      %s1489 = sadd.s32 %s1158, 72
      %s1490 = smul.addr %s1489, 4
      %s1491 = scalar_lea.vmem %s183, %s1490
      %v1492 = vld [vmem:[%s1491] sm:$0xf]
      %v1493 = vld [vmem:[%s1491 + $0x4] sm:$0xf]
      %v1494 = vld [vmem:[%s1491 + $0x8] sm:$0xf]
      %v1495 = vld [vmem:[%s1491 + $0xc] sm:$0xf]
      %v1496 = vld [vmem:[%s1491 + $0x10] sm:$0xf]
      %v1497 = vld [vmem:[%s1491 + $0x14] sm:$0xf]
      %v1498 = vld [vmem:[%s1491 + $0x18] sm:$0xf]
      %v1499 = vld [vmem:[%s1491 + $0x1c] sm:$0xf]
      %v1500 = vld [vmem:[%s1491 + $0x20] sm:$0xf]
      %v1501 = vld [vmem:[%s1491 + $0x24] sm:$0xf]
      %v1502 = vld [vmem:[%s1491 + $0x28] sm:$0xf]
      %v1503 = vld [vmem:[%s1491 + $0x2c] sm:$0xf]
      %v1504 = vld [vmem:[%s1491 + $0x30] sm:$0xf]
      %v1505 = vld [vmem:[%s1491 + $0x34] sm:$0xf]
      %v1506 = vld [vmem:[%s1491 + $0x38] sm:$0xf]
      %v1507 = vld [vmem:[%s1491 + $0x3c] sm:$0xf]
      %s1508 = scalar_lea.vmem %s1, 128
      %v1509 = vld [vmem:[%s1508] sm:$0xf]
      %v1510 = vld [vmem:[%s1508 + $0x4] sm:$0xf]
      %v1511 = vld [vmem:[%s1508 + $0x8] sm:$0xf]
      %v1512 = vld [vmem:[%s1508 + $0xc] sm:$0xf]
      %v1529 = vunpack.c.l.b16 %v1492
      %v1530 = vunpack.c.l.b16 %v1493
      %v1531 = vunpack.c.l.b16 %v1494
      %v1532 = vunpack.c.l.b16 %v1495
      %v1533 = vunpack.c.l.b16 %v1496
      %v1534 = vunpack.c.l.b16 %v1497
      %v1535 = vunpack.c.l.b16 %v1498
      %v1536 = vunpack.c.l.b16 %v1499
      %v1537 = vunpack.c.l.b16 %v1500
      %v1538 = vunpack.c.l.b16 %v1501
      %v1539 = vunpack.c.l.b16 %v1502
      %v1540 = vunpack.c.l.b16 %v1503
      %v1541 = vunpack.c.l.b16 %v1504
      %v1542 = vunpack.c.l.b16 %v1505
      %v1543 = vunpack.c.l.b16 %v1506
      %v1544 = vunpack.c.l.b16 %v1507
      %v1545 = vpack.c.b16 %v1530, %v1529
      %v1546 = vpack.c.b16 %v1532, %v1531
      %v1547 = vpack.c.b16 %v1534, %v1533
      %v1548 = vpack.c.b16 %v1536, %v1535
      %v1549 = vpack.c.b16 %v1538, %v1537
      %v1550 = vpack.c.b16 %v1540, %v1539
      %v1551 = vpack.c.b16 %v1542, %v1541
      %v1552 = vpack.c.b16 %v1544, %v1543
      %v1557 = vunpack.c.l.b16 %v1509
      %v1558 = vunpack.c.l.b16 %v1510
      %v1559 = vunpack.c.l.b16 %v1511
      %v1560 = vunpack.c.l.b16 %v1512
      %v1561 = vpack.c.b16 %v1558, %v1557
      %v1562 = vpack.c.b16 %v1560, %v1559
      %v1566 = vsel %vm296, %v1545, 0
      %v1569 = vsel %vm296, %v1546, 0
      %v1572 = vsel %vm296, %v1547, 0
      %v1575 = vsel %vm296, %v1548, 0
      %v1578 = vsel %vm296, %v1549, 0
      %v1581 = vsel %vm296, %v1550, 0
      %v1584 = vsel %vm296, %v1551, 0
      %v1587 = vsel %vm296, %v1552, 0
      %1589 = vmatpush.bf16.msra.mxu0 0
      %1590 = vmatpush.bf16.msra.mxu0 0
      %1591 = vmatpush.bf16.msra.mxu0 0
      %1592 = vmatpush.bf16.msra.mxu0 0
      %1593 = vmatpush.bf16.msra.mxu0 0
      %1594 = vmatpush.bf16.msra.mxu0 0
      %1595 = vmatpush.bf16.msra.mxu0 %v1562
      %1596 = vmatpush.bf16.msra.mxu0 %v1561
      %1597 = vmatmul.bf16.gmra.mxu0 %v1566
      %v1598 = vpop.f32.mrf.mxu0
      %v1599 = vadd.f32 0.0, %v1598
      %v1600 = vpop.f32.mrf.mxu0
      %v1601 = vadd.f32 0.0, %v1600
      %1602 = vmatmul.bf16.gmra.mxu0 %v1569
      %v1603 = vpop.f32.mrf.mxu0
      %v1604 = vadd.f32 0.0, %v1603
      %v1605 = vpop.f32.mrf.mxu0
      %v1606 = vadd.f32 0.0, %v1605
      %1607 = vmatmul.bf16.gmra.mxu0 %v1572
      %v1608 = vpop.f32.mrf.mxu0
      %v1609 = vadd.f32 0.0, %v1608
      %v1610 = vpop.f32.mrf.mxu0
      %v1611 = vadd.f32 0.0, %v1610
      %1612 = vmatmul.bf16.gmra.mxu0 %v1575
      %v1613 = vpop.f32.mrf.mxu0
      %v1614 = vadd.f32 0.0, %v1613
      %v1615 = vpop.f32.mrf.mxu0
      %v1616 = vadd.f32 0.0, %v1615
      %1617 = vmatmul.bf16.gmra.mxu0 %v1578
      %v1618 = vpop.f32.mrf.mxu0
      %v1619 = vadd.f32 0.0, %v1618
      %v1620 = vpop.f32.mrf.mxu0
      %v1621 = vadd.f32 0.0, %v1620
      %1622 = vmatmul.bf16.gmra.mxu0 %v1581
      %v1623 = vpop.f32.mrf.mxu0
      %v1624 = vadd.f32 0.0, %v1623
      %v1625 = vpop.f32.mrf.mxu0
      %v1626 = vadd.f32 0.0, %v1625
      %1627 = vmatmul.bf16.gmra.mxu0 %v1584
      %v1628 = vpop.f32.mrf.mxu0
      %v1629 = vadd.f32 0.0, %v1628
      %v1630 = vpop.f32.mrf.mxu0
      %v1631 = vadd.f32 0.0, %v1630
      %1632 = vmatmul.bf16.gmra.mxu0 %v1587
      %v1633 = vpop.f32.mrf.mxu0
      %v1634 = vadd.f32 0.0, %v1633
      %v1635 = vpop.f32.mrf.mxu0
      %v1636 = vadd.f32 0.0, %v1635
      %1637 = vdwg.mxu0
      %v1638 = vadd.f32 %v1473, %v1599
      %v1639 = vadd.f32 %v1474, %v1601
      %v1640 = vadd.f32 %v1475, %v1604
      %v1641 = vadd.f32 %v1476, %v1606
      %v1642 = vadd.f32 %v1477, %v1609
      %v1643 = vadd.f32 %v1478, %v1611
      %v1644 = vadd.f32 %v1479, %v1614
      %v1645 = vadd.f32 %v1480, %v1616
      %v1646 = vadd.f32 %v1481, %v1619
      %v1647 = vadd.f32 %v1482, %v1621
      %v1648 = vadd.f32 %v1483, %v1624
      %v1649 = vadd.f32 %v1484, %v1626
      %v1650 = vadd.f32 %v1485, %v1629
      %v1651 = vadd.f32 %v1486, %v1631
      %v1652 = vadd.f32 %v1487, %v1634
      %v1653 = vadd.f32 %v1488, %v1636
      %v1654 = vld [vmem:[%s2] sm:$0x1]
      %v1656 = vperm.slane %v1654, 0
      %v1658 = vadd.f32 %v1638, %v1656
      %v1659 = vadd.f32 %v1639, %v1656
      %v1660 = vadd.f32 %v1640, %v1656
      %v1661 = vadd.f32 %v1641, %v1656
      %v1662 = vadd.f32 %v1642, %v1656
      %v1663 = vadd.f32 %v1643, %v1656
      %v1664 = vadd.f32 %v1644, %v1656
      %v1665 = vadd.f32 %v1645, %v1656
      %v1666 = vadd.f32 %v1646, %v1656
      %v1667 = vadd.f32 %v1647, %v1656
      %v1668 = vadd.f32 %v1648, %v1656
      %v1669 = vadd.f32 %v1649, %v1656
      %v1670 = vadd.f32 %v1650, %v1656
      %v1671 = vadd.f32 %v1651, %v1656
      %v1672 = vadd.f32 %v1652, %v1656
      %v1673 = vadd.f32 %v1653, %v1656
      %1674 = vst [vmem:[%s192] sm:$0xff] %v1658
      %1675 = vst [vmem:[%s192 + $0x8] sm:$0xff] %v1659
      %1676 = vst [vmem:[%s192 + $0x10] sm:$0xff] %v1660
      %1677 = vst [vmem:[%s192 + $0x18] sm:$0xff] %v1661
      %1678 = vst [vmem:[%s192 + $0x20] sm:$0xff] %v1662
      %1679 = vst [vmem:[%s192 + $0x28] sm:$0xff] %v1663
      %1680 = vst [vmem:[%s192 + $0x30] sm:$0xff] %v1664
      %1681 = vst [vmem:[%s192 + $0x38] sm:$0xff] %v1665
      %1682 = vst [vmem:[%s192 + $0x40] sm:$0xff] %v1666
      %1683 = vst [vmem:[%s192 + $0x48] sm:$0xff] %v1667
      %1684 = vst [vmem:[%s192 + $0x50] sm:$0xff] %v1668
      %1685 = vst [vmem:[%s192 + $0x58] sm:$0xff] %v1669
      %1686 = vst [vmem:[%s192 + $0x60] sm:$0xff] %v1670
      %1687 = vst [vmem:[%s192 + $0x68] sm:$0xff] %v1671
      %1688 = vst [vmem:[%s192 + $0x70] sm:$0xff] %v1672
      %1689 = vst [vmem:[%s192 + $0x78] sm:$0xff] %v1673
      %s1690 = smul.u32 16, %s19
      %p1691 = scmp.lt.s32.totalorder %s18, 1
      %s1692 = scalar_select %p1691, %s18, 1
      %p1693 = scmp.lt.s32.totalorder %s1690, 31
      %s1694 = scalar_select %p1693, %s1690, 31
      %s1695 = smul.addr %s1692, 32
      %s1696 = sadd.s32 %s1694, %s1695
      %s1697 = smul.addr %s1696, 8
      %s1698 = scalar_lea.vmem %s3, %s1697
      // Predicated region
      $region33: #{_details_net_forward.9} parent=31 // pred_check
        %p1699 = pneg %p114
      $region34: #{_details_net_forward.9} parent=31 // pred_check_branch
        %1701 = sbr.rel (%p1699) target = $region36
      $region35: #{_details_net_forward.9} parent=31 // pred_region
        %s1702 = smul.u32 16, %s19
      $region36: #{_details_net_forward.9} parent=31 // pred_fallthru
        _
    $region32: #{_details_net_forward.9} parent=5 // pred_fallthru
      _
    %p1703 = scmp.le.s32.totalorder 2, %s9
    // Predicated region
    $region37: #{_details_net_forward.9} parent=5 // pred_check
      %p1704 = pneg %p1703
    $region38: #{_details_net_forward.9} parent=5 // pred_check_branch
      %1706 = sbr.rel (%p1704) target = $region40
    $region39: #{_details_net_forward.9} parent=5 // pred_region
      %s1707 = ssub.s32 %s9, 2
      // Predicated region
      $region41: #{_details_net_forward.9} parent=39 // pred_check
        %p1708 = pneg %p120
      $region42: #{_details_net_forward.9} parent=39 // pred_check_branch
        %1710 = sbr.rel (%p1708) target = $region44
      $region43: #{_details_net_forward.9} parent=39 // pred_region
        %s1711 = smul.u32 16, %s21
        %p1712 = scmp.lt.s32.totalorder %s20, 1
        %s1713 = scalar_select %p1712, %s20, 1
        %p1714 = scmp.lt.s32.totalorder %s1711, 31
        %s1715 = scalar_select %p1714, %s1711, 31
        %s1716 = smul.addr %s1713, 32
        %s1717 = sadd.s32 %s1715, %s1716
        %s1718 = smul.addr %s1717, 8
        %s1719 = scalar_lea.vmem %s3, %s1718
      $region44: #{_details_net_forward.9} parent=39 // pred_fallthru
        _
    $region40: #{_details_net_forward.9} parent=5 // pred_fallthru
      _
  $region6: #{_details_net_forward.9} parent=0 // loop_footer
    %s13 = sadd.s32 1, %s9
  $region7: #{_details_net_forward.9} parent=0 // loop_footer_branch
    %8 = sbr.rel target = $region3
  $region8: #{_details_net_forward.9} parent=0 // loop_exit
    _

// kernel: _details_net_forward.10
$region0: #{_details_net_forward.10}
  #allocation0 [shape = 'u32[]', space=smem, size = 0x4, offset = 0x4, fixed_abs, tag = 'smem constant byte address 0x4 - core index']
  #allocation1 [shape = 'u32[72,128]{1,0:T(1,128)}', space=vmem, size = 0x9000, scoped, tag = 'internal scratch']
  %s0 = inlined_call_operand.vmem [shape: bf16[2,3,288,64], index: 0, kind: input, shape index: {}]
  %s1 = inlined_call_operand.vmem [shape: bf16[9,64,128], index: 1, kind: input, shape index: {}]
  %s2 = inlined_call_operand.vmem [shape: f32[1,128], index: 2, kind: input, shape index: {}]
  %s3 = inlined_call_operand.vmem [shape: f32[2,256,128], index: 3, kind: output, shape index: {}]
  %s4 = sld [smem:[#allocation0]]
  $region45: #{_details_net_forward.10} parent=0
    _
  %s6 = ssub.s32 1, %s4
  %s7 = scalar_select 0, %s6, %s4
  loop: start=0, step=1, limit=6
  $region2: #{_details_net_forward.10} parent=0 // loop_pre_header
    _
  $region3: #{_details_net_forward.10} parent=0 // loop_header
    %s9 = sphi 0, %s13
    %p10 = scmp.ge.s32.totalorder %s9, 6
    %s16 = sphi 0, %s28
    %s17 = sphi 0, %s24
    %s18 = sphi 0, %s16
    %s19 = sphi 0, %s17
    %s20 = sphi 0, %s18
    %s21 = sphi 0, %s19
    %s31 = sphi 0, %s33
    %s34 = sphi 0, %s31
    %s35 = sphi 0, %s34
    %s51 = sphi 0, %s35
    %s55 = sphi 0, %s55
    %s57 = sphi 0, %s55
    %s58 = sphi 0, %s57
    %s72 = sphi 0, %s58
    %s76 = sphi 0, %s76
    %s78 = sphi 0, %s76
    %s79 = sphi 0, %s78
    %s93 = sphi 0, %s79
    %s101 = sphi 0, %s103
    %s104 = sphi 0, %s101
    %s105 = sphi 0, %s104
    %s121 = sphi 0, %s105
  $region4: #{_details_net_forward.10} parent=0 // loop_header_branch
    %12 = sbr.rel (%p10) target = $region8
  $region5: #{_details_net_forward.10} parent=0 // loop_body
    %s14 = ssub.s32 %s9, 1
    %s15 = ssub.s32 %s9, 2
    %s22 = sadd.s32 1, %s17
    %p23 = scmp.ge.s32.totalorder %s22, 2
    %s24 = scalar_select %p23, 0, %s22
    %s25 = sadd.s32 1, %s16
    %s26 = scalar_select %p23, %s25, %s16
    %p27 = scmp.ge.s32.totalorder %s26, 2
    %s28 = scalar_select %p27, 0, %s26
    %s29 = ssub.s32 %s16, %s28
    %p30 = scmp.eq.s32.totalorder %s29, 0
    %s32 = sadd.s32 %s31, 1
    %s33 = scalar_select %p30, %s31, %s32
    %p36 = pneg %p30
    %p37 = scmp.eq.s32.totalorder %s9, 3
    %p38 = por %p36, %p37
    %p39 = scmp.ne.s32.totalorder %s31, %s34
    %p40 = scmp.eq.s32.totalorder %s9, 0
    %p41 = por %p39, %p40
    %p42 = scmp.ne.s32.totalorder %s31, %s34
    %p43 = scmp.eq.s32.totalorder %s14, 3
    %p44 = por %p42, %p43
    %p45 = scmp.ne.s32.totalorder %s34, %s35
    %p46 = scmp.eq.s32.totalorder %s14, 0
    %p47 = por %p45, %p46
    %p48 = scmp.ne.s32.totalorder %s34, %s35
    %p49 = scmp.eq.s32.totalorder %s15, 3
    %p50 = por %p48, %p49
    %p52 = scmp.ne.s32.totalorder %s35, %s51
    %p53 = scmp.eq.s32.totalorder %s15, 0
    %p54 = por %p52, %p53
    %s56 = sadd.s32 %s55, 1
    %p59 = scmp.eq.s32.totalorder %s9, 3
    %p60 = scmp.ne.s32.totalorder %s55, %s57
    %p61 = scmp.eq.s32.totalorder %s9, 0
    %p62 = por %p60, %p61
    %p63 = scmp.ne.s32.totalorder %s55, %s57
    %p64 = scmp.eq.s32.totalorder %s14, 3
    %p65 = por %p63, %p64
    %p66 = scmp.ne.s32.totalorder %s57, %s58
    %p67 = scmp.eq.s32.totalorder %s14, 0
    %p68 = por %p66, %p67
    %p69 = scmp.ne.s32.totalorder %s57, %s58
    %p70 = scmp.eq.s32.totalorder %s15, 3
    %p71 = por %p69, %p70
    %p73 = scmp.ne.s32.totalorder %s58, %s72
    %p74 = scmp.eq.s32.totalorder %s15, 0
    %p75 = por %p73, %p74
    %s77 = sadd.s32 %s76, 1
    %p80 = scmp.eq.s32.totalorder %s9, 3
    %p81 = scmp.ne.s32.totalorder %s76, %s78
    %p82 = scmp.eq.s32.totalorder %s9, 0
    %p83 = por %p81, %p82
    %p84 = scmp.ne.s32.totalorder %s76, %s78
    %p85 = scmp.eq.s32.totalorder %s14, 3
    %p86 = por %p84, %p85
    %p87 = scmp.ne.s32.totalorder %s78, %s79
    %p88 = scmp.eq.s32.totalorder %s14, 0
    %p89 = por %p87, %p88
    %p90 = scmp.ne.s32.totalorder %s78, %s79
    %p91 = scmp.eq.s32.totalorder %s15, 3
    %p92 = por %p90, %p91
    %p94 = scmp.ne.s32.totalorder %s79, %s93
    %p95 = scmp.eq.s32.totalorder %s15, 0
    %p96 = por %p94, %p95
    %s97 = ssub.s32 %s16, %s28
    %s98 = ssub.s32 %s17, %s24
    %s99 = sor.u32 %s97, %s98
    %p100 = scmp.eq.s32.totalorder %s99, 0
    %s102 = sadd.s32 %s101, 1
    %s103 = scalar_select %p100, %s101, %s102
    %p106 = pneg %p100
    %p107 = scmp.eq.s32.totalorder %s9, 3
    %p108 = por %p106, %p107
    %p109 = scmp.ne.s32.totalorder %s101, %s104
    %p110 = scmp.eq.s32.totalorder %s9, 0
    %p111 = por %p109, %p110
    %p112 = scmp.ne.s32.totalorder %s101, %s104
    %p113 = scmp.eq.s32.totalorder %s14, 3
    %p114 = por %p112, %p113
    %p115 = scmp.ne.s32.totalorder %s104, %s105
    %p116 = scmp.eq.s32.totalorder %s14, 0
    %p117 = por %p115, %p116
    %p118 = scmp.ne.s32.totalorder %s104, %s105
    %p119 = scmp.eq.s32.totalorder %s15, 3
    %p120 = por %p118, %p119
    %p122 = scmp.ne.s32.totalorder %s105, %s121
    %p123 = scmp.eq.s32.totalorder %s15, 0
    %p124 = por %p122, %p123
    %p125 = scmp.le.s32.totalorder 1, %s9
    %p126 = scmp.lt.s32.totalorder %s9, 5
    %p127 = pnand %p125, %p126
    %p128 = pneg %p127
    // Predicated region
    $region9: #{_details_net_forward.10} parent=5 // pred_check
      _
    $region10: #{_details_net_forward.10} parent=5 // pred_check_branch
      %130 = sbr.rel (%p127) target = $region12
    $region11: #{_details_net_forward.10} parent=5 // pred_region
      %s131 = ssub.s32 %s9, 1
      // Predicated region
      $region13: #{_details_net_forward.10} parent=11 // pred_check
        %p132 = pneg %p68
      $region14: #{_details_net_forward.10} parent=11 // pred_check_branch
        %134 = sbr.rel (%p132) target = $region16
      $region15: #{_details_net_forward.10} parent=11 // pred_region
        _
      $region16: #{_details_net_forward.10} parent=11 // pred_fallthru
        _
      // Predicated region
      $region17: #{_details_net_forward.10} parent=11 // pred_check
        %p135 = pneg %p89
      $region18: #{_details_net_forward.10} parent=11 // pred_check_branch
        %137 = sbr.rel (%p135) target = $region20
      $region19: #{_details_net_forward.10} parent=11 // pred_region
        _
      $region20: #{_details_net_forward.10} parent=11 // pred_fallthru
        _
    $region12: #{_details_net_forward.10} parent=5 // pred_fallthru
      _
    %p138 = scmp.lt.s32.totalorder %s9, 4
    // Predicated region
    $region21: #{_details_net_forward.10} parent=5 // pred_check
      %p139 = pneg %p138
    $region22: #{_details_net_forward.10} parent=5 // pred_check_branch
      %141 = sbr.rel (%p139) target = $region24
    $region23: #{_details_net_forward.10} parent=5 // pred_region
      // Predicated region
      $region25: #{_details_net_forward.10} parent=23 // pred_check
        %p142 = pneg %p41
      $region26: #{_details_net_forward.10} parent=23 // pred_check_branch
        %144 = sbr.rel (%p142) target = $region28
      $region27: #{_details_net_forward.10} parent=23 // pred_region
        %p145 = scmp.lt.s32.totalorder %s16, 1
        %s146 = scalar_select %p145, %s16, 1
        %s147 = smul.addr %s146, 108
        %s148 = smul.addr %s147, 4
        %s149 = scalar_lea.vmem %s0, %s148
      $region28: #{_details_net_forward.10} parent=23 // pred_fallthru
        _
    $region24: #{_details_net_forward.10} parent=5 // pred_fallthru
      _
    %p150 = scmp.le.s32.totalorder 1, %s9
    %p151 = scmp.lt.s32.totalorder %s9, 5
    %p152 = pnand %p150, %p151
    %p153 = pneg %p152
    // Predicated region
    $region29: #{_details_net_forward.10} parent=5 // pred_check
      _
    $region30: #{_details_net_forward.10} parent=5 // pred_check_branch
      %155 = sbr.rel (%p152) target = $region32
    $region31: #{_details_net_forward.10} parent=5 // pred_region
      %s156 = ssub.s32 %s9, 1
      %p157 = scmp.lt.s32.totalorder %s18, 1
      %s158 = scalar_select %p157, %s18, 1
      %s159 = smul.addr %s158, 108
      %s160 = smul.addr %s159, 4
      %s161 = scalar_lea.vmem %s0, %s160
      %p162 = pneg %p47
      %p163 = pneg %p44
      %p164 = pneg %p68
      %p165 = pneg %p65
      %p166 = pneg %p89
      %p167 = pneg %p86
      %p168 = pneg %p117
      %p169 = pneg %p114
      %s170 = smul.u32 16, %s19
      %p171 = scmp.lt.s32.totalorder %s18, 1
      %s172 = scalar_select %p171, %s18, 1
      %p173 = scmp.lt.s32.totalorder %s170, 31
      %s174 = scalar_select %p173, %s170, 31
      %s175 = smul.addr %s172, 32
      %s176 = sadd.s32 %s174, %s175
      %s177 = smul.addr %s176, 8
      %s178 = scalar_lea.vmem %s3, %s177
      %p179 = scmp.lt.s32.totalorder %s18, 1
      %s180 = scalar_select %p179, %s18, 1
      %s181 = smul.addr %s180, 108
      %s182 = smul.addr %s181, 4
      %s183 = scalar_lea.vmem %s0, %s182
      %s184 = smul.u32 16, %s19
      %p185 = scmp.lt.s32.totalorder %s18, 1
      %s186 = scalar_select %p185, %s18, 1
      %p187 = scmp.lt.s32.totalorder %s184, 31
      %s188 = scalar_select %p187, %s184, 31
      %s189 = smul.addr %s186, 32
      %s190 = sadd.s32 %s188, %s189
      %s191 = smul.addr %s190, 8
      %s192 = scalar_lea.vmem %s3, %s191
      %s193 = smul.u32 16, %s19
      %s195 = smul.u32 %s19, 128
      %s196 = sshra.s32 %s195, 3
      %s197 = sand.u32 %s195, 7
      %s198 = smul.addr %s196, 4
      %s199 = scalar_lea.vmem %s183, %s198
      %v200 = vld [vmem:[%s199] sm:$0xf]
      %v201 = vld [vmem:[%s199 + $0x4] sm:$0xf]
      %v202 = vld [vmem:[%s199 + $0x8] sm:$0xf]
      %v203 = vld [vmem:[%s199 + $0xc] sm:$0xf]
      %v204 = vld [vmem:[%s199 + $0x10] sm:$0xf]
      %v205 = vld [vmem:[%s199 + $0x14] sm:$0xf]
      %v206 = vld [vmem:[%s199 + $0x18] sm:$0xf]
      %v207 = vld [vmem:[%s199 + $0x1c] sm:$0xf]
      %v208 = vld [vmem:[%s199 + $0x20] sm:$0xf]
      %v209 = vld [vmem:[%s199 + $0x24] sm:$0xf]
      %v210 = vld [vmem:[%s199 + $0x28] sm:$0xf]
      %v211 = vld [vmem:[%s199 + $0x2c] sm:$0xf]
      %v212 = vld [vmem:[%s199 + $0x30] sm:$0xf]
      %v213 = vld [vmem:[%s199 + $0x34] sm:$0xf]
      %v214 = vld [vmem:[%s199 + $0x38] sm:$0xf]
      %v215 = vld [vmem:[%s199 + $0x3c] sm:$0xf]
      %v216 = vld [vmem:[%s1] sm:$0xf]
      %v217 = vld [vmem:[%s1 + $0x4] sm:$0xf]
      %v218 = vld [vmem:[%s1 + $0x8] sm:$0xf]
      %v219 = vld [vmem:[%s1 + $0xc] sm:$0xf]
      %v220 = vld [vmem:[%s1 + $0x10] sm:$0xf]
      %v221 = vld [vmem:[%s1 + $0x14] sm:$0xf]
      %v222 = vld [vmem:[%s1 + $0x18] sm:$0xf]
      %v223 = vld [vmem:[%s1 + $0x1c] sm:$0xf]
      %s224 = sadd.s32 %s196, 36
      %s225 = smul.addr %s224, 4
      %s226 = scalar_lea.vmem %s183, %s225
      %v227 = vld [vmem:[%s226] sm:$0xf]
      %v228 = vld [vmem:[%s226 + $0x4] sm:$0xf]
      %v229 = vld [vmem:[%s226 + $0x8] sm:$0xf]
      %v230 = vld [vmem:[%s226 + $0xc] sm:$0xf]
      %v231 = vld [vmem:[%s226 + $0x10] sm:$0xf]
      %v232 = vld [vmem:[%s226 + $0x14] sm:$0xf]
      %v233 = vld [vmem:[%s226 + $0x18] sm:$0xf]
      %v234 = vld [vmem:[%s226 + $0x1c] sm:$0xf]
      %v235 = vld [vmem:[%s226 + $0x20] sm:$0xf]
      %v236 = vld [vmem:[%s226 + $0x24] sm:$0xf]
      %v237 = vld [vmem:[%s226 + $0x28] sm:$0xf]
      %v238 = vld [vmem:[%s226 + $0x2c] sm:$0xf]
      %v239 = vld [vmem:[%s226 + $0x30] sm:$0xf]
      %v240 = vld [vmem:[%s226 + $0x34] sm:$0xf]
      %v241 = vld [vmem:[%s226 + $0x38] sm:$0xf]
      %v242 = vld [vmem:[%s226 + $0x3c] sm:$0xf]
      %s243 = scalar_lea.vmem %s1, 32
      %v244 = vld [vmem:[%s243] sm:$0xf]
      %v245 = vld [vmem:[%s243 + $0x4] sm:$0xf]
      %v246 = vld [vmem:[%s243 + $0x8] sm:$0xf]
      %v247 = vld [vmem:[%s243 + $0xc] sm:$0xf]
      %v248 = vld [vmem:[%s243 + $0x10] sm:$0xf]
      %v249 = vld [vmem:[%s243 + $0x14] sm:$0xf]
      %v250 = vld [vmem:[%s243 + $0x18] sm:$0xf]
      %v251 = vld [vmem:[%s243 + $0x1c] sm:$0xf]
      %v268 = vunpack.c.l.b16 %v227
      %v269 = vunpack.c.l.b16 %v228
      %v270 = vunpack.c.l.b16 %v229
      %v271 = vunpack.c.l.b16 %v230
      %v272 = vunpack.c.l.b16 %v231
      %v273 = vunpack.c.l.b16 %v232
      %v274 = vunpack.c.l.b16 %v233
      %v275 = vunpack.c.l.b16 %v234
      %v276 = vunpack.c.l.b16 %v235
      %v277 = vunpack.c.l.b16 %v236
      %v278 = vunpack.c.l.b16 %v237
      %v279 = vunpack.c.l.b16 %v238
      %v280 = vunpack.c.l.b16 %v239
      %v281 = vunpack.c.l.b16 %v240
      %v282 = vunpack.c.l.b16 %v241
      %v283 = vunpack.c.l.b16 %v242
      %v284 = vpack.c.b16 %v269, %v268
      %v285 = vpack.c.b16 %v271, %v270
      %v286 = vpack.c.b16 %v273, %v272
      %v287 = vpack.c.b16 %v275, %v274
      %v288 = vpack.c.b16 %v277, %v276
      %v289 = vpack.c.b16 %v279, %v278
      %v290 = vpack.c.b16 %v281, %v280
      %v291 = vpack.c.b16 %v283, %v282
      %v300 = vunpack.c.l.b16 %v244
      %v301 = vunpack.c.l.b16 %v245
      %v302 = vunpack.c.l.b16 %v246
      %v303 = vunpack.c.l.b16 %v247
      %v304 = vunpack.c.l.b16 %v248
      %v305 = vunpack.c.l.b16 %v249
      %v306 = vunpack.c.l.b16 %v250
      %v307 = vunpack.c.l.b16 %v251
      %v308 = vpack.c.b16 %v301, %v300
      %v309 = vpack.c.b16 %v303, %v302
      %v310 = vpack.c.b16 %v305, %v304
      %v311 = vpack.c.b16 %v307, %v306
      %vm316 = vcmask 523264
      %v318 = vsel %vm316, %v284, 0
      %v321 = vsel %vm316, %v285, 0
      %v324 = vsel %vm316, %v286, 0
      %v327 = vsel %vm316, %v287, 0
      %v330 = vsel %vm316, %v288, 0
      %v333 = vsel %vm316, %v289, 0
      %v336 = vsel %vm316, %v290, 0
      %v339 = vsel %vm316, %v291, 0
      %341 = vmatpush.bf16.msra.mxu0 0
      %342 = vmatpush.bf16.msra.mxu0 0
      %343 = vmatpush.bf16.msra.mxu0 0
      %344 = vmatpush.bf16.msra.mxu0 0
      %345 = vmatpush.bf16.msra.mxu0 %v311
      %346 = vmatpush.bf16.msra.mxu0 %v310
      %347 = vmatpush.bf16.msra.mxu0 %v309
      %348 = vmatpush.bf16.msra.mxu0 %v308
      %349 = vmatmul.bf16.gmra.mxu0 %v318
      %v350 = vpop.f32.mrf.mxu0
      %v351 = vadd.f32 0.0, %v350
      %v352 = vpop.f32.mrf.mxu0
      %v353 = vadd.f32 0.0, %v352
      %354 = vmatmul.bf16.gmra.mxu0 %v321
      %v355 = vpop.f32.mrf.mxu0
      %v356 = vadd.f32 0.0, %v355
      %v357 = vpop.f32.mrf.mxu0
      %v358 = vadd.f32 0.0, %v357
      %359 = vmatmul.bf16.gmra.mxu0 %v324
      %v360 = vpop.f32.mrf.mxu0
      %v361 = vadd.f32 0.0, %v360
      %v362 = vpop.f32.mrf.mxu0
      %v363 = vadd.f32 0.0, %v362
      %364 = vmatmul.bf16.gmra.mxu0 %v327
      %v365 = vpop.f32.mrf.mxu0
      %v366 = vadd.f32 0.0, %v365
      %v367 = vpop.f32.mrf.mxu0
      %v368 = vadd.f32 0.0, %v367
      %369 = vmatmul.bf16.gmra.mxu0 %v330
      %v370 = vpop.f32.mrf.mxu0
      %v371 = vadd.f32 0.0, %v370
      %v372 = vpop.f32.mrf.mxu0
      %v373 = vadd.f32 0.0, %v372
      %374 = vmatmul.bf16.gmra.mxu0 %v333
      %v375 = vpop.f32.mrf.mxu0
      %v376 = vadd.f32 0.0, %v375
      %v377 = vpop.f32.mrf.mxu0
      %v378 = vadd.f32 0.0, %v377
      %379 = vmatmul.bf16.gmra.mxu0 %v336
      %v380 = vpop.f32.mrf.mxu0
      %v381 = vadd.f32 0.0, %v380
      %v382 = vpop.f32.mrf.mxu0
      %v383 = vadd.f32 0.0, %v382
      %384 = vmatmul.bf16.gmra.mxu0 %v339
      %v385 = vpop.f32.mrf.mxu0
      %v386 = vadd.f32 0.0, %v385
      %v387 = vpop.f32.mrf.mxu0
      %v388 = vadd.f32 0.0, %v387
      %389 = vdwg.mxu0
      %v406 = vunpack.c.l.b16 %v200
      %v407 = vunpack.c.l.b16 %v201
      %v408 = vunpack.c.l.b16 %v202
      %v409 = vunpack.c.l.b16 %v203
      %v410 = vunpack.c.l.b16 %v204
      %v411 = vunpack.c.l.b16 %v205
      %v412 = vunpack.c.l.b16 %v206
      %v413 = vunpack.c.l.b16 %v207
      %v414 = vunpack.c.l.b16 %v208
      %v415 = vunpack.c.l.b16 %v209
      %v416 = vunpack.c.l.b16 %v210
      %v417 = vunpack.c.l.b16 %v211
      %v418 = vunpack.c.l.b16 %v212
      %v419 = vunpack.c.l.b16 %v213
      %v420 = vunpack.c.l.b16 %v214
      %v421 = vunpack.c.l.b16 %v215
      %v422 = vpack.c.b16 %v407, %v406
      %v423 = vpack.c.b16 %v409, %v408
      %v424 = vpack.c.b16 %v411, %v410
      %v425 = vpack.c.b16 %v413, %v412
      %v426 = vpack.c.b16 %v415, %v414
      %v427 = vpack.c.b16 %v417, %v416
      %v428 = vpack.c.b16 %v419, %v418
      %v429 = vpack.c.b16 %v421, %v420
      %v438 = vunpack.c.l.b16 %v216
      %v439 = vunpack.c.l.b16 %v217
      %v440 = vunpack.c.l.b16 %v218
      %v441 = vunpack.c.l.b16 %v219
      %v442 = vunpack.c.l.b16 %v220
      %v443 = vunpack.c.l.b16 %v221
      %v444 = vunpack.c.l.b16 %v222
      %v445 = vunpack.c.l.b16 %v223
      %v446 = vpack.c.b16 %v439, %v438
      %v447 = vpack.c.b16 %v441, %v440
      %v448 = vpack.c.b16 %v443, %v442
      %v449 = vpack.c.b16 %v445, %v444
      %v455 = vsel %vm316, %v422, 0
      %v458 = vsel %vm316, %v423, 0
      %v461 = vsel %vm316, %v424, 0
      %v464 = vsel %vm316, %v425, 0
      %v467 = vsel %vm316, %v426, 0
      %v470 = vsel %vm316, %v427, 0
      %v473 = vsel %vm316, %v428, 0
      %v476 = vsel %vm316, %v429, 0
      %478 = vmatpush.bf16.msra.mxu0 0
      %479 = vmatpush.bf16.msra.mxu0 0
      %480 = vmatpush.bf16.msra.mxu0 0
      %481 = vmatpush.bf16.msra.mxu0 0
      %482 = vmatpush.bf16.msra.mxu0 %v449
      %483 = vmatpush.bf16.msra.mxu0 %v448
      %484 = vmatpush.bf16.msra.mxu0 %v447
      %485 = vmatpush.bf16.msra.mxu0 %v446
      %486 = vmatmul.bf16.gmra.mxu0 %v455
      %v487 = vpop.f32.mrf.mxu0
      %v488 = vadd.f32 %v351, %v487
      %v489 = vpop.f32.mrf.mxu0
      %v490 = vadd.f32 %v353, %v489
      %491 = vmatmul.bf16.gmra.mxu0 %v458
      %v492 = vpop.f32.mrf.mxu0
      %v493 = vadd.f32 %v356, %v492
      %v494 = vpop.f32.mrf.mxu0
      %v495 = vadd.f32 %v358, %v494
      %496 = vmatmul.bf16.gmra.mxu0 %v461
      %v497 = vpop.f32.mrf.mxu0
      %v498 = vadd.f32 %v361, %v497
      %v499 = vpop.f32.mrf.mxu0
      %v500 = vadd.f32 %v363, %v499
      %501 = vmatmul.bf16.gmra.mxu0 %v464
      %v502 = vpop.f32.mrf.mxu0
      %v503 = vadd.f32 %v366, %v502
      %v504 = vpop.f32.mrf.mxu0
      %v505 = vadd.f32 %v368, %v504
      %506 = vmatmul.bf16.gmra.mxu0 %v467
      %v507 = vpop.f32.mrf.mxu0
      %v508 = vadd.f32 %v371, %v507
      %v509 = vpop.f32.mrf.mxu0
      %v510 = vadd.f32 %v373, %v509
      %511 = vmatmul.bf16.gmra.mxu0 %v470
      %v512 = vpop.f32.mrf.mxu0
      %v513 = vadd.f32 %v376, %v512
      %v514 = vpop.f32.mrf.mxu0
      %v515 = vadd.f32 %v378, %v514
      %516 = vmatmul.bf16.gmra.mxu0 %v473
      %v517 = vpop.f32.mrf.mxu0
      %v518 = vadd.f32 %v381, %v517
      %v519 = vpop.f32.mrf.mxu0
      %v520 = vadd.f32 %v383, %v519
      %521 = vmatmul.bf16.gmra.mxu0 %v476
      %v522 = vpop.f32.mrf.mxu0
      %v523 = vadd.f32 %v386, %v522
      %v524 = vpop.f32.mrf.mxu0
      %v525 = vadd.f32 %v388, %v524
      %526 = vdwg.mxu0
      %s527 = sadd.s32 %s196, 72
      %s528 = smul.addr %s527, 4
      %s529 = scalar_lea.vmem %s183, %s528
      %v530 = vld [vmem:[%s529] sm:$0xf]
      %v531 = vld [vmem:[%s529 + $0x4] sm:$0xf]
      %v532 = vld [vmem:[%s529 + $0x8] sm:$0xf]
      %v533 = vld [vmem:[%s529 + $0xc] sm:$0xf]
      %v534 = vld [vmem:[%s529 + $0x10] sm:$0xf]
      %v535 = vld [vmem:[%s529 + $0x14] sm:$0xf]
      %v536 = vld [vmem:[%s529 + $0x18] sm:$0xf]
      %v537 = vld [vmem:[%s529 + $0x1c] sm:$0xf]
      %v538 = vld [vmem:[%s529 + $0x20] sm:$0xf]
      %v539 = vld [vmem:[%s529 + $0x24] sm:$0xf]
      %v540 = vld [vmem:[%s529 + $0x28] sm:$0xf]
      %v541 = vld [vmem:[%s529 + $0x2c] sm:$0xf]
      %v542 = vld [vmem:[%s529 + $0x30] sm:$0xf]
      %v543 = vld [vmem:[%s529 + $0x34] sm:$0xf]
      %v544 = vld [vmem:[%s529 + $0x38] sm:$0xf]
      %v545 = vld [vmem:[%s529 + $0x3c] sm:$0xf]
      %s546 = scalar_lea.vmem %s1, 64
      %v547 = vld [vmem:[%s546] sm:$0xf]
      %v548 = vld [vmem:[%s546 + $0x4] sm:$0xf]
      %v549 = vld [vmem:[%s546 + $0x8] sm:$0xf]
      %v550 = vld [vmem:[%s546 + $0xc] sm:$0xf]
      %v551 = vld [vmem:[%s546 + $0x10] sm:$0xf]
      %v552 = vld [vmem:[%s546 + $0x14] sm:$0xf]
      %v553 = vld [vmem:[%s546 + $0x18] sm:$0xf]
      %v554 = vld [vmem:[%s546 + $0x1c] sm:$0xf]
      %v571 = vunpack.c.l.b16 %v530
      %v572 = vunpack.c.l.b16 %v531
      %v573 = vunpack.c.l.b16 %v532
      %v574 = vunpack.c.l.b16 %v533
      %v575 = vunpack.c.l.b16 %v534
      %v576 = vunpack.c.l.b16 %v535
      %v577 = vunpack.c.l.b16 %v536
      %v578 = vunpack.c.l.b16 %v537
      %v579 = vunpack.c.l.b16 %v538
      %v580 = vunpack.c.l.b16 %v539
      %v581 = vunpack.c.l.b16 %v540
      %v582 = vunpack.c.l.b16 %v541
      %v583 = vunpack.c.l.b16 %v542
      %v584 = vunpack.c.l.b16 %v543
      %v585 = vunpack.c.l.b16 %v544
      %v586 = vunpack.c.l.b16 %v545
      %v587 = vpack.c.b16 %v572, %v571
      %v588 = vpack.c.b16 %v574, %v573
      %v589 = vpack.c.b16 %v576, %v575
      %v590 = vpack.c.b16 %v578, %v577
      %v591 = vpack.c.b16 %v580, %v579
      %v592 = vpack.c.b16 %v582, %v581
      %v593 = vpack.c.b16 %v584, %v583
      %v594 = vpack.c.b16 %v586, %v585
      %v603 = vunpack.c.l.b16 %v547
      %v604 = vunpack.c.l.b16 %v548
      %v605 = vunpack.c.l.b16 %v549
      %v606 = vunpack.c.l.b16 %v550
      %v607 = vunpack.c.l.b16 %v551
      %v608 = vunpack.c.l.b16 %v552
      %v609 = vunpack.c.l.b16 %v553
      %v610 = vunpack.c.l.b16 %v554
      %v611 = vpack.c.b16 %v604, %v603
      %v612 = vpack.c.b16 %v606, %v605
      %v613 = vpack.c.b16 %v608, %v607
      %v614 = vpack.c.b16 %v610, %v609
      %v620 = vsel %vm316, %v587, 0
      %v623 = vsel %vm316, %v588, 0
      %v626 = vsel %vm316, %v589, 0
      %v629 = vsel %vm316, %v590, 0
      %v632 = vsel %vm316, %v591, 0
      %v635 = vsel %vm316, %v592, 0
      %v638 = vsel %vm316, %v593, 0
      %v641 = vsel %vm316, %v594, 0
      %643 = vmatpush.bf16.msra.mxu0 0
      %644 = vmatpush.bf16.msra.mxu0 0
      %645 = vmatpush.bf16.msra.mxu0 0
      %646 = vmatpush.bf16.msra.mxu0 0
      %647 = vmatpush.bf16.msra.mxu0 %v614
      %648 = vmatpush.bf16.msra.mxu0 %v613
      %649 = vmatpush.bf16.msra.mxu0 %v612
      %650 = vmatpush.bf16.msra.mxu0 %v611
      %651 = vmatmul.bf16.gmra.mxu0 %v620
      %v652 = vpop.f32.mrf.mxu0
      %v653 = vadd.f32 0.0, %v652
      %v654 = vpop.f32.mrf.mxu0
      %v655 = vadd.f32 0.0, %v654
      %656 = vmatmul.bf16.gmra.mxu0 %v623
      %v657 = vpop.f32.mrf.mxu0
      %v658 = vadd.f32 0.0, %v657
      %v659 = vpop.f32.mrf.mxu0
      %v660 = vadd.f32 0.0, %v659
      %661 = vmatmul.bf16.gmra.mxu0 %v626
      %v662 = vpop.f32.mrf.mxu0
      %v663 = vadd.f32 0.0, %v662
      %v664 = vpop.f32.mrf.mxu0
      %v665 = vadd.f32 0.0, %v664
      %666 = vmatmul.bf16.gmra.mxu0 %v629
      %v667 = vpop.f32.mrf.mxu0
      %v668 = vadd.f32 0.0, %v667
      %v669 = vpop.f32.mrf.mxu0
      %v670 = vadd.f32 0.0, %v669
      %671 = vmatmul.bf16.gmra.mxu0 %v632
      %v672 = vpop.f32.mrf.mxu0
      %v673 = vadd.f32 0.0, %v672
      %v674 = vpop.f32.mrf.mxu0
      %v675 = vadd.f32 0.0, %v674
      %676 = vmatmul.bf16.gmra.mxu0 %v635
      %v677 = vpop.f32.mrf.mxu0
      %v678 = vadd.f32 0.0, %v677
      %v679 = vpop.f32.mrf.mxu0
      %v680 = vadd.f32 0.0, %v679
      %681 = vmatmul.bf16.gmra.mxu0 %v638
      %v682 = vpop.f32.mrf.mxu0
      %v683 = vadd.f32 0.0, %v682
      %v684 = vpop.f32.mrf.mxu0
      %v685 = vadd.f32 0.0, %v684
      %686 = vmatmul.bf16.gmra.mxu0 %v641
      %v687 = vpop.f32.mrf.mxu0
      %v688 = vadd.f32 0.0, %v687
      %v689 = vpop.f32.mrf.mxu0
      %v690 = vadd.f32 0.0, %v689
      %691 = vdwg.mxu0
      %v692 = vadd.f32 %v488, %v653
      %v693 = vadd.f32 %v490, %v655
      %v694 = vadd.f32 %v493, %v658
      %v695 = vadd.f32 %v495, %v660
      %v696 = vadd.f32 %v498, %v663
      %v697 = vadd.f32 %v500, %v665
      %v698 = vadd.f32 %v503, %v668
      %v699 = vadd.f32 %v505, %v670
      %v700 = vadd.f32 %v508, %v673
      %v701 = vadd.f32 %v510, %v675
      %v702 = vadd.f32 %v513, %v678
      %v703 = vadd.f32 %v515, %v680
      %v704 = vadd.f32 %v518, %v683
      %v705 = vadd.f32 %v520, %v685
      %v706 = vadd.f32 %v523, %v688
      %v707 = vadd.f32 %v525, %v690
      %s708 = sadd.s32 %s195, 16
      %s709 = sshra.s32 %s708, 3
      %s710 = sand.u32 %s708, 7
      %s711 = smul.addr %s709, 4
      %s712 = scalar_lea.vmem %s183, %s711
      %v713 = vld [vmem:[%s712] sm:$0xf]
      %v714 = vld [vmem:[%s712 + $0x4] sm:$0xf]
      %v715 = vld [vmem:[%s712 + $0x8] sm:$0xf]
      %v716 = vld [vmem:[%s712 + $0xc] sm:$0xf]
      %v717 = vld [vmem:[%s712 + $0x10] sm:$0xf]
      %v718 = vld [vmem:[%s712 + $0x14] sm:$0xf]
      %v719 = vld [vmem:[%s712 + $0x18] sm:$0xf]
      %v720 = vld [vmem:[%s712 + $0x1c] sm:$0xf]
      %v721 = vld [vmem:[%s712 + $0x20] sm:$0xf]
      %v722 = vld [vmem:[%s712 + $0x24] sm:$0xf]
      %v723 = vld [vmem:[%s712 + $0x28] sm:$0xf]
      %v724 = vld [vmem:[%s712 + $0x2c] sm:$0xf]
      %v725 = vld [vmem:[%s712 + $0x30] sm:$0xf]
      %v726 = vld [vmem:[%s712 + $0x34] sm:$0xf]
      %v727 = vld [vmem:[%s712 + $0x38] sm:$0xf]
      %v728 = vld [vmem:[%s712 + $0x3c] sm:$0xf]
      %s729 = scalar_lea.vmem %s1, 96
      %v730 = vld [vmem:[%s729] sm:$0xf]
      %v731 = vld [vmem:[%s729 + $0x4] sm:$0xf]
      %v732 = vld [vmem:[%s729 + $0x8] sm:$0xf]
      %v733 = vld [vmem:[%s729 + $0xc] sm:$0xf]
      %v734 = vld [vmem:[%s729 + $0x10] sm:$0xf]
      %v735 = vld [vmem:[%s729 + $0x14] sm:$0xf]
      %v736 = vld [vmem:[%s729 + $0x18] sm:$0xf]
      %v737 = vld [vmem:[%s729 + $0x1c] sm:$0xf]
      %v754 = vunpack.c.l.b16 %v713
      %v755 = vunpack.c.l.b16 %v714
      %v756 = vunpack.c.l.b16 %v715
      %v757 = vunpack.c.l.b16 %v716
      %v758 = vunpack.c.l.b16 %v717
      %v759 = vunpack.c.l.b16 %v718
      %v760 = vunpack.c.l.b16 %v719
      %v761 = vunpack.c.l.b16 %v720
      %v762 = vunpack.c.l.b16 %v721
      %v763 = vunpack.c.l.b16 %v722
      %v764 = vunpack.c.l.b16 %v723
      %v765 = vunpack.c.l.b16 %v724
      %v766 = vunpack.c.l.b16 %v725
      %v767 = vunpack.c.l.b16 %v726
      %v768 = vunpack.c.l.b16 %v727
      %v769 = vunpack.c.l.b16 %v728
      %v770 = vpack.c.b16 %v755, %v754
      %v771 = vpack.c.b16 %v757, %v756
      %v772 = vpack.c.b16 %v759, %v758
      %v773 = vpack.c.b16 %v761, %v760
      %v774 = vpack.c.b16 %v763, %v762
      %v775 = vpack.c.b16 %v765, %v764
      %v776 = vpack.c.b16 %v767, %v766
      %v777 = vpack.c.b16 %v769, %v768
      %v786 = vunpack.c.l.b16 %v730
      %v787 = vunpack.c.l.b16 %v731
      %v788 = vunpack.c.l.b16 %v732
      %v789 = vunpack.c.l.b16 %v733
      %v790 = vunpack.c.l.b16 %v734
      %v791 = vunpack.c.l.b16 %v735
      %v792 = vunpack.c.l.b16 %v736
      %v793 = vunpack.c.l.b16 %v737
      %v794 = vpack.c.b16 %v787, %v786
      %v795 = vpack.c.b16 %v789, %v788
      %v796 = vpack.c.b16 %v791, %v790
      %v797 = vpack.c.b16 %v793, %v792
      %v803 = vsel %vm316, %v770, 0
      %v806 = vsel %vm316, %v771, 0
      %v809 = vsel %vm316, %v772, 0
      %v812 = vsel %vm316, %v773, 0
      %v815 = vsel %vm316, %v774, 0
      %v818 = vsel %vm316, %v775, 0
      %v821 = vsel %vm316, %v776, 0
      %v824 = vsel %vm316, %v777, 0
      %826 = vmatpush.bf16.msra.mxu0 0
      %827 = vmatpush.bf16.msra.mxu0 0
      %828 = vmatpush.bf16.msra.mxu0 0
      %829 = vmatpush.bf16.msra.mxu0 0
      %830 = vmatpush.bf16.msra.mxu0 %v797
      %831 = vmatpush.bf16.msra.mxu0 %v796
      %832 = vmatpush.bf16.msra.mxu0 %v795
      %833 = vmatpush.bf16.msra.mxu0 %v794
      %834 = vmatmul.bf16.gmra.mxu0 %v803
      %v835 = vpop.f32.mrf.mxu0
      %v836 = vadd.f32 0.0, %v835
      %v837 = vpop.f32.mrf.mxu0
      %v838 = vadd.f32 0.0, %v837
      %839 = vmatmul.bf16.gmra.mxu0 %v806
      %v840 = vpop.f32.mrf.mxu0
      %v841 = vadd.f32 0.0, %v840
      %v842 = vpop.f32.mrf.mxu0
      %v843 = vadd.f32 0.0, %v842
      %844 = vmatmul.bf16.gmra.mxu0 %v809
      %v845 = vpop.f32.mrf.mxu0
      %v846 = vadd.f32 0.0, %v845
      %v847 = vpop.f32.mrf.mxu0
      %v848 = vadd.f32 0.0, %v847
      %849 = vmatmul.bf16.gmra.mxu0 %v812
      %v850 = vpop.f32.mrf.mxu0
      %v851 = vadd.f32 0.0, %v850
      %v852 = vpop.f32.mrf.mxu0
      %v853 = vadd.f32 0.0, %v852
      %854 = vmatmul.bf16.gmra.mxu0 %v815
      %v855 = vpop.f32.mrf.mxu0
      %v856 = vadd.f32 0.0, %v855
      %v857 = vpop.f32.mrf.mxu0
      %v858 = vadd.f32 0.0, %v857
      %859 = vmatmul.bf16.gmra.mxu0 %v818
      %v860 = vpop.f32.mrf.mxu0
      %v861 = vadd.f32 0.0, %v860
      %v862 = vpop.f32.mrf.mxu0
      %v863 = vadd.f32 0.0, %v862
      %864 = vmatmul.bf16.gmra.mxu0 %v821
      %v865 = vpop.f32.mrf.mxu0
      %v866 = vadd.f32 0.0, %v865
      %v867 = vpop.f32.mrf.mxu0
      %v868 = vadd.f32 0.0, %v867
      %869 = vmatmul.bf16.gmra.mxu0 %v824
      %v870 = vpop.f32.mrf.mxu0
      %v871 = vadd.f32 0.0, %v870
      %v872 = vpop.f32.mrf.mxu0
      %v873 = vadd.f32 0.0, %v872
      %874 = vdwg.mxu0
      %v875 = vadd.f32 %v692, %v836
      %v876 = vadd.f32 %v693, %v838
      %v877 = vadd.f32 %v694, %v841
      %v878 = vadd.f32 %v695, %v843
      %v879 = vadd.f32 %v696, %v846
      %v880 = vadd.f32 %v697, %v848
      %v881 = vadd.f32 %v698, %v851
      %v882 = vadd.f32 %v699, %v853
      %v883 = vadd.f32 %v700, %v856
      %v884 = vadd.f32 %v701, %v858
      %v885 = vadd.f32 %v702, %v861
      %v886 = vadd.f32 %v703, %v863
      %v887 = vadd.f32 %v704, %v866
      %v888 = vadd.f32 %v705, %v868
      %v889 = vadd.f32 %v706, %v871
      %v890 = vadd.f32 %v707, %v873
      %s891 = sadd.s32 %s709, 36
      %s892 = smul.addr %s891, 4
      %s893 = scalar_lea.vmem %s183, %s892
      %v894 = vld [vmem:[%s893] sm:$0xf]
      %v895 = vld [vmem:[%s893 + $0x4] sm:$0xf]
      %v896 = vld [vmem:[%s893 + $0x8] sm:$0xf]
      %v897 = vld [vmem:[%s893 + $0xc] sm:$0xf]
      %v898 = vld [vmem:[%s893 + $0x10] sm:$0xf]
      %v899 = vld [vmem:[%s893 + $0x14] sm:$0xf]
      %v900 = vld [vmem:[%s893 + $0x18] sm:$0xf]
      %v901 = vld [vmem:[%s893 + $0x1c] sm:$0xf]
      %v902 = vld [vmem:[%s893 + $0x20] sm:$0xf]
      %v903 = vld [vmem:[%s893 + $0x24] sm:$0xf]
      %v904 = vld [vmem:[%s893 + $0x28] sm:$0xf]
      %v905 = vld [vmem:[%s893 + $0x2c] sm:$0xf]
      %v906 = vld [vmem:[%s893 + $0x30] sm:$0xf]
      %v907 = vld [vmem:[%s893 + $0x34] sm:$0xf]
      %v908 = vld [vmem:[%s893 + $0x38] sm:$0xf]
      %v909 = vld [vmem:[%s893 + $0x3c] sm:$0xf]
      %s910 = scalar_lea.vmem %s1, 128
      %v911 = vld [vmem:[%s910] sm:$0xf]
      %v912 = vld [vmem:[%s910 + $0x4] sm:$0xf]
      %v913 = vld [vmem:[%s910 + $0x8] sm:$0xf]
      %v914 = vld [vmem:[%s910 + $0xc] sm:$0xf]
      %v915 = vld [vmem:[%s910 + $0x10] sm:$0xf]
      %v916 = vld [vmem:[%s910 + $0x14] sm:$0xf]
      %v917 = vld [vmem:[%s910 + $0x18] sm:$0xf]
      %v918 = vld [vmem:[%s910 + $0x1c] sm:$0xf]
      %v935 = vunpack.c.l.b16 %v894
      %v936 = vunpack.c.l.b16 %v895
      %v937 = vunpack.c.l.b16 %v896
      %v938 = vunpack.c.l.b16 %v897
      %v939 = vunpack.c.l.b16 %v898
      %v940 = vunpack.c.l.b16 %v899
      %v941 = vunpack.c.l.b16 %v900
      %v942 = vunpack.c.l.b16 %v901
      %v943 = vunpack.c.l.b16 %v902
      %v944 = vunpack.c.l.b16 %v903
      %v945 = vunpack.c.l.b16 %v904
      %v946 = vunpack.c.l.b16 %v905
      %v947 = vunpack.c.l.b16 %v906
      %v948 = vunpack.c.l.b16 %v907
      %v949 = vunpack.c.l.b16 %v908
      %v950 = vunpack.c.l.b16 %v909
      %v951 = vpack.c.b16 %v936, %v935
      %v952 = vpack.c.b16 %v938, %v937
      %v953 = vpack.c.b16 %v940, %v939
      %v954 = vpack.c.b16 %v942, %v941
      %v955 = vpack.c.b16 %v944, %v943
      %v956 = vpack.c.b16 %v946, %v945
      %v957 = vpack.c.b16 %v948, %v947
      %v958 = vpack.c.b16 %v950, %v949
      %v967 = vunpack.c.l.b16 %v911
      %v968 = vunpack.c.l.b16 %v912
      %v969 = vunpack.c.l.b16 %v913
      %v970 = vunpack.c.l.b16 %v914
      %v971 = vunpack.c.l.b16 %v915
      %v972 = vunpack.c.l.b16 %v916
      %v973 = vunpack.c.l.b16 %v917
      %v974 = vunpack.c.l.b16 %v918
      %v975 = vpack.c.b16 %v968, %v967
      %v976 = vpack.c.b16 %v970, %v969
      %v977 = vpack.c.b16 %v972, %v971
      %v978 = vpack.c.b16 %v974, %v973
      %v984 = vsel %vm316, %v951, 0
      %v987 = vsel %vm316, %v952, 0
      %v990 = vsel %vm316, %v953, 0
      %v993 = vsel %vm316, %v954, 0
      %v996 = vsel %vm316, %v955, 0
      %v999 = vsel %vm316, %v956, 0
      %v1002 = vsel %vm316, %v957, 0
      %v1005 = vsel %vm316, %v958, 0
      %1007 = vmatpush.bf16.msra.mxu0 0
      %1008 = vmatpush.bf16.msra.mxu0 0
      %1009 = vmatpush.bf16.msra.mxu0 0
      %1010 = vmatpush.bf16.msra.mxu0 0
      %1011 = vmatpush.bf16.msra.mxu0 %v978
      %1012 = vmatpush.bf16.msra.mxu0 %v977
      %1013 = vmatpush.bf16.msra.mxu0 %v976
      %1014 = vmatpush.bf16.msra.mxu0 %v975
      %1015 = vmatmul.bf16.gmra.mxu0 %v984
      %v1016 = vpop.f32.mrf.mxu0
      %v1017 = vadd.f32 0.0, %v1016
      %v1018 = vpop.f32.mrf.mxu0
      %v1019 = vadd.f32 0.0, %v1018
      %1020 = vmatmul.bf16.gmra.mxu0 %v987
      %v1021 = vpop.f32.mrf.mxu0
      %v1022 = vadd.f32 0.0, %v1021
      %v1023 = vpop.f32.mrf.mxu0
      %v1024 = vadd.f32 0.0, %v1023
      %1025 = vmatmul.bf16.gmra.mxu0 %v990
      %v1026 = vpop.f32.mrf.mxu0
      %v1027 = vadd.f32 0.0, %v1026
      %v1028 = vpop.f32.mrf.mxu0
      %v1029 = vadd.f32 0.0, %v1028
      %1030 = vmatmul.bf16.gmra.mxu0 %v993
      %v1031 = vpop.f32.mrf.mxu0
      %v1032 = vadd.f32 0.0, %v1031
      %v1033 = vpop.f32.mrf.mxu0
      %v1034 = vadd.f32 0.0, %v1033
      %1035 = vmatmul.bf16.gmra.mxu0 %v996
      %v1036 = vpop.f32.mrf.mxu0
      %v1037 = vadd.f32 0.0, %v1036
      %v1038 = vpop.f32.mrf.mxu0
      %v1039 = vadd.f32 0.0, %v1038
      %1040 = vmatmul.bf16.gmra.mxu0 %v999
      %v1041 = vpop.f32.mrf.mxu0
      %v1042 = vadd.f32 0.0, %v1041
      %v1043 = vpop.f32.mrf.mxu0
      %v1044 = vadd.f32 0.0, %v1043
      %1045 = vmatmul.bf16.gmra.mxu0 %v1002
      %v1046 = vpop.f32.mrf.mxu0
      %v1047 = vadd.f32 0.0, %v1046
      %v1048 = vpop.f32.mrf.mxu0
      %v1049 = vadd.f32 0.0, %v1048
      %1050 = vmatmul.bf16.gmra.mxu0 %v1005
      %v1051 = vpop.f32.mrf.mxu0
      %v1052 = vadd.f32 0.0, %v1051
      %v1053 = vpop.f32.mrf.mxu0
      %v1054 = vadd.f32 0.0, %v1053
      %1055 = vdwg.mxu0
      %v1056 = vadd.f32 %v875, %v1017
      %v1057 = vadd.f32 %v876, %v1019
      %v1058 = vadd.f32 %v877, %v1022
      %v1059 = vadd.f32 %v878, %v1024
      %v1060 = vadd.f32 %v879, %v1027
      %v1061 = vadd.f32 %v880, %v1029
      %v1062 = vadd.f32 %v881, %v1032
      %v1063 = vadd.f32 %v882, %v1034
      %v1064 = vadd.f32 %v883, %v1037
      %v1065 = vadd.f32 %v884, %v1039
      %v1066 = vadd.f32 %v885, %v1042
      %v1067 = vadd.f32 %v886, %v1044
      %v1068 = vadd.f32 %v887, %v1047
      %v1069 = vadd.f32 %v888, %v1049
      %v1070 = vadd.f32 %v889, %v1052
      %v1071 = vadd.f32 %v890, %v1054
      %s1072 = sadd.s32 %s709, 72
      %s1073 = smul.addr %s1072, 4
      %s1074 = scalar_lea.vmem %s183, %s1073
      %v1075 = vld [vmem:[%s1074] sm:$0xf]
      %v1076 = vld [vmem:[%s1074 + $0x4] sm:$0xf]
      %v1077 = vld [vmem:[%s1074 + $0x8] sm:$0xf]
      %v1078 = vld [vmem:[%s1074 + $0xc] sm:$0xf]
      %v1079 = vld [vmem:[%s1074 + $0x10] sm:$0xf]
      %v1080 = vld [vmem:[%s1074 + $0x14] sm:$0xf]
      %v1081 = vld [vmem:[%s1074 + $0x18] sm:$0xf]
      %v1082 = vld [vmem:[%s1074 + $0x1c] sm:$0xf]
      %v1083 = vld [vmem:[%s1074 + $0x20] sm:$0xf]
      %v1084 = vld [vmem:[%s1074 + $0x24] sm:$0xf]
      %v1085 = vld [vmem:[%s1074 + $0x28] sm:$0xf]
      %v1086 = vld [vmem:[%s1074 + $0x2c] sm:$0xf]
      %v1087 = vld [vmem:[%s1074 + $0x30] sm:$0xf]
      %v1088 = vld [vmem:[%s1074 + $0x34] sm:$0xf]
      %v1089 = vld [vmem:[%s1074 + $0x38] sm:$0xf]
      %v1090 = vld [vmem:[%s1074 + $0x3c] sm:$0xf]
      %s1091 = scalar_lea.vmem %s1, 160
      %v1092 = vld [vmem:[%s1091] sm:$0xf]
      %v1093 = vld [vmem:[%s1091 + $0x4] sm:$0xf]
      %v1094 = vld [vmem:[%s1091 + $0x8] sm:$0xf]
      %v1095 = vld [vmem:[%s1091 + $0xc] sm:$0xf]
      %v1096 = vld [vmem:[%s1091 + $0x10] sm:$0xf]
      %v1097 = vld [vmem:[%s1091 + $0x14] sm:$0xf]
      %v1098 = vld [vmem:[%s1091 + $0x18] sm:$0xf]
      %v1099 = vld [vmem:[%s1091 + $0x1c] sm:$0xf]
      %v1116 = vunpack.c.l.b16 %v1075
      %v1117 = vunpack.c.l.b16 %v1076
      %v1118 = vunpack.c.l.b16 %v1077
      %v1119 = vunpack.c.l.b16 %v1078
      %v1120 = vunpack.c.l.b16 %v1079
      %v1121 = vunpack.c.l.b16 %v1080
      %v1122 = vunpack.c.l.b16 %v1081
      %v1123 = vunpack.c.l.b16 %v1082
      %v1124 = vunpack.c.l.b16 %v1083
      %v1125 = vunpack.c.l.b16 %v1084
      %v1126 = vunpack.c.l.b16 %v1085
      %v1127 = vunpack.c.l.b16 %v1086
      %v1128 = vunpack.c.l.b16 %v1087
      %v1129 = vunpack.c.l.b16 %v1088
      %v1130 = vunpack.c.l.b16 %v1089
      %v1131 = vunpack.c.l.b16 %v1090
      %v1132 = vpack.c.b16 %v1117, %v1116
      %v1133 = vpack.c.b16 %v1119, %v1118
      %v1134 = vpack.c.b16 %v1121, %v1120
      %v1135 = vpack.c.b16 %v1123, %v1122
      %v1136 = vpack.c.b16 %v1125, %v1124
      %v1137 = vpack.c.b16 %v1127, %v1126
      %v1138 = vpack.c.b16 %v1129, %v1128
      %v1139 = vpack.c.b16 %v1131, %v1130
      %v1148 = vunpack.c.l.b16 %v1092
      %v1149 = vunpack.c.l.b16 %v1093
      %v1150 = vunpack.c.l.b16 %v1094
      %v1151 = vunpack.c.l.b16 %v1095
      %v1152 = vunpack.c.l.b16 %v1096
      %v1153 = vunpack.c.l.b16 %v1097
      %v1154 = vunpack.c.l.b16 %v1098
      %v1155 = vunpack.c.l.b16 %v1099
      %v1156 = vpack.c.b16 %v1149, %v1148
      %v1157 = vpack.c.b16 %v1151, %v1150
      %v1158 = vpack.c.b16 %v1153, %v1152
      %v1159 = vpack.c.b16 %v1155, %v1154
      %v1165 = vsel %vm316, %v1132, 0
      %v1168 = vsel %vm316, %v1133, 0
      %v1171 = vsel %vm316, %v1134, 0
      %v1174 = vsel %vm316, %v1135, 0
      %v1177 = vsel %vm316, %v1136, 0
      %v1180 = vsel %vm316, %v1137, 0
      %v1183 = vsel %vm316, %v1138, 0
      %v1186 = vsel %vm316, %v1139, 0
      %1188 = vmatpush.bf16.msra.mxu0 0
      %1189 = vmatpush.bf16.msra.mxu0 0
      %1190 = vmatpush.bf16.msra.mxu0 0
      %1191 = vmatpush.bf16.msra.mxu0 0
      %1192 = vmatpush.bf16.msra.mxu0 %v1159
      %1193 = vmatpush.bf16.msra.mxu0 %v1158
      %1194 = vmatpush.bf16.msra.mxu0 %v1157
      %1195 = vmatpush.bf16.msra.mxu0 %v1156
      %1196 = vmatmul.bf16.gmra.mxu0 %v1165
      %v1197 = vpop.f32.mrf.mxu0
      %v1198 = vadd.f32 0.0, %v1197
      %v1199 = vpop.f32.mrf.mxu0
      %v1200 = vadd.f32 0.0, %v1199
      %1201 = vmatmul.bf16.gmra.mxu0 %v1168
      %v1202 = vpop.f32.mrf.mxu0
      %v1203 = vadd.f32 0.0, %v1202
      %v1204 = vpop.f32.mrf.mxu0
      %v1205 = vadd.f32 0.0, %v1204
      %1206 = vmatmul.bf16.gmra.mxu0 %v1171
      %v1207 = vpop.f32.mrf.mxu0
      %v1208 = vadd.f32 0.0, %v1207
      %v1209 = vpop.f32.mrf.mxu0
      %v1210 = vadd.f32 0.0, %v1209
      %1211 = vmatmul.bf16.gmra.mxu0 %v1174
      %v1212 = vpop.f32.mrf.mxu0
      %v1213 = vadd.f32 0.0, %v1212
      %v1214 = vpop.f32.mrf.mxu0
      %v1215 = vadd.f32 0.0, %v1214
      %1216 = vmatmul.bf16.gmra.mxu0 %v1177
      %v1217 = vpop.f32.mrf.mxu0
      %v1218 = vadd.f32 0.0, %v1217
      %v1219 = vpop.f32.mrf.mxu0
      %v1220 = vadd.f32 0.0, %v1219
      %1221 = vmatmul.bf16.gmra.mxu0 %v1180
      %v1222 = vpop.f32.mrf.mxu0
      %v1223 = vadd.f32 0.0, %v1222
      %v1224 = vpop.f32.mrf.mxu0
      %v1225 = vadd.f32 0.0, %v1224
      %1226 = vmatmul.bf16.gmra.mxu0 %v1183
      %v1227 = vpop.f32.mrf.mxu0
      %v1228 = vadd.f32 0.0, %v1227
      %v1229 = vpop.f32.mrf.mxu0
      %v1230 = vadd.f32 0.0, %v1229
      %1231 = vmatmul.bf16.gmra.mxu0 %v1186
      %v1232 = vpop.f32.mrf.mxu0
      %v1233 = vadd.f32 0.0, %v1232
      %v1234 = vpop.f32.mrf.mxu0
      %v1235 = vadd.f32 0.0, %v1234
      %1236 = vdwg.mxu0
      %v1237 = vadd.f32 %v1056, %v1198
      %v1238 = vadd.f32 %v1057, %v1200
      %v1239 = vadd.f32 %v1058, %v1203
      %v1240 = vadd.f32 %v1059, %v1205
      %v1241 = vadd.f32 %v1060, %v1208
      %v1242 = vadd.f32 %v1061, %v1210
      %v1243 = vadd.f32 %v1062, %v1213
      %v1244 = vadd.f32 %v1063, %v1215
      %v1245 = vadd.f32 %v1064, %v1218
      %v1246 = vadd.f32 %v1065, %v1220
      %v1247 = vadd.f32 %v1066, %v1223
      %v1248 = vadd.f32 %v1067, %v1225
      %v1249 = vadd.f32 %v1068, %v1228
      %v1250 = vadd.f32 %v1069, %v1230
      %v1251 = vadd.f32 %v1070, %v1233
      %v1252 = vadd.f32 %v1071, %v1235
      %s1253 = sadd.s32 %s195, 32
      %s1254 = sshra.s32 %s1253, 3
      %s1255 = sand.u32 %s1253, 7
      %s1256 = smul.addr %s1254, 4
      %s1257 = scalar_lea.vmem %s183, %s1256
      %v1258 = vld [vmem:[%s1257] sm:$0xf]
      %v1259 = vld [vmem:[%s1257 + $0x4] sm:$0xf]
      %v1260 = vld [vmem:[%s1257 + $0x8] sm:$0xf]
      %v1261 = vld [vmem:[%s1257 + $0xc] sm:$0xf]
      %v1262 = vld [vmem:[%s1257 + $0x10] sm:$0xf]
      %v1263 = vld [vmem:[%s1257 + $0x14] sm:$0xf]
      %v1264 = vld [vmem:[%s1257 + $0x18] sm:$0xf]
      %v1265 = vld [vmem:[%s1257 + $0x1c] sm:$0xf]
      %v1266 = vld [vmem:[%s1257 + $0x20] sm:$0xf]
      %v1267 = vld [vmem:[%s1257 + $0x24] sm:$0xf]
      %v1268 = vld [vmem:[%s1257 + $0x28] sm:$0xf]
      %v1269 = vld [vmem:[%s1257 + $0x2c] sm:$0xf]
      %v1270 = vld [vmem:[%s1257 + $0x30] sm:$0xf]
      %v1271 = vld [vmem:[%s1257 + $0x34] sm:$0xf]
      %v1272 = vld [vmem:[%s1257 + $0x38] sm:$0xf]
      %v1273 = vld [vmem:[%s1257 + $0x3c] sm:$0xf]
      %s1274 = scalar_lea.vmem %s1, 192
      %v1275 = vld [vmem:[%s1274] sm:$0xf]
      %v1276 = vld [vmem:[%s1274 + $0x4] sm:$0xf]
      %v1277 = vld [vmem:[%s1274 + $0x8] sm:$0xf]
      %v1278 = vld [vmem:[%s1274 + $0xc] sm:$0xf]
      %v1279 = vld [vmem:[%s1274 + $0x10] sm:$0xf]
      %v1280 = vld [vmem:[%s1274 + $0x14] sm:$0xf]
      %v1281 = vld [vmem:[%s1274 + $0x18] sm:$0xf]
      %v1282 = vld [vmem:[%s1274 + $0x1c] sm:$0xf]
      %v1299 = vunpack.c.l.b16 %v1258
      %v1300 = vunpack.c.l.b16 %v1259
      %v1301 = vunpack.c.l.b16 %v1260
      %v1302 = vunpack.c.l.b16 %v1261
      %v1303 = vunpack.c.l.b16 %v1262
      %v1304 = vunpack.c.l.b16 %v1263
      %v1305 = vunpack.c.l.b16 %v1264
      %v1306 = vunpack.c.l.b16 %v1265
      %v1307 = vunpack.c.l.b16 %v1266
      %v1308 = vunpack.c.l.b16 %v1267
      %v1309 = vunpack.c.l.b16 %v1268
      %v1310 = vunpack.c.l.b16 %v1269
      %v1311 = vunpack.c.l.b16 %v1270
      %v1312 = vunpack.c.l.b16 %v1271
      %v1313 = vunpack.c.l.b16 %v1272
      %v1314 = vunpack.c.l.b16 %v1273
      %v1315 = vpack.c.b16 %v1300, %v1299
      %v1316 = vpack.c.b16 %v1302, %v1301
      %v1317 = vpack.c.b16 %v1304, %v1303
      %v1318 = vpack.c.b16 %v1306, %v1305
      %v1319 = vpack.c.b16 %v1308, %v1307
      %v1320 = vpack.c.b16 %v1310, %v1309
      %v1321 = vpack.c.b16 %v1312, %v1311
      %v1322 = vpack.c.b16 %v1314, %v1313
      %v1331 = vunpack.c.l.b16 %v1275
      %v1332 = vunpack.c.l.b16 %v1276
      %v1333 = vunpack.c.l.b16 %v1277
      %v1334 = vunpack.c.l.b16 %v1278
      %v1335 = vunpack.c.l.b16 %v1279
      %v1336 = vunpack.c.l.b16 %v1280
      %v1337 = vunpack.c.l.b16 %v1281
      %v1338 = vunpack.c.l.b16 %v1282
      %v1339 = vpack.c.b16 %v1332, %v1331
      %v1340 = vpack.c.b16 %v1334, %v1333
      %v1341 = vpack.c.b16 %v1336, %v1335
      %v1342 = vpack.c.b16 %v1338, %v1337
      %v1348 = vsel %vm316, %v1315, 0
      %v1351 = vsel %vm316, %v1316, 0
      %v1354 = vsel %vm316, %v1317, 0
      %v1357 = vsel %vm316, %v1318, 0
      %v1360 = vsel %vm316, %v1319, 0
      %v1363 = vsel %vm316, %v1320, 0
      %v1366 = vsel %vm316, %v1321, 0
      %v1369 = vsel %vm316, %v1322, 0
      %1371 = vmatpush.bf16.msra.mxu0 0
      %1372 = vmatpush.bf16.msra.mxu0 0
      %1373 = vmatpush.bf16.msra.mxu0 0
      %1374 = vmatpush.bf16.msra.mxu0 0
      %1375 = vmatpush.bf16.msra.mxu0 %v1342
      %1376 = vmatpush.bf16.msra.mxu0 %v1341
      %1377 = vmatpush.bf16.msra.mxu0 %v1340
      %1378 = vmatpush.bf16.msra.mxu0 %v1339
      %1379 = vmatmul.bf16.gmra.mxu0 %v1348
      %v1380 = vpop.f32.mrf.mxu0
      %v1381 = vadd.f32 0.0, %v1380
      %v1382 = vpop.f32.mrf.mxu0
      %v1383 = vadd.f32 0.0, %v1382
      %1384 = vmatmul.bf16.gmra.mxu0 %v1351
      %v1385 = vpop.f32.mrf.mxu0
      %v1386 = vadd.f32 0.0, %v1385
      %v1387 = vpop.f32.mrf.mxu0
      %v1388 = vadd.f32 0.0, %v1387
      %1389 = vmatmul.bf16.gmra.mxu0 %v1354
      %v1390 = vpop.f32.mrf.mxu0
      %v1391 = vadd.f32 0.0, %v1390
      %v1392 = vpop.f32.mrf.mxu0
      %v1393 = vadd.f32 0.0, %v1392
      %1394 = vmatmul.bf16.gmra.mxu0 %v1357
      %v1395 = vpop.f32.mrf.mxu0
      %v1396 = vadd.f32 0.0, %v1395
      %v1397 = vpop.f32.mrf.mxu0
      %v1398 = vadd.f32 0.0, %v1397
      %1399 = vmatmul.bf16.gmra.mxu0 %v1360
      %v1400 = vpop.f32.mrf.mxu0
      %v1401 = vadd.f32 0.0, %v1400
      %v1402 = vpop.f32.mrf.mxu0
      %v1403 = vadd.f32 0.0, %v1402
      %1404 = vmatmul.bf16.gmra.mxu0 %v1363
      %v1405 = vpop.f32.mrf.mxu0
      %v1406 = vadd.f32 0.0, %v1405
      %v1407 = vpop.f32.mrf.mxu0
      %v1408 = vadd.f32 0.0, %v1407
      %1409 = vmatmul.bf16.gmra.mxu0 %v1366
      %v1410 = vpop.f32.mrf.mxu0
      %v1411 = vadd.f32 0.0, %v1410
      %v1412 = vpop.f32.mrf.mxu0
      %v1413 = vadd.f32 0.0, %v1412
      %1414 = vmatmul.bf16.gmra.mxu0 %v1369
      %v1415 = vpop.f32.mrf.mxu0
      %v1416 = vadd.f32 0.0, %v1415
      %v1417 = vpop.f32.mrf.mxu0
      %v1418 = vadd.f32 0.0, %v1417
      %1419 = vdwg.mxu0
      %v1420 = vadd.f32 %v1237, %v1381
      %v1421 = vadd.f32 %v1238, %v1383
      %v1422 = vadd.f32 %v1239, %v1386
      %v1423 = vadd.f32 %v1240, %v1388
      %v1424 = vadd.f32 %v1241, %v1391
      %v1425 = vadd.f32 %v1242, %v1393
      %v1426 = vadd.f32 %v1243, %v1396
      %v1427 = vadd.f32 %v1244, %v1398
      %v1428 = vadd.f32 %v1245, %v1401
      %v1429 = vadd.f32 %v1246, %v1403
      %v1430 = vadd.f32 %v1247, %v1406
      %v1431 = vadd.f32 %v1248, %v1408
      %v1432 = vadd.f32 %v1249, %v1411
      %v1433 = vadd.f32 %v1250, %v1413
      %v1434 = vadd.f32 %v1251, %v1416
      %v1435 = vadd.f32 %v1252, %v1418
      %s1436 = sadd.s32 %s1254, 36
      %s1437 = smul.addr %s1436, 4
      %s1438 = scalar_lea.vmem %s183, %s1437
      %v1439 = vld [vmem:[%s1438] sm:$0xf]
      %v1440 = vld [vmem:[%s1438 + $0x4] sm:$0xf]
      %v1441 = vld [vmem:[%s1438 + $0x8] sm:$0xf]
      %v1442 = vld [vmem:[%s1438 + $0xc] sm:$0xf]
      %v1443 = vld [vmem:[%s1438 + $0x10] sm:$0xf]
      %v1444 = vld [vmem:[%s1438 + $0x14] sm:$0xf]
      %v1445 = vld [vmem:[%s1438 + $0x18] sm:$0xf]
      %v1446 = vld [vmem:[%s1438 + $0x1c] sm:$0xf]
      %v1447 = vld [vmem:[%s1438 + $0x20] sm:$0xf]
      %v1448 = vld [vmem:[%s1438 + $0x24] sm:$0xf]
      %v1449 = vld [vmem:[%s1438 + $0x28] sm:$0xf]
      %v1450 = vld [vmem:[%s1438 + $0x2c] sm:$0xf]
      %v1451 = vld [vmem:[%s1438 + $0x30] sm:$0xf]
      %v1452 = vld [vmem:[%s1438 + $0x34] sm:$0xf]
      %v1453 = vld [vmem:[%s1438 + $0x38] sm:$0xf]
      %v1454 = vld [vmem:[%s1438 + $0x3c] sm:$0xf]
      %s1455 = scalar_lea.vmem %s1, 224
      %v1456 = vld [vmem:[%s1455] sm:$0xf]
      %v1457 = vld [vmem:[%s1455 + $0x4] sm:$0xf]
      %v1458 = vld [vmem:[%s1455 + $0x8] sm:$0xf]
      %v1459 = vld [vmem:[%s1455 + $0xc] sm:$0xf]
      %v1460 = vld [vmem:[%s1455 + $0x10] sm:$0xf]
      %v1461 = vld [vmem:[%s1455 + $0x14] sm:$0xf]
      %v1462 = vld [vmem:[%s1455 + $0x18] sm:$0xf]
      %v1463 = vld [vmem:[%s1455 + $0x1c] sm:$0xf]
      %v1480 = vunpack.c.l.b16 %v1439
      %v1481 = vunpack.c.l.b16 %v1440
      %v1482 = vunpack.c.l.b16 %v1441
      %v1483 = vunpack.c.l.b16 %v1442
      %v1484 = vunpack.c.l.b16 %v1443
      %v1485 = vunpack.c.l.b16 %v1444
      %v1486 = vunpack.c.l.b16 %v1445
      %v1487 = vunpack.c.l.b16 %v1446
      %v1488 = vunpack.c.l.b16 %v1447
      %v1489 = vunpack.c.l.b16 %v1448
      %v1490 = vunpack.c.l.b16 %v1449
      %v1491 = vunpack.c.l.b16 %v1450
      %v1492 = vunpack.c.l.b16 %v1451
      %v1493 = vunpack.c.l.b16 %v1452
      %v1494 = vunpack.c.l.b16 %v1453
      %v1495 = vunpack.c.l.b16 %v1454
      %v1496 = vpack.c.b16 %v1481, %v1480
      %v1497 = vpack.c.b16 %v1483, %v1482
      %v1498 = vpack.c.b16 %v1485, %v1484
      %v1499 = vpack.c.b16 %v1487, %v1486
      %v1500 = vpack.c.b16 %v1489, %v1488
      %v1501 = vpack.c.b16 %v1491, %v1490
      %v1502 = vpack.c.b16 %v1493, %v1492
      %v1503 = vpack.c.b16 %v1495, %v1494
      %v1512 = vunpack.c.l.b16 %v1456
      %v1513 = vunpack.c.l.b16 %v1457
      %v1514 = vunpack.c.l.b16 %v1458
      %v1515 = vunpack.c.l.b16 %v1459
      %v1516 = vunpack.c.l.b16 %v1460
      %v1517 = vunpack.c.l.b16 %v1461
      %v1518 = vunpack.c.l.b16 %v1462
      %v1519 = vunpack.c.l.b16 %v1463
      %v1520 = vpack.c.b16 %v1513, %v1512
      %v1521 = vpack.c.b16 %v1515, %v1514
      %v1522 = vpack.c.b16 %v1517, %v1516
      %v1523 = vpack.c.b16 %v1519, %v1518
      %v1529 = vsel %vm316, %v1496, 0
      %v1532 = vsel %vm316, %v1497, 0
      %v1535 = vsel %vm316, %v1498, 0
      %v1538 = vsel %vm316, %v1499, 0
      %v1541 = vsel %vm316, %v1500, 0
      %v1544 = vsel %vm316, %v1501, 0
      %v1547 = vsel %vm316, %v1502, 0
      %v1550 = vsel %vm316, %v1503, 0
      %1552 = vmatpush.bf16.msra.mxu0 0
      %1553 = vmatpush.bf16.msra.mxu0 0
      %1554 = vmatpush.bf16.msra.mxu0 0
      %1555 = vmatpush.bf16.msra.mxu0 0
      %1556 = vmatpush.bf16.msra.mxu0 %v1523
      %1557 = vmatpush.bf16.msra.mxu0 %v1522
      %1558 = vmatpush.bf16.msra.mxu0 %v1521
      %1559 = vmatpush.bf16.msra.mxu0 %v1520
      %1560 = vmatmul.bf16.gmra.mxu0 %v1529
      %v1561 = vpop.f32.mrf.mxu0
      %v1562 = vadd.f32 0.0, %v1561
      %v1563 = vpop.f32.mrf.mxu0
      %v1564 = vadd.f32 0.0, %v1563
      %1565 = vmatmul.bf16.gmra.mxu0 %v1532
      %v1566 = vpop.f32.mrf.mxu0
      %v1567 = vadd.f32 0.0, %v1566
      %v1568 = vpop.f32.mrf.mxu0
      %v1569 = vadd.f32 0.0, %v1568
      %1570 = vmatmul.bf16.gmra.mxu0 %v1535
      %v1571 = vpop.f32.mrf.mxu0
      %v1572 = vadd.f32 0.0, %v1571
      %v1573 = vpop.f32.mrf.mxu0
      %v1574 = vadd.f32 0.0, %v1573
      %1575 = vmatmul.bf16.gmra.mxu0 %v1538
      %v1576 = vpop.f32.mrf.mxu0
      %v1577 = vadd.f32 0.0, %v1576
      %v1578 = vpop.f32.mrf.mxu0
      %v1579 = vadd.f32 0.0, %v1578
      %1580 = vmatmul.bf16.gmra.mxu0 %v1541
      %v1581 = vpop.f32.mrf.mxu0
      %v1582 = vadd.f32 0.0, %v1581
      %v1583 = vpop.f32.mrf.mxu0
      %v1584 = vadd.f32 0.0, %v1583
      %1585 = vmatmul.bf16.gmra.mxu0 %v1544
      %v1586 = vpop.f32.mrf.mxu0
      %v1587 = vadd.f32 0.0, %v1586
      %v1588 = vpop.f32.mrf.mxu0
      %v1589 = vadd.f32 0.0, %v1588
      %1590 = vmatmul.bf16.gmra.mxu0 %v1547
      %v1591 = vpop.f32.mrf.mxu0
      %v1592 = vadd.f32 0.0, %v1591
      %v1593 = vpop.f32.mrf.mxu0
      %v1594 = vadd.f32 0.0, %v1593
      %1595 = vmatmul.bf16.gmra.mxu0 %v1550
      %v1596 = vpop.f32.mrf.mxu0
      %v1597 = vadd.f32 0.0, %v1596
      %v1598 = vpop.f32.mrf.mxu0
      %v1599 = vadd.f32 0.0, %v1598
      %1600 = vdwg.mxu0
      %v1601 = vadd.f32 %v1420, %v1562
      %v1602 = vadd.f32 %v1421, %v1564
      %v1603 = vadd.f32 %v1422, %v1567
      %v1604 = vadd.f32 %v1423, %v1569
      %v1605 = vadd.f32 %v1424, %v1572
      %v1606 = vadd.f32 %v1425, %v1574
      %v1607 = vadd.f32 %v1426, %v1577
      %v1608 = vadd.f32 %v1427, %v1579
      %v1609 = vadd.f32 %v1428, %v1582
      %v1610 = vadd.f32 %v1429, %v1584
      %v1611 = vadd.f32 %v1430, %v1587
      %v1612 = vadd.f32 %v1431, %v1589
      %v1613 = vadd.f32 %v1432, %v1592
      %v1614 = vadd.f32 %v1433, %v1594
      %v1615 = vadd.f32 %v1434, %v1597
      %v1616 = vadd.f32 %v1435, %v1599
      %s1617 = sadd.s32 %s1254, 72
      %s1618 = smul.addr %s1617, 4
      %s1619 = scalar_lea.vmem %s183, %s1618
      %v1620 = vld [vmem:[%s1619] sm:$0xf]
      %v1621 = vld [vmem:[%s1619 + $0x4] sm:$0xf]
      %v1622 = vld [vmem:[%s1619 + $0x8] sm:$0xf]
      %v1623 = vld [vmem:[%s1619 + $0xc] sm:$0xf]
      %v1624 = vld [vmem:[%s1619 + $0x10] sm:$0xf]
      %v1625 = vld [vmem:[%s1619 + $0x14] sm:$0xf]
      %v1626 = vld [vmem:[%s1619 + $0x18] sm:$0xf]
      %v1627 = vld [vmem:[%s1619 + $0x1c] sm:$0xf]
      %v1628 = vld [vmem:[%s1619 + $0x20] sm:$0xf]
      %v1629 = vld [vmem:[%s1619 + $0x24] sm:$0xf]
      %v1630 = vld [vmem:[%s1619 + $0x28] sm:$0xf]
      %v1631 = vld [vmem:[%s1619 + $0x2c] sm:$0xf]
      %v1632 = vld [vmem:[%s1619 + $0x30] sm:$0xf]
      %v1633 = vld [vmem:[%s1619 + $0x34] sm:$0xf]
      %v1634 = vld [vmem:[%s1619 + $0x38] sm:$0xf]
      %v1635 = vld [vmem:[%s1619 + $0x3c] sm:$0xf]
      %s1636 = scalar_lea.vmem %s1, 256
      %v1637 = vld [vmem:[%s1636] sm:$0xf]
      %v1638 = vld [vmem:[%s1636 + $0x4] sm:$0xf]
      %v1639 = vld [vmem:[%s1636 + $0x8] sm:$0xf]
      %v1640 = vld [vmem:[%s1636 + $0xc] sm:$0xf]
      %v1641 = vld [vmem:[%s1636 + $0x10] sm:$0xf]
      %v1642 = vld [vmem:[%s1636 + $0x14] sm:$0xf]
      %v1643 = vld [vmem:[%s1636 + $0x18] sm:$0xf]
      %v1644 = vld [vmem:[%s1636 + $0x1c] sm:$0xf]
      %v1661 = vunpack.c.l.b16 %v1620
      %v1662 = vunpack.c.l.b16 %v1621
      %v1663 = vunpack.c.l.b16 %v1622
      %v1664 = vunpack.c.l.b16 %v1623
      %v1665 = vunpack.c.l.b16 %v1624
      %v1666 = vunpack.c.l.b16 %v1625
      %v1667 = vunpack.c.l.b16 %v1626
      %v1668 = vunpack.c.l.b16 %v1627
      %v1669 = vunpack.c.l.b16 %v1628
      %v1670 = vunpack.c.l.b16 %v1629
      %v1671 = vunpack.c.l.b16 %v1630
      %v1672 = vunpack.c.l.b16 %v1631
      %v1673 = vunpack.c.l.b16 %v1632
      %v1674 = vunpack.c.l.b16 %v1633
      %v1675 = vunpack.c.l.b16 %v1634
      %v1676 = vunpack.c.l.b16 %v1635
      %v1677 = vpack.c.b16 %v1662, %v1661
      %v1678 = vpack.c.b16 %v1664, %v1663
      %v1679 = vpack.c.b16 %v1666, %v1665
      %v1680 = vpack.c.b16 %v1668, %v1667
      %v1681 = vpack.c.b16 %v1670, %v1669
      %v1682 = vpack.c.b16 %v1672, %v1671
      %v1683 = vpack.c.b16 %v1674, %v1673
      %v1684 = vpack.c.b16 %v1676, %v1675
      %v1693 = vunpack.c.l.b16 %v1637
      %v1694 = vunpack.c.l.b16 %v1638
      %v1695 = vunpack.c.l.b16 %v1639
      %v1696 = vunpack.c.l.b16 %v1640
      %v1697 = vunpack.c.l.b16 %v1641
      %v1698 = vunpack.c.l.b16 %v1642
      %v1699 = vunpack.c.l.b16 %v1643
      %v1700 = vunpack.c.l.b16 %v1644
      %v1701 = vpack.c.b16 %v1694, %v1693
      %v1702 = vpack.c.b16 %v1696, %v1695
      %v1703 = vpack.c.b16 %v1698, %v1697
      %v1704 = vpack.c.b16 %v1700, %v1699
      %v1710 = vsel %vm316, %v1677, 0
      %v1713 = vsel %vm316, %v1678, 0
      %v1716 = vsel %vm316, %v1679, 0
      %v1719 = vsel %vm316, %v1680, 0
      %v1722 = vsel %vm316, %v1681, 0
      %v1725 = vsel %vm316, %v1682, 0
      %v1728 = vsel %vm316, %v1683, 0
      %v1731 = vsel %vm316, %v1684, 0
      %1733 = vmatpush.bf16.msra.mxu0 0
      %1734 = vmatpush.bf16.msra.mxu0 0
      %1735 = vmatpush.bf16.msra.mxu0 0
      %1736 = vmatpush.bf16.msra.mxu0 0
      %1737 = vmatpush.bf16.msra.mxu0 %v1704
      %1738 = vmatpush.bf16.msra.mxu0 %v1703
      %1739 = vmatpush.bf16.msra.mxu0 %v1702
      %1740 = vmatpush.bf16.msra.mxu0 %v1701
      %1741 = vmatmul.bf16.gmra.mxu0 %v1710
      %v1742 = vpop.f32.mrf.mxu0
      %v1743 = vadd.f32 0.0, %v1742
      %v1744 = vpop.f32.mrf.mxu0
      %v1745 = vadd.f32 0.0, %v1744
      %1746 = vmatmul.bf16.gmra.mxu0 %v1713
      %v1747 = vpop.f32.mrf.mxu0
      %v1748 = vadd.f32 0.0, %v1747
      %v1749 = vpop.f32.mrf.mxu0
      %v1750 = vadd.f32 0.0, %v1749
      %1751 = vmatmul.bf16.gmra.mxu0 %v1716
      %v1752 = vpop.f32.mrf.mxu0
      %v1753 = vadd.f32 0.0, %v1752
      %v1754 = vpop.f32.mrf.mxu0
      %v1755 = vadd.f32 0.0, %v1754
      %1756 = vmatmul.bf16.gmra.mxu0 %v1719
      %v1757 = vpop.f32.mrf.mxu0
      %v1758 = vadd.f32 0.0, %v1757
      %v1759 = vpop.f32.mrf.mxu0
      %v1760 = vadd.f32 0.0, %v1759
      %1761 = vmatmul.bf16.gmra.mxu0 %v1722
      %v1762 = vpop.f32.mrf.mxu0
      %v1763 = vadd.f32 0.0, %v1762
      %v1764 = vpop.f32.mrf.mxu0
      %v1765 = vadd.f32 0.0, %v1764
      %1766 = vmatmul.bf16.gmra.mxu0 %v1725
      %v1767 = vpop.f32.mrf.mxu0
      %v1768 = vadd.f32 0.0, %v1767
      %v1769 = vpop.f32.mrf.mxu0
      %v1770 = vadd.f32 0.0, %v1769
      %1771 = vmatmul.bf16.gmra.mxu0 %v1728
      %v1772 = vpop.f32.mrf.mxu0
      %v1773 = vadd.f32 0.0, %v1772
      %v1774 = vpop.f32.mrf.mxu0
      %v1775 = vadd.f32 0.0, %v1774
      %1776 = vmatmul.bf16.gmra.mxu0 %v1731
      %v1777 = vpop.f32.mrf.mxu0
      %v1778 = vadd.f32 0.0, %v1777
      %v1779 = vpop.f32.mrf.mxu0
      %v1780 = vadd.f32 0.0, %v1779
      %1781 = vdwg.mxu0
      %v1782 = vadd.f32 %v1601, %v1743
      %v1783 = vadd.f32 %v1602, %v1745
      %v1784 = vadd.f32 %v1603, %v1748
      %v1785 = vadd.f32 %v1604, %v1750
      %v1786 = vadd.f32 %v1605, %v1753
      %v1787 = vadd.f32 %v1606, %v1755
      %v1788 = vadd.f32 %v1607, %v1758
      %v1789 = vadd.f32 %v1608, %v1760
      %v1790 = vadd.f32 %v1609, %v1763
      %v1791 = vadd.f32 %v1610, %v1765
      %v1792 = vadd.f32 %v1611, %v1768
      %v1793 = vadd.f32 %v1612, %v1770
      %v1794 = vadd.f32 %v1613, %v1773
      %v1795 = vadd.f32 %v1614, %v1775
      %v1796 = vadd.f32 %v1615, %v1778
      %v1797 = vadd.f32 %v1616, %v1780
      %v1798 = vld [vmem:[%s2] sm:$0x1]
      %v1800 = vperm.slane %v1798, 0
      %v1802 = vadd.f32 %v1782, %v1800
      %v1803 = vadd.f32 %v1783, %v1800
      %v1804 = vadd.f32 %v1784, %v1800
      %v1805 = vadd.f32 %v1785, %v1800
      %v1806 = vadd.f32 %v1786, %v1800
      %v1807 = vadd.f32 %v1787, %v1800
      %v1808 = vadd.f32 %v1788, %v1800
      %v1809 = vadd.f32 %v1789, %v1800
      %v1810 = vadd.f32 %v1790, %v1800
      %v1811 = vadd.f32 %v1791, %v1800
      %v1812 = vadd.f32 %v1792, %v1800
      %v1813 = vadd.f32 %v1793, %v1800
      %v1814 = vadd.f32 %v1794, %v1800
      %v1815 = vadd.f32 %v1795, %v1800
      %v1816 = vadd.f32 %v1796, %v1800
      %v1817 = vadd.f32 %v1797, %v1800
      %vm1818 = vcmp.ge.f32.partialorder %v1802, 0.0
      %vm1819 = vcmp.ge.f32.partialorder %v1803, 0.0
      %vm1820 = vcmp.ge.f32.partialorder %v1804, 0.0
      %vm1821 = vcmp.ge.f32.partialorder %v1805, 0.0
      %vm1822 = vcmp.ge.f32.partialorder %v1806, 0.0
      %vm1823 = vcmp.ge.f32.partialorder %v1807, 0.0
      %vm1824 = vcmp.ge.f32.partialorder %v1808, 0.0
      %vm1825 = vcmp.ge.f32.partialorder %v1809, 0.0
      %vm1826 = vcmp.ge.f32.partialorder %v1810, 0.0
      %vm1827 = vcmp.ge.f32.partialorder %v1811, 0.0
      %vm1828 = vcmp.ge.f32.partialorder %v1812, 0.0
      %vm1829 = vcmp.ge.f32.partialorder %v1813, 0.0
      %vm1830 = vcmp.ge.f32.partialorder %v1814, 0.0
      %vm1831 = vcmp.ge.f32.partialorder %v1815, 0.0
      %vm1832 = vcmp.ge.f32.partialorder %v1816, 0.0
      %vm1833 = vcmp.ge.f32.partialorder %v1817, 0.0
      %v1834 = vmul.f32 %v1802, 0.2
      %v1835 = vmul.f32 %v1803, 0.2
      %v1836 = vmul.f32 %v1804, 0.2
      %v1837 = vmul.f32 %v1805, 0.2
      %v1838 = vmul.f32 %v1806, 0.2
      %v1839 = vmul.f32 %v1807, 0.2
      %v1840 = vmul.f32 %v1808, 0.2
      %v1841 = vmul.f32 %v1809, 0.2
      %v1842 = vmul.f32 %v1810, 0.2
      %v1843 = vmul.f32 %v1811, 0.2
      %v1844 = vmul.f32 %v1812, 0.2
      %v1845 = vmul.f32 %v1813, 0.2
      %v1846 = vmul.f32 %v1814, 0.2
      %v1847 = vmul.f32 %v1815, 0.2
      %v1848 = vmul.f32 %v1816, 0.2
      %v1849 = vmul.f32 %v1817, 0.2
      %v1850 = vsel %vm1818, %v1802, %v1834
      %v1851 = vsel %vm1819, %v1803, %v1835
      %v1852 = vsel %vm1820, %v1804, %v1836
      %v1853 = vsel %vm1821, %v1805, %v1837
      %v1854 = vsel %vm1822, %v1806, %v1838
      %v1855 = vsel %vm1823, %v1807, %v1839
      %v1856 = vsel %vm1824, %v1808, %v1840
      %v1857 = vsel %vm1825, %v1809, %v1841
      %v1858 = vsel %vm1826, %v1810, %v1842
      %v1859 = vsel %vm1827, %v1811, %v1843
      %v1860 = vsel %vm1828, %v1812, %v1844
      %v1861 = vsel %vm1829, %v1813, %v1845
      %v1862 = vsel %vm1830, %v1814, %v1846
      %v1863 = vsel %vm1831, %v1815, %v1847
      %v1864 = vsel %vm1832, %v1816, %v1848
      %v1865 = vsel %vm1833, %v1817, %v1849
      %1866 = vst [vmem:[%s192] sm:$0xff] %v1850
      %1867 = vst [vmem:[%s192 + $0x8] sm:$0xff] %v1851
      %1868 = vst [vmem:[%s192 + $0x10] sm:$0xff] %v1852
      %1869 = vst [vmem:[%s192 + $0x18] sm:$0xff] %v1853
      %1870 = vst [vmem:[%s192 + $0x20] sm:$0xff] %v1854
      %1871 = vst [vmem:[%s192 + $0x28] sm:$0xff] %v1855
      %1872 = vst [vmem:[%s192 + $0x30] sm:$0xff] %v1856
      %1873 = vst [vmem:[%s192 + $0x38] sm:$0xff] %v1857
      %1874 = vst [vmem:[%s192 + $0x40] sm:$0xff] %v1858
      %1875 = vst [vmem:[%s192 + $0x48] sm:$0xff] %v1859
      %1876 = vst [vmem:[%s192 + $0x50] sm:$0xff] %v1860
      %1877 = vst [vmem:[%s192 + $0x58] sm:$0xff] %v1861
      %1878 = vst [vmem:[%s192 + $0x60] sm:$0xff] %v1862
      %1879 = vst [vmem:[%s192 + $0x68] sm:$0xff] %v1863
      %1880 = vst [vmem:[%s192 + $0x70] sm:$0xff] %v1864
      %1881 = vst [vmem:[%s192 + $0x78] sm:$0xff] %v1865
      %s1882 = smul.u32 16, %s19
      %p1883 = scmp.lt.s32.totalorder %s18, 1
      %s1884 = scalar_select %p1883, %s18, 1
      %p1885 = scmp.lt.s32.totalorder %s1882, 31
      %s1886 = scalar_select %p1885, %s1882, 31
      %s1887 = smul.addr %s1884, 32
      %s1888 = sadd.s32 %s1886, %s1887
      %s1889 = smul.addr %s1888, 8
      %s1890 = scalar_lea.vmem %s3, %s1889
      // Predicated region
      $region33: #{_details_net_forward.10} parent=31 // pred_check
        %p1891 = pneg %p114
      $region34: #{_details_net_forward.10} parent=31 // pred_check_branch
        %1893 = sbr.rel (%p1891) target = $region36
      $region35: #{_details_net_forward.10} parent=31 // pred_region
        %s1894 = smul.u32 16, %s19
      $region36: #{_details_net_forward.10} parent=31 // pred_fallthru
        _
    $region32: #{_details_net_forward.10} parent=5 // pred_fallthru
      _
    %p1895 = scmp.le.s32.totalorder 2, %s9
    // Predicated region
    $region37: #{_details_net_forward.10} parent=5 // pred_check
      %p1896 = pneg %p1895
    $region38: #{_details_net_forward.10} parent=5 // pred_check_branch
      %1898 = sbr.rel (%p1896) target = $region40
    $region39: #{_details_net_forward.10} parent=5 // pred_region
      %s1899 = ssub.s32 %s9, 2
      // Predicated region
      $region41: #{_details_net_forward.10} parent=39 // pred_check
        %p1900 = pneg %p120
      $region42: #{_details_net_forward.10} parent=39 // pred_check_branch
        %1902 = sbr.rel (%p1900) target = $region44
      $region43: #{_details_net_forward.10} parent=39 // pred_region
        %s1903 = smul.u32 16, %s21
        %p1904 = scmp.lt.s32.totalorder %s20, 1
        %s1905 = scalar_select %p1904, %s20, 1
        %p1906 = scmp.lt.s32.totalorder %s1903, 31
        %s1907 = scalar_select %p1906, %s1903, 31
        %s1908 = smul.addr %s1905, 32
        %s1909 = sadd.s32 %s1907, %s1908
        %s1910 = smul.addr %s1909, 8
        %s1911 = scalar_lea.vmem %s3, %s1910
      $region44: #{_details_net_forward.10} parent=39 // pred_fallthru
        _
    $region40: #{_details_net_forward.10} parent=5 // pred_fallthru
      _
  $region6: #{_details_net_forward.10} parent=0 // loop_footer
    %s13 = sadd.s32 1, %s9
  $region7: #{_details_net_forward.10} parent=0 // loop_footer_branch
    %8 = sbr.rel target = $region3
  $region8: #{_details_net_forward.10} parent=0 // loop_exit
    _

// kernel: _details_net_forward.11
$region0: #{_details_net_forward.11}
  #allocation0 [shape = 'u32[]', space=smem, size = 0x4, offset = 0x4, fixed_abs, tag = 'smem constant byte address 0x4 - core index']
  #allocation1 [shape = 'u32[72,128]{1,0:T(1,128)}', space=vmem, size = 0x9000, scoped, tag = 'internal scratch']
  %s0 = inlined_call_operand.vmem [shape: bf16[2,3,288,64], index: 0, kind: input, shape index: {}]
  %s1 = inlined_call_operand.vmem [shape: bf16[9,64,128], index: 1, kind: input, shape index: {}]
  %s2 = inlined_call_operand.vmem [shape: f32[1,128], index: 2, kind: input, shape index: {}]
  %s3 = inlined_call_operand.vmem [shape: f32[2,256,128], index: 3, kind: output, shape index: {}]
  %s4 = sld [smem:[#allocation0]]
  $region45: #{_details_net_forward.11} parent=0
    _
  %s6 = ssub.s32 1, %s4
  %s7 = scalar_select 0, %s6, %s4
  loop: start=0, step=1, limit=6
  $region2: #{_details_net_forward.11} parent=0 // loop_pre_header
    _
  $region3: #{_details_net_forward.11} parent=0 // loop_header
    %s9 = sphi 0, %s13
    %p10 = scmp.ge.s32.totalorder %s9, 6
    %s16 = sphi 0, %s28
    %s17 = sphi 0, %s24
    %s18 = sphi 0, %s16
    %s19 = sphi 0, %s17
    %s20 = sphi 0, %s18
    %s21 = sphi 0, %s19
    %s31 = sphi 0, %s33
    %s34 = sphi 0, %s31
    %s35 = sphi 0, %s34
    %s51 = sphi 0, %s35
    %s55 = sphi 0, %s55
    %s57 = sphi 0, %s55
    %s58 = sphi 0, %s57
    %s72 = sphi 0, %s58
    %s76 = sphi 0, %s76
    %s78 = sphi 0, %s76
    %s79 = sphi 0, %s78
    %s93 = sphi 0, %s79
    %s101 = sphi 0, %s103
    %s104 = sphi 0, %s101
    %s105 = sphi 0, %s104
    %s121 = sphi 0, %s105
  $region4: #{_details_net_forward.11} parent=0 // loop_header_branch
    %12 = sbr.rel (%p10) target = $region8
  $region5: #{_details_net_forward.11} parent=0 // loop_body
    %s14 = ssub.s32 %s9, 1
    %s15 = ssub.s32 %s9, 2
    %s22 = sadd.s32 1, %s17
    %p23 = scmp.ge.s32.totalorder %s22, 2
    %s24 = scalar_select %p23, 0, %s22
    %s25 = sadd.s32 1, %s16
    %s26 = scalar_select %p23, %s25, %s16
    %p27 = scmp.ge.s32.totalorder %s26, 2
    %s28 = scalar_select %p27, 0, %s26
    %s29 = ssub.s32 %s16, %s28
    %p30 = scmp.eq.s32.totalorder %s29, 0
    %s32 = sadd.s32 %s31, 1
    %s33 = scalar_select %p30, %s31, %s32
    %p36 = pneg %p30
    %p37 = scmp.eq.s32.totalorder %s9, 3
    %p38 = por %p36, %p37
    %p39 = scmp.ne.s32.totalorder %s31, %s34
    %p40 = scmp.eq.s32.totalorder %s9, 0
    %p41 = por %p39, %p40
    %p42 = scmp.ne.s32.totalorder %s31, %s34
    %p43 = scmp.eq.s32.totalorder %s14, 3
    %p44 = por %p42, %p43
    %p45 = scmp.ne.s32.totalorder %s34, %s35
    %p46 = scmp.eq.s32.totalorder %s14, 0
    %p47 = por %p45, %p46
    %p48 = scmp.ne.s32.totalorder %s34, %s35
    %p49 = scmp.eq.s32.totalorder %s15, 3
    %p50 = por %p48, %p49
    %p52 = scmp.ne.s32.totalorder %s35, %s51
    %p53 = scmp.eq.s32.totalorder %s15, 0
    %p54 = por %p52, %p53
    %s56 = sadd.s32 %s55, 1
    %p59 = scmp.eq.s32.totalorder %s9, 3
    %p60 = scmp.ne.s32.totalorder %s55, %s57
    %p61 = scmp.eq.s32.totalorder %s9, 0
    %p62 = por %p60, %p61
    %p63 = scmp.ne.s32.totalorder %s55, %s57
    %p64 = scmp.eq.s32.totalorder %s14, 3
    %p65 = por %p63, %p64
    %p66 = scmp.ne.s32.totalorder %s57, %s58
    %p67 = scmp.eq.s32.totalorder %s14, 0
    %p68 = por %p66, %p67
    %p69 = scmp.ne.s32.totalorder %s57, %s58
    %p70 = scmp.eq.s32.totalorder %s15, 3
    %p71 = por %p69, %p70
    %p73 = scmp.ne.s32.totalorder %s58, %s72
    %p74 = scmp.eq.s32.totalorder %s15, 0
    %p75 = por %p73, %p74
    %s77 = sadd.s32 %s76, 1
    %p80 = scmp.eq.s32.totalorder %s9, 3
    %p81 = scmp.ne.s32.totalorder %s76, %s78
    %p82 = scmp.eq.s32.totalorder %s9, 0
    %p83 = por %p81, %p82
    %p84 = scmp.ne.s32.totalorder %s76, %s78
    %p85 = scmp.eq.s32.totalorder %s14, 3
    %p86 = por %p84, %p85
    %p87 = scmp.ne.s32.totalorder %s78, %s79
    %p88 = scmp.eq.s32.totalorder %s14, 0
    %p89 = por %p87, %p88
    %p90 = scmp.ne.s32.totalorder %s78, %s79
    %p91 = scmp.eq.s32.totalorder %s15, 3
    %p92 = por %p90, %p91
    %p94 = scmp.ne.s32.totalorder %s79, %s93
    %p95 = scmp.eq.s32.totalorder %s15, 0
    %p96 = por %p94, %p95
    %s97 = ssub.s32 %s16, %s28
    %s98 = ssub.s32 %s17, %s24
    %s99 = sor.u32 %s97, %s98
    %p100 = scmp.eq.s32.totalorder %s99, 0
    %s102 = sadd.s32 %s101, 1
    %s103 = scalar_select %p100, %s101, %s102
    %p106 = pneg %p100
    %p107 = scmp.eq.s32.totalorder %s9, 3
    %p108 = por %p106, %p107
    %p109 = scmp.ne.s32.totalorder %s101, %s104
    %p110 = scmp.eq.s32.totalorder %s9, 0
    %p111 = por %p109, %p110
    %p112 = scmp.ne.s32.totalorder %s101, %s104
    %p113 = scmp.eq.s32.totalorder %s14, 3
    %p114 = por %p112, %p113
    %p115 = scmp.ne.s32.totalorder %s104, %s105
    %p116 = scmp.eq.s32.totalorder %s14, 0
    %p117 = por %p115, %p116
    %p118 = scmp.ne.s32.totalorder %s104, %s105
    %p119 = scmp.eq.s32.totalorder %s15, 3
    %p120 = por %p118, %p119
    %p122 = scmp.ne.s32.totalorder %s105, %s121
    %p123 = scmp.eq.s32.totalorder %s15, 0
    %p124 = por %p122, %p123
    %p125 = scmp.le.s32.totalorder 1, %s9
    %p126 = scmp.lt.s32.totalorder %s9, 5
    %p127 = pnand %p125, %p126
    %p128 = pneg %p127
    // Predicated region
    $region9: #{_details_net_forward.11} parent=5 // pred_check
      _
    $region10: #{_details_net_forward.11} parent=5 // pred_check_branch
      %130 = sbr.rel (%p127) target = $region12
    $region11: #{_details_net_forward.11} parent=5 // pred_region
      %s131 = ssub.s32 %s9, 1
      // Predicated region
      $region13: #{_details_net_forward.11} parent=11 // pred_check
        %p132 = pneg %p68
      $region14: #{_details_net_forward.11} parent=11 // pred_check_branch
        %134 = sbr.rel (%p132) target = $region16
      $region15: #{_details_net_forward.11} parent=11 // pred_region
        _
      $region16: #{_details_net_forward.11} parent=11 // pred_fallthru
        _
      // Predicated region
      $region17: #{_details_net_forward.11} parent=11 // pred_check
        %p135 = pneg %p89
      $region18: #{_details_net_forward.11} parent=11 // pred_check_branch
        %137 = sbr.rel (%p135) target = $region20
      $region19: #{_details_net_forward.11} parent=11 // pred_region
        _
      $region20: #{_details_net_forward.11} parent=11 // pred_fallthru
        _
    $region12: #{_details_net_forward.11} parent=5 // pred_fallthru
      _
    %p138 = scmp.lt.s32.totalorder %s9, 4
    // Predicated region
    $region21: #{_details_net_forward.11} parent=5 // pred_check
      %p139 = pneg %p138
    $region22: #{_details_net_forward.11} parent=5 // pred_check_branch
      %141 = sbr.rel (%p139) target = $region24
    $region23: #{_details_net_forward.11} parent=5 // pred_region
      // Predicated region
      $region25: #{_details_net_forward.11} parent=23 // pred_check
        %p142 = pneg %p41
      $region26: #{_details_net_forward.11} parent=23 // pred_check_branch
        %144 = sbr.rel (%p142) target = $region28
      $region27: #{_details_net_forward.11} parent=23 // pred_region
        %p145 = scmp.lt.s32.totalorder %s16, 1
        %s146 = scalar_select %p145, %s16, 1
        %s147 = smul.addr %s146, 108
        %s148 = smul.addr %s147, 4
        %s149 = scalar_lea.vmem %s0, %s148
      $region28: #{_details_net_forward.11} parent=23 // pred_fallthru
        _
    $region24: #{_details_net_forward.11} parent=5 // pred_fallthru
      _
    %p150 = scmp.le.s32.totalorder 1, %s9
    %p151 = scmp.lt.s32.totalorder %s9, 5
    %p152 = pnand %p150, %p151
    %p153 = pneg %p152
    // Predicated region
    $region29: #{_details_net_forward.11} parent=5 // pred_check
      _
    $region30: #{_details_net_forward.11} parent=5 // pred_check_branch
      %155 = sbr.rel (%p152) target = $region32
    $region31: #{_details_net_forward.11} parent=5 // pred_region
      %s156 = ssub.s32 %s9, 1
      %p157 = scmp.lt.s32.totalorder %s18, 1
      %s158 = scalar_select %p157, %s18, 1
      %s159 = smul.addr %s158, 108
      %s160 = smul.addr %s159, 4
      %s161 = scalar_lea.vmem %s0, %s160
      %p162 = pneg %p47
      %p163 = pneg %p44
      %p164 = pneg %p68
      %p165 = pneg %p65
      %p166 = pneg %p89
      %p167 = pneg %p86
      %p168 = pneg %p117
      %p169 = pneg %p114
      %s170 = smul.u32 16, %s19
      %p171 = scmp.lt.s32.totalorder %s18, 1
      %s172 = scalar_select %p171, %s18, 1
      %p173 = scmp.lt.s32.totalorder %s170, 31
      %s174 = scalar_select %p173, %s170, 31
      %s175 = smul.addr %s172, 32
      %s176 = sadd.s32 %s174, %s175
      %s177 = smul.addr %s176, 8
      %s178 = scalar_lea.vmem %s3, %s177
      %p179 = scmp.lt.s32.totalorder %s18, 1
      %s180 = scalar_select %p179, %s18, 1
      %s181 = smul.addr %s180, 108
      %s182 = smul.addr %s181, 4
      %s183 = scalar_lea.vmem %s0, %s182
      %s184 = smul.u32 16, %s19
      %p185 = scmp.lt.s32.totalorder %s18, 1
      %s186 = scalar_select %p185, %s18, 1
      %p187 = scmp.lt.s32.totalorder %s184, 31
      %s188 = scalar_select %p187, %s184, 31
      %s189 = smul.addr %s186, 32
      %s190 = sadd.s32 %s188, %s189
      %s191 = smul.addr %s190, 8
      %s192 = scalar_lea.vmem %s3, %s191
      %s193 = smul.u32 16, %s19
      %s195 = smul.u32 %s19, 128
      %s196 = sshra.s32 %s195, 3
      %s197 = sand.u32 %s195, 7
      %s198 = smul.addr %s196, 4
      %s199 = scalar_lea.vmem %s183, %s198
      %v200 = vld [vmem:[%s199] sm:$0xf]
      %v201 = vld [vmem:[%s199 + $0x4] sm:$0xf]
      %v202 = vld [vmem:[%s199 + $0x8] sm:$0xf]
      %v203 = vld [vmem:[%s199 + $0xc] sm:$0xf]
      %v204 = vld [vmem:[%s199 + $0x10] sm:$0xf]
      %v205 = vld [vmem:[%s199 + $0x14] sm:$0xf]
      %v206 = vld [vmem:[%s199 + $0x18] sm:$0xf]
      %v207 = vld [vmem:[%s199 + $0x1c] sm:$0xf]
      %v208 = vld [vmem:[%s199 + $0x20] sm:$0xf]
      %v209 = vld [vmem:[%s199 + $0x24] sm:$0xf]
      %v210 = vld [vmem:[%s199 + $0x28] sm:$0xf]
      %v211 = vld [vmem:[%s199 + $0x2c] sm:$0xf]
      %v212 = vld [vmem:[%s199 + $0x30] sm:$0xf]
      %v213 = vld [vmem:[%s199 + $0x34] sm:$0xf]
      %v214 = vld [vmem:[%s199 + $0x38] sm:$0xf]
      %v215 = vld [vmem:[%s199 + $0x3c] sm:$0xf]
      %v216 = vld [vmem:[%s1] sm:$0xf]
      %v217 = vld [vmem:[%s1 + $0x4] sm:$0xf]
      %v218 = vld [vmem:[%s1 + $0x8] sm:$0xf]
      %v219 = vld [vmem:[%s1 + $0xc] sm:$0xf]
      %v220 = vld [vmem:[%s1 + $0x10] sm:$0xf]
      %v221 = vld [vmem:[%s1 + $0x14] sm:$0xf]
      %v222 = vld [vmem:[%s1 + $0x18] sm:$0xf]
      %v223 = vld [vmem:[%s1 + $0x1c] sm:$0xf]
      %s224 = sadd.s32 %s196, 36
      %s225 = smul.addr %s224, 4
      %s226 = scalar_lea.vmem %s183, %s225
      %v227 = vld [vmem:[%s226] sm:$0xf]
      %v228 = vld [vmem:[%s226 + $0x4] sm:$0xf]
      %v229 = vld [vmem:[%s226 + $0x8] sm:$0xf]
      %v230 = vld [vmem:[%s226 + $0xc] sm:$0xf]
      %v231 = vld [vmem:[%s226 + $0x10] sm:$0xf]
      %v232 = vld [vmem:[%s226 + $0x14] sm:$0xf]
      %v233 = vld [vmem:[%s226 + $0x18] sm:$0xf]
      %v234 = vld [vmem:[%s226 + $0x1c] sm:$0xf]
      %v235 = vld [vmem:[%s226 + $0x20] sm:$0xf]
      %v236 = vld [vmem:[%s226 + $0x24] sm:$0xf]
      %v237 = vld [vmem:[%s226 + $0x28] sm:$0xf]
      %v238 = vld [vmem:[%s226 + $0x2c] sm:$0xf]
      %v239 = vld [vmem:[%s226 + $0x30] sm:$0xf]
      %v240 = vld [vmem:[%s226 + $0x34] sm:$0xf]
      %v241 = vld [vmem:[%s226 + $0x38] sm:$0xf]
      %v242 = vld [vmem:[%s226 + $0x3c] sm:$0xf]
      %s243 = scalar_lea.vmem %s1, 32
      %v244 = vld [vmem:[%s243] sm:$0xf]
      %v245 = vld [vmem:[%s243 + $0x4] sm:$0xf]
      %v246 = vld [vmem:[%s243 + $0x8] sm:$0xf]
      %v247 = vld [vmem:[%s243 + $0xc] sm:$0xf]
      %v248 = vld [vmem:[%s243 + $0x10] sm:$0xf]
      %v249 = vld [vmem:[%s243 + $0x14] sm:$0xf]
      %v250 = vld [vmem:[%s243 + $0x18] sm:$0xf]
      %v251 = vld [vmem:[%s243 + $0x1c] sm:$0xf]
      %v268 = vunpack.c.l.b16 %v227
      %v269 = vunpack.c.l.b16 %v228
      %v270 = vunpack.c.l.b16 %v229
      %v271 = vunpack.c.l.b16 %v230
      %v272 = vunpack.c.l.b16 %v231
      %v273 = vunpack.c.l.b16 %v232
      %v274 = vunpack.c.l.b16 %v233
      %v275 = vunpack.c.l.b16 %v234
      %v276 = vunpack.c.l.b16 %v235
      %v277 = vunpack.c.l.b16 %v236
      %v278 = vunpack.c.l.b16 %v237
      %v279 = vunpack.c.l.b16 %v238
      %v280 = vunpack.c.l.b16 %v239
      %v281 = vunpack.c.l.b16 %v240
      %v282 = vunpack.c.l.b16 %v241
      %v283 = vunpack.c.l.b16 %v242
      %v284 = vpack.c.b16 %v269, %v268
      %v285 = vpack.c.b16 %v271, %v270
      %v286 = vpack.c.b16 %v273, %v272
      %v287 = vpack.c.b16 %v275, %v274
      %v288 = vpack.c.b16 %v277, %v276
      %v289 = vpack.c.b16 %v279, %v278
      %v290 = vpack.c.b16 %v281, %v280
      %v291 = vpack.c.b16 %v283, %v282
      %v300 = vunpack.c.l.b16 %v244
      %v301 = vunpack.c.l.b16 %v245
      %v302 = vunpack.c.l.b16 %v246
      %v303 = vunpack.c.l.b16 %v247
      %v304 = vunpack.c.l.b16 %v248
      %v305 = vunpack.c.l.b16 %v249
      %v306 = vunpack.c.l.b16 %v250
      %v307 = vunpack.c.l.b16 %v251
      %v308 = vpack.c.b16 %v301, %v300
      %v309 = vpack.c.b16 %v303, %v302
      %v310 = vpack.c.b16 %v305, %v304
      %v311 = vpack.c.b16 %v307, %v306
      %vm316 = vcmask 523264
      %v318 = vsel %vm316, %v284, 0
      %v321 = vsel %vm316, %v285, 0
      %v324 = vsel %vm316, %v286, 0
      %v327 = vsel %vm316, %v287, 0
      %v330 = vsel %vm316, %v288, 0
      %v333 = vsel %vm316, %v289, 0
      %v336 = vsel %vm316, %v290, 0
      %v339 = vsel %vm316, %v291, 0
      %341 = vmatpush.bf16.msra.mxu0 0
      %342 = vmatpush.bf16.msra.mxu0 0
      %343 = vmatpush.bf16.msra.mxu0 0
      %344 = vmatpush.bf16.msra.mxu0 0
      %345 = vmatpush.bf16.msra.mxu0 %v311
      %346 = vmatpush.bf16.msra.mxu0 %v310
      %347 = vmatpush.bf16.msra.mxu0 %v309
      %348 = vmatpush.bf16.msra.mxu0 %v308
      %349 = vmatmul.bf16.gmra.mxu0 %v318
      %v350 = vpop.f32.mrf.mxu0
      %v351 = vadd.f32 0.0, %v350
      %v352 = vpop.f32.mrf.mxu0
      %v353 = vadd.f32 0.0, %v352
      %354 = vmatmul.bf16.gmra.mxu0 %v321
      %v355 = vpop.f32.mrf.mxu0
      %v356 = vadd.f32 0.0, %v355
      %v357 = vpop.f32.mrf.mxu0
      %v358 = vadd.f32 0.0, %v357
      %359 = vmatmul.bf16.gmra.mxu0 %v324
      %v360 = vpop.f32.mrf.mxu0
      %v361 = vadd.f32 0.0, %v360
      %v362 = vpop.f32.mrf.mxu0
      %v363 = vadd.f32 0.0, %v362
      %364 = vmatmul.bf16.gmra.mxu0 %v327
      %v365 = vpop.f32.mrf.mxu0
      %v366 = vadd.f32 0.0, %v365
      %v367 = vpop.f32.mrf.mxu0
      %v368 = vadd.f32 0.0, %v367
      %369 = vmatmul.bf16.gmra.mxu0 %v330
      %v370 = vpop.f32.mrf.mxu0
      %v371 = vadd.f32 0.0, %v370
      %v372 = vpop.f32.mrf.mxu0
      %v373 = vadd.f32 0.0, %v372
      %374 = vmatmul.bf16.gmra.mxu0 %v333
      %v375 = vpop.f32.mrf.mxu0
      %v376 = vadd.f32 0.0, %v375
      %v377 = vpop.f32.mrf.mxu0
      %v378 = vadd.f32 0.0, %v377
      %379 = vmatmul.bf16.gmra.mxu0 %v336
      %v380 = vpop.f32.mrf.mxu0
      %v381 = vadd.f32 0.0, %v380
      %v382 = vpop.f32.mrf.mxu0
      %v383 = vadd.f32 0.0, %v382
      %384 = vmatmul.bf16.gmra.mxu0 %v339
      %v385 = vpop.f32.mrf.mxu0
      %v386 = vadd.f32 0.0, %v385
      %v387 = vpop.f32.mrf.mxu0
      %v388 = vadd.f32 0.0, %v387
      %389 = vdwg.mxu0
      %v406 = vunpack.c.l.b16 %v200
      %v407 = vunpack.c.l.b16 %v201
      %v408 = vunpack.c.l.b16 %v202
      %v409 = vunpack.c.l.b16 %v203
      %v410 = vunpack.c.l.b16 %v204
      %v411 = vunpack.c.l.b16 %v205
      %v412 = vunpack.c.l.b16 %v206
      %v413 = vunpack.c.l.b16 %v207
      %v414 = vunpack.c.l.b16 %v208
      %v415 = vunpack.c.l.b16 %v209
      %v416 = vunpack.c.l.b16 %v210
      %v417 = vunpack.c.l.b16 %v211
      %v418 = vunpack.c.l.b16 %v212
      %v419 = vunpack.c.l.b16 %v213
      %v420 = vunpack.c.l.b16 %v214
      %v421 = vunpack.c.l.b16 %v215
      %v422 = vpack.c.b16 %v407, %v406
      %v423 = vpack.c.b16 %v409, %v408
      %v424 = vpack.c.b16 %v411, %v410
      %v425 = vpack.c.b16 %v413, %v412
      %v426 = vpack.c.b16 %v415, %v414
      %v427 = vpack.c.b16 %v417, %v416
      %v428 = vpack.c.b16 %v419, %v418
      %v429 = vpack.c.b16 %v421, %v420
      %v438 = vunpack.c.l.b16 %v216
      %v439 = vunpack.c.l.b16 %v217
      %v440 = vunpack.c.l.b16 %v218
      %v441 = vunpack.c.l.b16 %v219
      %v442 = vunpack.c.l.b16 %v220
      %v443 = vunpack.c.l.b16 %v221
      %v444 = vunpack.c.l.b16 %v222
      %v445 = vunpack.c.l.b16 %v223
      %v446 = vpack.c.b16 %v439, %v438
      %v447 = vpack.c.b16 %v441, %v440
      %v448 = vpack.c.b16 %v443, %v442
      %v449 = vpack.c.b16 %v445, %v444
      %v455 = vsel %vm316, %v422, 0
      %v458 = vsel %vm316, %v423, 0
      %v461 = vsel %vm316, %v424, 0
      %v464 = vsel %vm316, %v425, 0
      %v467 = vsel %vm316, %v426, 0
      %v470 = vsel %vm316, %v427, 0
      %v473 = vsel %vm316, %v428, 0
      %v476 = vsel %vm316, %v429, 0
      %478 = vmatpush.bf16.msra.mxu0 0
      %479 = vmatpush.bf16.msra.mxu0 0
      %480 = vmatpush.bf16.msra.mxu0 0
      %481 = vmatpush.bf16.msra.mxu0 0
      %482 = vmatpush.bf16.msra.mxu0 %v449
      %483 = vmatpush.bf16.msra.mxu0 %v448
      %484 = vmatpush.bf16.msra.mxu0 %v447
      %485 = vmatpush.bf16.msra.mxu0 %v446
      %486 = vmatmul.bf16.gmra.mxu0 %v455
      %v487 = vpop.f32.mrf.mxu0
      %v488 = vadd.f32 %v351, %v487
      %v489 = vpop.f32.mrf.mxu0
      %v490 = vadd.f32 %v353, %v489
      %491 = vmatmul.bf16.gmra.mxu0 %v458
      %v492 = vpop.f32.mrf.mxu0
      %v493 = vadd.f32 %v356, %v492
      %v494 = vpop.f32.mrf.mxu0
      %v495 = vadd.f32 %v358, %v494
      %496 = vmatmul.bf16.gmra.mxu0 %v461
      %v497 = vpop.f32.mrf.mxu0
      %v498 = vadd.f32 %v361, %v497
      %v499 = vpop.f32.mrf.mxu0
      %v500 = vadd.f32 %v363, %v499
      %501 = vmatmul.bf16.gmra.mxu0 %v464
      %v502 = vpop.f32.mrf.mxu0
      %v503 = vadd.f32 %v366, %v502
      %v504 = vpop.f32.mrf.mxu0
      %v505 = vadd.f32 %v368, %v504
      %506 = vmatmul.bf16.gmra.mxu0 %v467
      %v507 = vpop.f32.mrf.mxu0
      %v508 = vadd.f32 %v371, %v507
      %v509 = vpop.f32.mrf.mxu0
      %v510 = vadd.f32 %v373, %v509
      %511 = vmatmul.bf16.gmra.mxu0 %v470
      %v512 = vpop.f32.mrf.mxu0
      %v513 = vadd.f32 %v376, %v512
      %v514 = vpop.f32.mrf.mxu0
      %v515 = vadd.f32 %v378, %v514
      %516 = vmatmul.bf16.gmra.mxu0 %v473
      %v517 = vpop.f32.mrf.mxu0
      %v518 = vadd.f32 %v381, %v517
      %v519 = vpop.f32.mrf.mxu0
      %v520 = vadd.f32 %v383, %v519
      %521 = vmatmul.bf16.gmra.mxu0 %v476
      %v522 = vpop.f32.mrf.mxu0
      %v523 = vadd.f32 %v386, %v522
      %v524 = vpop.f32.mrf.mxu0
      %v525 = vadd.f32 %v388, %v524
      %526 = vdwg.mxu0
      %s527 = sadd.s32 %s196, 72
      %s528 = smul.addr %s527, 4
      %s529 = scalar_lea.vmem %s183, %s528
      %v530 = vld [vmem:[%s529] sm:$0xf]
      %v531 = vld [vmem:[%s529 + $0x4] sm:$0xf]
      %v532 = vld [vmem:[%s529 + $0x8] sm:$0xf]
      %v533 = vld [vmem:[%s529 + $0xc] sm:$0xf]
      %v534 = vld [vmem:[%s529 + $0x10] sm:$0xf]
      %v535 = vld [vmem:[%s529 + $0x14] sm:$0xf]
      %v536 = vld [vmem:[%s529 + $0x18] sm:$0xf]
      %v537 = vld [vmem:[%s529 + $0x1c] sm:$0xf]
      %v538 = vld [vmem:[%s529 + $0x20] sm:$0xf]
      %v539 = vld [vmem:[%s529 + $0x24] sm:$0xf]
      %v540 = vld [vmem:[%s529 + $0x28] sm:$0xf]
      %v541 = vld [vmem:[%s529 + $0x2c] sm:$0xf]
      %v542 = vld [vmem:[%s529 + $0x30] sm:$0xf]
      %v543 = vld [vmem:[%s529 + $0x34] sm:$0xf]
      %v544 = vld [vmem:[%s529 + $0x38] sm:$0xf]
      %v545 = vld [vmem:[%s529 + $0x3c] sm:$0xf]
      %s546 = scalar_lea.vmem %s1, 64
      %v547 = vld [vmem:[%s546] sm:$0xf]
      %v548 = vld [vmem:[%s546 + $0x4] sm:$0xf]
      %v549 = vld [vmem:[%s546 + $0x8] sm:$0xf]
      %v550 = vld [vmem:[%s546 + $0xc] sm:$0xf]
      %v551 = vld [vmem:[%s546 + $0x10] sm:$0xf]
      %v552 = vld [vmem:[%s546 + $0x14] sm:$0xf]
      %v553 = vld [vmem:[%s546 + $0x18] sm:$0xf]
      %v554 = vld [vmem:[%s546 + $0x1c] sm:$0xf]
      %v571 = vunpack.c.l.b16 %v530
      %v572 = vunpack.c.l.b16 %v531
      %v573 = vunpack.c.l.b16 %v532
      %v574 = vunpack.c.l.b16 %v533
      %v575 = vunpack.c.l.b16 %v534
      %v576 = vunpack.c.l.b16 %v535
      %v577 = vunpack.c.l.b16 %v536
      %v578 = vunpack.c.l.b16 %v537
      %v579 = vunpack.c.l.b16 %v538
      %v580 = vunpack.c.l.b16 %v539
      %v581 = vunpack.c.l.b16 %v540
      %v582 = vunpack.c.l.b16 %v541
      %v583 = vunpack.c.l.b16 %v542
      %v584 = vunpack.c.l.b16 %v543
      %v585 = vunpack.c.l.b16 %v544
      %v586 = vunpack.c.l.b16 %v545
      %v587 = vpack.c.b16 %v572, %v571
      %v588 = vpack.c.b16 %v574, %v573
      %v589 = vpack.c.b16 %v576, %v575
      %v590 = vpack.c.b16 %v578, %v577
      %v591 = vpack.c.b16 %v580, %v579
      %v592 = vpack.c.b16 %v582, %v581
      %v593 = vpack.c.b16 %v584, %v583
      %v594 = vpack.c.b16 %v586, %v585
      %v603 = vunpack.c.l.b16 %v547
      %v604 = vunpack.c.l.b16 %v548
      %v605 = vunpack.c.l.b16 %v549
      %v606 = vunpack.c.l.b16 %v550
      %v607 = vunpack.c.l.b16 %v551
      %v608 = vunpack.c.l.b16 %v552
      %v609 = vunpack.c.l.b16 %v553
      %v610 = vunpack.c.l.b16 %v554
      %v611 = vpack.c.b16 %v604, %v603
      %v612 = vpack.c.b16 %v606, %v605
      %v613 = vpack.c.b16 %v608, %v607
      %v614 = vpack.c.b16 %v610, %v609
      %v620 = vsel %vm316, %v587, 0
      %v623 = vsel %vm316, %v588, 0
      %v626 = vsel %vm316, %v589, 0
      %v629 = vsel %vm316, %v590, 0
      %v632 = vsel %vm316, %v591, 0
      %v635 = vsel %vm316, %v592, 0
      %v638 = vsel %vm316, %v593, 0
      %v641 = vsel %vm316, %v594, 0
      %643 = vmatpush.bf16.msra.mxu0 0
      %644 = vmatpush.bf16.msra.mxu0 0
      %645 = vmatpush.bf16.msra.mxu0 0
      %646 = vmatpush.bf16.msra.mxu0 0
      %647 = vmatpush.bf16.msra.mxu0 %v614
      %648 = vmatpush.bf16.msra.mxu0 %v613
      %649 = vmatpush.bf16.msra.mxu0 %v612
      %650 = vmatpush.bf16.msra.mxu0 %v611
      %651 = vmatmul.bf16.gmra.mxu0 %v620
      %v652 = vpop.f32.mrf.mxu0
      %v653 = vadd.f32 0.0, %v652
      %v654 = vpop.f32.mrf.mxu0
      %v655 = vadd.f32 0.0, %v654
      %656 = vmatmul.bf16.gmra.mxu0 %v623
      %v657 = vpop.f32.mrf.mxu0
      %v658 = vadd.f32 0.0, %v657
      %v659 = vpop.f32.mrf.mxu0
      %v660 = vadd.f32 0.0, %v659
      %661 = vmatmul.bf16.gmra.mxu0 %v626
      %v662 = vpop.f32.mrf.mxu0
      %v663 = vadd.f32 0.0, %v662
      %v664 = vpop.f32.mrf.mxu0
      %v665 = vadd.f32 0.0, %v664
      %666 = vmatmul.bf16.gmra.mxu0 %v629
      %v667 = vpop.f32.mrf.mxu0
      %v668 = vadd.f32 0.0, %v667
      %v669 = vpop.f32.mrf.mxu0
      %v670 = vadd.f32 0.0, %v669
      %671 = vmatmul.bf16.gmra.mxu0 %v632
      %v672 = vpop.f32.mrf.mxu0
      %v673 = vadd.f32 0.0, %v672
      %v674 = vpop.f32.mrf.mxu0
      %v675 = vadd.f32 0.0, %v674
      %676 = vmatmul.bf16.gmra.mxu0 %v635
      %v677 = vpop.f32.mrf.mxu0
      %v678 = vadd.f32 0.0, %v677
      %v679 = vpop.f32.mrf.mxu0
      %v680 = vadd.f32 0.0, %v679
      %681 = vmatmul.bf16.gmra.mxu0 %v638
      %v682 = vpop.f32.mrf.mxu0
      %v683 = vadd.f32 0.0, %v682
      %v684 = vpop.f32.mrf.mxu0
      %v685 = vadd.f32 0.0, %v684
      %686 = vmatmul.bf16.gmra.mxu0 %v641
      %v687 = vpop.f32.mrf.mxu0
      %v688 = vadd.f32 0.0, %v687
      %v689 = vpop.f32.mrf.mxu0
      %v690 = vadd.f32 0.0, %v689
      %691 = vdwg.mxu0
      %v692 = vadd.f32 %v488, %v653
      %v693 = vadd.f32 %v490, %v655
      %v694 = vadd.f32 %v493, %v658
      %v695 = vadd.f32 %v495, %v660
      %v696 = vadd.f32 %v498, %v663
      %v697 = vadd.f32 %v500, %v665
      %v698 = vadd.f32 %v503, %v668
      %v699 = vadd.f32 %v505, %v670
      %v700 = vadd.f32 %v508, %v673
      %v701 = vadd.f32 %v510, %v675
      %v702 = vadd.f32 %v513, %v678
      %v703 = vadd.f32 %v515, %v680
      %v704 = vadd.f32 %v518, %v683
      %v705 = vadd.f32 %v520, %v685
      %v706 = vadd.f32 %v523, %v688
      %v707 = vadd.f32 %v525, %v690
      %s708 = sadd.s32 %s195, 16
      %s709 = sshra.s32 %s708, 3
      %s710 = sand.u32 %s708, 7
      %s711 = smul.addr %s709, 4
      %s712 = scalar_lea.vmem %s183, %s711
      %v713 = vld [vmem:[%s712] sm:$0xf]
      %v714 = vld [vmem:[%s712 + $0x4] sm:$0xf]
      %v715 = vld [vmem:[%s712 + $0x8] sm:$0xf]
      %v716 = vld [vmem:[%s712 + $0xc] sm:$0xf]
      %v717 = vld [vmem:[%s712 + $0x10] sm:$0xf]
      %v718 = vld [vmem:[%s712 + $0x14] sm:$0xf]
      %v719 = vld [vmem:[%s712 + $0x18] sm:$0xf]
      %v720 = vld [vmem:[%s712 + $0x1c] sm:$0xf]
      %v721 = vld [vmem:[%s712 + $0x20] sm:$0xf]
      %v722 = vld [vmem:[%s712 + $0x24] sm:$0xf]
      %v723 = vld [vmem:[%s712 + $0x28] sm:$0xf]
      %v724 = vld [vmem:[%s712 + $0x2c] sm:$0xf]
      %v725 = vld [vmem:[%s712 + $0x30] sm:$0xf]
      %v726 = vld [vmem:[%s712 + $0x34] sm:$0xf]
      %v727 = vld [vmem:[%s712 + $0x38] sm:$0xf]
      %v728 = vld [vmem:[%s712 + $0x3c] sm:$0xf]
      %s729 = scalar_lea.vmem %s1, 96
      %v730 = vld [vmem:[%s729] sm:$0xf]
      %v731 = vld [vmem:[%s729 + $0x4] sm:$0xf]
      %v732 = vld [vmem:[%s729 + $0x8] sm:$0xf]
      %v733 = vld [vmem:[%s729 + $0xc] sm:$0xf]
      %v734 = vld [vmem:[%s729 + $0x10] sm:$0xf]
      %v735 = vld [vmem:[%s729 + $0x14] sm:$0xf]
      %v736 = vld [vmem:[%s729 + $0x18] sm:$0xf]
      %v737 = vld [vmem:[%s729 + $0x1c] sm:$0xf]
      %v754 = vunpack.c.l.b16 %v713
      %v755 = vunpack.c.l.b16 %v714
      %v756 = vunpack.c.l.b16 %v715
      %v757 = vunpack.c.l.b16 %v716
      %v758 = vunpack.c.l.b16 %v717
      %v759 = vunpack.c.l.b16 %v718
      %v760 = vunpack.c.l.b16 %v719
      %v761 = vunpack.c.l.b16 %v720
      %v762 = vunpack.c.l.b16 %v721
      %v763 = vunpack.c.l.b16 %v722
      %v764 = vunpack.c.l.b16 %v723
      %v765 = vunpack.c.l.b16 %v724
      %v766 = vunpack.c.l.b16 %v725
      %v767 = vunpack.c.l.b16 %v726
      %v768 = vunpack.c.l.b16 %v727
      %v769 = vunpack.c.l.b16 %v728
      %v770 = vpack.c.b16 %v755, %v754
      %v771 = vpack.c.b16 %v757, %v756
      %v772 = vpack.c.b16 %v759, %v758
      %v773 = vpack.c.b16 %v761, %v760
      %v774 = vpack.c.b16 %v763, %v762
      %v775 = vpack.c.b16 %v765, %v764
      %v776 = vpack.c.b16 %v767, %v766
      %v777 = vpack.c.b16 %v769, %v768
      %v786 = vunpack.c.l.b16 %v730
      %v787 = vunpack.c.l.b16 %v731
      %v788 = vunpack.c.l.b16 %v732
      %v789 = vunpack.c.l.b16 %v733
      %v790 = vunpack.c.l.b16 %v734
      %v791 = vunpack.c.l.b16 %v735
      %v792 = vunpack.c.l.b16 %v736
      %v793 = vunpack.c.l.b16 %v737
      %v794 = vpack.c.b16 %v787, %v786
      %v795 = vpack.c.b16 %v789, %v788
      %v796 = vpack.c.b16 %v791, %v790
      %v797 = vpack.c.b16 %v793, %v792
      %v803 = vsel %vm316, %v770, 0
      %v806 = vsel %vm316, %v771, 0
      %v809 = vsel %vm316, %v772, 0
      %v812 = vsel %vm316, %v773, 0
      %v815 = vsel %vm316, %v774, 0
      %v818 = vsel %vm316, %v775, 0
      %v821 = vsel %vm316, %v776, 0
      %v824 = vsel %vm316, %v777, 0
      %826 = vmatpush.bf16.msra.mxu0 0
      %827 = vmatpush.bf16.msra.mxu0 0
      %828 = vmatpush.bf16.msra.mxu0 0
      %829 = vmatpush.bf16.msra.mxu0 0
      %830 = vmatpush.bf16.msra.mxu0 %v797
      %831 = vmatpush.bf16.msra.mxu0 %v796
      %832 = vmatpush.bf16.msra.mxu0 %v795
      %833 = vmatpush.bf16.msra.mxu0 %v794
      %834 = vmatmul.bf16.gmra.mxu0 %v803
      %v835 = vpop.f32.mrf.mxu0
      %v836 = vadd.f32 0.0, %v835
      %v837 = vpop.f32.mrf.mxu0
      %v838 = vadd.f32 0.0, %v837
      %839 = vmatmul.bf16.gmra.mxu0 %v806
      %v840 = vpop.f32.mrf.mxu0
      %v841 = vadd.f32 0.0, %v840
      %v842 = vpop.f32.mrf.mxu0
      %v843 = vadd.f32 0.0, %v842
      %844 = vmatmul.bf16.gmra.mxu0 %v809
      %v845 = vpop.f32.mrf.mxu0
      %v846 = vadd.f32 0.0, %v845
      %v847 = vpop.f32.mrf.mxu0
      %v848 = vadd.f32 0.0, %v847
      %849 = vmatmul.bf16.gmra.mxu0 %v812
      %v850 = vpop.f32.mrf.mxu0
      %v851 = vadd.f32 0.0, %v850
      %v852 = vpop.f32.mrf.mxu0
      %v853 = vadd.f32 0.0, %v852
      %854 = vmatmul.bf16.gmra.mxu0 %v815
      %v855 = vpop.f32.mrf.mxu0
      %v856 = vadd.f32 0.0, %v855
      %v857 = vpop.f32.mrf.mxu0
      %v858 = vadd.f32 0.0, %v857
      %859 = vmatmul.bf16.gmra.mxu0 %v818
      %v860 = vpop.f32.mrf.mxu0
      %v861 = vadd.f32 0.0, %v860
      %v862 = vpop.f32.mrf.mxu0
      %v863 = vadd.f32 0.0, %v862
      %864 = vmatmul.bf16.gmra.mxu0 %v821
      %v865 = vpop.f32.mrf.mxu0
      %v866 = vadd.f32 0.0, %v865
      %v867 = vpop.f32.mrf.mxu0
      %v868 = vadd.f32 0.0, %v867
      %869 = vmatmul.bf16.gmra.mxu0 %v824
      %v870 = vpop.f32.mrf.mxu0
      %v871 = vadd.f32 0.0, %v870
      %v872 = vpop.f32.mrf.mxu0
      %v873 = vadd.f32 0.0, %v872
      %874 = vdwg.mxu0
      %v875 = vadd.f32 %v692, %v836
      %v876 = vadd.f32 %v693, %v838
      %v877 = vadd.f32 %v694, %v841
      %v878 = vadd.f32 %v695, %v843
      %v879 = vadd.f32 %v696, %v846
      %v880 = vadd.f32 %v697, %v848
      %v881 = vadd.f32 %v698, %v851
      %v882 = vadd.f32 %v699, %v853
      %v883 = vadd.f32 %v700, %v856
      %v884 = vadd.f32 %v701, %v858
      %v885 = vadd.f32 %v702, %v861
      %v886 = vadd.f32 %v703, %v863
      %v887 = vadd.f32 %v704, %v866
      %v888 = vadd.f32 %v705, %v868
      %v889 = vadd.f32 %v706, %v871
      %v890 = vadd.f32 %v707, %v873
      %s891 = sadd.s32 %s709, 36
      %s892 = smul.addr %s891, 4
      %s893 = scalar_lea.vmem %s183, %s892
      %v894 = vld [vmem:[%s893] sm:$0xf]
      %v895 = vld [vmem:[%s893 + $0x4] sm:$0xf]
      %v896 = vld [vmem:[%s893 + $0x8] sm:$0xf]
      %v897 = vld [vmem:[%s893 + $0xc] sm:$0xf]
      %v898 = vld [vmem:[%s893 + $0x10] sm:$0xf]
      %v899 = vld [vmem:[%s893 + $0x14] sm:$0xf]
      %v900 = vld [vmem:[%s893 + $0x18] sm:$0xf]
      %v901 = vld [vmem:[%s893 + $0x1c] sm:$0xf]
      %v902 = vld [vmem:[%s893 + $0x20] sm:$0xf]
      %v903 = vld [vmem:[%s893 + $0x24] sm:$0xf]
      %v904 = vld [vmem:[%s893 + $0x28] sm:$0xf]
      %v905 = vld [vmem:[%s893 + $0x2c] sm:$0xf]
      %v906 = vld [vmem:[%s893 + $0x30] sm:$0xf]
      %v907 = vld [vmem:[%s893 + $0x34] sm:$0xf]
      %v908 = vld [vmem:[%s893 + $0x38] sm:$0xf]
      %v909 = vld [vmem:[%s893 + $0x3c] sm:$0xf]
      %s910 = scalar_lea.vmem %s1, 128
      %v911 = vld [vmem:[%s910] sm:$0xf]
      %v912 = vld [vmem:[%s910 + $0x4] sm:$0xf]
      %v913 = vld [vmem:[%s910 + $0x8] sm:$0xf]
      %v914 = vld [vmem:[%s910 + $0xc] sm:$0xf]
      %v915 = vld [vmem:[%s910 + $0x10] sm:$0xf]
      %v916 = vld [vmem:[%s910 + $0x14] sm:$0xf]
      %v917 = vld [vmem:[%s910 + $0x18] sm:$0xf]
      %v918 = vld [vmem:[%s910 + $0x1c] sm:$0xf]
      %v935 = vunpack.c.l.b16 %v894
      %v936 = vunpack.c.l.b16 %v895
      %v937 = vunpack.c.l.b16 %v896
      %v938 = vunpack.c.l.b16 %v897
      %v939 = vunpack.c.l.b16 %v898
      %v940 = vunpack.c.l.b16 %v899
      %v941 = vunpack.c.l.b16 %v900
      %v942 = vunpack.c.l.b16 %v901
      %v943 = vunpack.c.l.b16 %v902
      %v944 = vunpack.c.l.b16 %v903
      %v945 = vunpack.c.l.b16 %v904
      %v946 = vunpack.c.l.b16 %v905
      %v947 = vunpack.c.l.b16 %v906
      %v948 = vunpack.c.l.b16 %v907
      %v949 = vunpack.c.l.b16 %v908
      %v950 = vunpack.c.l.b16 %v909
      %v951 = vpack.c.b16 %v936, %v935
      %v952 = vpack.c.b16 %v938, %v937
      %v953 = vpack.c.b16 %v940, %v939
      %v954 = vpack.c.b16 %v942, %v941
      %v955 = vpack.c.b16 %v944, %v943
      %v956 = vpack.c.b16 %v946, %v945
      %v957 = vpack.c.b16 %v948, %v947
      %v958 = vpack.c.b16 %v950, %v949
      %v967 = vunpack.c.l.b16 %v911
      %v968 = vunpack.c.l.b16 %v912
      %v969 = vunpack.c.l.b16 %v913
      %v970 = vunpack.c.l.b16 %v914
      %v971 = vunpack.c.l.b16 %v915
      %v972 = vunpack.c.l.b16 %v916
      %v973 = vunpack.c.l.b16 %v917
      %v974 = vunpack.c.l.b16 %v918
      %v975 = vpack.c.b16 %v968, %v967
      %v976 = vpack.c.b16 %v970, %v969
      %v977 = vpack.c.b16 %v972, %v971
      %v978 = vpack.c.b16 %v974, %v973
      %v984 = vsel %vm316, %v951, 0
      %v987 = vsel %vm316, %v952, 0
      %v990 = vsel %vm316, %v953, 0
      %v993 = vsel %vm316, %v954, 0
      %v996 = vsel %vm316, %v955, 0
      %v999 = vsel %vm316, %v956, 0
      %v1002 = vsel %vm316, %v957, 0
      %v1005 = vsel %vm316, %v958, 0
      %1007 = vmatpush.bf16.msra.mxu0 0
      %1008 = vmatpush.bf16.msra.mxu0 0
      %1009 = vmatpush.bf16.msra.mxu0 0
      %1010 = vmatpush.bf16.msra.mxu0 0
      %1011 = vmatpush.bf16.msra.mxu0 %v978
      %1012 = vmatpush.bf16.msra.mxu0 %v977
      %1013 = vmatpush.bf16.msra.mxu0 %v976
      %1014 = vmatpush.bf16.msra.mxu0 %v975
      %1015 = vmatmul.bf16.gmra.mxu0 %v984
      %v1016 = vpop.f32.mrf.mxu0
      %v1017 = vadd.f32 0.0, %v1016
      %v1018 = vpop.f32.mrf.mxu0
      %v1019 = vadd.f32 0.0, %v1018
      %1020 = vmatmul.bf16.gmra.mxu0 %v987
      %v1021 = vpop.f32.mrf.mxu0
      %v1022 = vadd.f32 0.0, %v1021
      %v1023 = vpop.f32.mrf.mxu0
      %v1024 = vadd.f32 0.0, %v1023
      %1025 = vmatmul.bf16.gmra.mxu0 %v990
      %v1026 = vpop.f32.mrf.mxu0
      %v1027 = vadd.f32 0.0, %v1026
      %v1028 = vpop.f32.mrf.mxu0
      %v1029 = vadd.f32 0.0, %v1028
      %1030 = vmatmul.bf16.gmra.mxu0 %v993
      %v1031 = vpop.f32.mrf.mxu0
      %v1032 = vadd.f32 0.0, %v1031
      %v1033 = vpop.f32.mrf.mxu0
      %v1034 = vadd.f32 0.0, %v1033
      %1035 = vmatmul.bf16.gmra.mxu0 %v996
      %v1036 = vpop.f32.mrf.mxu0
      %v1037 = vadd.f32 0.0, %v1036
      %v1038 = vpop.f32.mrf.mxu0
      %v1039 = vadd.f32 0.0, %v1038
      %1040 = vmatmul.bf16.gmra.mxu0 %v999
      %v1041 = vpop.f32.mrf.mxu0
      %v1042 = vadd.f32 0.0, %v1041
      %v1043 = vpop.f32.mrf.mxu0
      %v1044 = vadd.f32 0.0, %v1043
      %1045 = vmatmul.bf16.gmra.mxu0 %v1002
      %v1046 = vpop.f32.mrf.mxu0
      %v1047 = vadd.f32 0.0, %v1046
      %v1048 = vpop.f32.mrf.mxu0
      %v1049 = vadd.f32 0.0, %v1048
      %1050 = vmatmul.bf16.gmra.mxu0 %v1005
      %v1051 = vpop.f32.mrf.mxu0
      %v1052 = vadd.f32 0.0, %v1051
      %v1053 = vpop.f32.mrf.mxu0
      %v1054 = vadd.f32 0.0, %v1053
      %1055 = vdwg.mxu0
      %v1056 = vadd.f32 %v875, %v1017
      %v1057 = vadd.f32 %v876, %v1019
      %v1058 = vadd.f32 %v877, %v1022
      %v1059 = vadd.f32 %v878, %v1024
      %v1060 = vadd.f32 %v879, %v1027
      %v1061 = vadd.f32 %v880, %v1029
      %v1062 = vadd.f32 %v881, %v1032
      %v1063 = vadd.f32 %v882, %v1034
      %v1064 = vadd.f32 %v883, %v1037
      %v1065 = vadd.f32 %v884, %v1039
      %v1066 = vadd.f32 %v885, %v1042
      %v1067 = vadd.f32 %v886, %v1044
      %v1068 = vadd.f32 %v887, %v1047
      %v1069 = vadd.f32 %v888, %v1049
      %v1070 = vadd.f32 %v889, %v1052
      %v1071 = vadd.f32 %v890, %v1054
      %s1072 = sadd.s32 %s709, 72
      %s1073 = smul.addr %s1072, 4
      %s1074 = scalar_lea.vmem %s183, %s1073
      %v1075 = vld [vmem:[%s1074] sm:$0xf]
      %v1076 = vld [vmem:[%s1074 + $0x4] sm:$0xf]
      %v1077 = vld [vmem:[%s1074 + $0x8] sm:$0xf]
      %v1078 = vld [vmem:[%s1074 + $0xc] sm:$0xf]
      %v1079 = vld [vmem:[%s1074 + $0x10] sm:$0xf]
      %v1080 = vld [vmem:[%s1074 + $0x14] sm:$0xf]
      %v1081 = vld [vmem:[%s1074 + $0x18] sm:$0xf]
      %v1082 = vld [vmem:[%s1074 + $0x1c] sm:$0xf]
      %v1083 = vld [vmem:[%s1074 + $0x20] sm:$0xf]
      %v1084 = vld [vmem:[%s1074 + $0x24] sm:$0xf]
      %v1085 = vld [vmem:[%s1074 + $0x28] sm:$0xf]
      %v1086 = vld [vmem:[%s1074 + $0x2c] sm:$0xf]
      %v1087 = vld [vmem:[%s1074 + $0x30] sm:$0xf]
      %v1088 = vld [vmem:[%s1074 + $0x34] sm:$0xf]
      %v1089 = vld [vmem:[%s1074 + $0x38] sm:$0xf]
      %v1090 = vld [vmem:[%s1074 + $0x3c] sm:$0xf]
      %s1091 = scalar_lea.vmem %s1, 160
      %v1092 = vld [vmem:[%s1091] sm:$0xf]
      %v1093 = vld [vmem:[%s1091 + $0x4] sm:$0xf]
      %v1094 = vld [vmem:[%s1091 + $0x8] sm:$0xf]
      %v1095 = vld [vmem:[%s1091 + $0xc] sm:$0xf]
      %v1096 = vld [vmem:[%s1091 + $0x10] sm:$0xf]
      %v1097 = vld [vmem:[%s1091 + $0x14] sm:$0xf]
      %v1098 = vld [vmem:[%s1091 + $0x18] sm:$0xf]
      %v1099 = vld [vmem:[%s1091 + $0x1c] sm:$0xf]
      %v1116 = vunpack.c.l.b16 %v1075
      %v1117 = vunpack.c.l.b16 %v1076
      %v1118 = vunpack.c.l.b16 %v1077
      %v1119 = vunpack.c.l.b16 %v1078
      %v1120 = vunpack.c.l.b16 %v1079
      %v1121 = vunpack.c.l.b16 %v1080
      %v1122 = vunpack.c.l.b16 %v1081
      %v1123 = vunpack.c.l.b16 %v1082
      %v1124 = vunpack.c.l.b16 %v1083
      %v1125 = vunpack.c.l.b16 %v1084
      %v1126 = vunpack.c.l.b16 %v1085
      %v1127 = vunpack.c.l.b16 %v1086
      %v1128 = vunpack.c.l.b16 %v1087
      %v1129 = vunpack.c.l.b16 %v1088
      %v1130 = vunpack.c.l.b16 %v1089
      %v1131 = vunpack.c.l.b16 %v1090
      %v1132 = vpack.c.b16 %v1117, %v1116
      %v1133 = vpack.c.b16 %v1119, %v1118
      %v1134 = vpack.c.b16 %v1121, %v1120
      %v1135 = vpack.c.b16 %v1123, %v1122
      %v1136 = vpack.c.b16 %v1125, %v1124
      %v1137 = vpack.c.b16 %v1127, %v1126
      %v1138 = vpack.c.b16 %v1129, %v1128
      %v1139 = vpack.c.b16 %v1131, %v1130
      %v1148 = vunpack.c.l.b16 %v1092
      %v1149 = vunpack.c.l.b16 %v1093
      %v1150 = vunpack.c.l.b16 %v1094
      %v1151 = vunpack.c.l.b16 %v1095
      %v1152 = vunpack.c.l.b16 %v1096
      %v1153 = vunpack.c.l.b16 %v1097
      %v1154 = vunpack.c.l.b16 %v1098
      %v1155 = vunpack.c.l.b16 %v1099
      %v1156 = vpack.c.b16 %v1149, %v1148
      %v1157 = vpack.c.b16 %v1151, %v1150
      %v1158 = vpack.c.b16 %v1153, %v1152
      %v1159 = vpack.c.b16 %v1155, %v1154
      %v1165 = vsel %vm316, %v1132, 0
      %v1168 = vsel %vm316, %v1133, 0
      %v1171 = vsel %vm316, %v1134, 0
      %v1174 = vsel %vm316, %v1135, 0
      %v1177 = vsel %vm316, %v1136, 0
      %v1180 = vsel %vm316, %v1137, 0
      %v1183 = vsel %vm316, %v1138, 0
      %v1186 = vsel %vm316, %v1139, 0
      %1188 = vmatpush.bf16.msra.mxu0 0
      %1189 = vmatpush.bf16.msra.mxu0 0
      %1190 = vmatpush.bf16.msra.mxu0 0
      %1191 = vmatpush.bf16.msra.mxu0 0
      %1192 = vmatpush.bf16.msra.mxu0 %v1159
      %1193 = vmatpush.bf16.msra.mxu0 %v1158
      %1194 = vmatpush.bf16.msra.mxu0 %v1157
      %1195 = vmatpush.bf16.msra.mxu0 %v1156
      %1196 = vmatmul.bf16.gmra.mxu0 %v1165
      %v1197 = vpop.f32.mrf.mxu0
      %v1198 = vadd.f32 0.0, %v1197
      %v1199 = vpop.f32.mrf.mxu0
      %v1200 = vadd.f32 0.0, %v1199
      %1201 = vmatmul.bf16.gmra.mxu0 %v1168
      %v1202 = vpop.f32.mrf.mxu0
      %v1203 = vadd.f32 0.0, %v1202
      %v1204 = vpop.f32.mrf.mxu0
      %v1205 = vadd.f32 0.0, %v1204
      %1206 = vmatmul.bf16.gmra.mxu0 %v1171
      %v1207 = vpop.f32.mrf.mxu0
      %v1208 = vadd.f32 0.0, %v1207
      %v1209 = vpop.f32.mrf.mxu0
      %v1210 = vadd.f32 0.0, %v1209
      %1211 = vmatmul.bf16.gmra.mxu0 %v1174
      %v1212 = vpop.f32.mrf.mxu0
      %v1213 = vadd.f32 0.0, %v1212
      %v1214 = vpop.f32.mrf.mxu0
      %v1215 = vadd.f32 0.0, %v1214
      %1216 = vmatmul.bf16.gmra.mxu0 %v1177
      %v1217 = vpop.f32.mrf.mxu0
      %v1218 = vadd.f32 0.0, %v1217
      %v1219 = vpop.f32.mrf.mxu0
      %v1220 = vadd.f32 0.0, %v1219
      %1221 = vmatmul.bf16.gmra.mxu0 %v1180
      %v1222 = vpop.f32.mrf.mxu0
      %v1223 = vadd.f32 0.0, %v1222
      %v1224 = vpop.f32.mrf.mxu0
      %v1225 = vadd.f32 0.0, %v1224
      %1226 = vmatmul.bf16.gmra.mxu0 %v1183
      %v1227 = vpop.f32.mrf.mxu0
      %v1228 = vadd.f32 0.0, %v1227
      %v1229 = vpop.f32.mrf.mxu0
      %v1230 = vadd.f32 0.0, %v1229
      %1231 = vmatmul.bf16.gmra.mxu0 %v1186
      %v1232 = vpop.f32.mrf.mxu0
      %v1233 = vadd.f32 0.0, %v1232
      %v1234 = vpop.f32.mrf.mxu0
      %v1235 = vadd.f32 0.0, %v1234
      %1236 = vdwg.mxu0
      %v1237 = vadd.f32 %v1056, %v1198
      %v1238 = vadd.f32 %v1057, %v1200
      %v1239 = vadd.f32 %v1058, %v1203
      %v1240 = vadd.f32 %v1059, %v1205
      %v1241 = vadd.f32 %v1060, %v1208
      %v1242 = vadd.f32 %v1061, %v1210
      %v1243 = vadd.f32 %v1062, %v1213
      %v1244 = vadd.f32 %v1063, %v1215
      %v1245 = vadd.f32 %v1064, %v1218
      %v1246 = vadd.f32 %v1065, %v1220
      %v1247 = vadd.f32 %v1066, %v1223
      %v1248 = vadd.f32 %v1067, %v1225
      %v1249 = vadd.f32 %v1068, %v1228
      %v1250 = vadd.f32 %v1069, %v1230
      %v1251 = vadd.f32 %v1070, %v1233
      %v1252 = vadd.f32 %v1071, %v1235
      %s1253 = sadd.s32 %s195, 32
      %s1254 = sshra.s32 %s1253, 3
      %s1255 = sand.u32 %s1253, 7
      %s1256 = smul.addr %s1254, 4
      %s1257 = scalar_lea.vmem %s183, %s1256
      %v1258 = vld [vmem:[%s1257] sm:$0xf]
      %v1259 = vld [vmem:[%s1257 + $0x4] sm:$0xf]
      %v1260 = vld [vmem:[%s1257 + $0x8] sm:$0xf]
      %v1261 = vld [vmem:[%s1257 + $0xc] sm:$0xf]
      %v1262 = vld [vmem:[%s1257 + $0x10] sm:$0xf]
      %v1263 = vld [vmem:[%s1257 + $0x14] sm:$0xf]
      %v1264 = vld [vmem:[%s1257 + $0x18] sm:$0xf]
      %v1265 = vld [vmem:[%s1257 + $0x1c] sm:$0xf]
      %v1266 = vld [vmem:[%s1257 + $0x20] sm:$0xf]
      %v1267 = vld [vmem:[%s1257 + $0x24] sm:$0xf]
      %v1268 = vld [vmem:[%s1257 + $0x28] sm:$0xf]
      %v1269 = vld [vmem:[%s1257 + $0x2c] sm:$0xf]
      %v1270 = vld [vmem:[%s1257 + $0x30] sm:$0xf]
      %v1271 = vld [vmem:[%s1257 + $0x34] sm:$0xf]
      %v1272 = vld [vmem:[%s1257 + $0x38] sm:$0xf]
      %v1273 = vld [vmem:[%s1257 + $0x3c] sm:$0xf]
      %s1274 = scalar_lea.vmem %s1, 192
      %v1275 = vld [vmem:[%s1274] sm:$0xf]
      %v1276 = vld [vmem:[%s1274 + $0x4] sm:$0xf]
      %v1277 = vld [vmem:[%s1274 + $0x8] sm:$0xf]
      %v1278 = vld [vmem:[%s1274 + $0xc] sm:$0xf]
      %v1279 = vld [vmem:[%s1274 + $0x10] sm:$0xf]
      %v1280 = vld [vmem:[%s1274 + $0x14] sm:$0xf]
      %v1281 = vld [vmem:[%s1274 + $0x18] sm:$0xf]
      %v1282 = vld [vmem:[%s1274 + $0x1c] sm:$0xf]
      %v1299 = vunpack.c.l.b16 %v1258
      %v1300 = vunpack.c.l.b16 %v1259
      %v1301 = vunpack.c.l.b16 %v1260
      %v1302 = vunpack.c.l.b16 %v1261
      %v1303 = vunpack.c.l.b16 %v1262
      %v1304 = vunpack.c.l.b16 %v1263
      %v1305 = vunpack.c.l.b16 %v1264
      %v1306 = vunpack.c.l.b16 %v1265
      %v1307 = vunpack.c.l.b16 %v1266
      %v1308 = vunpack.c.l.b16 %v1267
      %v1309 = vunpack.c.l.b16 %v1268
      %v1310 = vunpack.c.l.b16 %v1269
      %v1311 = vunpack.c.l.b16 %v1270
      %v1312 = vunpack.c.l.b16 %v1271
      %v1313 = vunpack.c.l.b16 %v1272
      %v1314 = vunpack.c.l.b16 %v1273
      %v1315 = vpack.c.b16 %v1300, %v1299
      %v1316 = vpack.c.b16 %v1302, %v1301
      %v1317 = vpack.c.b16 %v1304, %v1303
      %v1318 = vpack.c.b16 %v1306, %v1305
      %v1319 = vpack.c.b16 %v1308, %v1307
      %v1320 = vpack.c.b16 %v1310, %v1309
      %v1321 = vpack.c.b16 %v1312, %v1311
      %v1322 = vpack.c.b16 %v1314, %v1313
      %v1331 = vunpack.c.l.b16 %v1275
      %v1332 = vunpack.c.l.b16 %v1276
      %v1333 = vunpack.c.l.b16 %v1277
      %v1334 = vunpack.c.l.b16 %v1278
      %v1335 = vunpack.c.l.b16 %v1279
      %v1336 = vunpack.c.l.b16 %v1280
      %v1337 = vunpack.c.l.b16 %v1281
      %v1338 = vunpack.c.l.b16 %v1282
      %v1339 = vpack.c.b16 %v1332, %v1331
      %v1340 = vpack.c.b16 %v1334, %v1333
      %v1341 = vpack.c.b16 %v1336, %v1335
      %v1342 = vpack.c.b16 %v1338, %v1337
      %v1348 = vsel %vm316, %v1315, 0
      %v1351 = vsel %vm316, %v1316, 0
      %v1354 = vsel %vm316, %v1317, 0
      %v1357 = vsel %vm316, %v1318, 0
      %v1360 = vsel %vm316, %v1319, 0
      %v1363 = vsel %vm316, %v1320, 0
      %v1366 = vsel %vm316, %v1321, 0
      %v1369 = vsel %vm316, %v1322, 0
      %1371 = vmatpush.bf16.msra.mxu0 0
      %1372 = vmatpush.bf16.msra.mxu0 0
      %1373 = vmatpush.bf16.msra.mxu0 0
      %1374 = vmatpush.bf16.msra.mxu0 0
      %1375 = vmatpush.bf16.msra.mxu0 %v1342
      %1376 = vmatpush.bf16.msra.mxu0 %v1341
      %1377 = vmatpush.bf16.msra.mxu0 %v1340
      %1378 = vmatpush.bf16.msra.mxu0 %v1339
      %1379 = vmatmul.bf16.gmra.mxu0 %v1348
      %v1380 = vpop.f32.mrf.mxu0
      %v1381 = vadd.f32 0.0, %v1380
      %v1382 = vpop.f32.mrf.mxu0
      %v1383 = vadd.f32 0.0, %v1382
      %1384 = vmatmul.bf16.gmra.mxu0 %v1351
      %v1385 = vpop.f32.mrf.mxu0
      %v1386 = vadd.f32 0.0, %v1385
      %v1387 = vpop.f32.mrf.mxu0
      %v1388 = vadd.f32 0.0, %v1387
      %1389 = vmatmul.bf16.gmra.mxu0 %v1354
      %v1390 = vpop.f32.mrf.mxu0
      %v1391 = vadd.f32 0.0, %v1390
      %v1392 = vpop.f32.mrf.mxu0
      %v1393 = vadd.f32 0.0, %v1392
      %1394 = vmatmul.bf16.gmra.mxu0 %v1357
      %v1395 = vpop.f32.mrf.mxu0
      %v1396 = vadd.f32 0.0, %v1395
      %v1397 = vpop.f32.mrf.mxu0
      %v1398 = vadd.f32 0.0, %v1397
      %1399 = vmatmul.bf16.gmra.mxu0 %v1360
      %v1400 = vpop.f32.mrf.mxu0
      %v1401 = vadd.f32 0.0, %v1400
      %v1402 = vpop.f32.mrf.mxu0
      %v1403 = vadd.f32 0.0, %v1402
      %1404 = vmatmul.bf16.gmra.mxu0 %v1363
      %v1405 = vpop.f32.mrf.mxu0
      %v1406 = vadd.f32 0.0, %v1405
      %v1407 = vpop.f32.mrf.mxu0
      %v1408 = vadd.f32 0.0, %v1407
      %1409 = vmatmul.bf16.gmra.mxu0 %v1366
      %v1410 = vpop.f32.mrf.mxu0
      %v1411 = vadd.f32 0.0, %v1410
      %v1412 = vpop.f32.mrf.mxu0
      %v1413 = vadd.f32 0.0, %v1412
      %1414 = vmatmul.bf16.gmra.mxu0 %v1369
      %v1415 = vpop.f32.mrf.mxu0
      %v1416 = vadd.f32 0.0, %v1415
      %v1417 = vpop.f32.mrf.mxu0
      %v1418 = vadd.f32 0.0, %v1417
      %1419 = vdwg.mxu0
      %v1420 = vadd.f32 %v1237, %v1381
      %v1421 = vadd.f32 %v1238, %v1383
      %v1422 = vadd.f32 %v1239, %v1386
      %v1423 = vadd.f32 %v1240, %v1388
      %v1424 = vadd.f32 %v1241, %v1391
      %v1425 = vadd.f32 %v1242, %v1393
      %v1426 = vadd.f32 %v1243, %v1396
      %v1427 = vadd.f32 %v1244, %v1398
      %v1428 = vadd.f32 %v1245, %v1401
      %v1429 = vadd.f32 %v1246, %v1403
      %v1430 = vadd.f32 %v1247, %v1406
      %v1431 = vadd.f32 %v1248, %v1408
      %v1432 = vadd.f32 %v1249, %v1411
      %v1433 = vadd.f32 %v1250, %v1413
      %v1434 = vadd.f32 %v1251, %v1416
      %v1435 = vadd.f32 %v1252, %v1418
      %s1436 = sadd.s32 %s1254, 36
      %s1437 = smul.addr %s1436, 4
      %s1438 = scalar_lea.vmem %s183, %s1437
      %v1439 = vld [vmem:[%s1438] sm:$0xf]
      %v1440 = vld [vmem:[%s1438 + $0x4] sm:$0xf]
      %v1441 = vld [vmem:[%s1438 + $0x8] sm:$0xf]
      %v1442 = vld [vmem:[%s1438 + $0xc] sm:$0xf]
      %v1443 = vld [vmem:[%s1438 + $0x10] sm:$0xf]
      %v1444 = vld [vmem:[%s1438 + $0x14] sm:$0xf]
      %v1445 = vld [vmem:[%s1438 + $0x18] sm:$0xf]
      %v1446 = vld [vmem:[%s1438 + $0x1c] sm:$0xf]
      %v1447 = vld [vmem:[%s1438 + $0x20] sm:$0xf]
      %v1448 = vld [vmem:[%s1438 + $0x24] sm:$0xf]
      %v1449 = vld [vmem:[%s1438 + $0x28] sm:$0xf]
      %v1450 = vld [vmem:[%s1438 + $0x2c] sm:$0xf]
      %v1451 = vld [vmem:[%s1438 + $0x30] sm:$0xf]
      %v1452 = vld [vmem:[%s1438 + $0x34] sm:$0xf]
      %v1453 = vld [vmem:[%s1438 + $0x38] sm:$0xf]
      %v1454 = vld [vmem:[%s1438 + $0x3c] sm:$0xf]
      %s1455 = scalar_lea.vmem %s1, 224
      %v1456 = vld [vmem:[%s1455] sm:$0xf]
      %v1457 = vld [vmem:[%s1455 + $0x4] sm:$0xf]
      %v1458 = vld [vmem:[%s1455 + $0x8] sm:$0xf]
      %v1459 = vld [vmem:[%s1455 + $0xc] sm:$0xf]
      %v1460 = vld [vmem:[%s1455 + $0x10] sm:$0xf]
      %v1461 = vld [vmem:[%s1455 + $0x14] sm:$0xf]
      %v1462 = vld [vmem:[%s1455 + $0x18] sm:$0xf]
      %v1463 = vld [vmem:[%s1455 + $0x1c] sm:$0xf]
      %v1480 = vunpack.c.l.b16 %v1439
      %v1481 = vunpack.c.l.b16 %v1440
      %v1482 = vunpack.c.l.b16 %v1441
      %v1483 = vunpack.c.l.b16 %v1442
      %v1484 = vunpack.c.l.b16 %v1443
      %v1485 = vunpack.c.l.b16 %v1444
      %v1486 = vunpack.c.l.b16 %v1445
      %v1487 = vunpack.c.l.b16 %v1446
      %v1488 = vunpack.c.l.b16 %v1447
      %v1489 = vunpack.c.l.b16 %v1448
      %v1490 = vunpack.c.l.b16 %v1449
      %v1491 = vunpack.c.l.b16 %v1450
      %v1492 = vunpack.c.l.b16 %v1451
      %v1493 = vunpack.c.l.b16 %v1452
      %v1494 = vunpack.c.l.b16 %v1453
      %v1495 = vunpack.c.l.b16 %v1454
      %v1496 = vpack.c.b16 %v1481, %v1480
      %v1497 = vpack.c.b16 %v1483, %v1482
      %v1498 = vpack.c.b16 %v1485, %v1484
      %v1499 = vpack.c.b16 %v1487, %v1486
      %v1500 = vpack.c.b16 %v1489, %v1488
      %v1501 = vpack.c.b16 %v1491, %v1490
      %v1502 = vpack.c.b16 %v1493, %v1492
      %v1503 = vpack.c.b16 %v1495, %v1494
      %v1512 = vunpack.c.l.b16 %v1456
      %v1513 = vunpack.c.l.b16 %v1457
      %v1514 = vunpack.c.l.b16 %v1458
      %v1515 = vunpack.c.l.b16 %v1459
      %v1516 = vunpack.c.l.b16 %v1460
      %v1517 = vunpack.c.l.b16 %v1461
      %v1518 = vunpack.c.l.b16 %v1462
      %v1519 = vunpack.c.l.b16 %v1463
      %v1520 = vpack.c.b16 %v1513, %v1512
      %v1521 = vpack.c.b16 %v1515, %v1514
      %v1522 = vpack.c.b16 %v1517, %v1516
      %v1523 = vpack.c.b16 %v1519, %v1518
      %v1529 = vsel %vm316, %v1496, 0
      %v1532 = vsel %vm316, %v1497, 0
      %v1535 = vsel %vm316, %v1498, 0
      %v1538 = vsel %vm316, %v1499, 0
      %v1541 = vsel %vm316, %v1500, 0
      %v1544 = vsel %vm316, %v1501, 0
      %v1547 = vsel %vm316, %v1502, 0
      %v1550 = vsel %vm316, %v1503, 0
      %1552 = vmatpush.bf16.msra.mxu0 0
      %1553 = vmatpush.bf16.msra.mxu0 0
      %1554 = vmatpush.bf16.msra.mxu0 0
      %1555 = vmatpush.bf16.msra.mxu0 0
      %1556 = vmatpush.bf16.msra.mxu0 %v1523
      %1557 = vmatpush.bf16.msra.mxu0 %v1522
      %1558 = vmatpush.bf16.msra.mxu0 %v1521
      %1559 = vmatpush.bf16.msra.mxu0 %v1520
      %1560 = vmatmul.bf16.gmra.mxu0 %v1529
      %v1561 = vpop.f32.mrf.mxu0
      %v1562 = vadd.f32 0.0, %v1561
      %v1563 = vpop.f32.mrf.mxu0
      %v1564 = vadd.f32 0.0, %v1563
      %1565 = vmatmul.bf16.gmra.mxu0 %v1532
      %v1566 = vpop.f32.mrf.mxu0
      %v1567 = vadd.f32 0.0, %v1566
      %v1568 = vpop.f32.mrf.mxu0
      %v1569 = vadd.f32 0.0, %v1568
      %1570 = vmatmul.bf16.gmra.mxu0 %v1535
      %v1571 = vpop.f32.mrf.mxu0
      %v1572 = vadd.f32 0.0, %v1571
      %v1573 = vpop.f32.mrf.mxu0
      %v1574 = vadd.f32 0.0, %v1573
      %1575 = vmatmul.bf16.gmra.mxu0 %v1538
      %v1576 = vpop.f32.mrf.mxu0
      %v1577 = vadd.f32 0.0, %v1576
      %v1578 = vpop.f32.mrf.mxu0
      %v1579 = vadd.f32 0.0, %v1578
      %1580 = vmatmul.bf16.gmra.mxu0 %v1541
      %v1581 = vpop.f32.mrf.mxu0
      %v1582 = vadd.f32 0.0, %v1581
      %v1583 = vpop.f32.mrf.mxu0
      %v1584 = vadd.f32 0.0, %v1583
      %1585 = vmatmul.bf16.gmra.mxu0 %v1544
      %v1586 = vpop.f32.mrf.mxu0
      %v1587 = vadd.f32 0.0, %v1586
      %v1588 = vpop.f32.mrf.mxu0
      %v1589 = vadd.f32 0.0, %v1588
      %1590 = vmatmul.bf16.gmra.mxu0 %v1547
      %v1591 = vpop.f32.mrf.mxu0
      %v1592 = vadd.f32 0.0, %v1591
      %v1593 = vpop.f32.mrf.mxu0
      %v1594 = vadd.f32 0.0, %v1593
      %1595 = vmatmul.bf16.gmra.mxu0 %v1550
      %v1596 = vpop.f32.mrf.mxu0
      %v1597 = vadd.f32 0.0, %v1596
      %v1598 = vpop.f32.mrf.mxu0
      %v1599 = vadd.f32 0.0, %v1598
      %1600 = vdwg.mxu0
      %v1601 = vadd.f32 %v1420, %v1562
      %v1602 = vadd.f32 %v1421, %v1564
      %v1603 = vadd.f32 %v1422, %v1567
      %v1604 = vadd.f32 %v1423, %v1569
      %v1605 = vadd.f32 %v1424, %v1572
      %v1606 = vadd.f32 %v1425, %v1574
      %v1607 = vadd.f32 %v1426, %v1577
      %v1608 = vadd.f32 %v1427, %v1579
      %v1609 = vadd.f32 %v1428, %v1582
      %v1610 = vadd.f32 %v1429, %v1584
      %v1611 = vadd.f32 %v1430, %v1587
      %v1612 = vadd.f32 %v1431, %v1589
      %v1613 = vadd.f32 %v1432, %v1592
      %v1614 = vadd.f32 %v1433, %v1594
      %v1615 = vadd.f32 %v1434, %v1597
      %v1616 = vadd.f32 %v1435, %v1599
      %s1617 = sadd.s32 %s1254, 72
      %s1618 = smul.addr %s1617, 4
      %s1619 = scalar_lea.vmem %s183, %s1618
      %v1620 = vld [vmem:[%s1619] sm:$0xf]
      %v1621 = vld [vmem:[%s1619 + $0x4] sm:$0xf]
      %v1622 = vld [vmem:[%s1619 + $0x8] sm:$0xf]
      %v1623 = vld [vmem:[%s1619 + $0xc] sm:$0xf]
      %v1624 = vld [vmem:[%s1619 + $0x10] sm:$0xf]
      %v1625 = vld [vmem:[%s1619 + $0x14] sm:$0xf]
      %v1626 = vld [vmem:[%s1619 + $0x18] sm:$0xf]
      %v1627 = vld [vmem:[%s1619 + $0x1c] sm:$0xf]
      %v1628 = vld [vmem:[%s1619 + $0x20] sm:$0xf]
      %v1629 = vld [vmem:[%s1619 + $0x24] sm:$0xf]
      %v1630 = vld [vmem:[%s1619 + $0x28] sm:$0xf]
      %v1631 = vld [vmem:[%s1619 + $0x2c] sm:$0xf]
      %v1632 = vld [vmem:[%s1619 + $0x30] sm:$0xf]
      %v1633 = vld [vmem:[%s1619 + $0x34] sm:$0xf]
      %v1634 = vld [vmem:[%s1619 + $0x38] sm:$0xf]
      %v1635 = vld [vmem:[%s1619 + $0x3c] sm:$0xf]
      %s1636 = scalar_lea.vmem %s1, 256
      %v1637 = vld [vmem:[%s1636] sm:$0xf]
      %v1638 = vld [vmem:[%s1636 + $0x4] sm:$0xf]
      %v1639 = vld [vmem:[%s1636 + $0x8] sm:$0xf]
      %v1640 = vld [vmem:[%s1636 + $0xc] sm:$0xf]
      %v1641 = vld [vmem:[%s1636 + $0x10] sm:$0xf]
      %v1642 = vld [vmem:[%s1636 + $0x14] sm:$0xf]
      %v1643 = vld [vmem:[%s1636 + $0x18] sm:$0xf]
      %v1644 = vld [vmem:[%s1636 + $0x1c] sm:$0xf]
      %v1661 = vunpack.c.l.b16 %v1620
      %v1662 = vunpack.c.l.b16 %v1621
      %v1663 = vunpack.c.l.b16 %v1622
      %v1664 = vunpack.c.l.b16 %v1623
      %v1665 = vunpack.c.l.b16 %v1624
      %v1666 = vunpack.c.l.b16 %v1625
      %v1667 = vunpack.c.l.b16 %v1626
      %v1668 = vunpack.c.l.b16 %v1627
      %v1669 = vunpack.c.l.b16 %v1628
      %v1670 = vunpack.c.l.b16 %v1629
      %v1671 = vunpack.c.l.b16 %v1630
      %v1672 = vunpack.c.l.b16 %v1631
      %v1673 = vunpack.c.l.b16 %v1632
      %v1674 = vunpack.c.l.b16 %v1633
      %v1675 = vunpack.c.l.b16 %v1634
      %v1676 = vunpack.c.l.b16 %v1635
      %v1677 = vpack.c.b16 %v1662, %v1661
      %v1678 = vpack.c.b16 %v1664, %v1663
      %v1679 = vpack.c.b16 %v1666, %v1665
      %v1680 = vpack.c.b16 %v1668, %v1667
      %v1681 = vpack.c.b16 %v1670, %v1669
      %v1682 = vpack.c.b16 %v1672, %v1671
      %v1683 = vpack.c.b16 %v1674, %v1673
      %v1684 = vpack.c.b16 %v1676, %v1675
      %v1693 = vunpack.c.l.b16 %v1637
      %v1694 = vunpack.c.l.b16 %v1638
      %v1695 = vunpack.c.l.b16 %v1639
      %v1696 = vunpack.c.l.b16 %v1640
      %v1697 = vunpack.c.l.b16 %v1641
      %v1698 = vunpack.c.l.b16 %v1642
      %v1699 = vunpack.c.l.b16 %v1643
      %v1700 = vunpack.c.l.b16 %v1644
      %v1701 = vpack.c.b16 %v1694, %v1693
      %v1702 = vpack.c.b16 %v1696, %v1695
      %v1703 = vpack.c.b16 %v1698, %v1697
      %v1704 = vpack.c.b16 %v1700, %v1699
      %v1710 = vsel %vm316, %v1677, 0
      %v1713 = vsel %vm316, %v1678, 0
      %v1716 = vsel %vm316, %v1679, 0
      %v1719 = vsel %vm316, %v1680, 0
      %v1722 = vsel %vm316, %v1681, 0
      %v1725 = vsel %vm316, %v1682, 0
      %v1728 = vsel %vm316, %v1683, 0
      %v1731 = vsel %vm316, %v1684, 0
      %1733 = vmatpush.bf16.msra.mxu0 0
      %1734 = vmatpush.bf16.msra.mxu0 0
      %1735 = vmatpush.bf16.msra.mxu0 0
      %1736 = vmatpush.bf16.msra.mxu0 0
      %1737 = vmatpush.bf16.msra.mxu0 %v1704
      %1738 = vmatpush.bf16.msra.mxu0 %v1703
      %1739 = vmatpush.bf16.msra.mxu0 %v1702
      %1740 = vmatpush.bf16.msra.mxu0 %v1701
      %1741 = vmatmul.bf16.gmra.mxu0 %v1710
      %v1742 = vpop.f32.mrf.mxu0
      %v1743 = vadd.f32 0.0, %v1742
      %v1744 = vpop.f32.mrf.mxu0
      %v1745 = vadd.f32 0.0, %v1744
      %1746 = vmatmul.bf16.gmra.mxu0 %v1713
      %v1747 = vpop.f32.mrf.mxu0
      %v1748 = vadd.f32 0.0, %v1747
      %v1749 = vpop.f32.mrf.mxu0
      %v1750 = vadd.f32 0.0, %v1749
      %1751 = vmatmul.bf16.gmra.mxu0 %v1716
      %v1752 = vpop.f32.mrf.mxu0
      %v1753 = vadd.f32 0.0, %v1752
      %v1754 = vpop.f32.mrf.mxu0
      %v1755 = vadd.f32 0.0, %v1754
      %1756 = vmatmul.bf16.gmra.mxu0 %v1719
      %v1757 = vpop.f32.mrf.mxu0
      %v1758 = vadd.f32 0.0, %v1757
      %v1759 = vpop.f32.mrf.mxu0
      %v1760 = vadd.f32 0.0, %v1759
      %1761 = vmatmul.bf16.gmra.mxu0 %v1722
      %v1762 = vpop.f32.mrf.mxu0
      %v1763 = vadd.f32 0.0, %v1762
      %v1764 = vpop.f32.mrf.mxu0
      %v1765 = vadd.f32 0.0, %v1764
      %1766 = vmatmul.bf16.gmra.mxu0 %v1725
      %v1767 = vpop.f32.mrf.mxu0
      %v1768 = vadd.f32 0.0, %v1767
      %v1769 = vpop.f32.mrf.mxu0
      %v1770 = vadd.f32 0.0, %v1769
      %1771 = vmatmul.bf16.gmra.mxu0 %v1728
      %v1772 = vpop.f32.mrf.mxu0
      %v1773 = vadd.f32 0.0, %v1772
      %v1774 = vpop.f32.mrf.mxu0
      %v1775 = vadd.f32 0.0, %v1774
      %1776 = vmatmul.bf16.gmra.mxu0 %v1731
      %v1777 = vpop.f32.mrf.mxu0
      %v1778 = vadd.f32 0.0, %v1777
      %v1779 = vpop.f32.mrf.mxu0
      %v1780 = vadd.f32 0.0, %v1779
      %1781 = vdwg.mxu0
      %v1782 = vadd.f32 %v1601, %v1743
      %v1783 = vadd.f32 %v1602, %v1745
      %v1784 = vadd.f32 %v1603, %v1748
      %v1785 = vadd.f32 %v1604, %v1750
      %v1786 = vadd.f32 %v1605, %v1753
      %v1787 = vadd.f32 %v1606, %v1755
      %v1788 = vadd.f32 %v1607, %v1758
      %v1789 = vadd.f32 %v1608, %v1760
      %v1790 = vadd.f32 %v1609, %v1763
      %v1791 = vadd.f32 %v1610, %v1765
      %v1792 = vadd.f32 %v1611, %v1768
      %v1793 = vadd.f32 %v1612, %v1770
      %v1794 = vadd.f32 %v1613, %v1773
      %v1795 = vadd.f32 %v1614, %v1775
      %v1796 = vadd.f32 %v1615, %v1778
      %v1797 = vadd.f32 %v1616, %v1780
      %v1798 = vld [vmem:[%s2] sm:$0x1]
      %v1800 = vperm.slane %v1798, 0
      %v1802 = vadd.f32 %v1782, %v1800
      %v1803 = vadd.f32 %v1783, %v1800
      %v1804 = vadd.f32 %v1784, %v1800
      %v1805 = vadd.f32 %v1785, %v1800
      %v1806 = vadd.f32 %v1786, %v1800
      %v1807 = vadd.f32 %v1787, %v1800
      %v1808 = vadd.f32 %v1788, %v1800
      %v1809 = vadd.f32 %v1789, %v1800
      %v1810 = vadd.f32 %v1790, %v1800
      %v1811 = vadd.f32 %v1791, %v1800
      %v1812 = vadd.f32 %v1792, %v1800
      %v1813 = vadd.f32 %v1793, %v1800
      %v1814 = vadd.f32 %v1794, %v1800
      %v1815 = vadd.f32 %v1795, %v1800
      %v1816 = vadd.f32 %v1796, %v1800
      %v1817 = vadd.f32 %v1797, %v1800
      %1818 = vst [vmem:[%s192] sm:$0xff] %v1802
      %1819 = vst [vmem:[%s192 + $0x8] sm:$0xff] %v1803
      %1820 = vst [vmem:[%s192 + $0x10] sm:$0xff] %v1804
      %1821 = vst [vmem:[%s192 + $0x18] sm:$0xff] %v1805
      %1822 = vst [vmem:[%s192 + $0x20] sm:$0xff] %v1806
      %1823 = vst [vmem:[%s192 + $0x28] sm:$0xff] %v1807
      %1824 = vst [vmem:[%s192 + $0x30] sm:$0xff] %v1808
      %1825 = vst [vmem:[%s192 + $0x38] sm:$0xff] %v1809
      %1826 = vst [vmem:[%s192 + $0x40] sm:$0xff] %v1810
      %1827 = vst [vmem:[%s192 + $0x48] sm:$0xff] %v1811
      %1828 = vst [vmem:[%s192 + $0x50] sm:$0xff] %v1812
      %1829 = vst [vmem:[%s192 + $0x58] sm:$0xff] %v1813
      %1830 = vst [vmem:[%s192 + $0x60] sm:$0xff] %v1814
      %1831 = vst [vmem:[%s192 + $0x68] sm:$0xff] %v1815
      %1832 = vst [vmem:[%s192 + $0x70] sm:$0xff] %v1816
      %1833 = vst [vmem:[%s192 + $0x78] sm:$0xff] %v1817
      %s1834 = smul.u32 16, %s19
      %p1835 = scmp.lt.s32.totalorder %s18, 1
      %s1836 = scalar_select %p1835, %s18, 1
      %p1837 = scmp.lt.s32.totalorder %s1834, 31
      %s1838 = scalar_select %p1837, %s1834, 31
      %s1839 = smul.addr %s1836, 32
      %s1840 = sadd.s32 %s1838, %s1839
      %s1841 = smul.addr %s1840, 8
      %s1842 = scalar_lea.vmem %s3, %s1841
      // Predicated region
      $region33: #{_details_net_forward.11} parent=31 // pred_check
        %p1843 = pneg %p114
      $region34: #{_details_net_forward.11} parent=31 // pred_check_branch
        %1845 = sbr.rel (%p1843) target = $region36
      $region35: #{_details_net_forward.11} parent=31 // pred_region
        %s1846 = smul.u32 16, %s19
      $region36: #{_details_net_forward.11} parent=31 // pred_fallthru
        _
    $region32: #{_details_net_forward.11} parent=5 // pred_fallthru
      _
    %p1847 = scmp.le.s32.totalorder 2, %s9
    // Predicated region
    $region37: #{_details_net_forward.11} parent=5 // pred_check
      %p1848 = pneg %p1847
    $region38: #{_details_net_forward.11} parent=5 // pred_check_branch
      %1850 = sbr.rel (%p1848) target = $region40
    $region39: #{_details_net_forward.11} parent=5 // pred_region
      %s1851 = ssub.s32 %s9, 2
      // Predicated region
      $region41: #{_details_net_forward.11} parent=39 // pred_check
        %p1852 = pneg %p120
      $region42: #{_details_net_forward.11} parent=39 // pred_check_branch
        %1854 = sbr.rel (%p1852) target = $region44
      $region43: #{_details_net_forward.11} parent=39 // pred_region
        %s1855 = smul.u32 16, %s21
        %p1856 = scmp.lt.s32.totalorder %s20, 1
        %s1857 = scalar_select %p1856, %s20, 1
        %p1858 = scmp.lt.s32.totalorder %s1855, 31
        %s1859 = scalar_select %p1858, %s1855, 31
        %s1860 = smul.addr %s1857, 32
        %s1861 = sadd.s32 %s1859, %s1860
        %s1862 = smul.addr %s1861, 8
        %s1863 = scalar_lea.vmem %s3, %s1862
      $region44: #{_details_net_forward.11} parent=39 // pred_fallthru
        _
    $region40: #{_details_net_forward.11} parent=5 // pred_fallthru
      _
  $region6: #{_details_net_forward.11} parent=0 // loop_footer
    %s13 = sadd.s32 1, %s9
  $region7: #{_details_net_forward.11} parent=0 // loop_footer_branch
    %8 = sbr.rel target = $region3
  $region8: #{_details_net_forward.11} parent=0 // loop_exit
    _

// kernel: _details_net_forward.17
$region0: #{_details_net_forward.17}
  #allocation0 [shape = 'u32[]', space=smem, size = 0x4, offset = 0x4, fixed_abs, tag = 'smem constant byte address 0x4 - core index']
  #allocation1 [shape = 'u32[72,128]{1,0:T(1,128)}', space=vmem, size = 0x9000, scoped, tag = 'internal scratch']
  %s0 = inlined_call_operand.vmem [shape: bf16[2,3,288,64], index: 0, kind: input, shape index: {}]
  %s1 = inlined_call_operand.vmem [shape: bf16[9,64,128], index: 1, kind: input, shape index: {}]
  %s2 = inlined_call_operand.vmem [shape: f32[1,128], index: 2, kind: input, shape index: {}]
  %s3 = inlined_call_operand.vmem [shape: f32[2,256,128], index: 3, kind: output, shape index: {}]
  %s4 = sld [smem:[#allocation0]]
  $region45: #{_details_net_forward.17} parent=0
    _
  %s6 = ssub.s32 1, %s4
  %s7 = scalar_select 0, %s6, %s4
  loop: start=0, step=1, limit=6
  $region2: #{_details_net_forward.17} parent=0 // loop_pre_header
    _
  $region3: #{_details_net_forward.17} parent=0 // loop_header
    %s9 = sphi 0, %s13
    %p10 = scmp.ge.s32.totalorder %s9, 6
    %s16 = sphi 0, %s28
    %s17 = sphi 0, %s24
    %s18 = sphi 0, %s16
    %s19 = sphi 0, %s17
    %s20 = sphi 0, %s18
    %s21 = sphi 0, %s19
    %s31 = sphi 0, %s33
    %s34 = sphi 0, %s31
    %s35 = sphi 0, %s34
    %s51 = sphi 0, %s35
    %s55 = sphi 0, %s55
    %s57 = sphi 0, %s55
    %s58 = sphi 0, %s57
    %s72 = sphi 0, %s58
    %s76 = sphi 0, %s76
    %s78 = sphi 0, %s76
    %s79 = sphi 0, %s78
    %s93 = sphi 0, %s79
    %s101 = sphi 0, %s103
    %s104 = sphi 0, %s101
    %s105 = sphi 0, %s104
    %s121 = sphi 0, %s105
  $region4: #{_details_net_forward.17} parent=0 // loop_header_branch
    %12 = sbr.rel (%p10) target = $region8
  $region5: #{_details_net_forward.17} parent=0 // loop_body
    %s14 = ssub.s32 %s9, 1
    %s15 = ssub.s32 %s9, 2
    %s22 = sadd.s32 1, %s17
    %p23 = scmp.ge.s32.totalorder %s22, 2
    %s24 = scalar_select %p23, 0, %s22
    %s25 = sadd.s32 1, %s16
    %s26 = scalar_select %p23, %s25, %s16
    %p27 = scmp.ge.s32.totalorder %s26, 2
    %s28 = scalar_select %p27, 0, %s26
    %s29 = ssub.s32 %s16, %s28
    %p30 = scmp.eq.s32.totalorder %s29, 0
    %s32 = sadd.s32 %s31, 1
    %s33 = scalar_select %p30, %s31, %s32
    %p36 = pneg %p30
    %p37 = scmp.eq.s32.totalorder %s9, 3
    %p38 = por %p36, %p37
    %p39 = scmp.ne.s32.totalorder %s31, %s34
    %p40 = scmp.eq.s32.totalorder %s9, 0
    %p41 = por %p39, %p40
    %p42 = scmp.ne.s32.totalorder %s31, %s34
    %p43 = scmp.eq.s32.totalorder %s14, 3
    %p44 = por %p42, %p43
    %p45 = scmp.ne.s32.totalorder %s34, %s35
    %p46 = scmp.eq.s32.totalorder %s14, 0
    %p47 = por %p45, %p46
    %p48 = scmp.ne.s32.totalorder %s34, %s35
    %p49 = scmp.eq.s32.totalorder %s15, 3
    %p50 = por %p48, %p49
    %p52 = scmp.ne.s32.totalorder %s35, %s51
    %p53 = scmp.eq.s32.totalorder %s15, 0
    %p54 = por %p52, %p53
    %s56 = sadd.s32 %s55, 1
    %p59 = scmp.eq.s32.totalorder %s9, 3
    %p60 = scmp.ne.s32.totalorder %s55, %s57
    %p61 = scmp.eq.s32.totalorder %s9, 0
    %p62 = por %p60, %p61
    %p63 = scmp.ne.s32.totalorder %s55, %s57
    %p64 = scmp.eq.s32.totalorder %s14, 3
    %p65 = por %p63, %p64
    %p66 = scmp.ne.s32.totalorder %s57, %s58
    %p67 = scmp.eq.s32.totalorder %s14, 0
    %p68 = por %p66, %p67
    %p69 = scmp.ne.s32.totalorder %s57, %s58
    %p70 = scmp.eq.s32.totalorder %s15, 3
    %p71 = por %p69, %p70
    %p73 = scmp.ne.s32.totalorder %s58, %s72
    %p74 = scmp.eq.s32.totalorder %s15, 0
    %p75 = por %p73, %p74
    %s77 = sadd.s32 %s76, 1
    %p80 = scmp.eq.s32.totalorder %s9, 3
    %p81 = scmp.ne.s32.totalorder %s76, %s78
    %p82 = scmp.eq.s32.totalorder %s9, 0
    %p83 = por %p81, %p82
    %p84 = scmp.ne.s32.totalorder %s76, %s78
    %p85 = scmp.eq.s32.totalorder %s14, 3
    %p86 = por %p84, %p85
    %p87 = scmp.ne.s32.totalorder %s78, %s79
    %p88 = scmp.eq.s32.totalorder %s14, 0
    %p89 = por %p87, %p88
    %p90 = scmp.ne.s32.totalorder %s78, %s79
    %p91 = scmp.eq.s32.totalorder %s15, 3
    %p92 = por %p90, %p91
    %p94 = scmp.ne.s32.totalorder %s79, %s93
    %p95 = scmp.eq.s32.totalorder %s15, 0
    %p96 = por %p94, %p95
    %s97 = ssub.s32 %s16, %s28
    %s98 = ssub.s32 %s17, %s24
    %s99 = sor.u32 %s97, %s98
    %p100 = scmp.eq.s32.totalorder %s99, 0
    %s102 = sadd.s32 %s101, 1
    %s103 = scalar_select %p100, %s101, %s102
    %p106 = pneg %p100
    %p107 = scmp.eq.s32.totalorder %s9, 3
    %p108 = por %p106, %p107
    %p109 = scmp.ne.s32.totalorder %s101, %s104
    %p110 = scmp.eq.s32.totalorder %s9, 0
    %p111 = por %p109, %p110
    %p112 = scmp.ne.s32.totalorder %s101, %s104
    %p113 = scmp.eq.s32.totalorder %s14, 3
    %p114 = por %p112, %p113
    %p115 = scmp.ne.s32.totalorder %s104, %s105
    %p116 = scmp.eq.s32.totalorder %s14, 0
    %p117 = por %p115, %p116
    %p118 = scmp.ne.s32.totalorder %s104, %s105
    %p119 = scmp.eq.s32.totalorder %s15, 3
    %p120 = por %p118, %p119
    %p122 = scmp.ne.s32.totalorder %s105, %s121
    %p123 = scmp.eq.s32.totalorder %s15, 0
    %p124 = por %p122, %p123
    %p125 = scmp.le.s32.totalorder 1, %s9
    %p126 = scmp.lt.s32.totalorder %s9, 5
    %p127 = pnand %p125, %p126
    %p128 = pneg %p127
    // Predicated region
    $region9: #{_details_net_forward.17} parent=5 // pred_check
      _
    $region10: #{_details_net_forward.17} parent=5 // pred_check_branch
      %130 = sbr.rel (%p127) target = $region12
    $region11: #{_details_net_forward.17} parent=5 // pred_region
      %s131 = ssub.s32 %s9, 1
      // Predicated region
      $region13: #{_details_net_forward.17} parent=11 // pred_check
        %p132 = pneg %p68
      $region14: #{_details_net_forward.17} parent=11 // pred_check_branch
        %134 = sbr.rel (%p132) target = $region16
      $region15: #{_details_net_forward.17} parent=11 // pred_region
        _
      $region16: #{_details_net_forward.17} parent=11 // pred_fallthru
        _
      // Predicated region
      $region17: #{_details_net_forward.17} parent=11 // pred_check
        %p135 = pneg %p89
      $region18: #{_details_net_forward.17} parent=11 // pred_check_branch
        %137 = sbr.rel (%p135) target = $region20
      $region19: #{_details_net_forward.17} parent=11 // pred_region
        _
      $region20: #{_details_net_forward.17} parent=11 // pred_fallthru
        _
    $region12: #{_details_net_forward.17} parent=5 // pred_fallthru
      _
    %p138 = scmp.lt.s32.totalorder %s9, 4
    // Predicated region
    $region21: #{_details_net_forward.17} parent=5 // pred_check
      %p139 = pneg %p138
    $region22: #{_details_net_forward.17} parent=5 // pred_check_branch
      %141 = sbr.rel (%p139) target = $region24
    $region23: #{_details_net_forward.17} parent=5 // pred_region
      // Predicated region
      $region25: #{_details_net_forward.17} parent=23 // pred_check
        %p142 = pneg %p41
      $region26: #{_details_net_forward.17} parent=23 // pred_check_branch
        %144 = sbr.rel (%p142) target = $region28
      $region27: #{_details_net_forward.17} parent=23 // pred_region
        %p145 = scmp.lt.s32.totalorder %s16, 1
        %s146 = scalar_select %p145, %s16, 1
        %s147 = smul.addr %s146, 108
        %s148 = smul.addr %s147, 4
        %s149 = scalar_lea.vmem %s0, %s148
      $region28: #{_details_net_forward.17} parent=23 // pred_fallthru
        _
    $region24: #{_details_net_forward.17} parent=5 // pred_fallthru
      _
    %p150 = scmp.le.s32.totalorder 1, %s9
    %p151 = scmp.lt.s32.totalorder %s9, 5
    %p152 = pnand %p150, %p151
    %p153 = pneg %p152
    // Predicated region
    $region29: #{_details_net_forward.17} parent=5 // pred_check
      _
    $region30: #{_details_net_forward.17} parent=5 // pred_check_branch
      %155 = sbr.rel (%p152) target = $region32
    $region31: #{_details_net_forward.17} parent=5 // pred_region
      %s156 = ssub.s32 %s9, 1
      %p157 = scmp.lt.s32.totalorder %s18, 1
      %s158 = scalar_select %p157, %s18, 1
      %s159 = smul.addr %s158, 108
      %s160 = smul.addr %s159, 4
      %s161 = scalar_lea.vmem %s0, %s160
      %p162 = pneg %p47
      %p163 = pneg %p44
      %p164 = pneg %p68
      %p165 = pneg %p65
      %p166 = pneg %p89
      %p167 = pneg %p86
      %p168 = pneg %p117
      %p169 = pneg %p114
      %s170 = smul.u32 16, %s19
      %p171 = scmp.lt.s32.totalorder %s18, 1
      %s172 = scalar_select %p171, %s18, 1
      %p173 = scmp.lt.s32.totalorder %s170, 31
      %s174 = scalar_select %p173, %s170, 31
      %s175 = smul.addr %s172, 32
      %s176 = sadd.s32 %s174, %s175
      %s177 = smul.addr %s176, 8
      %s178 = scalar_lea.vmem %s3, %s177
      %p179 = scmp.lt.s32.totalorder %s18, 1
      %s180 = scalar_select %p179, %s18, 1
      %s181 = smul.addr %s180, 108
      %s182 = smul.addr %s181, 4
      %s183 = scalar_lea.vmem %s0, %s182
      %s184 = smul.u32 16, %s19
      %p185 = scmp.lt.s32.totalorder %s18, 1
      %s186 = scalar_select %p185, %s18, 1
      %p187 = scmp.lt.s32.totalorder %s184, 31
      %s188 = scalar_select %p187, %s184, 31
      %s189 = smul.addr %s186, 32
      %s190 = sadd.s32 %s188, %s189
      %s191 = smul.addr %s190, 8
      %s192 = scalar_lea.vmem %s3, %s191
      %s193 = smul.u32 16, %s19
      %s195 = smul.u32 %s19, 128
      %s196 = sshra.s32 %s195, 3
      %s197 = sand.u32 %s195, 7
      %s198 = smul.addr %s196, 4
      %s199 = scalar_lea.vmem %s183, %s198
      %v200 = vld [vmem:[%s199] sm:$0xf]
      %v201 = vld [vmem:[%s199 + $0x4] sm:$0xf]
      %v202 = vld [vmem:[%s199 + $0x8] sm:$0xf]
      %v203 = vld [vmem:[%s199 + $0xc] sm:$0xf]
      %v204 = vld [vmem:[%s199 + $0x10] sm:$0xf]
      %v205 = vld [vmem:[%s199 + $0x14] sm:$0xf]
      %v206 = vld [vmem:[%s199 + $0x18] sm:$0xf]
      %v207 = vld [vmem:[%s199 + $0x1c] sm:$0xf]
      %v208 = vld [vmem:[%s199 + $0x20] sm:$0xf]
      %v209 = vld [vmem:[%s199 + $0x24] sm:$0xf]
      %v210 = vld [vmem:[%s199 + $0x28] sm:$0xf]
      %v211 = vld [vmem:[%s199 + $0x2c] sm:$0xf]
      %v212 = vld [vmem:[%s199 + $0x30] sm:$0xf]
      %v213 = vld [vmem:[%s199 + $0x34] sm:$0xf]
      %v214 = vld [vmem:[%s199 + $0x38] sm:$0xf]
      %v215 = vld [vmem:[%s199 + $0x3c] sm:$0xf]
      %v216 = vld [vmem:[%s1] sm:$0xf]
      %v217 = vld [vmem:[%s1 + $0x4] sm:$0xf]
      %v218 = vld [vmem:[%s1 + $0x8] sm:$0xf]
      %v219 = vld [vmem:[%s1 + $0xc] sm:$0xf]
      %v220 = vld [vmem:[%s1 + $0x10] sm:$0xf]
      %v221 = vld [vmem:[%s1 + $0x14] sm:$0xf]
      %v222 = vld [vmem:[%s1 + $0x18] sm:$0xf]
      %v223 = vld [vmem:[%s1 + $0x1c] sm:$0xf]
      %s224 = sadd.s32 %s196, 36
      %s225 = smul.addr %s224, 4
      %s226 = scalar_lea.vmem %s183, %s225
      %v227 = vld [vmem:[%s226] sm:$0xf]
      %v228 = vld [vmem:[%s226 + $0x4] sm:$0xf]
      %v229 = vld [vmem:[%s226 + $0x8] sm:$0xf]
      %v230 = vld [vmem:[%s226 + $0xc] sm:$0xf]
      %v231 = vld [vmem:[%s226 + $0x10] sm:$0xf]
      %v232 = vld [vmem:[%s226 + $0x14] sm:$0xf]
      %v233 = vld [vmem:[%s226 + $0x18] sm:$0xf]
      %v234 = vld [vmem:[%s226 + $0x1c] sm:$0xf]
      %v235 = vld [vmem:[%s226 + $0x20] sm:$0xf]
      %v236 = vld [vmem:[%s226 + $0x24] sm:$0xf]
      %v237 = vld [vmem:[%s226 + $0x28] sm:$0xf]
      %v238 = vld [vmem:[%s226 + $0x2c] sm:$0xf]
      %v239 = vld [vmem:[%s226 + $0x30] sm:$0xf]
      %v240 = vld [vmem:[%s226 + $0x34] sm:$0xf]
      %v241 = vld [vmem:[%s226 + $0x38] sm:$0xf]
      %v242 = vld [vmem:[%s226 + $0x3c] sm:$0xf]
      %s243 = scalar_lea.vmem %s1, 32
      %v244 = vld [vmem:[%s243] sm:$0xf]
      %v245 = vld [vmem:[%s243 + $0x4] sm:$0xf]
      %v246 = vld [vmem:[%s243 + $0x8] sm:$0xf]
      %v247 = vld [vmem:[%s243 + $0xc] sm:$0xf]
      %v248 = vld [vmem:[%s243 + $0x10] sm:$0xf]
      %v249 = vld [vmem:[%s243 + $0x14] sm:$0xf]
      %v250 = vld [vmem:[%s243 + $0x18] sm:$0xf]
      %v251 = vld [vmem:[%s243 + $0x1c] sm:$0xf]
      %v268 = vunpack.c.l.b16 %v227
      %v269 = vunpack.c.l.b16 %v228
      %v270 = vunpack.c.l.b16 %v229
      %v271 = vunpack.c.l.b16 %v230
      %v272 = vunpack.c.l.b16 %v231
      %v273 = vunpack.c.l.b16 %v232
      %v274 = vunpack.c.l.b16 %v233
      %v275 = vunpack.c.l.b16 %v234
      %v276 = vunpack.c.l.b16 %v235
      %v277 = vunpack.c.l.b16 %v236
      %v278 = vunpack.c.l.b16 %v237
      %v279 = vunpack.c.l.b16 %v238
      %v280 = vunpack.c.l.b16 %v239
      %v281 = vunpack.c.l.b16 %v240
      %v282 = vunpack.c.l.b16 %v241
      %v283 = vunpack.c.l.b16 %v242
      %v284 = vpack.c.b16 %v269, %v268
      %v285 = vpack.c.b16 %v271, %v270
      %v286 = vpack.c.b16 %v273, %v272
      %v287 = vpack.c.b16 %v275, %v274
      %v288 = vpack.c.b16 %v277, %v276
      %v289 = vpack.c.b16 %v279, %v278
      %v290 = vpack.c.b16 %v281, %v280
      %v291 = vpack.c.b16 %v283, %v282
      %v300 = vunpack.c.l.b16 %v244
      %v301 = vunpack.c.l.b16 %v245
      %v302 = vunpack.c.l.b16 %v246
      %v303 = vunpack.c.l.b16 %v247
      %v304 = vunpack.c.l.b16 %v248
      %v305 = vunpack.c.l.b16 %v249
      %v306 = vunpack.c.l.b16 %v250
      %v307 = vunpack.c.l.b16 %v251
      %v308 = vpack.c.b16 %v301, %v300
      %v309 = vpack.c.b16 %v303, %v302
      %v310 = vpack.c.b16 %v305, %v304
      %v311 = vpack.c.b16 %v307, %v306
      %vm316 = vcmask 523264
      %v318 = vsel %vm316, %v284, 0
      %v321 = vsel %vm316, %v285, 0
      %v324 = vsel %vm316, %v286, 0
      %v327 = vsel %vm316, %v287, 0
      %v330 = vsel %vm316, %v288, 0
      %v333 = vsel %vm316, %v289, 0
      %v336 = vsel %vm316, %v290, 0
      %v339 = vsel %vm316, %v291, 0
      %341 = vmatpush.bf16.msra.mxu0 0
      %342 = vmatpush.bf16.msra.mxu0 0
      %343 = vmatpush.bf16.msra.mxu0 0
      %344 = vmatpush.bf16.msra.mxu0 0
      %345 = vmatpush.bf16.msra.mxu0 %v311
      %346 = vmatpush.bf16.msra.mxu0 %v310
      %347 = vmatpush.bf16.msra.mxu0 %v309
      %348 = vmatpush.bf16.msra.mxu0 %v308
      %349 = vmatmul.bf16.gmra.mxu0 %v318
      %v350 = vpop.f32.mrf.mxu0
      %v351 = vadd.f32 0.0, %v350
      %v352 = vpop.f32.mrf.mxu0
      %v353 = vadd.f32 0.0, %v352
      %354 = vmatmul.bf16.gmra.mxu0 %v321
      %v355 = vpop.f32.mrf.mxu0
      %v356 = vadd.f32 0.0, %v355
      %v357 = vpop.f32.mrf.mxu0
      %v358 = vadd.f32 0.0, %v357
      %359 = vmatmul.bf16.gmra.mxu0 %v324
      %v360 = vpop.f32.mrf.mxu0
      %v361 = vadd.f32 0.0, %v360
      %v362 = vpop.f32.mrf.mxu0
      %v363 = vadd.f32 0.0, %v362
      %364 = vmatmul.bf16.gmra.mxu0 %v327
      %v365 = vpop.f32.mrf.mxu0
      %v366 = vadd.f32 0.0, %v365
      %v367 = vpop.f32.mrf.mxu0
      %v368 = vadd.f32 0.0, %v367
      %369 = vmatmul.bf16.gmra.mxu0 %v330
      %v370 = vpop.f32.mrf.mxu0
      %v371 = vadd.f32 0.0, %v370
      %v372 = vpop.f32.mrf.mxu0
      %v373 = vadd.f32 0.0, %v372
      %374 = vmatmul.bf16.gmra.mxu0 %v333
      %v375 = vpop.f32.mrf.mxu0
      %v376 = vadd.f32 0.0, %v375
      %v377 = vpop.f32.mrf.mxu0
      %v378 = vadd.f32 0.0, %v377
      %379 = vmatmul.bf16.gmra.mxu0 %v336
      %v380 = vpop.f32.mrf.mxu0
      %v381 = vadd.f32 0.0, %v380
      %v382 = vpop.f32.mrf.mxu0
      %v383 = vadd.f32 0.0, %v382
      %384 = vmatmul.bf16.gmra.mxu0 %v339
      %v385 = vpop.f32.mrf.mxu0
      %v386 = vadd.f32 0.0, %v385
      %v387 = vpop.f32.mrf.mxu0
      %v388 = vadd.f32 0.0, %v387
      %389 = vdwg.mxu0
      %v406 = vunpack.c.l.b16 %v200
      %v407 = vunpack.c.l.b16 %v201
      %v408 = vunpack.c.l.b16 %v202
      %v409 = vunpack.c.l.b16 %v203
      %v410 = vunpack.c.l.b16 %v204
      %v411 = vunpack.c.l.b16 %v205
      %v412 = vunpack.c.l.b16 %v206
      %v413 = vunpack.c.l.b16 %v207
      %v414 = vunpack.c.l.b16 %v208
      %v415 = vunpack.c.l.b16 %v209
      %v416 = vunpack.c.l.b16 %v210
      %v417 = vunpack.c.l.b16 %v211
      %v418 = vunpack.c.l.b16 %v212
      %v419 = vunpack.c.l.b16 %v213
      %v420 = vunpack.c.l.b16 %v214
      %v421 = vunpack.c.l.b16 %v215
      %v422 = vpack.c.b16 %v407, %v406
      %v423 = vpack.c.b16 %v409, %v408
      %v424 = vpack.c.b16 %v411, %v410
      %v425 = vpack.c.b16 %v413, %v412
      %v426 = vpack.c.b16 %v415, %v414
      %v427 = vpack.c.b16 %v417, %v416
      %v428 = vpack.c.b16 %v419, %v418
      %v429 = vpack.c.b16 %v421, %v420
      %v438 = vunpack.c.l.b16 %v216
      %v439 = vunpack.c.l.b16 %v217
      %v440 = vunpack.c.l.b16 %v218
      %v441 = vunpack.c.l.b16 %v219
      %v442 = vunpack.c.l.b16 %v220
      %v443 = vunpack.c.l.b16 %v221
      %v444 = vunpack.c.l.b16 %v222
      %v445 = vunpack.c.l.b16 %v223
      %v446 = vpack.c.b16 %v439, %v438
      %v447 = vpack.c.b16 %v441, %v440
      %v448 = vpack.c.b16 %v443, %v442
      %v449 = vpack.c.b16 %v445, %v444
      %v455 = vsel %vm316, %v422, 0
      %v458 = vsel %vm316, %v423, 0
      %v461 = vsel %vm316, %v424, 0
      %v464 = vsel %vm316, %v425, 0
      %v467 = vsel %vm316, %v426, 0
      %v470 = vsel %vm316, %v427, 0
      %v473 = vsel %vm316, %v428, 0
      %v476 = vsel %vm316, %v429, 0
      %478 = vmatpush.bf16.msra.mxu0 0
      %479 = vmatpush.bf16.msra.mxu0 0
      %480 = vmatpush.bf16.msra.mxu0 0
      %481 = vmatpush.bf16.msra.mxu0 0
      %482 = vmatpush.bf16.msra.mxu0 %v449
      %483 = vmatpush.bf16.msra.mxu0 %v448
      %484 = vmatpush.bf16.msra.mxu0 %v447
      %485 = vmatpush.bf16.msra.mxu0 %v446
      %486 = vmatmul.bf16.gmra.mxu0 %v455
      %v487 = vpop.f32.mrf.mxu0
      %v488 = vadd.f32 %v351, %v487
      %v489 = vpop.f32.mrf.mxu0
      %v490 = vadd.f32 %v353, %v489
      %491 = vmatmul.bf16.gmra.mxu0 %v458
      %v492 = vpop.f32.mrf.mxu0
      %v493 = vadd.f32 %v356, %v492
      %v494 = vpop.f32.mrf.mxu0
      %v495 = vadd.f32 %v358, %v494
      %496 = vmatmul.bf16.gmra.mxu0 %v461
      %v497 = vpop.f32.mrf.mxu0
      %v498 = vadd.f32 %v361, %v497
      %v499 = vpop.f32.mrf.mxu0
      %v500 = vadd.f32 %v363, %v499
      %501 = vmatmul.bf16.gmra.mxu0 %v464
      %v502 = vpop.f32.mrf.mxu0
      %v503 = vadd.f32 %v366, %v502
      %v504 = vpop.f32.mrf.mxu0
      %v505 = vadd.f32 %v368, %v504
      %506 = vmatmul.bf16.gmra.mxu0 %v467
      %v507 = vpop.f32.mrf.mxu0
      %v508 = vadd.f32 %v371, %v507
      %v509 = vpop.f32.mrf.mxu0
      %v510 = vadd.f32 %v373, %v509
      %511 = vmatmul.bf16.gmra.mxu0 %v470
      %v512 = vpop.f32.mrf.mxu0
      %v513 = vadd.f32 %v376, %v512
      %v514 = vpop.f32.mrf.mxu0
      %v515 = vadd.f32 %v378, %v514
      %516 = vmatmul.bf16.gmra.mxu0 %v473
      %v517 = vpop.f32.mrf.mxu0
      %v518 = vadd.f32 %v381, %v517
      %v519 = vpop.f32.mrf.mxu0
      %v520 = vadd.f32 %v383, %v519
      %521 = vmatmul.bf16.gmra.mxu0 %v476
      %v522 = vpop.f32.mrf.mxu0
      %v523 = vadd.f32 %v386, %v522
      %v524 = vpop.f32.mrf.mxu0
      %v525 = vadd.f32 %v388, %v524
      %526 = vdwg.mxu0
      %s527 = sadd.s32 %s196, 72
      %s528 = smul.addr %s527, 4
      %s529 = scalar_lea.vmem %s183, %s528
      %v530 = vld [vmem:[%s529] sm:$0xf]
      %v531 = vld [vmem:[%s529 + $0x4] sm:$0xf]
      %v532 = vld [vmem:[%s529 + $0x8] sm:$0xf]
      %v533 = vld [vmem:[%s529 + $0xc] sm:$0xf]
      %v534 = vld [vmem:[%s529 + $0x10] sm:$0xf]
      %v535 = vld [vmem:[%s529 + $0x14] sm:$0xf]
      %v536 = vld [vmem:[%s529 + $0x18] sm:$0xf]
      %v537 = vld [vmem:[%s529 + $0x1c] sm:$0xf]
      %v538 = vld [vmem:[%s529 + $0x20] sm:$0xf]
      %v539 = vld [vmem:[%s529 + $0x24] sm:$0xf]
      %v540 = vld [vmem:[%s529 + $0x28] sm:$0xf]
      %v541 = vld [vmem:[%s529 + $0x2c] sm:$0xf]
      %v542 = vld [vmem:[%s529 + $0x30] sm:$0xf]
      %v543 = vld [vmem:[%s529 + $0x34] sm:$0xf]
      %v544 = vld [vmem:[%s529 + $0x38] sm:$0xf]
      %v545 = vld [vmem:[%s529 + $0x3c] sm:$0xf]
      %s546 = scalar_lea.vmem %s1, 64
      %v547 = vld [vmem:[%s546] sm:$0xf]
      %v548 = vld [vmem:[%s546 + $0x4] sm:$0xf]
      %v549 = vld [vmem:[%s546 + $0x8] sm:$0xf]
      %v550 = vld [vmem:[%s546 + $0xc] sm:$0xf]
      %v551 = vld [vmem:[%s546 + $0x10] sm:$0xf]
      %v552 = vld [vmem:[%s546 + $0x14] sm:$0xf]
      %v553 = vld [vmem:[%s546 + $0x18] sm:$0xf]
      %v554 = vld [vmem:[%s546 + $0x1c] sm:$0xf]
      %v571 = vunpack.c.l.b16 %v530
      %v572 = vunpack.c.l.b16 %v531
      %v573 = vunpack.c.l.b16 %v532
      %v574 = vunpack.c.l.b16 %v533
      %v575 = vunpack.c.l.b16 %v534
      %v576 = vunpack.c.l.b16 %v535
      %v577 = vunpack.c.l.b16 %v536
      %v578 = vunpack.c.l.b16 %v537
      %v579 = vunpack.c.l.b16 %v538
      %v580 = vunpack.c.l.b16 %v539
      %v581 = vunpack.c.l.b16 %v540
      %v582 = vunpack.c.l.b16 %v541
      %v583 = vunpack.c.l.b16 %v542
      %v584 = vunpack.c.l.b16 %v543
      %v585 = vunpack.c.l.b16 %v544
      %v586 = vunpack.c.l.b16 %v545
      %v587 = vpack.c.b16 %v572, %v571
      %v588 = vpack.c.b16 %v574, %v573
      %v589 = vpack.c.b16 %v576, %v575
      %v590 = vpack.c.b16 %v578, %v577
      %v591 = vpack.c.b16 %v580, %v579
      %v592 = vpack.c.b16 %v582, %v581
      %v593 = vpack.c.b16 %v584, %v583
      %v594 = vpack.c.b16 %v586, %v585
      %v603 = vunpack.c.l.b16 %v547
      %v604 = vunpack.c.l.b16 %v548
      %v605 = vunpack.c.l.b16 %v549
      %v606 = vunpack.c.l.b16 %v550
      %v607 = vunpack.c.l.b16 %v551
      %v608 = vunpack.c.l.b16 %v552
      %v609 = vunpack.c.l.b16 %v553
      %v610 = vunpack.c.l.b16 %v554
      %v611 = vpack.c.b16 %v604, %v603
      %v612 = vpack.c.b16 %v606, %v605
      %v613 = vpack.c.b16 %v608, %v607
      %v614 = vpack.c.b16 %v610, %v609
      %v620 = vsel %vm316, %v587, 0
      %v623 = vsel %vm316, %v588, 0
      %v626 = vsel %vm316, %v589, 0
      %v629 = vsel %vm316, %v590, 0
      %v632 = vsel %vm316, %v591, 0
      %v635 = vsel %vm316, %v592, 0
      %v638 = vsel %vm316, %v593, 0
      %v641 = vsel %vm316, %v594, 0
      %643 = vmatpush.bf16.msra.mxu0 0
      %644 = vmatpush.bf16.msra.mxu0 0
      %645 = vmatpush.bf16.msra.mxu0 0
      %646 = vmatpush.bf16.msra.mxu0 0
      %647 = vmatpush.bf16.msra.mxu0 %v614
      %648 = vmatpush.bf16.msra.mxu0 %v613
      %649 = vmatpush.bf16.msra.mxu0 %v612
      %650 = vmatpush.bf16.msra.mxu0 %v611
      %651 = vmatmul.bf16.gmra.mxu0 %v620
      %v652 = vpop.f32.mrf.mxu0
      %v653 = vadd.f32 0.0, %v652
      %v654 = vpop.f32.mrf.mxu0
      %v655 = vadd.f32 0.0, %v654
      %656 = vmatmul.bf16.gmra.mxu0 %v623
      %v657 = vpop.f32.mrf.mxu0
      %v658 = vadd.f32 0.0, %v657
      %v659 = vpop.f32.mrf.mxu0
      %v660 = vadd.f32 0.0, %v659
      %661 = vmatmul.bf16.gmra.mxu0 %v626
      %v662 = vpop.f32.mrf.mxu0
      %v663 = vadd.f32 0.0, %v662
      %v664 = vpop.f32.mrf.mxu0
      %v665 = vadd.f32 0.0, %v664
      %666 = vmatmul.bf16.gmra.mxu0 %v629
      %v667 = vpop.f32.mrf.mxu0
      %v668 = vadd.f32 0.0, %v667
      %v669 = vpop.f32.mrf.mxu0
      %v670 = vadd.f32 0.0, %v669
      %671 = vmatmul.bf16.gmra.mxu0 %v632
      %v672 = vpop.f32.mrf.mxu0
      %v673 = vadd.f32 0.0, %v672
      %v674 = vpop.f32.mrf.mxu0
      %v675 = vadd.f32 0.0, %v674
      %676 = vmatmul.bf16.gmra.mxu0 %v635
      %v677 = vpop.f32.mrf.mxu0
      %v678 = vadd.f32 0.0, %v677
      %v679 = vpop.f32.mrf.mxu0
      %v680 = vadd.f32 0.0, %v679
      %681 = vmatmul.bf16.gmra.mxu0 %v638
      %v682 = vpop.f32.mrf.mxu0
      %v683 = vadd.f32 0.0, %v682
      %v684 = vpop.f32.mrf.mxu0
      %v685 = vadd.f32 0.0, %v684
      %686 = vmatmul.bf16.gmra.mxu0 %v641
      %v687 = vpop.f32.mrf.mxu0
      %v688 = vadd.f32 0.0, %v687
      %v689 = vpop.f32.mrf.mxu0
      %v690 = vadd.f32 0.0, %v689
      %691 = vdwg.mxu0
      %v692 = vadd.f32 %v488, %v653
      %v693 = vadd.f32 %v490, %v655
      %v694 = vadd.f32 %v493, %v658
      %v695 = vadd.f32 %v495, %v660
      %v696 = vadd.f32 %v498, %v663
      %v697 = vadd.f32 %v500, %v665
      %v698 = vadd.f32 %v503, %v668
      %v699 = vadd.f32 %v505, %v670
      %v700 = vadd.f32 %v508, %v673
      %v701 = vadd.f32 %v510, %v675
      %v702 = vadd.f32 %v513, %v678
      %v703 = vadd.f32 %v515, %v680
      %v704 = vadd.f32 %v518, %v683
      %v705 = vadd.f32 %v520, %v685
      %v706 = vadd.f32 %v523, %v688
      %v707 = vadd.f32 %v525, %v690
      %s708 = sadd.s32 %s195, 16
      %s709 = sshra.s32 %s708, 3
      %s710 = sand.u32 %s708, 7
      %s711 = smul.addr %s709, 4
      %s712 = scalar_lea.vmem %s183, %s711
      %v713 = vld [vmem:[%s712] sm:$0xf]
      %v714 = vld [vmem:[%s712 + $0x4] sm:$0xf]
      %v715 = vld [vmem:[%s712 + $0x8] sm:$0xf]
      %v716 = vld [vmem:[%s712 + $0xc] sm:$0xf]
      %v717 = vld [vmem:[%s712 + $0x10] sm:$0xf]
      %v718 = vld [vmem:[%s712 + $0x14] sm:$0xf]
      %v719 = vld [vmem:[%s712 + $0x18] sm:$0xf]
      %v720 = vld [vmem:[%s712 + $0x1c] sm:$0xf]
      %v721 = vld [vmem:[%s712 + $0x20] sm:$0xf]
      %v722 = vld [vmem:[%s712 + $0x24] sm:$0xf]
      %v723 = vld [vmem:[%s712 + $0x28] sm:$0xf]
      %v724 = vld [vmem:[%s712 + $0x2c] sm:$0xf]
      %v725 = vld [vmem:[%s712 + $0x30] sm:$0xf]
      %v726 = vld [vmem:[%s712 + $0x34] sm:$0xf]
      %v727 = vld [vmem:[%s712 + $0x38] sm:$0xf]
      %v728 = vld [vmem:[%s712 + $0x3c] sm:$0xf]
      %s729 = scalar_lea.vmem %s1, 96
      %v730 = vld [vmem:[%s729] sm:$0xf]
      %v731 = vld [vmem:[%s729 + $0x4] sm:$0xf]
      %v732 = vld [vmem:[%s729 + $0x8] sm:$0xf]
      %v733 = vld [vmem:[%s729 + $0xc] sm:$0xf]
      %v734 = vld [vmem:[%s729 + $0x10] sm:$0xf]
      %v735 = vld [vmem:[%s729 + $0x14] sm:$0xf]
      %v736 = vld [vmem:[%s729 + $0x18] sm:$0xf]
      %v737 = vld [vmem:[%s729 + $0x1c] sm:$0xf]
      %v754 = vunpack.c.l.b16 %v713
      %v755 = vunpack.c.l.b16 %v714
      %v756 = vunpack.c.l.b16 %v715
      %v757 = vunpack.c.l.b16 %v716
      %v758 = vunpack.c.l.b16 %v717
      %v759 = vunpack.c.l.b16 %v718
      %v760 = vunpack.c.l.b16 %v719
      %v761 = vunpack.c.l.b16 %v720
      %v762 = vunpack.c.l.b16 %v721
      %v763 = vunpack.c.l.b16 %v722
      %v764 = vunpack.c.l.b16 %v723
      %v765 = vunpack.c.l.b16 %v724
      %v766 = vunpack.c.l.b16 %v725
      %v767 = vunpack.c.l.b16 %v726
      %v768 = vunpack.c.l.b16 %v727
      %v769 = vunpack.c.l.b16 %v728
      %v770 = vpack.c.b16 %v755, %v754
      %v771 = vpack.c.b16 %v757, %v756
      %v772 = vpack.c.b16 %v759, %v758
      %v773 = vpack.c.b16 %v761, %v760
      %v774 = vpack.c.b16 %v763, %v762
      %v775 = vpack.c.b16 %v765, %v764
      %v776 = vpack.c.b16 %v767, %v766
      %v777 = vpack.c.b16 %v769, %v768
      %v786 = vunpack.c.l.b16 %v730
      %v787 = vunpack.c.l.b16 %v731
      %v788 = vunpack.c.l.b16 %v732
      %v789 = vunpack.c.l.b16 %v733
      %v790 = vunpack.c.l.b16 %v734
      %v791 = vunpack.c.l.b16 %v735
      %v792 = vunpack.c.l.b16 %v736
      %v793 = vunpack.c.l.b16 %v737
      %v794 = vpack.c.b16 %v787, %v786
      %v795 = vpack.c.b16 %v789, %v788
      %v796 = vpack.c.b16 %v791, %v790
      %v797 = vpack.c.b16 %v793, %v792
      %v803 = vsel %vm316, %v770, 0
      %v806 = vsel %vm316, %v771, 0
      %v809 = vsel %vm316, %v772, 0
      %v812 = vsel %vm316, %v773, 0
      %v815 = vsel %vm316, %v774, 0
      %v818 = vsel %vm316, %v775, 0
      %v821 = vsel %vm316, %v776, 0
      %v824 = vsel %vm316, %v777, 0
      %826 = vmatpush.bf16.msra.mxu0 0
      %827 = vmatpush.bf16.msra.mxu0 0
      %828 = vmatpush.bf16.msra.mxu0 0
      %829 = vmatpush.bf16.msra.mxu0 0
      %830 = vmatpush.bf16.msra.mxu0 %v797
      %831 = vmatpush.bf16.msra.mxu0 %v796
      %832 = vmatpush.bf16.msra.mxu0 %v795
      %833 = vmatpush.bf16.msra.mxu0 %v794
      %834 = vmatmul.bf16.gmra.mxu0 %v803
      %v835 = vpop.f32.mrf.mxu0
      %v836 = vadd.f32 0.0, %v835
      %v837 = vpop.f32.mrf.mxu0
      %v838 = vadd.f32 0.0, %v837
      %839 = vmatmul.bf16.gmra.mxu0 %v806
      %v840 = vpop.f32.mrf.mxu0
      %v841 = vadd.f32 0.0, %v840
      %v842 = vpop.f32.mrf.mxu0
      %v843 = vadd.f32 0.0, %v842
      %844 = vmatmul.bf16.gmra.mxu0 %v809
      %v845 = vpop.f32.mrf.mxu0
      %v846 = vadd.f32 0.0, %v845
      %v847 = vpop.f32.mrf.mxu0
      %v848 = vadd.f32 0.0, %v847
      %849 = vmatmul.bf16.gmra.mxu0 %v812
      %v850 = vpop.f32.mrf.mxu0
      %v851 = vadd.f32 0.0, %v850
      %v852 = vpop.f32.mrf.mxu0
      %v853 = vadd.f32 0.0, %v852
      %854 = vmatmul.bf16.gmra.mxu0 %v815
      %v855 = vpop.f32.mrf.mxu0
      %v856 = vadd.f32 0.0, %v855
      %v857 = vpop.f32.mrf.mxu0
      %v858 = vadd.f32 0.0, %v857
      %859 = vmatmul.bf16.gmra.mxu0 %v818
      %v860 = vpop.f32.mrf.mxu0
      %v861 = vadd.f32 0.0, %v860
      %v862 = vpop.f32.mrf.mxu0
      %v863 = vadd.f32 0.0, %v862
      %864 = vmatmul.bf16.gmra.mxu0 %v821
      %v865 = vpop.f32.mrf.mxu0
      %v866 = vadd.f32 0.0, %v865
      %v867 = vpop.f32.mrf.mxu0
      %v868 = vadd.f32 0.0, %v867
      %869 = vmatmul.bf16.gmra.mxu0 %v824
      %v870 = vpop.f32.mrf.mxu0
      %v871 = vadd.f32 0.0, %v870
      %v872 = vpop.f32.mrf.mxu0
      %v873 = vadd.f32 0.0, %v872
      %874 = vdwg.mxu0
      %v875 = vadd.f32 %v692, %v836
      %v876 = vadd.f32 %v693, %v838
      %v877 = vadd.f32 %v694, %v841
      %v878 = vadd.f32 %v695, %v843
      %v879 = vadd.f32 %v696, %v846
      %v880 = vadd.f32 %v697, %v848
      %v881 = vadd.f32 %v698, %v851
      %v882 = vadd.f32 %v699, %v853
      %v883 = vadd.f32 %v700, %v856
      %v884 = vadd.f32 %v701, %v858
      %v885 = vadd.f32 %v702, %v861
      %v886 = vadd.f32 %v703, %v863
      %v887 = vadd.f32 %v704, %v866
      %v888 = vadd.f32 %v705, %v868
      %v889 = vadd.f32 %v706, %v871
      %v890 = vadd.f32 %v707, %v873
      %s891 = sadd.s32 %s709, 36
      %s892 = smul.addr %s891, 4
      %s893 = scalar_lea.vmem %s183, %s892
      %v894 = vld [vmem:[%s893] sm:$0xf]
      %v895 = vld [vmem:[%s893 + $0x4] sm:$0xf]
      %v896 = vld [vmem:[%s893 + $0x8] sm:$0xf]
      %v897 = vld [vmem:[%s893 + $0xc] sm:$0xf]
      %v898 = vld [vmem:[%s893 + $0x10] sm:$0xf]
      %v899 = vld [vmem:[%s893 + $0x14] sm:$0xf]
      %v900 = vld [vmem:[%s893 + $0x18] sm:$0xf]
      %v901 = vld [vmem:[%s893 + $0x1c] sm:$0xf]
      %v902 = vld [vmem:[%s893 + $0x20] sm:$0xf]
      %v903 = vld [vmem:[%s893 + $0x24] sm:$0xf]
      %v904 = vld [vmem:[%s893 + $0x28] sm:$0xf]
      %v905 = vld [vmem:[%s893 + $0x2c] sm:$0xf]
      %v906 = vld [vmem:[%s893 + $0x30] sm:$0xf]
      %v907 = vld [vmem:[%s893 + $0x34] sm:$0xf]
      %v908 = vld [vmem:[%s893 + $0x38] sm:$0xf]
      %v909 = vld [vmem:[%s893 + $0x3c] sm:$0xf]
      %s910 = scalar_lea.vmem %s1, 128
      %v911 = vld [vmem:[%s910] sm:$0xf]
      %v912 = vld [vmem:[%s910 + $0x4] sm:$0xf]
      %v913 = vld [vmem:[%s910 + $0x8] sm:$0xf]
      %v914 = vld [vmem:[%s910 + $0xc] sm:$0xf]
      %v915 = vld [vmem:[%s910 + $0x10] sm:$0xf]
      %v916 = vld [vmem:[%s910 + $0x14] sm:$0xf]
      %v917 = vld [vmem:[%s910 + $0x18] sm:$0xf]
      %v918 = vld [vmem:[%s910 + $0x1c] sm:$0xf]
      %v935 = vunpack.c.l.b16 %v894
      %v936 = vunpack.c.l.b16 %v895
      %v937 = vunpack.c.l.b16 %v896
      %v938 = vunpack.c.l.b16 %v897
      %v939 = vunpack.c.l.b16 %v898
      %v940 = vunpack.c.l.b16 %v899
      %v941 = vunpack.c.l.b16 %v900
      %v942 = vunpack.c.l.b16 %v901
      %v943 = vunpack.c.l.b16 %v902
      %v944 = vunpack.c.l.b16 %v903
      %v945 = vunpack.c.l.b16 %v904
      %v946 = vunpack.c.l.b16 %v905
      %v947 = vunpack.c.l.b16 %v906
      %v948 = vunpack.c.l.b16 %v907
      %v949 = vunpack.c.l.b16 %v908
      %v950 = vunpack.c.l.b16 %v909
      %v951 = vpack.c.b16 %v936, %v935
      %v952 = vpack.c.b16 %v938, %v937
      %v953 = vpack.c.b16 %v940, %v939
      %v954 = vpack.c.b16 %v942, %v941
      %v955 = vpack.c.b16 %v944, %v943
      %v956 = vpack.c.b16 %v946, %v945
      %v957 = vpack.c.b16 %v948, %v947
      %v958 = vpack.c.b16 %v950, %v949
      %v967 = vunpack.c.l.b16 %v911
      %v968 = vunpack.c.l.b16 %v912
      %v969 = vunpack.c.l.b16 %v913
      %v970 = vunpack.c.l.b16 %v914
      %v971 = vunpack.c.l.b16 %v915
      %v972 = vunpack.c.l.b16 %v916
      %v973 = vunpack.c.l.b16 %v917
      %v974 = vunpack.c.l.b16 %v918
      %v975 = vpack.c.b16 %v968, %v967
      %v976 = vpack.c.b16 %v970, %v969
      %v977 = vpack.c.b16 %v972, %v971
      %v978 = vpack.c.b16 %v974, %v973
      %v984 = vsel %vm316, %v951, 0
      %v987 = vsel %vm316, %v952, 0
      %v990 = vsel %vm316, %v953, 0
      %v993 = vsel %vm316, %v954, 0
      %v996 = vsel %vm316, %v955, 0
      %v999 = vsel %vm316, %v956, 0
      %v1002 = vsel %vm316, %v957, 0
      %v1005 = vsel %vm316, %v958, 0
      %1007 = vmatpush.bf16.msra.mxu0 0
      %1008 = vmatpush.bf16.msra.mxu0 0
      %1009 = vmatpush.bf16.msra.mxu0 0
      %1010 = vmatpush.bf16.msra.mxu0 0
      %1011 = vmatpush.bf16.msra.mxu0 %v978
      %1012 = vmatpush.bf16.msra.mxu0 %v977
      %1013 = vmatpush.bf16.msra.mxu0 %v976
      %1014 = vmatpush.bf16.msra.mxu0 %v975
      %1015 = vmatmul.bf16.gmra.mxu0 %v984
      %v1016 = vpop.f32.mrf.mxu0
      %v1017 = vadd.f32 0.0, %v1016
      %v1018 = vpop.f32.mrf.mxu0
      %v1019 = vadd.f32 0.0, %v1018
      %1020 = vmatmul.bf16.gmra.mxu0 %v987
      %v1021 = vpop.f32.mrf.mxu0
      %v1022 = vadd.f32 0.0, %v1021
      %v1023 = vpop.f32.mrf.mxu0
      %v1024 = vadd.f32 0.0, %v1023
      %1025 = vmatmul.bf16.gmra.mxu0 %v990
      %v1026 = vpop.f32.mrf.mxu0
      %v1027 = vadd.f32 0.0, %v1026
      %v1028 = vpop.f32.mrf.mxu0
      %v1029 = vadd.f32 0.0, %v1028
      %1030 = vmatmul.bf16.gmra.mxu0 %v993
      %v1031 = vpop.f32.mrf.mxu0
      %v1032 = vadd.f32 0.0, %v1031
      %v1033 = vpop.f32.mrf.mxu0
      %v1034 = vadd.f32 0.0, %v1033
      %1035 = vmatmul.bf16.gmra.mxu0 %v996
      %v1036 = vpop.f32.mrf.mxu0
      %v1037 = vadd.f32 0.0, %v1036
      %v1038 = vpop.f32.mrf.mxu0
      %v1039 = vadd.f32 0.0, %v1038
      %1040 = vmatmul.bf16.gmra.mxu0 %v999
      %v1041 = vpop.f32.mrf.mxu0
      %v1042 = vadd.f32 0.0, %v1041
      %v1043 = vpop.f32.mrf.mxu0
      %v1044 = vadd.f32 0.0, %v1043
      %1045 = vmatmul.bf16.gmra.mxu0 %v1002
      %v1046 = vpop.f32.mrf.mxu0
      %v1047 = vadd.f32 0.0, %v1046
      %v1048 = vpop.f32.mrf.mxu0
      %v1049 = vadd.f32 0.0, %v1048
      %1050 = vmatmul.bf16.gmra.mxu0 %v1005
      %v1051 = vpop.f32.mrf.mxu0
      %v1052 = vadd.f32 0.0, %v1051
      %v1053 = vpop.f32.mrf.mxu0
      %v1054 = vadd.f32 0.0, %v1053
      %1055 = vdwg.mxu0
      %v1056 = vadd.f32 %v875, %v1017
      %v1057 = vadd.f32 %v876, %v1019
      %v1058 = vadd.f32 %v877, %v1022
      %v1059 = vadd.f32 %v878, %v1024
      %v1060 = vadd.f32 %v879, %v1027
      %v1061 = vadd.f32 %v880, %v1029
      %v1062 = vadd.f32 %v881, %v1032
      %v1063 = vadd.f32 %v882, %v1034
      %v1064 = vadd.f32 %v883, %v1037
      %v1065 = vadd.f32 %v884, %v1039
      %v1066 = vadd.f32 %v885, %v1042
      %v1067 = vadd.f32 %v886, %v1044
      %v1068 = vadd.f32 %v887, %v1047
      %v1069 = vadd.f32 %v888, %v1049
      %v1070 = vadd.f32 %v889, %v1052
      %v1071 = vadd.f32 %v890, %v1054
      %s1072 = sadd.s32 %s709, 72
      %s1073 = smul.addr %s1072, 4
      %s1074 = scalar_lea.vmem %s183, %s1073
      %v1075 = vld [vmem:[%s1074] sm:$0xf]
      %v1076 = vld [vmem:[%s1074 + $0x4] sm:$0xf]
      %v1077 = vld [vmem:[%s1074 + $0x8] sm:$0xf]
      %v1078 = vld [vmem:[%s1074 + $0xc] sm:$0xf]
      %v1079 = vld [vmem:[%s1074 + $0x10] sm:$0xf]
      %v1080 = vld [vmem:[%s1074 + $0x14] sm:$0xf]
      %v1081 = vld [vmem:[%s1074 + $0x18] sm:$0xf]
      %v1082 = vld [vmem:[%s1074 + $0x1c] sm:$0xf]
      %v1083 = vld [vmem:[%s1074 + $0x20] sm:$0xf]
      %v1084 = vld [vmem:[%s1074 + $0x24] sm:$0xf]
      %v1085 = vld [vmem:[%s1074 + $0x28] sm:$0xf]
      %v1086 = vld [vmem:[%s1074 + $0x2c] sm:$0xf]
      %v1087 = vld [vmem:[%s1074 + $0x30] sm:$0xf]
      %v1088 = vld [vmem:[%s1074 + $0x34] sm:$0xf]
      %v1089 = vld [vmem:[%s1074 + $0x38] sm:$0xf]
      %v1090 = vld [vmem:[%s1074 + $0x3c] sm:$0xf]
      %s1091 = scalar_lea.vmem %s1, 160
      %v1092 = vld [vmem:[%s1091] sm:$0xf]
      %v1093 = vld [vmem:[%s1091 + $0x4] sm:$0xf]
      %v1094 = vld [vmem:[%s1091 + $0x8] sm:$0xf]
      %v1095 = vld [vmem:[%s1091 + $0xc] sm:$0xf]
      %v1096 = vld [vmem:[%s1091 + $0x10] sm:$0xf]
      %v1097 = vld [vmem:[%s1091 + $0x14] sm:$0xf]
      %v1098 = vld [vmem:[%s1091 + $0x18] sm:$0xf]
      %v1099 = vld [vmem:[%s1091 + $0x1c] sm:$0xf]
      %v1116 = vunpack.c.l.b16 %v1075
      %v1117 = vunpack.c.l.b16 %v1076
      %v1118 = vunpack.c.l.b16 %v1077
      %v1119 = vunpack.c.l.b16 %v1078
      %v1120 = vunpack.c.l.b16 %v1079
      %v1121 = vunpack.c.l.b16 %v1080
      %v1122 = vunpack.c.l.b16 %v1081
      %v1123 = vunpack.c.l.b16 %v1082
      %v1124 = vunpack.c.l.b16 %v1083
      %v1125 = vunpack.c.l.b16 %v1084
      %v1126 = vunpack.c.l.b16 %v1085
      %v1127 = vunpack.c.l.b16 %v1086
      %v1128 = vunpack.c.l.b16 %v1087
      %v1129 = vunpack.c.l.b16 %v1088
      %v1130 = vunpack.c.l.b16 %v1089
      %v1131 = vunpack.c.l.b16 %v1090
      %v1132 = vpack.c.b16 %v1117, %v1116
      %v1133 = vpack.c.b16 %v1119, %v1118
      %v1134 = vpack.c.b16 %v1121, %v1120
      %v1135 = vpack.c.b16 %v1123, %v1122
      %v1136 = vpack.c.b16 %v1125, %v1124
      %v1137 = vpack.c.b16 %v1127, %v1126
      %v1138 = vpack.c.b16 %v1129, %v1128
      %v1139 = vpack.c.b16 %v1131, %v1130
      %v1148 = vunpack.c.l.b16 %v1092
      %v1149 = vunpack.c.l.b16 %v1093
      %v1150 = vunpack.c.l.b16 %v1094
      %v1151 = vunpack.c.l.b16 %v1095
      %v1152 = vunpack.c.l.b16 %v1096
      %v1153 = vunpack.c.l.b16 %v1097
      %v1154 = vunpack.c.l.b16 %v1098
      %v1155 = vunpack.c.l.b16 %v1099
      %v1156 = vpack.c.b16 %v1149, %v1148
      %v1157 = vpack.c.b16 %v1151, %v1150
      %v1158 = vpack.c.b16 %v1153, %v1152
      %v1159 = vpack.c.b16 %v1155, %v1154
      %v1165 = vsel %vm316, %v1132, 0
      %v1168 = vsel %vm316, %v1133, 0
      %v1171 = vsel %vm316, %v1134, 0
      %v1174 = vsel %vm316, %v1135, 0
      %v1177 = vsel %vm316, %v1136, 0
      %v1180 = vsel %vm316, %v1137, 0
      %v1183 = vsel %vm316, %v1138, 0
      %v1186 = vsel %vm316, %v1139, 0
      %1188 = vmatpush.bf16.msra.mxu0 0
      %1189 = vmatpush.bf16.msra.mxu0 0
      %1190 = vmatpush.bf16.msra.mxu0 0
      %1191 = vmatpush.bf16.msra.mxu0 0
      %1192 = vmatpush.bf16.msra.mxu0 %v1159
      %1193 = vmatpush.bf16.msra.mxu0 %v1158
      %1194 = vmatpush.bf16.msra.mxu0 %v1157
      %1195 = vmatpush.bf16.msra.mxu0 %v1156
      %1196 = vmatmul.bf16.gmra.mxu0 %v1165
      %v1197 = vpop.f32.mrf.mxu0
      %v1198 = vadd.f32 0.0, %v1197
      %v1199 = vpop.f32.mrf.mxu0
      %v1200 = vadd.f32 0.0, %v1199
      %1201 = vmatmul.bf16.gmra.mxu0 %v1168
      %v1202 = vpop.f32.mrf.mxu0
      %v1203 = vadd.f32 0.0, %v1202
      %v1204 = vpop.f32.mrf.mxu0
      %v1205 = vadd.f32 0.0, %v1204
      %1206 = vmatmul.bf16.gmra.mxu0 %v1171
      %v1207 = vpop.f32.mrf.mxu0
      %v1208 = vadd.f32 0.0, %v1207
      %v1209 = vpop.f32.mrf.mxu0
      %v1210 = vadd.f32 0.0, %v1209
      %1211 = vmatmul.bf16.gmra.mxu0 %v1174
      %v1212 = vpop.f32.mrf.mxu0
      %v1213 = vadd.f32 0.0, %v1212
      %v1214 = vpop.f32.mrf.mxu0
      %v1215 = vadd.f32 0.0, %v1214
      %1216 = vmatmul.bf16.gmra.mxu0 %v1177
      %v1217 = vpop.f32.mrf.mxu0
      %v1218 = vadd.f32 0.0, %v1217
      %v1219 = vpop.f32.mrf.mxu0
      %v1220 = vadd.f32 0.0, %v1219
      %1221 = vmatmul.bf16.gmra.mxu0 %v1180
      %v1222 = vpop.f32.mrf.mxu0
      %v1223 = vadd.f32 0.0, %v1222
      %v1224 = vpop.f32.mrf.mxu0
      %v1225 = vadd.f32 0.0, %v1224
      %1226 = vmatmul.bf16.gmra.mxu0 %v1183
      %v1227 = vpop.f32.mrf.mxu0
      %v1228 = vadd.f32 0.0, %v1227
      %v1229 = vpop.f32.mrf.mxu0
      %v1230 = vadd.f32 0.0, %v1229
      %1231 = vmatmul.bf16.gmra.mxu0 %v1186
      %v1232 = vpop.f32.mrf.mxu0
      %v1233 = vadd.f32 0.0, %v1232
      %v1234 = vpop.f32.mrf.mxu0
      %v1235 = vadd.f32 0.0, %v1234
      %1236 = vdwg.mxu0
      %v1237 = vadd.f32 %v1056, %v1198
      %v1238 = vadd.f32 %v1057, %v1200
      %v1239 = vadd.f32 %v1058, %v1203
      %v1240 = vadd.f32 %v1059, %v1205
      %v1241 = vadd.f32 %v1060, %v1208
      %v1242 = vadd.f32 %v1061, %v1210
      %v1243 = vadd.f32 %v1062, %v1213
      %v1244 = vadd.f32 %v1063, %v1215
      %v1245 = vadd.f32 %v1064, %v1218
      %v1246 = vadd.f32 %v1065, %v1220
      %v1247 = vadd.f32 %v1066, %v1223
      %v1248 = vadd.f32 %v1067, %v1225
      %v1249 = vadd.f32 %v1068, %v1228
      %v1250 = vadd.f32 %v1069, %v1230
      %v1251 = vadd.f32 %v1070, %v1233
      %v1252 = vadd.f32 %v1071, %v1235
      %s1253 = sadd.s32 %s195, 32
      %s1254 = sshra.s32 %s1253, 3
      %s1255 = sand.u32 %s1253, 7
      %s1256 = smul.addr %s1254, 4
      %s1257 = scalar_lea.vmem %s183, %s1256
      %v1258 = vld [vmem:[%s1257] sm:$0xf]
      %v1259 = vld [vmem:[%s1257 + $0x4] sm:$0xf]
      %v1260 = vld [vmem:[%s1257 + $0x8] sm:$0xf]
      %v1261 = vld [vmem:[%s1257 + $0xc] sm:$0xf]
      %v1262 = vld [vmem:[%s1257 + $0x10] sm:$0xf]
      %v1263 = vld [vmem:[%s1257 + $0x14] sm:$0xf]
      %v1264 = vld [vmem:[%s1257 + $0x18] sm:$0xf]
      %v1265 = vld [vmem:[%s1257 + $0x1c] sm:$0xf]
      %v1266 = vld [vmem:[%s1257 + $0x20] sm:$0xf]
      %v1267 = vld [vmem:[%s1257 + $0x24] sm:$0xf]
      %v1268 = vld [vmem:[%s1257 + $0x28] sm:$0xf]
      %v1269 = vld [vmem:[%s1257 + $0x2c] sm:$0xf]
      %v1270 = vld [vmem:[%s1257 + $0x30] sm:$0xf]
      %v1271 = vld [vmem:[%s1257 + $0x34] sm:$0xf]
      %v1272 = vld [vmem:[%s1257 + $0x38] sm:$0xf]
      %v1273 = vld [vmem:[%s1257 + $0x3c] sm:$0xf]
      %s1274 = scalar_lea.vmem %s1, 192
      %v1275 = vld [vmem:[%s1274] sm:$0xf]
      %v1276 = vld [vmem:[%s1274 + $0x4] sm:$0xf]
      %v1277 = vld [vmem:[%s1274 + $0x8] sm:$0xf]
      %v1278 = vld [vmem:[%s1274 + $0xc] sm:$0xf]
      %v1279 = vld [vmem:[%s1274 + $0x10] sm:$0xf]
      %v1280 = vld [vmem:[%s1274 + $0x14] sm:$0xf]
      %v1281 = vld [vmem:[%s1274 + $0x18] sm:$0xf]
      %v1282 = vld [vmem:[%s1274 + $0x1c] sm:$0xf]
      %v1299 = vunpack.c.l.b16 %v1258
      %v1300 = vunpack.c.l.b16 %v1259
      %v1301 = vunpack.c.l.b16 %v1260
      %v1302 = vunpack.c.l.b16 %v1261
      %v1303 = vunpack.c.l.b16 %v1262
      %v1304 = vunpack.c.l.b16 %v1263
      %v1305 = vunpack.c.l.b16 %v1264
      %v1306 = vunpack.c.l.b16 %v1265
      %v1307 = vunpack.c.l.b16 %v1266
      %v1308 = vunpack.c.l.b16 %v1267
      %v1309 = vunpack.c.l.b16 %v1268
      %v1310 = vunpack.c.l.b16 %v1269
      %v1311 = vunpack.c.l.b16 %v1270
      %v1312 = vunpack.c.l.b16 %v1271
      %v1313 = vunpack.c.l.b16 %v1272
      %v1314 = vunpack.c.l.b16 %v1273
      %v1315 = vpack.c.b16 %v1300, %v1299
      %v1316 = vpack.c.b16 %v1302, %v1301
      %v1317 = vpack.c.b16 %v1304, %v1303
      %v1318 = vpack.c.b16 %v1306, %v1305
      %v1319 = vpack.c.b16 %v1308, %v1307
      %v1320 = vpack.c.b16 %v1310, %v1309
      %v1321 = vpack.c.b16 %v1312, %v1311
      %v1322 = vpack.c.b16 %v1314, %v1313
      %v1331 = vunpack.c.l.b16 %v1275
      %v1332 = vunpack.c.l.b16 %v1276
      %v1333 = vunpack.c.l.b16 %v1277
      %v1334 = vunpack.c.l.b16 %v1278
      %v1335 = vunpack.c.l.b16 %v1279
      %v1336 = vunpack.c.l.b16 %v1280
      %v1337 = vunpack.c.l.b16 %v1281
      %v1338 = vunpack.c.l.b16 %v1282
      %v1339 = vpack.c.b16 %v1332, %v1331
      %v1340 = vpack.c.b16 %v1334, %v1333
      %v1341 = vpack.c.b16 %v1336, %v1335
      %v1342 = vpack.c.b16 %v1338, %v1337
      %v1348 = vsel %vm316, %v1315, 0
      %v1351 = vsel %vm316, %v1316, 0
      %v1354 = vsel %vm316, %v1317, 0
      %v1357 = vsel %vm316, %v1318, 0
      %v1360 = vsel %vm316, %v1319, 0
      %v1363 = vsel %vm316, %v1320, 0
      %v1366 = vsel %vm316, %v1321, 0
      %v1369 = vsel %vm316, %v1322, 0
      %1371 = vmatpush.bf16.msra.mxu0 0
      %1372 = vmatpush.bf16.msra.mxu0 0
      %1373 = vmatpush.bf16.msra.mxu0 0
      %1374 = vmatpush.bf16.msra.mxu0 0
      %1375 = vmatpush.bf16.msra.mxu0 %v1342
      %1376 = vmatpush.bf16.msra.mxu0 %v1341
      %1377 = vmatpush.bf16.msra.mxu0 %v1340
      %1378 = vmatpush.bf16.msra.mxu0 %v1339
      %1379 = vmatmul.bf16.gmra.mxu0 %v1348
      %v1380 = vpop.f32.mrf.mxu0
      %v1381 = vadd.f32 0.0, %v1380
      %v1382 = vpop.f32.mrf.mxu0
      %v1383 = vadd.f32 0.0, %v1382
      %1384 = vmatmul.bf16.gmra.mxu0 %v1351
      %v1385 = vpop.f32.mrf.mxu0
      %v1386 = vadd.f32 0.0, %v1385
      %v1387 = vpop.f32.mrf.mxu0
      %v1388 = vadd.f32 0.0, %v1387
      %1389 = vmatmul.bf16.gmra.mxu0 %v1354
      %v1390 = vpop.f32.mrf.mxu0
      %v1391 = vadd.f32 0.0, %v1390
      %v1392 = vpop.f32.mrf.mxu0
      %v1393 = vadd.f32 0.0, %v1392
      %1394 = vmatmul.bf16.gmra.mxu0 %v1357
      %v1395 = vpop.f32.mrf.mxu0
      %v1396 = vadd.f32 0.0, %v1395
      %v1397 = vpop.f32.mrf.mxu0
      %v1398 = vadd.f32 0.0, %v1397
      %1399 = vmatmul.bf16.gmra.mxu0 %v1360
      %v1400 = vpop.f32.mrf.mxu0
      %v1401 = vadd.f32 0.0, %v1400
      %v1402 = vpop.f32.mrf.mxu0
      %v1403 = vadd.f32 0.0, %v1402
      %1404 = vmatmul.bf16.gmra.mxu0 %v1363
      %v1405 = vpop.f32.mrf.mxu0
      %v1406 = vadd.f32 0.0, %v1405
      %v1407 = vpop.f32.mrf.mxu0
      %v1408 = vadd.f32 0.0, %v1407
      %1409 = vmatmul.bf16.gmra.mxu0 %v1366
      %v1410 = vpop.f32.mrf.mxu0
      %v1411 = vadd.f32 0.0, %v1410
      %v1412 = vpop.f32.mrf.mxu0
      %v1413 = vadd.f32 0.0, %v1412
      %1414 = vmatmul.bf16.gmra.mxu0 %v1369
      %v1415 = vpop.f32.mrf.mxu0
      %v1416 = vadd.f32 0.0, %v1415
      %v1417 = vpop.f32.mrf.mxu0
      %v1418 = vadd.f32 0.0, %v1417
      %1419 = vdwg.mxu0
      %v1420 = vadd.f32 %v1237, %v1381
      %v1421 = vadd.f32 %v1238, %v1383
      %v1422 = vadd.f32 %v1239, %v1386
      %v1423 = vadd.f32 %v1240, %v1388
      %v1424 = vadd.f32 %v1241, %v1391
      %v1425 = vadd.f32 %v1242, %v1393
      %v1426 = vadd.f32 %v1243, %v1396
      %v1427 = vadd.f32 %v1244, %v1398
      %v1428 = vadd.f32 %v1245, %v1401
      %v1429 = vadd.f32 %v1246, %v1403
      %v1430 = vadd.f32 %v1247, %v1406
      %v1431 = vadd.f32 %v1248, %v1408
      %v1432 = vadd.f32 %v1249, %v1411
      %v1433 = vadd.f32 %v1250, %v1413
      %v1434 = vadd.f32 %v1251, %v1416
      %v1435 = vadd.f32 %v1252, %v1418
      %s1436 = sadd.s32 %s1254, 36
      %s1437 = smul.addr %s1436, 4
      %s1438 = scalar_lea.vmem %s183, %s1437
      %v1439 = vld [vmem:[%s1438] sm:$0xf]
      %v1440 = vld [vmem:[%s1438 + $0x4] sm:$0xf]
      %v1441 = vld [vmem:[%s1438 + $0x8] sm:$0xf]
      %v1442 = vld [vmem:[%s1438 + $0xc] sm:$0xf]
      %v1443 = vld [vmem:[%s1438 + $0x10] sm:$0xf]
      %v1444 = vld [vmem:[%s1438 + $0x14] sm:$0xf]
      %v1445 = vld [vmem:[%s1438 + $0x18] sm:$0xf]
      %v1446 = vld [vmem:[%s1438 + $0x1c] sm:$0xf]
      %v1447 = vld [vmem:[%s1438 + $0x20] sm:$0xf]
      %v1448 = vld [vmem:[%s1438 + $0x24] sm:$0xf]
      %v1449 = vld [vmem:[%s1438 + $0x28] sm:$0xf]
      %v1450 = vld [vmem:[%s1438 + $0x2c] sm:$0xf]
      %v1451 = vld [vmem:[%s1438 + $0x30] sm:$0xf]
      %v1452 = vld [vmem:[%s1438 + $0x34] sm:$0xf]
      %v1453 = vld [vmem:[%s1438 + $0x38] sm:$0xf]
      %v1454 = vld [vmem:[%s1438 + $0x3c] sm:$0xf]
      %s1455 = scalar_lea.vmem %s1, 224
      %v1456 = vld [vmem:[%s1455] sm:$0xf]
      %v1457 = vld [vmem:[%s1455 + $0x4] sm:$0xf]
      %v1458 = vld [vmem:[%s1455 + $0x8] sm:$0xf]
      %v1459 = vld [vmem:[%s1455 + $0xc] sm:$0xf]
      %v1460 = vld [vmem:[%s1455 + $0x10] sm:$0xf]
      %v1461 = vld [vmem:[%s1455 + $0x14] sm:$0xf]
      %v1462 = vld [vmem:[%s1455 + $0x18] sm:$0xf]
      %v1463 = vld [vmem:[%s1455 + $0x1c] sm:$0xf]
      %v1480 = vunpack.c.l.b16 %v1439
      %v1481 = vunpack.c.l.b16 %v1440
      %v1482 = vunpack.c.l.b16 %v1441
      %v1483 = vunpack.c.l.b16 %v1442
      %v1484 = vunpack.c.l.b16 %v1443
      %v1485 = vunpack.c.l.b16 %v1444
      %v1486 = vunpack.c.l.b16 %v1445
      %v1487 = vunpack.c.l.b16 %v1446
      %v1488 = vunpack.c.l.b16 %v1447
      %v1489 = vunpack.c.l.b16 %v1448
      %v1490 = vunpack.c.l.b16 %v1449
      %v1491 = vunpack.c.l.b16 %v1450
      %v1492 = vunpack.c.l.b16 %v1451
      %v1493 = vunpack.c.l.b16 %v1452
      %v1494 = vunpack.c.l.b16 %v1453
      %v1495 = vunpack.c.l.b16 %v1454
      %v1496 = vpack.c.b16 %v1481, %v1480
      %v1497 = vpack.c.b16 %v1483, %v1482
      %v1498 = vpack.c.b16 %v1485, %v1484
      %v1499 = vpack.c.b16 %v1487, %v1486
      %v1500 = vpack.c.b16 %v1489, %v1488
      %v1501 = vpack.c.b16 %v1491, %v1490
      %v1502 = vpack.c.b16 %v1493, %v1492
      %v1503 = vpack.c.b16 %v1495, %v1494
      %v1512 = vunpack.c.l.b16 %v1456
      %v1513 = vunpack.c.l.b16 %v1457
      %v1514 = vunpack.c.l.b16 %v1458
      %v1515 = vunpack.c.l.b16 %v1459
      %v1516 = vunpack.c.l.b16 %v1460
      %v1517 = vunpack.c.l.b16 %v1461
      %v1518 = vunpack.c.l.b16 %v1462
      %v1519 = vunpack.c.l.b16 %v1463
      %v1520 = vpack.c.b16 %v1513, %v1512
      %v1521 = vpack.c.b16 %v1515, %v1514
      %v1522 = vpack.c.b16 %v1517, %v1516
      %v1523 = vpack.c.b16 %v1519, %v1518
      %v1529 = vsel %vm316, %v1496, 0
      %v1532 = vsel %vm316, %v1497, 0
      %v1535 = vsel %vm316, %v1498, 0
      %v1538 = vsel %vm316, %v1499, 0
      %v1541 = vsel %vm316, %v1500, 0
      %v1544 = vsel %vm316, %v1501, 0
      %v1547 = vsel %vm316, %v1502, 0
      %v1550 = vsel %vm316, %v1503, 0
      %1552 = vmatpush.bf16.msra.mxu0 0
      %1553 = vmatpush.bf16.msra.mxu0 0
      %1554 = vmatpush.bf16.msra.mxu0 0
      %1555 = vmatpush.bf16.msra.mxu0 0
      %1556 = vmatpush.bf16.msra.mxu0 %v1523
      %1557 = vmatpush.bf16.msra.mxu0 %v1522
      %1558 = vmatpush.bf16.msra.mxu0 %v1521
      %1559 = vmatpush.bf16.msra.mxu0 %v1520
      %1560 = vmatmul.bf16.gmra.mxu0 %v1529
      %v1561 = vpop.f32.mrf.mxu0
      %v1562 = vadd.f32 0.0, %v1561
      %v1563 = vpop.f32.mrf.mxu0
      %v1564 = vadd.f32 0.0, %v1563
      %1565 = vmatmul.bf16.gmra.mxu0 %v1532
      %v1566 = vpop.f32.mrf.mxu0
      %v1567 = vadd.f32 0.0, %v1566
      %v1568 = vpop.f32.mrf.mxu0
      %v1569 = vadd.f32 0.0, %v1568
      %1570 = vmatmul.bf16.gmra.mxu0 %v1535
      %v1571 = vpop.f32.mrf.mxu0
      %v1572 = vadd.f32 0.0, %v1571
      %v1573 = vpop.f32.mrf.mxu0
      %v1574 = vadd.f32 0.0, %v1573
      %1575 = vmatmul.bf16.gmra.mxu0 %v1538
      %v1576 = vpop.f32.mrf.mxu0
      %v1577 = vadd.f32 0.0, %v1576
      %v1578 = vpop.f32.mrf.mxu0
      %v1579 = vadd.f32 0.0, %v1578
      %1580 = vmatmul.bf16.gmra.mxu0 %v1541
      %v1581 = vpop.f32.mrf.mxu0
      %v1582 = vadd.f32 0.0, %v1581
      %v1583 = vpop.f32.mrf.mxu0
      %v1584 = vadd.f32 0.0, %v1583
      %1585 = vmatmul.bf16.gmra.mxu0 %v1544
      %v1586 = vpop.f32.mrf.mxu0
      %v1587 = vadd.f32 0.0, %v1586
      %v1588 = vpop.f32.mrf.mxu0
      %v1589 = vadd.f32 0.0, %v1588
      %1590 = vmatmul.bf16.gmra.mxu0 %v1547
      %v1591 = vpop.f32.mrf.mxu0
      %v1592 = vadd.f32 0.0, %v1591
      %v1593 = vpop.f32.mrf.mxu0
      %v1594 = vadd.f32 0.0, %v1593
      %1595 = vmatmul.bf16.gmra.mxu0 %v1550
      %v1596 = vpop.f32.mrf.mxu0
      %v1597 = vadd.f32 0.0, %v1596
      %v1598 = vpop.f32.mrf.mxu0
      %v1599 = vadd.f32 0.0, %v1598
      %1600 = vdwg.mxu0
      %v1601 = vadd.f32 %v1420, %v1562
      %v1602 = vadd.f32 %v1421, %v1564
      %v1603 = vadd.f32 %v1422, %v1567
      %v1604 = vadd.f32 %v1423, %v1569
      %v1605 = vadd.f32 %v1424, %v1572
      %v1606 = vadd.f32 %v1425, %v1574
      %v1607 = vadd.f32 %v1426, %v1577
      %v1608 = vadd.f32 %v1427, %v1579
      %v1609 = vadd.f32 %v1428, %v1582
      %v1610 = vadd.f32 %v1429, %v1584
      %v1611 = vadd.f32 %v1430, %v1587
      %v1612 = vadd.f32 %v1431, %v1589
      %v1613 = vadd.f32 %v1432, %v1592
      %v1614 = vadd.f32 %v1433, %v1594
      %v1615 = vadd.f32 %v1434, %v1597
      %v1616 = vadd.f32 %v1435, %v1599
      %s1617 = sadd.s32 %s1254, 72
      %s1618 = smul.addr %s1617, 4
      %s1619 = scalar_lea.vmem %s183, %s1618
      %v1620 = vld [vmem:[%s1619] sm:$0xf]
      %v1621 = vld [vmem:[%s1619 + $0x4] sm:$0xf]
      %v1622 = vld [vmem:[%s1619 + $0x8] sm:$0xf]
      %v1623 = vld [vmem:[%s1619 + $0xc] sm:$0xf]
      %v1624 = vld [vmem:[%s1619 + $0x10] sm:$0xf]
      %v1625 = vld [vmem:[%s1619 + $0x14] sm:$0xf]
      %v1626 = vld [vmem:[%s1619 + $0x18] sm:$0xf]
      %v1627 = vld [vmem:[%s1619 + $0x1c] sm:$0xf]
      %v1628 = vld [vmem:[%s1619 + $0x20] sm:$0xf]
      %v1629 = vld [vmem:[%s1619 + $0x24] sm:$0xf]
      %v1630 = vld [vmem:[%s1619 + $0x28] sm:$0xf]
      %v1631 = vld [vmem:[%s1619 + $0x2c] sm:$0xf]
      %v1632 = vld [vmem:[%s1619 + $0x30] sm:$0xf]
      %v1633 = vld [vmem:[%s1619 + $0x34] sm:$0xf]
      %v1634 = vld [vmem:[%s1619 + $0x38] sm:$0xf]
      %v1635 = vld [vmem:[%s1619 + $0x3c] sm:$0xf]
      %s1636 = scalar_lea.vmem %s1, 256
      %v1637 = vld [vmem:[%s1636] sm:$0xf]
      %v1638 = vld [vmem:[%s1636 + $0x4] sm:$0xf]
      %v1639 = vld [vmem:[%s1636 + $0x8] sm:$0xf]
      %v1640 = vld [vmem:[%s1636 + $0xc] sm:$0xf]
      %v1641 = vld [vmem:[%s1636 + $0x10] sm:$0xf]
      %v1642 = vld [vmem:[%s1636 + $0x14] sm:$0xf]
      %v1643 = vld [vmem:[%s1636 + $0x18] sm:$0xf]
      %v1644 = vld [vmem:[%s1636 + $0x1c] sm:$0xf]
      %v1661 = vunpack.c.l.b16 %v1620
      %v1662 = vunpack.c.l.b16 %v1621
      %v1663 = vunpack.c.l.b16 %v1622
      %v1664 = vunpack.c.l.b16 %v1623
      %v1665 = vunpack.c.l.b16 %v1624
      %v1666 = vunpack.c.l.b16 %v1625
      %v1667 = vunpack.c.l.b16 %v1626
      %v1668 = vunpack.c.l.b16 %v1627
      %v1669 = vunpack.c.l.b16 %v1628
      %v1670 = vunpack.c.l.b16 %v1629
      %v1671 = vunpack.c.l.b16 %v1630
      %v1672 = vunpack.c.l.b16 %v1631
      %v1673 = vunpack.c.l.b16 %v1632
      %v1674 = vunpack.c.l.b16 %v1633
      %v1675 = vunpack.c.l.b16 %v1634
      %v1676 = vunpack.c.l.b16 %v1635
      %v1677 = vpack.c.b16 %v1662, %v1661
      %v1678 = vpack.c.b16 %v1664, %v1663
      %v1679 = vpack.c.b16 %v1666, %v1665
      %v1680 = vpack.c.b16 %v1668, %v1667
      %v1681 = vpack.c.b16 %v1670, %v1669
      %v1682 = vpack.c.b16 %v1672, %v1671
      %v1683 = vpack.c.b16 %v1674, %v1673
      %v1684 = vpack.c.b16 %v1676, %v1675
      %v1693 = vunpack.c.l.b16 %v1637
      %v1694 = vunpack.c.l.b16 %v1638
      %v1695 = vunpack.c.l.b16 %v1639
      %v1696 = vunpack.c.l.b16 %v1640
      %v1697 = vunpack.c.l.b16 %v1641
      %v1698 = vunpack.c.l.b16 %v1642
      %v1699 = vunpack.c.l.b16 %v1643
      %v1700 = vunpack.c.l.b16 %v1644
      %v1701 = vpack.c.b16 %v1694, %v1693
      %v1702 = vpack.c.b16 %v1696, %v1695
      %v1703 = vpack.c.b16 %v1698, %v1697
      %v1704 = vpack.c.b16 %v1700, %v1699
      %v1710 = vsel %vm316, %v1677, 0
      %v1713 = vsel %vm316, %v1678, 0
      %v1716 = vsel %vm316, %v1679, 0
      %v1719 = vsel %vm316, %v1680, 0
      %v1722 = vsel %vm316, %v1681, 0
      %v1725 = vsel %vm316, %v1682, 0
      %v1728 = vsel %vm316, %v1683, 0
      %v1731 = vsel %vm316, %v1684, 0
      %1733 = vmatpush.bf16.msra.mxu0 0
      %1734 = vmatpush.bf16.msra.mxu0 0
      %1735 = vmatpush.bf16.msra.mxu0 0
      %1736 = vmatpush.bf16.msra.mxu0 0
      %1737 = vmatpush.bf16.msra.mxu0 %v1704
      %1738 = vmatpush.bf16.msra.mxu0 %v1703
      %1739 = vmatpush.bf16.msra.mxu0 %v1702
      %1740 = vmatpush.bf16.msra.mxu0 %v1701
      %1741 = vmatmul.bf16.gmra.mxu0 %v1710
      %v1742 = vpop.f32.mrf.mxu0
      %v1743 = vadd.f32 0.0, %v1742
      %v1744 = vpop.f32.mrf.mxu0
      %v1745 = vadd.f32 0.0, %v1744
      %1746 = vmatmul.bf16.gmra.mxu0 %v1713
      %v1747 = vpop.f32.mrf.mxu0
      %v1748 = vadd.f32 0.0, %v1747
      %v1749 = vpop.f32.mrf.mxu0
      %v1750 = vadd.f32 0.0, %v1749
      %1751 = vmatmul.bf16.gmra.mxu0 %v1716
      %v1752 = vpop.f32.mrf.mxu0
      %v1753 = vadd.f32 0.0, %v1752
      %v1754 = vpop.f32.mrf.mxu0
      %v1755 = vadd.f32 0.0, %v1754
      %1756 = vmatmul.bf16.gmra.mxu0 %v1719
      %v1757 = vpop.f32.mrf.mxu0
      %v1758 = vadd.f32 0.0, %v1757
      %v1759 = vpop.f32.mrf.mxu0
      %v1760 = vadd.f32 0.0, %v1759
      %1761 = vmatmul.bf16.gmra.mxu0 %v1722
      %v1762 = vpop.f32.mrf.mxu0
      %v1763 = vadd.f32 0.0, %v1762
      %v1764 = vpop.f32.mrf.mxu0
      %v1765 = vadd.f32 0.0, %v1764
      %1766 = vmatmul.bf16.gmra.mxu0 %v1725
      %v1767 = vpop.f32.mrf.mxu0
      %v1768 = vadd.f32 0.0, %v1767
      %v1769 = vpop.f32.mrf.mxu0
      %v1770 = vadd.f32 0.0, %v1769
      %1771 = vmatmul.bf16.gmra.mxu0 %v1728
      %v1772 = vpop.f32.mrf.mxu0
      %v1773 = vadd.f32 0.0, %v1772
      %v1774 = vpop.f32.mrf.mxu0
      %v1775 = vadd.f32 0.0, %v1774
      %1776 = vmatmul.bf16.gmra.mxu0 %v1731
      %v1777 = vpop.f32.mrf.mxu0
      %v1778 = vadd.f32 0.0, %v1777
      %v1779 = vpop.f32.mrf.mxu0
      %v1780 = vadd.f32 0.0, %v1779
      %1781 = vdwg.mxu0
      %v1782 = vadd.f32 %v1601, %v1743
      %v1783 = vadd.f32 %v1602, %v1745
      %v1784 = vadd.f32 %v1603, %v1748
      %v1785 = vadd.f32 %v1604, %v1750
      %v1786 = vadd.f32 %v1605, %v1753
      %v1787 = vadd.f32 %v1606, %v1755
      %v1788 = vadd.f32 %v1607, %v1758
      %v1789 = vadd.f32 %v1608, %v1760
      %v1790 = vadd.f32 %v1609, %v1763
      %v1791 = vadd.f32 %v1610, %v1765
      %v1792 = vadd.f32 %v1611, %v1768
      %v1793 = vadd.f32 %v1612, %v1770
      %v1794 = vadd.f32 %v1613, %v1773
      %v1795 = vadd.f32 %v1614, %v1775
      %v1796 = vadd.f32 %v1615, %v1778
      %v1797 = vadd.f32 %v1616, %v1780
      %v1798 = vld [vmem:[%s2] sm:$0x1]
      %v1800 = vperm.slane %v1798, 0
      %v1802 = vadd.f32 %v1782, %v1800
      %v1803 = vadd.f32 %v1783, %v1800
      %v1804 = vadd.f32 %v1784, %v1800
      %v1805 = vadd.f32 %v1785, %v1800
      %v1806 = vadd.f32 %v1786, %v1800
      %v1807 = vadd.f32 %v1787, %v1800
      %v1808 = vadd.f32 %v1788, %v1800
      %v1809 = vadd.f32 %v1789, %v1800
      %v1810 = vadd.f32 %v1790, %v1800
      %v1811 = vadd.f32 %v1791, %v1800
      %v1812 = vadd.f32 %v1792, %v1800
      %v1813 = vadd.f32 %v1793, %v1800
      %v1814 = vadd.f32 %v1794, %v1800
      %v1815 = vadd.f32 %v1795, %v1800
      %v1816 = vadd.f32 %v1796, %v1800
      %v1817 = vadd.f32 %v1797, %v1800
      %v1818 = vtanh.pop %v1802
      %v1819 = vtanh.pop %v1803
      %v1820 = vtanh.pop %v1804
      %v1821 = vtanh.pop %v1805
      %v1822 = vtanh.pop %v1806
      %v1823 = vtanh.pop %v1807
      %v1824 = vtanh.pop %v1808
      %v1825 = vtanh.pop %v1809
      %v1826 = vtanh.pop %v1810
      %v1827 = vtanh.pop %v1811
      %v1828 = vtanh.pop %v1812
      %v1829 = vtanh.pop %v1813
      %v1830 = vtanh.pop %v1814
      %v1831 = vtanh.pop %v1815
      %v1832 = vtanh.pop %v1816
      %v1833 = vtanh.pop %v1817
      %1834 = vst [vmem:[%s192] sm:$0xff] %v1818
      %1835 = vst [vmem:[%s192 + $0x8] sm:$0xff] %v1819
      %1836 = vst [vmem:[%s192 + $0x10] sm:$0xff] %v1820
      %1837 = vst [vmem:[%s192 + $0x18] sm:$0xff] %v1821
      %1838 = vst [vmem:[%s192 + $0x20] sm:$0xff] %v1822
      %1839 = vst [vmem:[%s192 + $0x28] sm:$0xff] %v1823
      %1840 = vst [vmem:[%s192 + $0x30] sm:$0xff] %v1824
      %1841 = vst [vmem:[%s192 + $0x38] sm:$0xff] %v1825
      %1842 = vst [vmem:[%s192 + $0x40] sm:$0xff] %v1826
      %1843 = vst [vmem:[%s192 + $0x48] sm:$0xff] %v1827
      %1844 = vst [vmem:[%s192 + $0x50] sm:$0xff] %v1828
      %1845 = vst [vmem:[%s192 + $0x58] sm:$0xff] %v1829
      %1846 = vst [vmem:[%s192 + $0x60] sm:$0xff] %v1830
      %1847 = vst [vmem:[%s192 + $0x68] sm:$0xff] %v1831
      %1848 = vst [vmem:[%s192 + $0x70] sm:$0xff] %v1832
      %1849 = vst [vmem:[%s192 + $0x78] sm:$0xff] %v1833
      %s1850 = smul.u32 16, %s19
      %p1851 = scmp.lt.s32.totalorder %s18, 1
      %s1852 = scalar_select %p1851, %s18, 1
      %p1853 = scmp.lt.s32.totalorder %s1850, 31
      %s1854 = scalar_select %p1853, %s1850, 31
      %s1855 = smul.addr %s1852, 32
      %s1856 = sadd.s32 %s1854, %s1855
      %s1857 = smul.addr %s1856, 8
      %s1858 = scalar_lea.vmem %s3, %s1857
      // Predicated region
      $region33: #{_details_net_forward.17} parent=31 // pred_check
        %p1859 = pneg %p114
      $region34: #{_details_net_forward.17} parent=31 // pred_check_branch
        %1861 = sbr.rel (%p1859) target = $region36
      $region35: #{_details_net_forward.17} parent=31 // pred_region
        %s1862 = smul.u32 16, %s19
      $region36: #{_details_net_forward.17} parent=31 // pred_fallthru
        _
    $region32: #{_details_net_forward.17} parent=5 // pred_fallthru
      _
    %p1863 = scmp.le.s32.totalorder 2, %s9
    // Predicated region
    $region37: #{_details_net_forward.17} parent=5 // pred_check
      %p1864 = pneg %p1863
    $region38: #{_details_net_forward.17} parent=5 // pred_check_branch
      %1866 = sbr.rel (%p1864) target = $region40
    $region39: #{_details_net_forward.17} parent=5 // pred_region
      %s1867 = ssub.s32 %s9, 2
      // Predicated region
      $region41: #{_details_net_forward.17} parent=39 // pred_check
        %p1868 = pneg %p120
      $region42: #{_details_net_forward.17} parent=39 // pred_check_branch
        %1870 = sbr.rel (%p1868) target = $region44
      $region43: #{_details_net_forward.17} parent=39 // pred_region
        %s1871 = smul.u32 16, %s21
        %p1872 = scmp.lt.s32.totalorder %s20, 1
        %s1873 = scalar_select %p1872, %s20, 1
        %p1874 = scmp.lt.s32.totalorder %s1871, 31
        %s1875 = scalar_select %p1874, %s1871, 31
        %s1876 = smul.addr %s1873, 32
        %s1877 = sadd.s32 %s1875, %s1876
        %s1878 = smul.addr %s1877, 8
        %s1879 = scalar_lea.vmem %s3, %s1878
      $region44: #{_details_net_forward.17} parent=39 // pred_fallthru
        _
    $region40: #{_details_net_forward.17} parent=5 // pred_fallthru
      _
  $region6: #{_details_net_forward.17} parent=0 // loop_footer
    %s13 = sadd.s32 1, %s9
  $region7: #{_details_net_forward.17} parent=0 // loop_footer_branch
    %8 = sbr.rel target = $region3
  $region8: #{_details_net_forward.17} parent=0 // loop_exit
    _

</llo_original>
